<compile_context>
chip_gen: v5e
topology: v5e:2x2
jax: 0.10.0
libtpu: 0.0.40
codegen_flags: <defaults>
</compile_context>

<pallas_src>
import functools

import jax
import jax.numpy as jnp
from jax import lax
from jax.experimental import pallas as pl
from jax.experimental.pallas import tpu as pltpu

LN_EPS = 1e-5  # torch.nn.LayerNorm default eps


def _layer_norm_last(v, gamma, beta):
    mu = jnp.mean(v, axis=-1, keepdims=True)
    var = jnp.mean((v - mu) ** 2, axis=-1, keepdims=True)
    return (v - mu) * lax.rsqrt(var + LN_EPS) * gamma + beta


def _recycle_z_kernel(first, inv_scales, cb_i_ref, cbT_j_ref, w_ref, b_ref, *rest):
    """One (ti, tj) tile of the recycled pair representation.

    first=True  refs: (cb_i, cbT_j, W, b, out)
    first=False refs: (cb_i, cbT_j, W, b, z, gz, bz, out)
    """
    if first:
        (out_ref,) = rest
    else:
        z_ref, gz_ref, bz_ref, out_ref = rest

    ti, tj, cz = out_ref.shape
    D = len(inv_scales)

    cb_i = cb_i_ref[...]    # (ti, 3)  row block of C-beta coords
    cbT_j = cbT_j_ref[...]  # (3, tj)  column block, residues on lanes

    # Pairwise distances via direct per-coordinate differences (exact f32,
    # lane-dense over tj; no catastrophic cancellation).
    d2 = ((cb_i[:, 0:1] - cbT_j[0:1, :]) ** 2
          + (cb_i[:, 1:2] - cbT_j[1:2, :]) ** 2
          + (cb_i[:, 2:3] - cbT_j[2:3, :]) ** 2)      # (ti, tj)
    d = jnp.sqrt(d2)                                  # (ti, tj)

    # Fourier features, evaluated lane-dense per scale (EUP on full 128-lane
    # maps), then assembled once into a (ti*tj, 2D+1) tile for the MXU.
    maps = []
    for inv in inv_scales:               # unrolled, D is small
        maps.append(jnp.sin(d * inv))
    for inv in inv_scales:
        maps.append(jnp.cos(d * inv))
    maps.append(d)
    feats = jnp.concatenate([f[:, :, None] for f in maps], axis=-1)  # (ti, tj, 2D+1)
    feats2d = feats.reshape(ti * tj, 2 * D + 1)

    # Single MXU matmul replaces the 2D+1 broadcast-FMA accumulator passes.
    # HIGHEST precision + f32 accumulation preserves the ~1e-6 reference match.
    lin2d = lax.dot_general(
        feats2d, w_ref[...],
        dimension_numbers=(((1,), (0,)), ((), ())),
        preferred_element_type=jnp.float32,
        precision=lax.Precision.HIGHEST,
    ) + b_ref[...]                                     # (ti*tj, Cz)

    if first:
        out_ref[...] = lin2d.reshape(ti, tj, cz).astype(out_ref.dtype)
    else:
        z2d = z_ref[...].reshape(ti * tj, cz)
        zn = _layer_norm_last(z2d, gz_ref[...], bz_ref[...])
        out_ref[...] = (zn + lin2d).reshape(ti, tj, cz).astype(out_ref.dtype)


def _norm_m_kernel(m_ref, g_ref, b_ref, out_ref):
    out_ref[...] = _layer_norm_last(m_ref[...], g_ref[...], b_ref[...]).astype(out_ref.dtype)


def recycling_embedder(m, z, x, first, params, *, ti=64, tj=128):
    """Forward pass of RecyclingEmbedder.

    ti/tj: row/column residue tile of the pair map.  (64, 128) keeps the
    column axis 128-lane-dense and fits v7x's 64 MiB VMEM at Cz=128 with
    double buffering; sweep up to (128, 128)/(256, 128) on v5e/v6e (the
    vmem limit below scales with the tile).
    """
    W = params["linear_w"]                    # (2D+1, z_dim)
    b = params["linear_b"]                    # (z_dim,)
    gz, bz = params["normz_w"], params["normz_b"]   # (z_dim,)
    gm, bm = params["normm_w"], params["normm_b"]   # (m_dim,)

    N = x.shape[0]
    D = (W.shape[0] - 1) // 2
    Cz = W.shape[1]
    first = bool(first)

    ti = min(ti, N)
    tj = min(tj, N)

    cb = x[:, -1].astype(jnp.float32)         # (N, 3)
    cbT = jnp.transpose(cb)                   # (3, N)  residues on lanes for column blocks

    # fourier scales baked as trace-time constants (exact powers of two).
    inv_scales = tuple(float(1.0 / (2.0 ** k)) for k in range(D))

    kernel = functools.partial(_recycle_z_kernel, first, inv_scales)

    tile_bytes = ti * tj * Cz * 4
    vmem_limit = int(min(96 * 1024 * 1024, max(48 * 1024 * 1024, 12 * tile_bytes)))

    in_specs = [
        pl.BlockSpec((ti, 3), lambda i, j: (i, 0)),             # cb row block
        pl.BlockSpec((3, tj), lambda i, j: (0, j)),             # cb^T column block
        pl.BlockSpec((2 * D + 1, Cz), lambda i, j: (0, 0)),     # linear weight
        pl.BlockSpec((1, Cz), lambda i, j: (0, 0)),             # linear bias
    ]
    args = [cb, cbT, W.astype(jnp.float32), b[None, :].astype(jnp.float32)]
    if not first:
        # z is only read (and DMA'd) when it is actually used.
        in_specs += [
            pl.BlockSpec((ti, tj, Cz), lambda i, j: (i, j, 0)),  # z tile
            pl.BlockSpec((1, Cz), lambda i, j: (0, 0)),          # normz gamma
            pl.BlockSpec((1, Cz), lambda i, j: (0, 0)),          # normz beta
        ]
        args += [z.astype(jnp.float32), gz[None, :].astype(jnp.float32),
                 bz[None, :].astype(jnp.float32)]

    out_z = pl.pallas_call(
        kernel,
        out_shape=jax.ShapeDtypeStruct((N, N, Cz), jnp.float32),
        grid_spec=pltpu.PrefetchScalarGridSpec(
            num_scalar_prefetch=0,
            grid=(pl.cdiv(N, ti), pl.cdiv(N, tj)),
            in_specs=in_specs,
            out_specs=pl.BlockSpec((ti, tj, Cz), lambda i, j: (i, j, 0)),
        ),
        compiler_params=pltpu.CompilerParams(
            dimension_semantics=("parallel", "parallel"),
            vmem_limit_bytes=vmem_limit,
        ),
    )(*args)

    if first:
        return 0, out_z   # module returns literal 0 for m on the first recycle

    # LayerNorm(m) over m_dim, flattened to (S*N, Cm) with multi-MiB 2-D blocks.
    S, _, Cm = m.shape
    rows = S * N
    mf = m.reshape(rows, Cm).astype(jnp.float32)
    if rows <= 4096:
        tr = rows                                    # full axis (no 8-divisibility needed)
    else:
        tr = max(8, min(rows, (4 * 1024 * 1024) // (4 * Cm)) // 8 * 8)

    out_m = pl.pallas_call(
        _norm_m_kernel,
        out_shape=jax.ShapeDtypeStruct((rows, Cm), jnp.float32),
        grid_spec=pltpu.PrefetchScalarGridSpec(
            num_scalar_prefetch=0,
            grid=(pl.cdiv(rows, tr),),
            in_specs=[
                pl.BlockSpec((tr, Cm), lambda s: (s, 0)),
                pl.BlockSpec((1, Cm), lambda s: (0, 0)),
                pl.BlockSpec((1, Cm), lambda s: (0, 0)),
            ],
            out_specs=pl.BlockSpec((tr, Cm), lambda s: (s, 0)),
        ),
        compiler_params=pltpu.CompilerParams(
            dimension_semantics=("parallel",),
            vmem_limit_bytes=64 * 1024 * 1024,
        ),
    )(mf, gm[None, :].astype(jnp.float32), bm[None, :].astype(jnp.float32))
    return out_m.reshape(S, N, Cm), out_z


def _reference(m, z, x, first, params, D):
    """Plain-JAX mirror of the PyTorch forward (full precision) for checking."""
    cb = x[:, -1]
    diff = cb[:, None, :] - cb[None, :, :]
    dismap = jnp.sqrt(jnp.sum(diff * diff, axis=-1))
    scales = 2.0 ** jnp.arange(D, dtype=jnp.float32)
    xd = dismap[..., None] / scales
    feats = jnp.concatenate([jnp.sin(xd), jnp.cos(xd), dismap[..., None]], axis=-1)
    lin = jnp.einsum("ijk,kc->ijc", feats, params["linear_w"],
                     precision=lax.Precision.HIGHEST) + params["linear_b"]
    if first:
        return 0, lin

    def ln(v, g, b_):
        mu = v.mean(-1, keepdims=True)
        var = ((v - mu) ** 2).mean(-1, keepdims=True)
        return (v - mu) / jnp.sqrt(var + LN_EPS) * g + b_

    out_m = ln(m, params["normm_w"], params["normm_b"])
    out_z = ln(z, params["normz_w"], params["normz_b"]) + lin
    return out_m, out_z


if __name__ == "__main__":
    # Small shapes consistent with the forward pass.
    S, N, A = 4, 16, 4            # n_seq, n_res, n_atoms
    m_dim, z_dim, D = 32, 32, 8   # dis_encoding_dim = 8

    key = jax.random.PRNGKey(0)
    ks = jax.random.split(key, 9)
    m = jax.random.normal(ks[0], (S, N, m_dim), jnp.float32)
    z = jax.random.normal(ks[1], (N, N, z_dim), jnp.float32)
    x = jax.random.normal(ks[2], (N, A, 3), jnp.float32)

    params = {
        "linear_w": jax.random.normal(ks[3], (2 * D + 1, z_dim), jnp.float32) * 0.1,
        "linear_b": jax.random.normal(ks[4], (z_dim,), jnp.float32) * 0.1,
        "normz_w": 1.0 + 0.1 * jax.random.normal(ks[5], (z_dim,), jnp.float32),
        "normz_b": 0.1 * jax.random.normal(ks[6], (z_dim,), jnp.float32),
        "normm_w": 1.0 + 0.1 * jax.random.normal(ks[7], (m_dim,), jnp.float32),
        "normm_b": 0.1 * jax.random.normal(ks[8], (m_dim,), jnp.float32),
    }

    # first = False branch
    out_m, out_z = recycling_embedder(m, z, x, False, params)
    out_m, out_z = jax.block_until_ready(out_m), jax.block_until_ready(out_z)
    ref_m, ref_z = _reference(m, z, x, False, params, D)
    assert jnp.allclose(out_m, ref_m, atol=1e-3, rtol=1e-3), "m mismatch"
    assert jnp.allclose(out_z, ref_z, atol=1e-3, rtol=1e-3), "z mismatch"

    # first = True branch
    fm, fz = recycling_embedder(m, z, x, True, params)
    fz = jax.block_until_ready(fz)
    _, ref_fz = _reference(m, z, x, True, params, D)
    assert fm == 0
    assert jnp.allclose(fz, ref_fz, atol=1e-3, rtol=1e-3), "first-z mismatch"

    print("KERNEL_OK")
</pallas_src>

<mosaic_0001>
module attributes {stable_mosaic.version = 11 : i64} {
  func.func @_recycle_z_kernel(%arg0: i32, %arg1: i32, %arg2: memref<16x3xf32, #tpu.memory_space<vmem>>, %arg3: memref<3x16xf32, #tpu.memory_space<vmem>>, %arg4: memref<17x32xf32, #tpu.memory_space<vmem>>, %arg5: memref<1x32xf32, #tpu.memory_space<vmem>>, %arg6: memref<16x16x32xf32, #tpu.memory_space<vmem>>, %arg7: memref<1x32xf32, #tpu.memory_space<vmem>>, %arg8: memref<1x32xf32, #tpu.memory_space<vmem>>, %arg9: memref<16x16x32xf32, #tpu.memory_space<vmem>>) attributes {dimension_semantics = [#tpu.dimension_semantics<parallel>, #tpu.dimension_semantics<parallel>], iteration_bounds = array<i64: 1, 1>, scalar_prefetch = 0 : i64, scratch_operands = 0 : i64, tpu.core_type = #tpu.core_type<tc>, window_params = [{transform_indices = @transform_0, window_bounds = array<i64: 16, 3>}, {transform_indices = @transform_1, window_bounds = array<i64: 3, 16>}, {pipeline_mode = #tpu.pipeline_mode<synchronous>, transform_indices = @transform_2, window_bounds = array<i64: 17, 32>}, {pipeline_mode = #tpu.pipeline_mode<synchronous>, transform_indices = @transform_3, window_bounds = array<i64: 1, 32>}, {transform_indices = @transform_4, window_bounds = array<i64: 16, 16, 32>}, {pipeline_mode = #tpu.pipeline_mode<synchronous>, transform_indices = @transform_5, window_bounds = array<i64: 1, 32>}, {pipeline_mode = #tpu.pipeline_mode<synchronous>, transform_indices = @transform_6, window_bounds = array<i64: 1, 32>}, {transform_indices = @transform_7, window_bounds = array<i64: 16, 16, 32>}]} {
    %c0 = arith.constant 0 : index
    %c0_0 = arith.constant 0 : index
    %0 = vector.load %arg2[%c0, %c0_0] : memref<16x3xf32, #tpu.memory_space<vmem>>, vector<16x3xf32>
    %c0_1 = arith.constant 0 : index
    %c0_2 = arith.constant 0 : index
    %1 = vector.load %arg3[%c0_1, %c0_2] : memref<3x16xf32, #tpu.memory_space<vmem>>, vector<3x16xf32>
    %2 = vector.extract_strided_slice %0 {offsets = [0, 0], sizes = [16, 1], strides = [1, 1]} : vector<16x3xf32> to vector<16x1xf32>
    %3 = vector.extract_strided_slice %1 {offsets = [0, 0], sizes = [1, 16], strides = [1, 1]} : vector<3x16xf32> to vector<1x16xf32>
    %4 = vector.broadcast %2 : vector<16x1xf32> to vector<16x16xf32>
    %5 = vector.broadcast %3 : vector<1x16xf32> to vector<16x16xf32>
    %6 = arith.subf %4, %5 : vector<16x16xf32>
    %7 = arith.mulf %6, %6 : vector<16x16xf32>
    %8 = vector.extract_strided_slice %0 {offsets = [0, 1], sizes = [16, 1], strides = [1, 1]} : vector<16x3xf32> to vector<16x1xf32>
    %9 = vector.extract_strided_slice %1 {offsets = [1, 0], sizes = [1, 16], strides = [1, 1]} : vector<3x16xf32> to vector<1x16xf32>
    %10 = vector.broadcast %8 : vector<16x1xf32> to vector<16x16xf32>
    %11 = vector.broadcast %9 : vector<1x16xf32> to vector<16x16xf32>
    %12 = arith.subf %10, %11 : vector<16x16xf32>
    %13 = arith.mulf %12, %12 : vector<16x16xf32>
    %14 = arith.addf %7, %13 : vector<16x16xf32>
    %15 = vector.extract_strided_slice %0 {offsets = [0, 2], sizes = [16, 1], strides = [1, 1]} : vector<16x3xf32> to vector<16x1xf32>
    %16 = vector.extract_strided_slice %1 {offsets = [2, 0], sizes = [1, 16], strides = [1, 1]} : vector<3x16xf32> to vector<1x16xf32>
    %17 = vector.broadcast %15 : vector<16x1xf32> to vector<16x16xf32>
    %18 = vector.broadcast %16 : vector<1x16xf32> to vector<16x16xf32>
    %19 = arith.subf %17, %18 : vector<16x16xf32>
    %20 = arith.mulf %19, %19 : vector<16x16xf32>
    %21 = arith.addf %14, %20 : vector<16x16xf32>
    %22 = math.sqrt %21 : vector<16x16xf32>
    %cst = arith.constant 1.000000e+00 : f32
    %23 = vector.broadcast %cst : f32 to vector<16x16xf32>
    %24 = arith.mulf %22, %23 : vector<16x16xf32>
    %25 = math.sin %24 : vector<16x16xf32>
    %cst_3 = arith.constant 5.000000e-01 : f32
    %26 = vector.broadcast %cst_3 : f32 to vector<16x16xf32>
    %27 = arith.mulf %22, %26 : vector<16x16xf32>
    %28 = math.sin %27 : vector<16x16xf32>
    %cst_4 = arith.constant 2.500000e-01 : f32
    %29 = vector.broadcast %cst_4 : f32 to vector<16x16xf32>
    %30 = arith.mulf %22, %29 : vector<16x16xf32>
    %31 = math.sin %30 : vector<16x16xf32>
    %cst_5 = arith.constant 1.250000e-01 : f32
    %32 = vector.broadcast %cst_5 : f32 to vector<16x16xf32>
    %33 = arith.mulf %22, %32 : vector<16x16xf32>
    %34 = math.sin %33 : vector<16x16xf32>
    %cst_6 = arith.constant 6.250000e-02 : f32
    %35 = vector.broadcast %cst_6 : f32 to vector<16x16xf32>
    %36 = arith.mulf %22, %35 : vector<16x16xf32>
    %37 = math.sin %36 : vector<16x16xf32>
    %cst_7 = arith.constant 3.125000e-02 : f32
    %38 = vector.broadcast %cst_7 : f32 to vector<16x16xf32>
    %39 = arith.mulf %22, %38 : vector<16x16xf32>
    %40 = math.sin %39 : vector<16x16xf32>
    %cst_8 = arith.constant 1.562500e-02 : f32
    %41 = vector.broadcast %cst_8 : f32 to vector<16x16xf32>
    %42 = arith.mulf %22, %41 : vector<16x16xf32>
    %43 = math.sin %42 : vector<16x16xf32>
    %cst_9 = arith.constant 7.812500e-03 : f32
    %44 = vector.broadcast %cst_9 : f32 to vector<16x16xf32>
    %45 = arith.mulf %22, %44 : vector<16x16xf32>
    %46 = math.sin %45 : vector<16x16xf32>
    %cst_10 = arith.constant 1.000000e+00 : f32
    %47 = vector.broadcast %cst_10 : f32 to vector<16x16xf32>
    %48 = arith.mulf %22, %47 : vector<16x16xf32>
    %49 = math.cos %48 : vector<16x16xf32>
    %cst_11 = arith.constant 5.000000e-01 : f32
    %50 = vector.broadcast %cst_11 : f32 to vector<16x16xf32>
    %51 = arith.mulf %22, %50 : vector<16x16xf32>
    %52 = math.cos %51 : vector<16x16xf32>
    %cst_12 = arith.constant 2.500000e-01 : f32
    %53 = vector.broadcast %cst_12 : f32 to vector<16x16xf32>
    %54 = arith.mulf %22, %53 : vector<16x16xf32>
    %55 = math.cos %54 : vector<16x16xf32>
    %cst_13 = arith.constant 1.250000e-01 : f32
    %56 = vector.broadcast %cst_13 : f32 to vector<16x16xf32>
    %57 = arith.mulf %22, %56 : vector<16x16xf32>
    %58 = math.cos %57 : vector<16x16xf32>
    %cst_14 = arith.constant 6.250000e-02 : f32
    %59 = vector.broadcast %cst_14 : f32 to vector<16x16xf32>
    %60 = arith.mulf %22, %59 : vector<16x16xf32>
    %61 = math.cos %60 : vector<16x16xf32>
    %cst_15 = arith.constant 3.125000e-02 : f32
    %62 = vector.broadcast %cst_15 : f32 to vector<16x16xf32>
    %63 = arith.mulf %22, %62 : vector<16x16xf32>
    %64 = math.cos %63 : vector<16x16xf32>
    %cst_16 = arith.constant 1.562500e-02 : f32
    %65 = vector.broadcast %cst_16 : f32 to vector<16x16xf32>
    %66 = arith.mulf %22, %65 : vector<16x16xf32>
    %67 = math.cos %66 : vector<16x16xf32>
    %cst_17 = arith.constant 7.812500e-03 : f32
    %68 = vector.broadcast %cst_17 : f32 to vector<16x16xf32>
    %69 = arith.mulf %22, %68 : vector<16x16xf32>
    %70 = math.cos %69 : vector<16x16xf32>
    %71 = vector.shape_cast %25 : vector<16x16xf32> to vector<16x16x1xf32>
    %72 = vector.shape_cast %28 : vector<16x16xf32> to vector<16x16x1xf32>
    %73 = vector.shape_cast %31 : vector<16x16xf32> to vector<16x16x1xf32>
    %74 = vector.shape_cast %34 : vector<16x16xf32> to vector<16x16x1xf32>
    %75 = vector.shape_cast %37 : vector<16x16xf32> to vector<16x16x1xf32>
    %76 = vector.shape_cast %40 : vector<16x16xf32> to vector<16x16x1xf32>
    %77 = vector.shape_cast %43 : vector<16x16xf32> to vector<16x16x1xf32>
    %78 = vector.shape_cast %46 : vector<16x16xf32> to vector<16x16x1xf32>
    %79 = vector.shape_cast %49 : vector<16x16xf32> to vector<16x16x1xf32>
    %80 = vector.shape_cast %52 : vector<16x16xf32> to vector<16x16x1xf32>
    %81 = vector.shape_cast %55 : vector<16x16xf32> to vector<16x16x1xf32>
    %82 = vector.shape_cast %58 : vector<16x16xf32> to vector<16x16x1xf32>
    %83 = vector.shape_cast %61 : vector<16x16xf32> to vector<16x16x1xf32>
    %84 = vector.shape_cast %64 : vector<16x16xf32> to vector<16x16x1xf32>
    %85 = vector.shape_cast %67 : vector<16x16xf32> to vector<16x16x1xf32>
    %86 = vector.shape_cast %70 : vector<16x16xf32> to vector<16x16x1xf32>
    %87 = vector.shape_cast %22 : vector<16x16xf32> to vector<16x16x1xf32>
    %88 = tpu.concatenate %71, %72, %73, %74, %75, %76, %77, %78, %79, %80, %81, %82, %83, %84, %85, %86 in 2 : vector<16x16x1xf32>, vector<16x16x1xf32>, vector<16x16x1xf32>, vector<16x16x1xf32>, vector<16x16x1xf32>, vector<16x16x1xf32>, vector<16x16x1xf32>, vector<16x16x1xf32>, vector<16x16x1xf32>, vector<16x16x1xf32>, vector<16x16x1xf32>, vector<16x16x1xf32>, vector<16x16x1xf32>, vector<16x16x1xf32>, vector<16x16x1xf32>, vector<16x16x1xf32> -> vector<16x16x16xf32>
    %89 = tpu.concatenate %88, %87 in 2 : vector<16x16x16xf32>, vector<16x16x1xf32> -> vector<16x16x17xf32>
    %90 = vector.shape_cast %89 : vector<16x16x17xf32> to vector<256x17xf32>
    %c0_18 = arith.constant 0 : index
    %c0_19 = arith.constant 0 : index
    %91 = vector.load %arg4[%c0_18, %c0_19] : memref<17x32xf32, #tpu.memory_space<vmem>>, vector<17x32xf32>
    %cst_20 = arith.constant dense<0.000000e+00> : vector<256x32xf32>
    %92 = tpu.matmul %90, %91, %cst_20 {dimension_numbers = #tpu.dot_dimension_numbers<[1], [0], [0], [1], [0, 0, 1, 1], [], []>, precision = #tpu.contract_precision<fp32>} : vector<256x17xf32>, vector<17x32xf32>, vector<256x32xf32> -> vector<256x32xf32>
    %c0_21 = arith.constant 0 : index
    %c0_22 = arith.constant 0 : index
    %93 = vector.load %arg5[%c0_21, %c0_22] : memref<1x32xf32, #tpu.memory_space<vmem>>, vector<1x32xf32>
    %94 = vector.broadcast %93 : vector<1x32xf32> to vector<256x32xf32>
    %95 = arith.addf %92, %94 : vector<256x32xf32>
    %c0_23 = arith.constant 0 : index
    %c0_24 = arith.constant 0 : index
    %c0_25 = arith.constant 0 : index
    %96 = vector.load %arg6[%c0_23, %c0_24, %c0_25] : memref<16x16x32xf32, #tpu.memory_space<vmem>>, vector<16x16x32xf32>
    %97 = vector.shape_cast %96 : vector<16x16x32xf32> to vector<256x32xf32>
    %c0_26 = arith.constant 0 : index
    %c0_27 = arith.constant 0 : index
    %98 = vector.load %arg7[%c0_26, %c0_27] : memref<1x32xf32, #tpu.memory_space<vmem>>, vector<1x32xf32>
    %c0_28 = arith.constant 0 : index
    %c0_29 = arith.constant 0 : index
    %99 = vector.load %arg8[%c0_28, %c0_29] : memref<1x32xf32, #tpu.memory_space<vmem>>, vector<1x32xf32>
    %cst_30 = arith.constant dense<0.000000e+00> : vector<256xf32>
    %100 = vector.multi_reduction <add>, %97, %cst_30 [1] : vector<256x32xf32> to vector<256xf32>
    %101 = vector.shape_cast %100 : vector<256xf32> to vector<256x1xf32>
    %cst_31 = arith.constant 3.200000e+01 : f32
    %102 = vector.broadcast %cst_31 : f32 to vector<256x1xf32>
    %103 = arith.divf %101, %102 : vector<256x1xf32>
    %104 = vector.broadcast %103 : vector<256x1xf32> to vector<256x32xf32>
    %105 = arith.subf %97, %104 : vector<256x32xf32>
    %106 = arith.mulf %105, %105 : vector<256x32xf32>
    %cst_32 = arith.constant dense<0.000000e+00> : vector<256xf32>
    %107 = vector.multi_reduction <add>, %106, %cst_32 [1] : vector<256x32xf32> to vector<256xf32>
    %108 = vector.shape_cast %107 : vector<256xf32> to vector<256x1xf32>
    %cst_33 = arith.constant 3.200000e+01 : f32
    %109 = vector.broadcast %cst_33 : f32 to vector<256x1xf32>
    %110 = arith.divf %108, %109 : vector<256x1xf32>
    %111 = vector.broadcast %103 : vector<256x1xf32> to vector<256x32xf32>
    %112 = arith.subf %97, %111 : vector<256x32xf32>
    %cst_34 = arith.constant 9.99999974E-6 : f32
    %113 = vector.broadcast %cst_34 : f32 to vector<256x1xf32>
    %114 = arith.addf %110, %113 : vector<256x1xf32>
    %115 = math.rsqrt %114 : vector<256x1xf32>
    %116 = vector.broadcast %115 : vector<256x1xf32> to vector<256x32xf32>
    %117 = arith.mulf %112, %116 : vector<256x32xf32>
    %118 = vector.broadcast %98 : vector<1x32xf32> to vector<256x32xf32>
    %119 = arith.mulf %117, %118 : vector<256x32xf32>
    %120 = vector.broadcast %99 : vector<1x32xf32> to vector<256x32xf32>
    %121 = arith.addf %119, %120 : vector<256x32xf32>
    %122 = arith.addf %121, %95 : vector<256x32xf32>
    %123 = vector.shape_cast %122 : vector<256x32xf32> to vector<16x16x32xf32>
    %c0_35 = arith.constant 0 : index
    %c0_36 = arith.constant 0 : index
    %c0_37 = arith.constant 0 : index
    %124 = vector.load %arg9[%c0_35, %c0_36, %c0_37] : memref<16x16x32xf32, #tpu.memory_space<vmem>>, vector<16x16x32xf32>
    tpu.vector_store %arg9[%c0_35, %c0_36, %c0_37], %123 {strides = array<i32>} : memref<16x16x32xf32, #tpu.memory_space<vmem>>, vector<16x16x32xf32>,
    return
  }
  func.func @transform_0(%arg0: i32, %arg1: i32) -> (i32, i32) {
    %c0_i32 = arith.constant 0 : i32
    %c0_i32_0 = arith.constant 0 : i32
    return %arg0, %c0_i32 : i32, i32
  }
  func.func @transform_1(%arg0: i32, %arg1: i32) -> (i32, i32) {
    %c0_i32 = arith.constant 0 : i32
    %c0_i32_0 = arith.constant 0 : i32
    return %c0_i32, %arg1 : i32, i32
  }
  func.func @transform_2(%arg0: i32, %arg1: i32) -> (i32, i32) {
    %c0_i32 = arith.constant 0 : i32
    %c0_i32_0 = arith.constant 0 : i32
    %c0_i32_1 = arith.constant 0 : i32
    return %c0_i32, %c0_i32_0 : i32, i32
  }
  func.func @transform_3(%arg0: i32, %arg1: i32) -> (i32, i32) {
    %c0_i32 = arith.constant 0 : i32
    %c0_i32_0 = arith.constant 0 : i32
    %c0_i32_1 = arith.constant 0 : i32
    return %c0_i32, %c0_i32_0 : i32, i32
  }
  func.func @transform_4(%arg0: i32, %arg1: i32) -> (i32, i32, i32) {
    %c0_i32 = arith.constant 0 : i32
    %c0_i32_0 = arith.constant 0 : i32
    return %arg0, %arg1, %c0_i32 : i32, i32, i32
  }
  func.func @transform_5(%arg0: i32, %arg1: i32) -> (i32, i32) {
    %c0_i32 = arith.constant 0 : i32
    %c0_i32_0 = arith.constant 0 : i32
    %c0_i32_1 = arith.constant 0 : i32
    return %c0_i32, %c0_i32_0 : i32, i32
  }
  func.func @transform_6(%arg0: i32, %arg1: i32) -> (i32, i32) {
    %c0_i32 = arith.constant 0 : i32
    %c0_i32_0 = arith.constant 0 : i32
    %c0_i32_1 = arith.constant 0 : i32
    return %c0_i32, %c0_i32_0 : i32, i32
  }
  func.func @transform_7(%arg0: i32, %arg1: i32) -> (i32, i32, i32) {
    %c0_i32 = arith.constant 0 : i32
    %c0_i32_0 = arith.constant 0 : i32
    return %arg0, %arg1, %c0_i32 : i32, i32, i32
  }
}

</mosaic_0001>

<llo_original>
// kernel: tpu_custom_call.1
$region0: #{tpu_custom_call.1}
  #allocation0 [shape = 'u32[]', space=smem, size = 0x4, offset = 0x4, fixed_abs, tag = 'smem constant byte address 0x4 - core index']
  #allocation1 [shape = 'u32[72,128]{1,0:T(1,128)}', space=vmem, size = 0x9000, scoped, tag = 'internal scratch']
  %s0 = inlined_call_operand.vmem [shape: f32[16,3], index: 0, kind: input, shape index: {}]
  %s1 = inlined_call_operand.vmem [shape: f32[3,16], index: 1, kind: input, shape index: {}]
  %s2 = inlined_call_operand.hbm [shape: f32[17,32], index: 2, kind: input, shape index: {}]
  %s3 = inlined_call_operand.vmem [shape: f32[1,32], index: 3, kind: input, shape index: {}]
  %s4 = inlined_call_operand.hbm [shape: f32[16,16,32], index: 4, kind: input, shape index: {}]
  %s5 = inlined_call_operand.vmem [shape: f32[1,32], index: 5, kind: input, shape index: {}]
  %s6 = inlined_call_operand.vmem [shape: f32[1,32], index: 6, kind: input, shape index: {}]
  %s7 = inlined_call_operand.hbm [shape: f32[16,16,32], index: 7, kind: output, shape index: {}]
  %s8 = sld [smem:[#allocation0]]
  $region46: #{tpu_custom_call.1} parent=0
    _
  %s10 = ssub.s32 1, %s8
  %s11 = scalar_select 0, %s10, %s8
  $region1: #{tpu_custom_call.1} parent=0
    #allocation2 [shape = 'u8[12288]{0}', space=vmem, size = 0x3000, scoped, tag = 'input window, operand 2, single buffered']
    #allocation3 [shape = 's32[1]{0}', space=sflag, size = 0x4, scoped, tag = 'scoped memory for tpu_custom_call.1']
    #allocation4 [shape = 's32[1]{0}', space=sflag, size = 0x4, scoped, tag = 'scoped memory for tpu_custom_call.1']
    #allocation5 [shape = 'u8[131072]{0}', space=vmem, size = 0x20000, scoped, tag = 'input window, operand 4, single buffered']
    #allocation6 [shape = 's32[1]{0}', space=sflag, size = 0x4, scoped, tag = 'scoped memory for tpu_custom_call.1']
    #allocation7 [shape = 'u8[131072]{0}', space=vmem, size = 0x20000, scoped, tag = 'output window, operand 0, single buffered']
    %12 = vsyncpa [#allocation3], 0
    %13 = vsyncpa [#allocation6], 0
    %14 = vsyncpa [#allocation4], 0
    // Predicated region
    $region2: #{tpu_custom_call.1} parent=1 // pred_check
      _
    $region3: #{tpu_custom_call.1} parent=1 // pred_check_branch
      %16 = sbr.rel (0) target = $region5
    $region4: #{tpu_custom_call.1} parent=1 // pred_region
      _
    $region5: #{tpu_custom_call.1} parent=1 // pred_fallthru
      _
    // Predicated region
    $region6: #{tpu_custom_call.1} parent=1 // pred_check
      _
    $region7: #{tpu_custom_call.1} parent=1 // pred_check_branch
      %18 = sbr.rel (0) target = $region9
    $region8: #{tpu_custom_call.1} parent=1 // pred_region
      _
    $region9: #{tpu_custom_call.1} parent=1 // pred_fallthru
      _
    // Predicated region
    $region10: #{tpu_custom_call.1} parent=1 // pred_check
      _
    $region11: #{tpu_custom_call.1} parent=1 // pred_check_branch
      %20 = sbr.rel (0) target = $region13
    $region12: #{tpu_custom_call.1} parent=1 // pred_region
      %22 = vsyncadd [#allocation3], 0
      %s23 = sshll.u32 %s2, 4
      %s24 = int_to_ptr.hbm [resolvable:$true] %s23
      %s25 = sshll.u32 [#allocation2], 4
      %s26 = int_to_ptr.vmem [resolvable:$true] %s25
      %31 = dma.hbm_to_vmem [thread:$0]  %s24, 384, %s26, [#allocation3], 128, 128, 8
    $region13: #{tpu_custom_call.1} parent=1 // pred_fallthru
      _
    // Predicated region
    $region14: #{tpu_custom_call.1} parent=1 // pred_check
      _
    $region15: #{tpu_custom_call.1} parent=1 // pred_check_branch
      %33 = sbr.rel (0) target = $region17
    $region16: #{tpu_custom_call.1} parent=1 // pred_region
      _
    $region17: #{tpu_custom_call.1} parent=1 // pred_fallthru
      _
    // Predicated region
    $region18: #{tpu_custom_call.1} parent=1 // pred_check
      _
    $region19: #{tpu_custom_call.1} parent=1 // pred_check_branch
      %35 = sbr.rel (0) target = $region21
    $region20: #{tpu_custom_call.1} parent=1 // pred_region
      %37 = vsyncadd [#allocation6], 0
      %s38 = sshll.u32 %s4, 4
      %s39 = int_to_ptr.hbm [resolvable:$true] %s38
      %s40 = sshll.u32 [#allocation5], 4
      %s41 = int_to_ptr.vmem [resolvable:$true] %s40
      %46 = dma.hbm_to_vmem [thread:$0]  %s39, 4096, %s41, [#allocation6], 128, 128, 8
    $region21: #{tpu_custom_call.1} parent=1 // pred_fallthru
      _
    // Predicated region
    $region22: #{tpu_custom_call.1} parent=1 // pred_check
      _
    $region23: #{tpu_custom_call.1} parent=1 // pred_check_branch
      %48 = sbr.rel (0) target = $region25
    $region24: #{tpu_custom_call.1} parent=1 // pred_region
      _
    $region25: #{tpu_custom_call.1} parent=1 // pred_fallthru
      _
    // Predicated region
    $region26: #{tpu_custom_call.1} parent=1 // pred_check
      _
    $region27: #{tpu_custom_call.1} parent=1 // pred_check_branch
      %50 = sbr.rel (0) target = $region29
    $region28: #{tpu_custom_call.1} parent=1 // pred_region
      _
    $region29: #{tpu_custom_call.1} parent=1 // pred_fallthru
      _
    // Predicated region
    $region30: #{tpu_custom_call.1} parent=1 // pred_check
      _
    $region31: #{tpu_custom_call.1} parent=1 // pred_check_branch
      %52 = sbr.rel (0) target = $region33
    $region32: #{tpu_custom_call.1} parent=1 // pred_region
      %54 = dma.done [#allocation3], 384
    $region33: #{tpu_custom_call.1} parent=1 // pred_fallthru
      _
    // Predicated region
    $region34: #{tpu_custom_call.1} parent=1 // pred_check
      _
    $region35: #{tpu_custom_call.1} parent=1 // pred_check_branch
      %56 = sbr.rel (0) target = $region37
    $region36: #{tpu_custom_call.1} parent=1 // pred_region
      %58 = dma.done [#allocation6], 4096
    $region37: #{tpu_custom_call.1} parent=1 // pred_fallthru
      _
    %v59 = vld [vmem:[%s0] sm:$0xff]
    %v60 = vld [vmem:[%s0 + $0x8] sm:$0xff]
    %v61 = vld [vmem:[%s1] sm:$0x7]
    %63 = vset.pattern.permute.xlu0 0
    %64 = vperm.xlu0 %63, %v59
    %v65 = vpop.permute.xlu0 %64
    %68 = vset.pattern.permute.xlu0 0
    %69 = vperm.xlu0 %68, %v60
    %v70 = vpop.permute.xlu0 %69
    %v72 = vperm.slane %v61, 0
    %v73 = vsub.f32 %v65, %v72
    %v74 = vsub.f32 %v70, %v72
    %v75 = vmul.f32 %v73, %v73
    %v76 = vmul.f32 %v74, %v74
    %77 = vset.pattern.permute.xlu0 1
    %78 = vperm.xlu0 %77, %v59
    %v79 = vpop.permute.xlu0 %78
    %81 = vset.pattern.permute.xlu0 1
    %82 = vperm.xlu0 %81, %v60
    %v83 = vpop.permute.xlu0 %82
    %v85 = vperm.slane %v61, 1
    %v86 = vsub.f32 %v79, %v85
    %v87 = vsub.f32 %v83, %v85
    %v88 = vmul.f32 %v86, %v86
    %v89 = vmul.f32 %v87, %v87
    %v90 = vadd.f32 %v75, %v88
    %v91 = vadd.f32 %v76, %v89
    %92 = vset.pattern.permute.xlu0 2
    %93 = vperm.xlu0 %92, %v59
    %v94 = vpop.permute.xlu0 %93
    %96 = vset.pattern.permute.xlu0 2
    %97 = vperm.xlu0 %96, %v60
    %v98 = vpop.permute.xlu0 %97
    %v100 = vperm.slane %v61, 2
    %v101 = vsub.f32 %v94, %v100
    %v102 = vsub.f32 %v98, %v100
    %v103 = vmul.f32 %v101, %v101
    %v104 = vmul.f32 %v102, %v102
    %v105 = vadd.f32 %v90, %v103
    %v106 = vadd.f32 %v91, %v104
    %v107 = vrsqrt.pop %v105
    %v108 = vmul.f32 %v107, %v105
    %v109 = vmul.f32 %v108, %v107
    %v110 = vmul.f32 0.5, %v109
    %v111 = vsub.f32 1.5, %v110
    %v112 = vmul.f32 %v107, %v111
    %v113 = vmul.f32 %v105, %v112
    %vm114 = vcmp.eq.f32.partialorder %v105, inf
    %v115 = vsel %vm114, %v105, %v113
    %vm116 = vcmp.eq.f32.partialorder %v105, 0.0
    %v117 = vand.u32 %v105, 2147483648
    %v118 = vsel %vm116, %v117, %v115
    %v119 = vrsqrt.pop %v106
    %v120 = vmul.f32 %v119, %v106
    %v121 = vmul.f32 %v120, %v119
    %v122 = vmul.f32 0.5, %v121
    %v123 = vsub.f32 1.5, %v122
    %v124 = vmul.f32 %v119, %v123
    %v125 = vmul.f32 %v106, %v124
    %vm126 = vcmp.eq.f32.partialorder %v106, inf
    %v127 = vsel %vm126, %v106, %v125
    %vm128 = vcmp.eq.f32.partialorder %v106, 0.0
    %v129 = vand.u32 %v106, 2147483648
    %v130 = vsel %vm128, %v129, %v127
    %v131 = vand.u32 2147483647, %v118
    %vm132 = vcmp.le.f32.partialorder %v131, 0.7853982
    %vm133 = vcmp.lt.s32.totalorder %v118, 0
    %v134 = vand.u32 %v118, 2139095040
    %v135 = vshrl.u32 %v134, 23
    %v136 = vsub.s32 %v135, 127
    %v137 = vand.u32 2147483647, %v118
    %v138 = vand.u32 %v137, 8388607
    %v139 = vor.u32 %v138, 8388608
    %v140 = vsub.s32 0, %v139
    %v141 = vadd.s32 %v136, 1
    %vm142 = vcmp.gt.s32.totalorder %v141, 0
    %v143 = vsel %vm142, %v141, 0
    %v144 = vshrl.u32 %v143, 5
    %v145 = vand.u32 %v143, 31
    %v146 = vsub.s32 32, %v145
    %v147 = vshrl.u32 683565275, %v146
    %v148 = vshll.u32 683565275, %v145
    %v149 = vshrl.u32 2475754826, %v146
    %v150 = vor.u32 %v148, %v149
    %v151 = vshll.u32 2475754826, %v145
    %v152 = vshrl.u32 2131351028, %v146
    %v153 = vor.u32 %v151, %v152
    %v154 = vshll.u32 2131351028, %v145
    %v155 = vshrl.u32 2102212464, %v146
    %v156 = vor.u32 %v154, %v155
    %v157 = vshll.u32 2102212464, %v145
    %v158 = vshrl.u32 920167782, %v146
    %v159 = vor.u32 %v157, %v158
    %v160 = vshll.u32 920167782, %v145
    %v161 = vshrl.u32 1326507024, %v146
    %v162 = vor.u32 %v160, %v161
    %vm163 = vcmp.lt.s32.totalorder %v144, 1
    %vm164 = vcmp.lt.s32.totalorder %v144, 2
    %vm165 = vcmp.lt.s32.totalorder %v144, 3
    %vm166 = vcmp.lt.s32.totalorder %v144, 4
    %v167 = vsel %vm163, %v147, %v150
    %v168 = vsel %vm166, %v156, 2102212464
    %v169 = vsel %vm165, %v153, %v168
    %v170 = vsel %vm164, %v167, %v169
    %v171 = vsel %vm163, %v150, %v153
    %v172 = vsel %vm166, %v159, 920167782
    %v173 = vsel %vm165, %v156, %v172
    %v174 = vsel %vm164, %v171, %v173
    %v175 = vsel %vm163, %v153, %v156
    %v176 = vsel %vm166, %v162, 1326507024
    %v177 = vsel %vm165, %v159, %v176
    %v178 = vsel %vm164, %v175, %v177
    %v179 = vshll.u32 %v139, 8
    %v180 = vand.u32 %v179, 65535
    %v181 = vshrl.u32 %v179, 16
    %v182 = vand.u32 %v178, 65535
    %v183 = vshrl.u32 %v178, 16
    %v184 = vmul.u32 %v180, %v182
    %v185 = vmul.u32 %v180, %v183
    %v186 = vmul.u32 %v181, %v182
    %v187 = vmul.u32 %v181, %v183
    %v188 = vshll.u32 %v185, 16
    %v189 = vshrl.u32 %v185, 16
    %v190 = vshll.u32 %v186, 16
    %v191 = vshrl.u32 %v186, 16
    %vm192 = vc.u32 %v184, %v188
    %v193 = vsel %vm192, 1, 0
    %v194 = vadd.s32 %v184, %v188
    %v195 = vadd.s32 %v187, %v193
    %vm196 = vc.u32 %v194, %v190
    %v197 = vsel %vm196, 1, 0
    %v198 = vadd.s32 %v194, %v190
    %v199 = vadd.s32 %v195, %v197
    %v200 = vadd.s32 %v199, %v189
    %v201 = vadd.s32 %v200, %v191
    %v202 = vand.u32 %v179, 65535
    %v203 = vshrl.u32 %v179, 16
    %v204 = vand.u32 %v174, 65535
    %v205 = vshrl.u32 %v174, 16
    %v206 = vmul.u32 %v202, %v204
    %v207 = vmul.u32 %v202, %v205
    %v208 = vmul.u32 %v203, %v204
    %v209 = vmul.u32 %v203, %v205
    %v210 = vshll.u32 %v207, 16
    %v211 = vshrl.u32 %v207, 16
    %v212 = vshll.u32 %v208, 16
    %v213 = vshrl.u32 %v208, 16
    %vm214 = vc.u32 %v206, %v210
    %v215 = vsel %vm214, 1, 0
    %v216 = vadd.s32 %v206, %v210
    %v217 = vadd.s32 %v209, %v215
    %vm218 = vc.u32 %v216, %v212
    %v219 = vsel %vm218, 1, 0
    %v220 = vadd.s32 %v216, %v212
    %v221 = vadd.s32 %v217, %v219
    %v222 = vadd.s32 %v221, %v211
    %v223 = vadd.s32 %v222, %v213
    %v224 = vmul.u32 %v179, %v170
    %v225 = vadd.s32 %v201, %v220
    %vm226 = vc.u32 %v201, %v220
    %v227 = vadd.s32 %v223, 1
    %v228 = vsel %vm226, %v227, %v223
    %v229 = vadd.s32 %v224, %v228
    %v230 = vadd.s32 %v229, 536870912
    %v231 = vshrl.u32 %v230, 30
    %v232 = vshll.u32 %v231, 30
    %v233 = vsub.s32 %v229, %v232
    %vm234 = vcmp.lt.s32.totalorder %v233, 0
    %v235 = vsub.s32 0, %v233
    %v236 = vsel %vm234, %v235, %v233
    %v237 = vclz %v236
    %v238 = vsub.s32 %v237, 2
    %vm239 = vcmp.gt.s32.totalorder 0, %v238
    %v240 = vsel %vm239, 0, %v238
    %v241 = vsub.s32 32, %v240
    %v242 = vshll.u32 %v233, %v240
    %v243 = vshrl.u32 %v225, %v241
    %v244 = vor.u32 %v242, %v243
    %v245 = vsub.s32 4294967266, %v240
    %v246 = vadd.s32 %v245, 127
    %v247 = vshll.u32 %v246, 23
    %v248 = vor.u32 4788187, %v247
    %v249 = vand.u32 2147483647, %v248
    %v251 = vcvt.s32.f32 %v244
    %v252 = vmul.f32 %v251, %v249
    %v253 = vxor.u32 %v252, 2147483648
    %v254 = vsel %vm133, %v253, %v252
    %v255 = vsub.s32 4, %v231
    %v256 = vsel %vm133, %v255, %v231
    %v257 = vsel %vm132, %v118, %v254
    %v258 = vsel %vm132, 0, %v256
    %v259 = vmul.f32 %v257, %v257
    %v260 = vmul.f32 %v259, -0.001358992
    %v261 = vadd.f32 %v260, 0.041655596
    %v262 = vmul.f32 %v259, %v261
    %v263 = vadd.f32 %v262, -0.4999988
    %v264 = vmul.f32 %v259, %v263
    %v265 = vadd.f32 1.0, %v264
    %v266 = vmul.f32 %v257, %v257
    %v267 = vmul.f32 %v266, -0.00019511016
    %v268 = vadd.f32 %v267, 0.008332121
    %v269 = vmul.f32 %v266, %v268
    %v270 = vadd.f32 %v269, -0.16666654
    %v271 = vmul.f32 %v266, %v270
    %v272 = vadd.f32 %v271, 1.0
    %v273 = vmul.f32 %v272, %v257
    %vm274 = vweird.f32 %v118
    %v275 = vadd.s32 %v258, 3
    %v276 = vand.u32 %v275, 3
    %vm277 = vcmp.lt.s32.totalorder %v276, 2
    %vm278 = vcmp.eq.s32.totalorder %v276, 0
    %v279 = vxor.u32 %v273, 2147483648
    %v280 = vsel %vm278, %v265, %v279
    %vm281 = vcmp.eq.s32.totalorder %v276, 2
    %v282 = vxor.u32 %v265, 2147483648
    %v283 = vsel %vm281, %v282, %v273
    %v284 = vsel %vm277, %v280, %v283
    %v285 = vsel %vm274, nan, %v284
    %v286 = vand.u32 2147483647, %v130
    %vm287 = vcmp.le.f32.partialorder %v286, 0.7853982
    %vm288 = vcmp.lt.s32.totalorder %v130, 0
    %v289 = vand.u32 %v130, 2139095040
    %v290 = vshrl.u32 %v289, 23
    %v291 = vsub.s32 %v290, 127
    %v292 = vand.u32 2147483647, %v130
    %v293 = vand.u32 %v292, 8388607
    %v294 = vor.u32 %v293, 8388608
    %v295 = vsub.s32 0, %v294
    %v296 = vadd.s32 %v291, 1
    %vm297 = vcmp.gt.s32.totalorder %v296, 0
    %v298 = vsel %vm297, %v296, 0
    %v299 = vshrl.u32 %v298, 5
    %v300 = vand.u32 %v298, 31
    %v301 = vsub.s32 32, %v300
    %v302 = vshrl.u32 683565275, %v301
    %v303 = vshll.u32 683565275, %v300
    %v304 = vshrl.u32 2475754826, %v301
    %v305 = vor.u32 %v303, %v304
    %v306 = vshll.u32 2475754826, %v300
    %v307 = vshrl.u32 2131351028, %v301
    %v308 = vor.u32 %v306, %v307
    %v309 = vshll.u32 2131351028, %v300
    %v310 = vshrl.u32 2102212464, %v301
    %v311 = vor.u32 %v309, %v310
    %v312 = vshll.u32 2102212464, %v300
    %v313 = vshrl.u32 920167782, %v301
    %v314 = vor.u32 %v312, %v313
    %v315 = vshll.u32 920167782, %v300
    %v316 = vshrl.u32 1326507024, %v301
    %v317 = vor.u32 %v315, %v316
    %vm318 = vcmp.lt.s32.totalorder %v299, 1
    %vm319 = vcmp.lt.s32.totalorder %v299, 2
    %vm320 = vcmp.lt.s32.totalorder %v299, 3
    %vm321 = vcmp.lt.s32.totalorder %v299, 4
    %v322 = vsel %vm318, %v302, %v305
    %v323 = vsel %vm321, %v311, 2102212464
    %v324 = vsel %vm320, %v308, %v323
    %v325 = vsel %vm319, %v322, %v324
    %v326 = vsel %vm318, %v305, %v308
    %v327 = vsel %vm321, %v314, 920167782
    %v328 = vsel %vm320, %v311, %v327
    %v329 = vsel %vm319, %v326, %v328
    %v330 = vsel %vm318, %v308, %v311
    %v331 = vsel %vm321, %v317, 1326507024
    %v332 = vsel %vm320, %v314, %v331
    %v333 = vsel %vm319, %v330, %v332
    %v334 = vshll.u32 %v294, 8
    %v335 = vand.u32 %v334, 65535
    %v336 = vshrl.u32 %v334, 16
    %v337 = vand.u32 %v333, 65535
    %v338 = vshrl.u32 %v333, 16
    %v339 = vmul.u32 %v335, %v337
    %v340 = vmul.u32 %v335, %v338
    %v341 = vmul.u32 %v336, %v337
    %v342 = vmul.u32 %v336, %v338
    %v343 = vshll.u32 %v340, 16
    %v344 = vshrl.u32 %v340, 16
    %v345 = vshll.u32 %v341, 16
    %v346 = vshrl.u32 %v341, 16
    %vm347 = vc.u32 %v339, %v343
    %v348 = vsel %vm347, 1, 0
    %v349 = vadd.s32 %v339, %v343
    %v350 = vadd.s32 %v342, %v348
    %vm351 = vc.u32 %v349, %v345
    %v352 = vsel %vm351, 1, 0
    %v353 = vadd.s32 %v349, %v345
    %v354 = vadd.s32 %v350, %v352
    %v355 = vadd.s32 %v354, %v344
    %v356 = vadd.s32 %v355, %v346
    %v357 = vand.u32 %v334, 65535
    %v358 = vshrl.u32 %v334, 16
    %v359 = vand.u32 %v329, 65535
    %v360 = vshrl.u32 %v329, 16
    %v361 = vmul.u32 %v357, %v359
    %v362 = vmul.u32 %v357, %v360
    %v363 = vmul.u32 %v358, %v359
    %v364 = vmul.u32 %v358, %v360
    %v365 = vshll.u32 %v362, 16
    %v366 = vshrl.u32 %v362, 16
    %v367 = vshll.u32 %v363, 16
    %v368 = vshrl.u32 %v363, 16
    %vm369 = vc.u32 %v361, %v365
    %v370 = vsel %vm369, 1, 0
    %v371 = vadd.s32 %v361, %v365
    %v372 = vadd.s32 %v364, %v370
    %vm373 = vc.u32 %v371, %v367
    %v374 = vsel %vm373, 1, 0
    %v375 = vadd.s32 %v371, %v367
    %v376 = vadd.s32 %v372, %v374
    %v377 = vadd.s32 %v376, %v366
    %v378 = vadd.s32 %v377, %v368
    %v379 = vmul.u32 %v334, %v325
    %v380 = vadd.s32 %v356, %v375
    %vm381 = vc.u32 %v356, %v375
    %v382 = vadd.s32 %v378, 1
    %v383 = vsel %vm381, %v382, %v378
    %v384 = vadd.s32 %v379, %v383
    %v385 = vadd.s32 %v384, 536870912
    %v386 = vshrl.u32 %v385, 30
    %v387 = vshll.u32 %v386, 30
    %v388 = vsub.s32 %v384, %v387
    %vm389 = vcmp.lt.s32.totalorder %v388, 0
    %v390 = vsub.s32 0, %v388
    %v391 = vsel %vm389, %v390, %v388
    %v392 = vclz %v391
    %v393 = vsub.s32 %v392, 2
    %vm394 = vcmp.gt.s32.totalorder 0, %v393
    %v395 = vsel %vm394, 0, %v393
    %v396 = vsub.s32 32, %v395
    %v397 = vshll.u32 %v388, %v395
    %v398 = vshrl.u32 %v380, %v396
    %v399 = vor.u32 %v397, %v398
    %v400 = vsub.s32 4294967266, %v395
    %v401 = vadd.s32 %v400, 127
    %v402 = vshll.u32 %v401, 23
    %v403 = vor.u32 4788187, %v402
    %v404 = vand.u32 2147483647, %v403
    %v406 = vcvt.s32.f32 %v399
    %v407 = vmul.f32 %v406, %v404
    %v408 = vxor.u32 %v407, 2147483648
    %v409 = vsel %vm288, %v408, %v407
    %v410 = vsub.s32 4, %v386
    %v411 = vsel %vm288, %v410, %v386
    %v412 = vsel %vm287, %v130, %v409
    %v413 = vsel %vm287, 0, %v411
    %v414 = vmul.f32 %v412, %v412
    %v415 = vmul.f32 %v414, -0.001358992
    %v416 = vadd.f32 %v415, 0.041655596
    %v417 = vmul.f32 %v414, %v416
    %v418 = vadd.f32 %v417, -0.4999988
    %v419 = vmul.f32 %v414, %v418
    %v420 = vadd.f32 1.0, %v419
    %v421 = vmul.f32 %v412, %v412
    %v422 = vmul.f32 %v421, -0.00019511016
    %v423 = vadd.f32 %v422, 0.008332121
    %v424 = vmul.f32 %v421, %v423
    %v425 = vadd.f32 %v424, -0.16666654
    %v426 = vmul.f32 %v421, %v425
    %v427 = vadd.f32 %v426, 1.0
    %v428 = vmul.f32 %v427, %v412
    %vm429 = vweird.f32 %v130
    %v430 = vadd.s32 %v413, 3
    %v431 = vand.u32 %v430, 3
    %vm432 = vcmp.lt.s32.totalorder %v431, 2
    %vm433 = vcmp.eq.s32.totalorder %v431, 0
    %v434 = vxor.u32 %v428, 2147483648
    %v435 = vsel %vm433, %v420, %v434
    %vm436 = vcmp.eq.s32.totalorder %v431, 2
    %v437 = vxor.u32 %v420, 2147483648
    %v438 = vsel %vm436, %v437, %v428
    %v439 = vsel %vm432, %v435, %v438
    %v440 = vsel %vm429, nan, %v439
    %v441 = vmul.f32 %v118, 0.5
    %v442 = vmul.f32 %v130, 0.5
    %v443 = vand.u32 2147483647, %v441
    %vm444 = vcmp.le.f32.partialorder %v443, 0.7853982
    %vm445 = vcmp.lt.s32.totalorder %v441, 0
    %v446 = vand.u32 %v441, 2139095040
    %v447 = vshrl.u32 %v446, 23
    %v448 = vsub.s32 %v447, 127
    %v449 = vand.u32 2147483647, %v441
    %v450 = vand.u32 %v449, 8388607
    %v451 = vor.u32 %v450, 8388608
    %v452 = vsub.s32 0, %v451
    %v453 = vadd.s32 %v448, 1
    %vm454 = vcmp.gt.s32.totalorder %v453, 0
    %v455 = vsel %vm454, %v453, 0
    %v456 = vshrl.u32 %v455, 5
    %v457 = vand.u32 %v455, 31
    %v458 = vsub.s32 32, %v457
    %v459 = vshrl.u32 683565275, %v458
    %v460 = vshll.u32 683565275, %v457
    %v461 = vshrl.u32 2475754826, %v458
    %v462 = vor.u32 %v460, %v461
    %v463 = vshll.u32 2475754826, %v457
    %v464 = vshrl.u32 2131351028, %v458
    %v465 = vor.u32 %v463, %v464
    %v466 = vshll.u32 2131351028, %v457
    %v467 = vshrl.u32 2102212464, %v458
    %v468 = vor.u32 %v466, %v467
    %v469 = vshll.u32 2102212464, %v457
    %v470 = vshrl.u32 920167782, %v458
    %v471 = vor.u32 %v469, %v470
    %v472 = vshll.u32 920167782, %v457
    %v473 = vshrl.u32 1326507024, %v458
    %v474 = vor.u32 %v472, %v473
    %vm475 = vcmp.lt.s32.totalorder %v456, 1
    %vm476 = vcmp.lt.s32.totalorder %v456, 2
    %vm477 = vcmp.lt.s32.totalorder %v456, 3
    %vm478 = vcmp.lt.s32.totalorder %v456, 4
    %v479 = vsel %vm475, %v459, %v462
    %v480 = vsel %vm478, %v468, 2102212464
    %v481 = vsel %vm477, %v465, %v480
    %v482 = vsel %vm476, %v479, %v481
    %v483 = vsel %vm475, %v462, %v465
    %v484 = vsel %vm478, %v471, 920167782
    %v485 = vsel %vm477, %v468, %v484
    %v486 = vsel %vm476, %v483, %v485
    %v487 = vsel %vm475, %v465, %v468
    %v488 = vsel %vm478, %v474, 1326507024
    %v489 = vsel %vm477, %v471, %v488
    %v490 = vsel %vm476, %v487, %v489
    %v491 = vshll.u32 %v451, 8
    %v492 = vand.u32 %v491, 65535
    %v493 = vshrl.u32 %v491, 16
    %v494 = vand.u32 %v490, 65535
    %v495 = vshrl.u32 %v490, 16
    %v496 = vmul.u32 %v492, %v494
    %v497 = vmul.u32 %v492, %v495
    %v498 = vmul.u32 %v493, %v494
    %v499 = vmul.u32 %v493, %v495
    %v500 = vshll.u32 %v497, 16
    %v501 = vshrl.u32 %v497, 16
    %v502 = vshll.u32 %v498, 16
    %v503 = vshrl.u32 %v498, 16
    %vm504 = vc.u32 %v496, %v500
    %v505 = vsel %vm504, 1, 0
    %v506 = vadd.s32 %v496, %v500
    %v507 = vadd.s32 %v499, %v505
    %vm508 = vc.u32 %v506, %v502
    %v509 = vsel %vm508, 1, 0
    %v510 = vadd.s32 %v506, %v502
    %v511 = vadd.s32 %v507, %v509
    %v512 = vadd.s32 %v511, %v501
    %v513 = vadd.s32 %v512, %v503
    %v514 = vand.u32 %v491, 65535
    %v515 = vshrl.u32 %v491, 16
    %v516 = vand.u32 %v486, 65535
    %v517 = vshrl.u32 %v486, 16
    %v518 = vmul.u32 %v514, %v516
    %v519 = vmul.u32 %v514, %v517
    %v520 = vmul.u32 %v515, %v516
    %v521 = vmul.u32 %v515, %v517
    %v522 = vshll.u32 %v519, 16
    %v523 = vshrl.u32 %v519, 16
    %v524 = vshll.u32 %v520, 16
    %v525 = vshrl.u32 %v520, 16
    %vm526 = vc.u32 %v518, %v522
    %v527 = vsel %vm526, 1, 0
    %v528 = vadd.s32 %v518, %v522
    %v529 = vadd.s32 %v521, %v527
    %vm530 = vc.u32 %v528, %v524
    %v531 = vsel %vm530, 1, 0
    %v532 = vadd.s32 %v528, %v524
    %v533 = vadd.s32 %v529, %v531
    %v534 = vadd.s32 %v533, %v523
    %v535 = vadd.s32 %v534, %v525
    %v536 = vmul.u32 %v491, %v482
    %v537 = vadd.s32 %v513, %v532
    %vm538 = vc.u32 %v513, %v532
    %v539 = vadd.s32 %v535, 1
    %v540 = vsel %vm538, %v539, %v535
    %v541 = vadd.s32 %v536, %v540
    %v542 = vadd.s32 %v541, 536870912
    %v543 = vshrl.u32 %v542, 30
    %v544 = vshll.u32 %v543, 30
    %v545 = vsub.s32 %v541, %v544
    %vm546 = vcmp.lt.s32.totalorder %v545, 0
    %v547 = vsub.s32 0, %v545
    %v548 = vsel %vm546, %v547, %v545
    %v549 = vclz %v548
    %v550 = vsub.s32 %v549, 2
    %vm551 = vcmp.gt.s32.totalorder 0, %v550
    %v552 = vsel %vm551, 0, %v550
    %v553 = vsub.s32 32, %v552
    %v554 = vshll.u32 %v545, %v552
    %v555 = vshrl.u32 %v537, %v553
    %v556 = vor.u32 %v554, %v555
    %v557 = vsub.s32 4294967266, %v552
    %v558 = vadd.s32 %v557, 127
    %v559 = vshll.u32 %v558, 23
    %v560 = vor.u32 4788187, %v559
    %v561 = vand.u32 2147483647, %v560
    %v563 = vcvt.s32.f32 %v556
    %v564 = vmul.f32 %v563, %v561
    %v565 = vxor.u32 %v564, 2147483648
    %v566 = vsel %vm445, %v565, %v564
    %v567 = vsub.s32 4, %v543
    %v568 = vsel %vm445, %v567, %v543
    %v569 = vsel %vm444, %v441, %v566
    %v570 = vsel %vm444, 0, %v568
    %v571 = vmul.f32 %v569, %v569
    %v572 = vmul.f32 %v571, -0.001358992
    %v573 = vadd.f32 %v572, 0.041655596
    %v574 = vmul.f32 %v571, %v573
    %v575 = vadd.f32 %v574, -0.4999988
    %v576 = vmul.f32 %v571, %v575
    %v577 = vadd.f32 1.0, %v576
    %v578 = vmul.f32 %v569, %v569
    %v579 = vmul.f32 %v578, -0.00019511016
    %v580 = vadd.f32 %v579, 0.008332121
    %v581 = vmul.f32 %v578, %v580
    %v582 = vadd.f32 %v581, -0.16666654
    %v583 = vmul.f32 %v578, %v582
    %v584 = vadd.f32 %v583, 1.0
    %v585 = vmul.f32 %v584, %v569
    %vm586 = vweird.f32 %v441
    %v587 = vadd.s32 %v570, 3
    %v588 = vand.u32 %v587, 3
    %vm589 = vcmp.lt.s32.totalorder %v588, 2
    %vm590 = vcmp.eq.s32.totalorder %v588, 0
    %v591 = vxor.u32 %v585, 2147483648
    %v592 = vsel %vm590, %v577, %v591
    %vm593 = vcmp.eq.s32.totalorder %v588, 2
    %v594 = vxor.u32 %v577, 2147483648
    %v595 = vsel %vm593, %v594, %v585
    %v596 = vsel %vm589, %v592, %v595
    %v597 = vsel %vm586, nan, %v596
    %v598 = vand.u32 2147483647, %v442
    %vm599 = vcmp.le.f32.partialorder %v598, 0.7853982
    %vm600 = vcmp.lt.s32.totalorder %v442, 0
    %v601 = vand.u32 %v442, 2139095040
    %v602 = vshrl.u32 %v601, 23
    %v603 = vsub.s32 %v602, 127
    %v604 = vand.u32 2147483647, %v442
    %v605 = vand.u32 %v604, 8388607
    %v606 = vor.u32 %v605, 8388608
    %v607 = vsub.s32 0, %v606
    %v608 = vadd.s32 %v603, 1
    %vm609 = vcmp.gt.s32.totalorder %v608, 0
    %v610 = vsel %vm609, %v608, 0
    %v611 = vshrl.u32 %v610, 5
    %v612 = vand.u32 %v610, 31
    %v613 = vsub.s32 32, %v612
    %v614 = vshrl.u32 683565275, %v613
    %v615 = vshll.u32 683565275, %v612
    %v616 = vshrl.u32 2475754826, %v613
    %v617 = vor.u32 %v615, %v616
    %v618 = vshll.u32 2475754826, %v612
    %v619 = vshrl.u32 2131351028, %v613
    %v620 = vor.u32 %v618, %v619
    %v621 = vshll.u32 2131351028, %v612
    %v622 = vshrl.u32 2102212464, %v613
    %v623 = vor.u32 %v621, %v622
    %v624 = vshll.u32 2102212464, %v612
    %v625 = vshrl.u32 920167782, %v613
    %v626 = vor.u32 %v624, %v625
    %v627 = vshll.u32 920167782, %v612
    %v628 = vshrl.u32 1326507024, %v613
    %v629 = vor.u32 %v627, %v628
    %vm630 = vcmp.lt.s32.totalorder %v611, 1
    %vm631 = vcmp.lt.s32.totalorder %v611, 2
    %vm632 = vcmp.lt.s32.totalorder %v611, 3
    %vm633 = vcmp.lt.s32.totalorder %v611, 4
    %v634 = vsel %vm630, %v614, %v617
    %v635 = vsel %vm633, %v623, 2102212464
    %v636 = vsel %vm632, %v620, %v635
    %v637 = vsel %vm631, %v634, %v636
    %v638 = vsel %vm630, %v617, %v620
    %v639 = vsel %vm633, %v626, 920167782
    %v640 = vsel %vm632, %v623, %v639
    %v641 = vsel %vm631, %v638, %v640
    %v642 = vsel %vm630, %v620, %v623
    %v643 = vsel %vm633, %v629, 1326507024
    %v644 = vsel %vm632, %v626, %v643
    %v645 = vsel %vm631, %v642, %v644
    %v646 = vshll.u32 %v606, 8
    %v647 = vand.u32 %v646, 65535
    %v648 = vshrl.u32 %v646, 16
    %v649 = vand.u32 %v645, 65535
    %v650 = vshrl.u32 %v645, 16
    %v651 = vmul.u32 %v647, %v649
    %v652 = vmul.u32 %v647, %v650
    %v653 = vmul.u32 %v648, %v649
    %v654 = vmul.u32 %v648, %v650
    %v655 = vshll.u32 %v652, 16
    %v656 = vshrl.u32 %v652, 16
    %v657 = vshll.u32 %v653, 16
    %v658 = vshrl.u32 %v653, 16
    %vm659 = vc.u32 %v651, %v655
    %v660 = vsel %vm659, 1, 0
    %v661 = vadd.s32 %v651, %v655
    %v662 = vadd.s32 %v654, %v660
    %vm663 = vc.u32 %v661, %v657
    %v664 = vsel %vm663, 1, 0
    %v665 = vadd.s32 %v661, %v657
    %v666 = vadd.s32 %v662, %v664
    %v667 = vadd.s32 %v666, %v656
    %v668 = vadd.s32 %v667, %v658
    %v669 = vand.u32 %v646, 65535
    %v670 = vshrl.u32 %v646, 16
    %v671 = vand.u32 %v641, 65535
    %v672 = vshrl.u32 %v641, 16
    %v673 = vmul.u32 %v669, %v671
    %v674 = vmul.u32 %v669, %v672
    %v675 = vmul.u32 %v670, %v671
    %v676 = vmul.u32 %v670, %v672
    %v677 = vshll.u32 %v674, 16
    %v678 = vshrl.u32 %v674, 16
    %v679 = vshll.u32 %v675, 16
    %v680 = vshrl.u32 %v675, 16
    %vm681 = vc.u32 %v673, %v677
    %v682 = vsel %vm681, 1, 0
    %v683 = vadd.s32 %v673, %v677
    %v684 = vadd.s32 %v676, %v682
    %vm685 = vc.u32 %v683, %v679
    %v686 = vsel %vm685, 1, 0
    %v687 = vadd.s32 %v683, %v679
    %v688 = vadd.s32 %v684, %v686
    %v689 = vadd.s32 %v688, %v678
    %v690 = vadd.s32 %v689, %v680
    %v691 = vmul.u32 %v646, %v637
    %v692 = vadd.s32 %v668, %v687
    %vm693 = vc.u32 %v668, %v687
    %v694 = vadd.s32 %v690, 1
    %v695 = vsel %vm693, %v694, %v690
    %v696 = vadd.s32 %v691, %v695
    %v697 = vadd.s32 %v696, 536870912
    %v698 = vshrl.u32 %v697, 30
    %v699 = vshll.u32 %v698, 30
    %v700 = vsub.s32 %v696, %v699
    %vm701 = vcmp.lt.s32.totalorder %v700, 0
    %v702 = vsub.s32 0, %v700
    %v703 = vsel %vm701, %v702, %v700
    %v704 = vclz %v703
    %v705 = vsub.s32 %v704, 2
    %vm706 = vcmp.gt.s32.totalorder 0, %v705
    %v707 = vsel %vm706, 0, %v705
    %v708 = vsub.s32 32, %v707
    %v709 = vshll.u32 %v700, %v707
    %v710 = vshrl.u32 %v692, %v708
    %v711 = vor.u32 %v709, %v710
    %v712 = vsub.s32 4294967266, %v707
    %v713 = vadd.s32 %v712, 127
    %v714 = vshll.u32 %v713, 23
    %v715 = vor.u32 4788187, %v714
    %v716 = vand.u32 2147483647, %v715
    %v718 = vcvt.s32.f32 %v711
    %v719 = vmul.f32 %v718, %v716
    %v720 = vxor.u32 %v719, 2147483648
    %v721 = vsel %vm600, %v720, %v719
    %v722 = vsub.s32 4, %v698
    %v723 = vsel %vm600, %v722, %v698
    %v724 = vsel %vm599, %v442, %v721
    %v725 = vsel %vm599, 0, %v723
    %v726 = vmul.f32 %v724, %v724
    %v727 = vmul.f32 %v726, -0.001358992
    %v728 = vadd.f32 %v727, 0.041655596
    %v729 = vmul.f32 %v726, %v728
    %v730 = vadd.f32 %v729, -0.4999988
    %v731 = vmul.f32 %v726, %v730
    %v732 = vadd.f32 1.0, %v731
    %v733 = vmul.f32 %v724, %v724
    %v734 = vmul.f32 %v733, -0.00019511016
    %v735 = vadd.f32 %v734, 0.008332121
    %v736 = vmul.f32 %v733, %v735
    %v737 = vadd.f32 %v736, -0.16666654
    %v738 = vmul.f32 %v733, %v737
    %v739 = vadd.f32 %v738, 1.0
    %v740 = vmul.f32 %v739, %v724
    %vm741 = vweird.f32 %v442
    %v742 = vadd.s32 %v725, 3
    %v743 = vand.u32 %v742, 3
    %vm744 = vcmp.lt.s32.totalorder %v743, 2
    %vm745 = vcmp.eq.s32.totalorder %v743, 0
    %v746 = vxor.u32 %v740, 2147483648
    %v747 = vsel %vm745, %v732, %v746
    %vm748 = vcmp.eq.s32.totalorder %v743, 2
    %v749 = vxor.u32 %v732, 2147483648
    %v750 = vsel %vm748, %v749, %v740
    %v751 = vsel %vm744, %v747, %v750
    %v752 = vsel %vm741, nan, %v751
    %v753 = vmul.f32 %v118, 0.25
    %v754 = vmul.f32 %v130, 0.25
    %v755 = vand.u32 2147483647, %v753
    %vm756 = vcmp.le.f32.partialorder %v755, 0.7853982
    %vm757 = vcmp.lt.s32.totalorder %v753, 0
    %v758 = vand.u32 %v753, 2139095040
    %v759 = vshrl.u32 %v758, 23
    %v760 = vsub.s32 %v759, 127
    %v761 = vand.u32 2147483647, %v753
    %v762 = vand.u32 %v761, 8388607
    %v763 = vor.u32 %v762, 8388608
    %v764 = vsub.s32 0, %v763
    %v765 = vadd.s32 %v760, 1
    %vm766 = vcmp.gt.s32.totalorder %v765, 0
    %v767 = vsel %vm766, %v765, 0
    %v768 = vshrl.u32 %v767, 5
    %v769 = vand.u32 %v767, 31
    %v770 = vsub.s32 32, %v769
    %v771 = vshrl.u32 683565275, %v770
    %v772 = vshll.u32 683565275, %v769
    %v773 = vshrl.u32 2475754826, %v770
    %v774 = vor.u32 %v772, %v773
    %v775 = vshll.u32 2475754826, %v769
    %v776 = vshrl.u32 2131351028, %v770
    %v777 = vor.u32 %v775, %v776
    %v778 = vshll.u32 2131351028, %v769
    %v779 = vshrl.u32 2102212464, %v770
    %v780 = vor.u32 %v778, %v779
    %v781 = vshll.u32 2102212464, %v769
    %v782 = vshrl.u32 920167782, %v770
    %v783 = vor.u32 %v781, %v782
    %v784 = vshll.u32 920167782, %v769
    %v785 = vshrl.u32 1326507024, %v770
    %v786 = vor.u32 %v784, %v785
    %vm787 = vcmp.lt.s32.totalorder %v768, 1
    %vm788 = vcmp.lt.s32.totalorder %v768, 2
    %vm789 = vcmp.lt.s32.totalorder %v768, 3
    %vm790 = vcmp.lt.s32.totalorder %v768, 4
    %v791 = vsel %vm787, %v771, %v774
    %v792 = vsel %vm790, %v780, 2102212464
    %v793 = vsel %vm789, %v777, %v792
    %v794 = vsel %vm788, %v791, %v793
    %v795 = vsel %vm787, %v774, %v777
    %v796 = vsel %vm790, %v783, 920167782
    %v797 = vsel %vm789, %v780, %v796
    %v798 = vsel %vm788, %v795, %v797
    %v799 = vsel %vm787, %v777, %v780
    %v800 = vsel %vm790, %v786, 1326507024
    %v801 = vsel %vm789, %v783, %v800
    %v802 = vsel %vm788, %v799, %v801
    %v803 = vshll.u32 %v763, 8
    %v804 = vand.u32 %v803, 65535
    %v805 = vshrl.u32 %v803, 16
    %v806 = vand.u32 %v802, 65535
    %v807 = vshrl.u32 %v802, 16
    %v808 = vmul.u32 %v804, %v806
    %v809 = vmul.u32 %v804, %v807
    %v810 = vmul.u32 %v805, %v806
    %v811 = vmul.u32 %v805, %v807
    %v812 = vshll.u32 %v809, 16
    %v813 = vshrl.u32 %v809, 16
    %v814 = vshll.u32 %v810, 16
    %v815 = vshrl.u32 %v810, 16
    %vm816 = vc.u32 %v808, %v812
    %v817 = vsel %vm816, 1, 0
    %v818 = vadd.s32 %v808, %v812
    %v819 = vadd.s32 %v811, %v817
    %vm820 = vc.u32 %v818, %v814
    %v821 = vsel %vm820, 1, 0
    %v822 = vadd.s32 %v818, %v814
    %v823 = vadd.s32 %v819, %v821
    %v824 = vadd.s32 %v823, %v813
    %v825 = vadd.s32 %v824, %v815
    %v826 = vand.u32 %v803, 65535
    %v827 = vshrl.u32 %v803, 16
    %v828 = vand.u32 %v798, 65535
    %v829 = vshrl.u32 %v798, 16
    %v830 = vmul.u32 %v826, %v828
    %v831 = vmul.u32 %v826, %v829
    %v832 = vmul.u32 %v827, %v828
    %v833 = vmul.u32 %v827, %v829
    %v834 = vshll.u32 %v831, 16
    %v835 = vshrl.u32 %v831, 16
    %v836 = vshll.u32 %v832, 16
    %v837 = vshrl.u32 %v832, 16
    %vm838 = vc.u32 %v830, %v834
    %v839 = vsel %vm838, 1, 0
    %v840 = vadd.s32 %v830, %v834
    %v841 = vadd.s32 %v833, %v839
    %vm842 = vc.u32 %v840, %v836
    %v843 = vsel %vm842, 1, 0
    %v844 = vadd.s32 %v840, %v836
    %v845 = vadd.s32 %v841, %v843
    %v846 = vadd.s32 %v845, %v835
    %v847 = vadd.s32 %v846, %v837
    %v848 = vmul.u32 %v803, %v794
    %v849 = vadd.s32 %v825, %v844
    %vm850 = vc.u32 %v825, %v844
    %v851 = vadd.s32 %v847, 1
    %v852 = vsel %vm850, %v851, %v847
    %v853 = vadd.s32 %v848, %v852
    %v854 = vadd.s32 %v853, 536870912
    %v855 = vshrl.u32 %v854, 30
    %v856 = vshll.u32 %v855, 30
    %v857 = vsub.s32 %v853, %v856
    %vm858 = vcmp.lt.s32.totalorder %v857, 0
    %v859 = vsub.s32 0, %v857
    %v860 = vsel %vm858, %v859, %v857
    %v861 = vclz %v860
    %v862 = vsub.s32 %v861, 2
    %vm863 = vcmp.gt.s32.totalorder 0, %v862
    %v864 = vsel %vm863, 0, %v862
    %v865 = vsub.s32 32, %v864
    %v866 = vshll.u32 %v857, %v864
    %v867 = vshrl.u32 %v849, %v865
    %v868 = vor.u32 %v866, %v867
    %v869 = vsub.s32 4294967266, %v864
    %v870 = vadd.s32 %v869, 127
    %v871 = vshll.u32 %v870, 23
    %v872 = vor.u32 4788187, %v871
    %v873 = vand.u32 2147483647, %v872
    %v875 = vcvt.s32.f32 %v868
    %v876 = vmul.f32 %v875, %v873
    %v877 = vxor.u32 %v876, 2147483648
    %v878 = vsel %vm757, %v877, %v876
    %v879 = vsub.s32 4, %v855
    %v880 = vsel %vm757, %v879, %v855
    %v881 = vsel %vm756, %v753, %v878
    %v882 = vsel %vm756, 0, %v880
    %v883 = vmul.f32 %v881, %v881
    %v884 = vmul.f32 %v883, -0.001358992
    %v885 = vadd.f32 %v884, 0.041655596
    %v886 = vmul.f32 %v883, %v885
    %v887 = vadd.f32 %v886, -0.4999988
    %v888 = vmul.f32 %v883, %v887
    %v889 = vadd.f32 1.0, %v888
    %v890 = vmul.f32 %v881, %v881
    %v891 = vmul.f32 %v890, -0.00019511016
    %v892 = vadd.f32 %v891, 0.008332121
    %v893 = vmul.f32 %v890, %v892
    %v894 = vadd.f32 %v893, -0.16666654
    %v895 = vmul.f32 %v890, %v894
    %v896 = vadd.f32 %v895, 1.0
    %v897 = vmul.f32 %v896, %v881
    %vm898 = vweird.f32 %v753
    %v899 = vadd.s32 %v882, 3
    %v900 = vand.u32 %v899, 3
    %vm901 = vcmp.lt.s32.totalorder %v900, 2
    %vm902 = vcmp.eq.s32.totalorder %v900, 0
    %v903 = vxor.u32 %v897, 2147483648
    %v904 = vsel %vm902, %v889, %v903
    %vm905 = vcmp.eq.s32.totalorder %v900, 2
    %v906 = vxor.u32 %v889, 2147483648
    %v907 = vsel %vm905, %v906, %v897
    %v908 = vsel %vm901, %v904, %v907
    %v909 = vsel %vm898, nan, %v908
    %v910 = vand.u32 2147483647, %v754
    %vm911 = vcmp.le.f32.partialorder %v910, 0.7853982
    %vm912 = vcmp.lt.s32.totalorder %v754, 0
    %v913 = vand.u32 %v754, 2139095040
    %v914 = vshrl.u32 %v913, 23
    %v915 = vsub.s32 %v914, 127
    %v916 = vand.u32 2147483647, %v754
    %v917 = vand.u32 %v916, 8388607
    %v918 = vor.u32 %v917, 8388608
    %v919 = vsub.s32 0, %v918
    %v920 = vadd.s32 %v915, 1
    %vm921 = vcmp.gt.s32.totalorder %v920, 0
    %v922 = vsel %vm921, %v920, 0
    %v923 = vshrl.u32 %v922, 5
    %v924 = vand.u32 %v922, 31
    %v925 = vsub.s32 32, %v924
    %v926 = vshrl.u32 683565275, %v925
    %v927 = vshll.u32 683565275, %v924
    %v928 = vshrl.u32 2475754826, %v925
    %v929 = vor.u32 %v927, %v928
    %v930 = vshll.u32 2475754826, %v924
    %v931 = vshrl.u32 2131351028, %v925
    %v932 = vor.u32 %v930, %v931
    %v933 = vshll.u32 2131351028, %v924
    %v934 = vshrl.u32 2102212464, %v925
    %v935 = vor.u32 %v933, %v934
    %v936 = vshll.u32 2102212464, %v924
    %v937 = vshrl.u32 920167782, %v925
    %v938 = vor.u32 %v936, %v937
    %v939 = vshll.u32 920167782, %v924
    %v940 = vshrl.u32 1326507024, %v925
    %v941 = vor.u32 %v939, %v940
    %vm942 = vcmp.lt.s32.totalorder %v923, 1
    %vm943 = vcmp.lt.s32.totalorder %v923, 2
    %vm944 = vcmp.lt.s32.totalorder %v923, 3
    %vm945 = vcmp.lt.s32.totalorder %v923, 4
    %v946 = vsel %vm942, %v926, %v929
    %v947 = vsel %vm945, %v935, 2102212464
    %v948 = vsel %vm944, %v932, %v947
    %v949 = vsel %vm943, %v946, %v948
    %v950 = vsel %vm942, %v929, %v932
    %v951 = vsel %vm945, %v938, 920167782
    %v952 = vsel %vm944, %v935, %v951
    %v953 = vsel %vm943, %v950, %v952
    %v954 = vsel %vm942, %v932, %v935
    %v955 = vsel %vm945, %v941, 1326507024
    %v956 = vsel %vm944, %v938, %v955
    %v957 = vsel %vm943, %v954, %v956
    %v958 = vshll.u32 %v918, 8
    %v959 = vand.u32 %v958, 65535
    %v960 = vshrl.u32 %v958, 16
    %v961 = vand.u32 %v957, 65535
    %v962 = vshrl.u32 %v957, 16
    %v963 = vmul.u32 %v959, %v961
    %v964 = vmul.u32 %v959, %v962
    %v965 = vmul.u32 %v960, %v961
    %v966 = vmul.u32 %v960, %v962
    %v967 = vshll.u32 %v964, 16
    %v968 = vshrl.u32 %v964, 16
    %v969 = vshll.u32 %v965, 16
    %v970 = vshrl.u32 %v965, 16
    %vm971 = vc.u32 %v963, %v967
    %v972 = vsel %vm971, 1, 0
    %v973 = vadd.s32 %v963, %v967
    %v974 = vadd.s32 %v966, %v972
    %vm975 = vc.u32 %v973, %v969
    %v976 = vsel %vm975, 1, 0
    %v977 = vadd.s32 %v973, %v969
    %v978 = vadd.s32 %v974, %v976
    %v979 = vadd.s32 %v978, %v968
    %v980 = vadd.s32 %v979, %v970
    %v981 = vand.u32 %v958, 65535
    %v982 = vshrl.u32 %v958, 16
    %v983 = vand.u32 %v953, 65535
    %v984 = vshrl.u32 %v953, 16
    %v985 = vmul.u32 %v981, %v983
    %v986 = vmul.u32 %v981, %v984
    %v987 = vmul.u32 %v982, %v983
    %v988 = vmul.u32 %v982, %v984
    %v989 = vshll.u32 %v986, 16
    %v990 = vshrl.u32 %v986, 16
    %v991 = vshll.u32 %v987, 16
    %v992 = vshrl.u32 %v987, 16
    %vm993 = vc.u32 %v985, %v989
    %v994 = vsel %vm993, 1, 0
    %v995 = vadd.s32 %v985, %v989
    %v996 = vadd.s32 %v988, %v994
    %vm997 = vc.u32 %v995, %v991
    %v998 = vsel %vm997, 1, 0
    %v999 = vadd.s32 %v995, %v991
    %v1000 = vadd.s32 %v996, %v998
    %v1001 = vadd.s32 %v1000, %v990
    %v1002 = vadd.s32 %v1001, %v992
    %v1003 = vmul.u32 %v958, %v949
    %v1004 = vadd.s32 %v980, %v999
    %vm1005 = vc.u32 %v980, %v999
    %v1006 = vadd.s32 %v1002, 1
    %v1007 = vsel %vm1005, %v1006, %v1002
    %v1008 = vadd.s32 %v1003, %v1007
    %v1009 = vadd.s32 %v1008, 536870912
    %v1010 = vshrl.u32 %v1009, 30
    %v1011 = vshll.u32 %v1010, 30
    %v1012 = vsub.s32 %v1008, %v1011
    %vm1013 = vcmp.lt.s32.totalorder %v1012, 0
    %v1014 = vsub.s32 0, %v1012
    %v1015 = vsel %vm1013, %v1014, %v1012
    %v1016 = vclz %v1015
    %v1017 = vsub.s32 %v1016, 2
    %vm1018 = vcmp.gt.s32.totalorder 0, %v1017
    %v1019 = vsel %vm1018, 0, %v1017
    %v1020 = vsub.s32 32, %v1019
    %v1021 = vshll.u32 %v1012, %v1019
    %v1022 = vshrl.u32 %v1004, %v1020
    %v1023 = vor.u32 %v1021, %v1022
    %v1024 = vsub.s32 4294967266, %v1019
    %v1025 = vadd.s32 %v1024, 127
    %v1026 = vshll.u32 %v1025, 23
    %v1027 = vor.u32 4788187, %v1026
    %v1028 = vand.u32 2147483647, %v1027
    %v1030 = vcvt.s32.f32 %v1023
    %v1031 = vmul.f32 %v1030, %v1028
    %v1032 = vxor.u32 %v1031, 2147483648
    %v1033 = vsel %vm912, %v1032, %v1031
    %v1034 = vsub.s32 4, %v1010
    %v1035 = vsel %vm912, %v1034, %v1010
    %v1036 = vsel %vm911, %v754, %v1033
    %v1037 = vsel %vm911, 0, %v1035
    %v1038 = vmul.f32 %v1036, %v1036
    %v1039 = vmul.f32 %v1038, -0.001358992
    %v1040 = vadd.f32 %v1039, 0.041655596
    %v1041 = vmul.f32 %v1038, %v1040
    %v1042 = vadd.f32 %v1041, -0.4999988
    %v1043 = vmul.f32 %v1038, %v1042
    %v1044 = vadd.f32 1.0, %v1043
    %v1045 = vmul.f32 %v1036, %v1036
    %v1046 = vmul.f32 %v1045, -0.00019511016
    %v1047 = vadd.f32 %v1046, 0.008332121
    %v1048 = vmul.f32 %v1045, %v1047
    %v1049 = vadd.f32 %v1048, -0.16666654
    %v1050 = vmul.f32 %v1045, %v1049
    %v1051 = vadd.f32 %v1050, 1.0
    %v1052 = vmul.f32 %v1051, %v1036
    %vm1053 = vweird.f32 %v754
    %v1054 = vadd.s32 %v1037, 3
    %v1055 = vand.u32 %v1054, 3
    %vm1056 = vcmp.lt.s32.totalorder %v1055, 2
    %vm1057 = vcmp.eq.s32.totalorder %v1055, 0
    %v1058 = vxor.u32 %v1052, 2147483648
    %v1059 = vsel %vm1057, %v1044, %v1058
    %vm1060 = vcmp.eq.s32.totalorder %v1055, 2
    %v1061 = vxor.u32 %v1044, 2147483648
    %v1062 = vsel %vm1060, %v1061, %v1052
    %v1063 = vsel %vm1056, %v1059, %v1062
    %v1064 = vsel %vm1053, nan, %v1063
    %v1065 = vmul.f32 %v118, 0.125
    %v1066 = vmul.f32 %v130, 0.125
    %v1067 = vand.u32 2147483647, %v1065
    %vm1068 = vcmp.le.f32.partialorder %v1067, 0.7853982
    %vm1069 = vcmp.lt.s32.totalorder %v1065, 0
    %v1070 = vand.u32 %v1065, 2139095040
    %v1071 = vshrl.u32 %v1070, 23
    %v1072 = vsub.s32 %v1071, 127
    %v1073 = vand.u32 2147483647, %v1065
    %v1074 = vand.u32 %v1073, 8388607
    %v1075 = vor.u32 %v1074, 8388608
    %v1076 = vsub.s32 0, %v1075
    %v1077 = vadd.s32 %v1072, 1
    %vm1078 = vcmp.gt.s32.totalorder %v1077, 0
    %v1079 = vsel %vm1078, %v1077, 0
    %v1080 = vshrl.u32 %v1079, 5
    %v1081 = vand.u32 %v1079, 31
    %v1082 = vsub.s32 32, %v1081
    %v1083 = vshrl.u32 683565275, %v1082
    %v1084 = vshll.u32 683565275, %v1081
    %v1085 = vshrl.u32 2475754826, %v1082
    %v1086 = vor.u32 %v1084, %v1085
    %v1087 = vshll.u32 2475754826, %v1081
    %v1088 = vshrl.u32 2131351028, %v1082
    %v1089 = vor.u32 %v1087, %v1088
    %v1090 = vshll.u32 2131351028, %v1081
    %v1091 = vshrl.u32 2102212464, %v1082
    %v1092 = vor.u32 %v1090, %v1091
    %v1093 = vshll.u32 2102212464, %v1081
    %v1094 = vshrl.u32 920167782, %v1082
    %v1095 = vor.u32 %v1093, %v1094
    %v1096 = vshll.u32 920167782, %v1081
    %v1097 = vshrl.u32 1326507024, %v1082
    %v1098 = vor.u32 %v1096, %v1097
    %vm1099 = vcmp.lt.s32.totalorder %v1080, 1
    %vm1100 = vcmp.lt.s32.totalorder %v1080, 2
    %vm1101 = vcmp.lt.s32.totalorder %v1080, 3
    %vm1102 = vcmp.lt.s32.totalorder %v1080, 4
    %v1103 = vsel %vm1099, %v1083, %v1086
    %v1104 = vsel %vm1102, %v1092, 2102212464
    %v1105 = vsel %vm1101, %v1089, %v1104
    %v1106 = vsel %vm1100, %v1103, %v1105
    %v1107 = vsel %vm1099, %v1086, %v1089
    %v1108 = vsel %vm1102, %v1095, 920167782
    %v1109 = vsel %vm1101, %v1092, %v1108
    %v1110 = vsel %vm1100, %v1107, %v1109
    %v1111 = vsel %vm1099, %v1089, %v1092
    %v1112 = vsel %vm1102, %v1098, 1326507024
    %v1113 = vsel %vm1101, %v1095, %v1112
    %v1114 = vsel %vm1100, %v1111, %v1113
    %v1115 = vshll.u32 %v1075, 8
    %v1116 = vand.u32 %v1115, 65535
    %v1117 = vshrl.u32 %v1115, 16
    %v1118 = vand.u32 %v1114, 65535
    %v1119 = vshrl.u32 %v1114, 16
    %v1120 = vmul.u32 %v1116, %v1118
    %v1121 = vmul.u32 %v1116, %v1119
    %v1122 = vmul.u32 %v1117, %v1118
    %v1123 = vmul.u32 %v1117, %v1119
    %v1124 = vshll.u32 %v1121, 16
    %v1125 = vshrl.u32 %v1121, 16
    %v1126 = vshll.u32 %v1122, 16
    %v1127 = vshrl.u32 %v1122, 16
    %vm1128 = vc.u32 %v1120, %v1124
    %v1129 = vsel %vm1128, 1, 0
    %v1130 = vadd.s32 %v1120, %v1124
    %v1131 = vadd.s32 %v1123, %v1129
    %vm1132 = vc.u32 %v1130, %v1126
    %v1133 = vsel %vm1132, 1, 0
    %v1134 = vadd.s32 %v1130, %v1126
    %v1135 = vadd.s32 %v1131, %v1133
    %v1136 = vadd.s32 %v1135, %v1125
    %v1137 = vadd.s32 %v1136, %v1127
    %v1138 = vand.u32 %v1115, 65535
    %v1139 = vshrl.u32 %v1115, 16
    %v1140 = vand.u32 %v1110, 65535
    %v1141 = vshrl.u32 %v1110, 16
    %v1142 = vmul.u32 %v1138, %v1140
    %v1143 = vmul.u32 %v1138, %v1141
    %v1144 = vmul.u32 %v1139, %v1140
    %v1145 = vmul.u32 %v1139, %v1141
    %v1146 = vshll.u32 %v1143, 16
    %v1147 = vshrl.u32 %v1143, 16
    %v1148 = vshll.u32 %v1144, 16
    %v1149 = vshrl.u32 %v1144, 16
    %vm1150 = vc.u32 %v1142, %v1146
    %v1151 = vsel %vm1150, 1, 0
    %v1152 = vadd.s32 %v1142, %v1146
    %v1153 = vadd.s32 %v1145, %v1151
    %vm1154 = vc.u32 %v1152, %v1148
    %v1155 = vsel %vm1154, 1, 0
    %v1156 = vadd.s32 %v1152, %v1148
    %v1157 = vadd.s32 %v1153, %v1155
    %v1158 = vadd.s32 %v1157, %v1147
    %v1159 = vadd.s32 %v1158, %v1149
    %v1160 = vmul.u32 %v1115, %v1106
    %v1161 = vadd.s32 %v1137, %v1156
    %vm1162 = vc.u32 %v1137, %v1156
    %v1163 = vadd.s32 %v1159, 1
    %v1164 = vsel %vm1162, %v1163, %v1159
    %v1165 = vadd.s32 %v1160, %v1164
    %v1166 = vadd.s32 %v1165, 536870912
    %v1167 = vshrl.u32 %v1166, 30
    %v1168 = vshll.u32 %v1167, 30
    %v1169 = vsub.s32 %v1165, %v1168
    %vm1170 = vcmp.lt.s32.totalorder %v1169, 0
    %v1171 = vsub.s32 0, %v1169
    %v1172 = vsel %vm1170, %v1171, %v1169
    %v1173 = vclz %v1172
    %v1174 = vsub.s32 %v1173, 2
    %vm1175 = vcmp.gt.s32.totalorder 0, %v1174
    %v1176 = vsel %vm1175, 0, %v1174
    %v1177 = vsub.s32 32, %v1176
    %v1178 = vshll.u32 %v1169, %v1176
    %v1179 = vshrl.u32 %v1161, %v1177
    %v1180 = vor.u32 %v1178, %v1179
    %v1181 = vsub.s32 4294967266, %v1176
    %v1182 = vadd.s32 %v1181, 127
    %v1183 = vshll.u32 %v1182, 23
    %v1184 = vor.u32 4788187, %v1183
    %v1185 = vand.u32 2147483647, %v1184
    %v1187 = vcvt.s32.f32 %v1180
    %v1188 = vmul.f32 %v1187, %v1185
    %v1189 = vxor.u32 %v1188, 2147483648
    %v1190 = vsel %vm1069, %v1189, %v1188
    %v1191 = vsub.s32 4, %v1167
    %v1192 = vsel %vm1069, %v1191, %v1167
    %v1193 = vsel %vm1068, %v1065, %v1190
    %v1194 = vsel %vm1068, 0, %v1192
    %v1195 = vmul.f32 %v1193, %v1193
    %v1196 = vmul.f32 %v1195, -0.001358992
    %v1197 = vadd.f32 %v1196, 0.041655596
    %v1198 = vmul.f32 %v1195, %v1197
    %v1199 = vadd.f32 %v1198, -0.4999988
    %v1200 = vmul.f32 %v1195, %v1199
    %v1201 = vadd.f32 1.0, %v1200
    %v1202 = vmul.f32 %v1193, %v1193
    %v1203 = vmul.f32 %v1202, -0.00019511016
    %v1204 = vadd.f32 %v1203, 0.008332121
    %v1205 = vmul.f32 %v1202, %v1204
    %v1206 = vadd.f32 %v1205, -0.16666654
    %v1207 = vmul.f32 %v1202, %v1206
    %v1208 = vadd.f32 %v1207, 1.0
    %v1209 = vmul.f32 %v1208, %v1193
    %vm1210 = vweird.f32 %v1065
    %v1211 = vadd.s32 %v1194, 3
    %v1212 = vand.u32 %v1211, 3
    %vm1213 = vcmp.lt.s32.totalorder %v1212, 2
    %vm1214 = vcmp.eq.s32.totalorder %v1212, 0
    %v1215 = vxor.u32 %v1209, 2147483648
    %v1216 = vsel %vm1214, %v1201, %v1215
    %vm1217 = vcmp.eq.s32.totalorder %v1212, 2
    %v1218 = vxor.u32 %v1201, 2147483648
    %v1219 = vsel %vm1217, %v1218, %v1209
    %v1220 = vsel %vm1213, %v1216, %v1219
    %v1221 = vsel %vm1210, nan, %v1220
    %v1222 = vand.u32 2147483647, %v1066
    %vm1223 = vcmp.le.f32.partialorder %v1222, 0.7853982
    %vm1224 = vcmp.lt.s32.totalorder %v1066, 0
    %v1225 = vand.u32 %v1066, 2139095040
    %v1226 = vshrl.u32 %v1225, 23
    %v1227 = vsub.s32 %v1226, 127
    %v1228 = vand.u32 2147483647, %v1066
    %v1229 = vand.u32 %v1228, 8388607
    %v1230 = vor.u32 %v1229, 8388608
    %v1231 = vsub.s32 0, %v1230
    %v1232 = vadd.s32 %v1227, 1
    %vm1233 = vcmp.gt.s32.totalorder %v1232, 0
    %v1234 = vsel %vm1233, %v1232, 0
    %v1235 = vshrl.u32 %v1234, 5
    %v1236 = vand.u32 %v1234, 31
    %v1237 = vsub.s32 32, %v1236
    %v1238 = vshrl.u32 683565275, %v1237
    %v1239 = vshll.u32 683565275, %v1236
    %v1240 = vshrl.u32 2475754826, %v1237
    %v1241 = vor.u32 %v1239, %v1240
    %v1242 = vshll.u32 2475754826, %v1236
    %v1243 = vshrl.u32 2131351028, %v1237
    %v1244 = vor.u32 %v1242, %v1243
    %v1245 = vshll.u32 2131351028, %v1236
    %v1246 = vshrl.u32 2102212464, %v1237
    %v1247 = vor.u32 %v1245, %v1246
    %v1248 = vshll.u32 2102212464, %v1236
    %v1249 = vshrl.u32 920167782, %v1237
    %v1250 = vor.u32 %v1248, %v1249
    %v1251 = vshll.u32 920167782, %v1236
    %v1252 = vshrl.u32 1326507024, %v1237
    %v1253 = vor.u32 %v1251, %v1252
    %vm1254 = vcmp.lt.s32.totalorder %v1235, 1
    %vm1255 = vcmp.lt.s32.totalorder %v1235, 2
    %vm1256 = vcmp.lt.s32.totalorder %v1235, 3
    %vm1257 = vcmp.lt.s32.totalorder %v1235, 4
    %v1258 = vsel %vm1254, %v1238, %v1241
    %v1259 = vsel %vm1257, %v1247, 2102212464
    %v1260 = vsel %vm1256, %v1244, %v1259
    %v1261 = vsel %vm1255, %v1258, %v1260
    %v1262 = vsel %vm1254, %v1241, %v1244
    %v1263 = vsel %vm1257, %v1250, 920167782
    %v1264 = vsel %vm1256, %v1247, %v1263
    %v1265 = vsel %vm1255, %v1262, %v1264
    %v1266 = vsel %vm1254, %v1244, %v1247
    %v1267 = vsel %vm1257, %v1253, 1326507024
    %v1268 = vsel %vm1256, %v1250, %v1267
    %v1269 = vsel %vm1255, %v1266, %v1268
    %v1270 = vshll.u32 %v1230, 8
    %v1271 = vand.u32 %v1270, 65535
    %v1272 = vshrl.u32 %v1270, 16
    %v1273 = vand.u32 %v1269, 65535
    %v1274 = vshrl.u32 %v1269, 16
    %v1275 = vmul.u32 %v1271, %v1273
    %v1276 = vmul.u32 %v1271, %v1274
    %v1277 = vmul.u32 %v1272, %v1273
    %v1278 = vmul.u32 %v1272, %v1274
    %v1279 = vshll.u32 %v1276, 16
    %v1280 = vshrl.u32 %v1276, 16
    %v1281 = vshll.u32 %v1277, 16
    %v1282 = vshrl.u32 %v1277, 16
    %vm1283 = vc.u32 %v1275, %v1279
    %v1284 = vsel %vm1283, 1, 0
    %v1285 = vadd.s32 %v1275, %v1279
    %v1286 = vadd.s32 %v1278, %v1284
    %vm1287 = vc.u32 %v1285, %v1281
    %v1288 = vsel %vm1287, 1, 0
    %v1289 = vadd.s32 %v1285, %v1281
    %v1290 = vadd.s32 %v1286, %v1288
    %v1291 = vadd.s32 %v1290, %v1280
    %v1292 = vadd.s32 %v1291, %v1282
    %v1293 = vand.u32 %v1270, 65535
    %v1294 = vshrl.u32 %v1270, 16
    %v1295 = vand.u32 %v1265, 65535
    %v1296 = vshrl.u32 %v1265, 16
    %v1297 = vmul.u32 %v1293, %v1295
    %v1298 = vmul.u32 %v1293, %v1296
    %v1299 = vmul.u32 %v1294, %v1295
    %v1300 = vmul.u32 %v1294, %v1296
    %v1301 = vshll.u32 %v1298, 16
    %v1302 = vshrl.u32 %v1298, 16
    %v1303 = vshll.u32 %v1299, 16
    %v1304 = vshrl.u32 %v1299, 16
    %vm1305 = vc.u32 %v1297, %v1301
    %v1306 = vsel %vm1305, 1, 0
    %v1307 = vadd.s32 %v1297, %v1301
    %v1308 = vadd.s32 %v1300, %v1306
    %vm1309 = vc.u32 %v1307, %v1303
    %v1310 = vsel %vm1309, 1, 0
    %v1311 = vadd.s32 %v1307, %v1303
    %v1312 = vadd.s32 %v1308, %v1310
    %v1313 = vadd.s32 %v1312, %v1302
    %v1314 = vadd.s32 %v1313, %v1304
    %v1315 = vmul.u32 %v1270, %v1261
    %v1316 = vadd.s32 %v1292, %v1311
    %vm1317 = vc.u32 %v1292, %v1311
    %v1318 = vadd.s32 %v1314, 1
    %v1319 = vsel %vm1317, %v1318, %v1314
    %v1320 = vadd.s32 %v1315, %v1319
    %v1321 = vadd.s32 %v1320, 536870912
    %v1322 = vshrl.u32 %v1321, 30
    %v1323 = vshll.u32 %v1322, 30
    %v1324 = vsub.s32 %v1320, %v1323
    %vm1325 = vcmp.lt.s32.totalorder %v1324, 0
    %v1326 = vsub.s32 0, %v1324
    %v1327 = vsel %vm1325, %v1326, %v1324
    %v1328 = vclz %v1327
    %v1329 = vsub.s32 %v1328, 2
    %vm1330 = vcmp.gt.s32.totalorder 0, %v1329
    %v1331 = vsel %vm1330, 0, %v1329
    %v1332 = vsub.s32 32, %v1331
    %v1333 = vshll.u32 %v1324, %v1331
    %v1334 = vshrl.u32 %v1316, %v1332
    %v1335 = vor.u32 %v1333, %v1334
    %v1336 = vsub.s32 4294967266, %v1331
    %v1337 = vadd.s32 %v1336, 127
    %v1338 = vshll.u32 %v1337, 23
    %v1339 = vor.u32 4788187, %v1338
    %v1340 = vand.u32 2147483647, %v1339
    %v1342 = vcvt.s32.f32 %v1335
    %v1343 = vmul.f32 %v1342, %v1340
    %v1344 = vxor.u32 %v1343, 2147483648
    %v1345 = vsel %vm1224, %v1344, %v1343
    %v1346 = vsub.s32 4, %v1322
    %v1347 = vsel %vm1224, %v1346, %v1322
    %v1348 = vsel %vm1223, %v1066, %v1345
    %v1349 = vsel %vm1223, 0, %v1347
    %v1350 = vmul.f32 %v1348, %v1348
    %v1351 = vmul.f32 %v1350, -0.001358992
    %v1352 = vadd.f32 %v1351, 0.041655596
    %v1353 = vmul.f32 %v1350, %v1352
    %v1354 = vadd.f32 %v1353, -0.4999988
    %v1355 = vmul.f32 %v1350, %v1354
    %v1356 = vadd.f32 1.0, %v1355
    %v1357 = vmul.f32 %v1348, %v1348
    %v1358 = vmul.f32 %v1357, -0.00019511016
    %v1359 = vadd.f32 %v1358, 0.008332121
    %v1360 = vmul.f32 %v1357, %v1359
    %v1361 = vadd.f32 %v1360, -0.16666654
    %v1362 = vmul.f32 %v1357, %v1361
    %v1363 = vadd.f32 %v1362, 1.0
    %v1364 = vmul.f32 %v1363, %v1348
    %vm1365 = vweird.f32 %v1066
    %v1366 = vadd.s32 %v1349, 3
    %v1367 = vand.u32 %v1366, 3
    %vm1368 = vcmp.lt.s32.totalorder %v1367, 2
    %vm1369 = vcmp.eq.s32.totalorder %v1367, 0
    %v1370 = vxor.u32 %v1364, 2147483648
    %v1371 = vsel %vm1369, %v1356, %v1370
    %vm1372 = vcmp.eq.s32.totalorder %v1367, 2
    %v1373 = vxor.u32 %v1356, 2147483648
    %v1374 = vsel %vm1372, %v1373, %v1364
    %v1375 = vsel %vm1368, %v1371, %v1374
    %v1376 = vsel %vm1365, nan, %v1375
    %v1377 = vmul.f32 %v118, 0.0625
    %v1378 = vmul.f32 %v130, 0.0625
    %v1379 = vand.u32 2147483647, %v1377
    %vm1380 = vcmp.le.f32.partialorder %v1379, 0.7853982
    %vm1381 = vcmp.lt.s32.totalorder %v1377, 0
    %v1382 = vand.u32 %v1377, 2139095040
    %v1383 = vshrl.u32 %v1382, 23
    %v1384 = vsub.s32 %v1383, 127
    %v1385 = vand.u32 2147483647, %v1377
    %v1386 = vand.u32 %v1385, 8388607
    %v1387 = vor.u32 %v1386, 8388608
    %v1388 = vsub.s32 0, %v1387
    %v1389 = vadd.s32 %v1384, 1
    %vm1390 = vcmp.gt.s32.totalorder %v1389, 0
    %v1391 = vsel %vm1390, %v1389, 0
    %v1392 = vshrl.u32 %v1391, 5
    %v1393 = vand.u32 %v1391, 31
    %v1394 = vsub.s32 32, %v1393
    %v1395 = vshrl.u32 683565275, %v1394
    %v1396 = vshll.u32 683565275, %v1393
    %v1397 = vshrl.u32 2475754826, %v1394
    %v1398 = vor.u32 %v1396, %v1397
    %v1399 = vshll.u32 2475754826, %v1393
    %v1400 = vshrl.u32 2131351028, %v1394
    %v1401 = vor.u32 %v1399, %v1400
    %v1402 = vshll.u32 2131351028, %v1393
    %v1403 = vshrl.u32 2102212464, %v1394
    %v1404 = vor.u32 %v1402, %v1403
    %v1405 = vshll.u32 2102212464, %v1393
    %v1406 = vshrl.u32 920167782, %v1394
    %v1407 = vor.u32 %v1405, %v1406
    %v1408 = vshll.u32 920167782, %v1393
    %v1409 = vshrl.u32 1326507024, %v1394
    %v1410 = vor.u32 %v1408, %v1409
    %vm1411 = vcmp.lt.s32.totalorder %v1392, 1
    %vm1412 = vcmp.lt.s32.totalorder %v1392, 2
    %vm1413 = vcmp.lt.s32.totalorder %v1392, 3
    %vm1414 = vcmp.lt.s32.totalorder %v1392, 4
    %v1415 = vsel %vm1411, %v1395, %v1398
    %v1416 = vsel %vm1414, %v1404, 2102212464
    %v1417 = vsel %vm1413, %v1401, %v1416
    %v1418 = vsel %vm1412, %v1415, %v1417
    %v1419 = vsel %vm1411, %v1398, %v1401
    %v1420 = vsel %vm1414, %v1407, 920167782
    %v1421 = vsel %vm1413, %v1404, %v1420
    %v1422 = vsel %vm1412, %v1419, %v1421
    %v1423 = vsel %vm1411, %v1401, %v1404
    %v1424 = vsel %vm1414, %v1410, 1326507024
    %v1425 = vsel %vm1413, %v1407, %v1424
    %v1426 = vsel %vm1412, %v1423, %v1425
    %v1427 = vshll.u32 %v1387, 8
    %v1428 = vand.u32 %v1427, 65535
    %v1429 = vshrl.u32 %v1427, 16
    %v1430 = vand.u32 %v1426, 65535
    %v1431 = vshrl.u32 %v1426, 16
    %v1432 = vmul.u32 %v1428, %v1430
    %v1433 = vmul.u32 %v1428, %v1431
    %v1434 = vmul.u32 %v1429, %v1430
    %v1435 = vmul.u32 %v1429, %v1431
    %v1436 = vshll.u32 %v1433, 16
    %v1437 = vshrl.u32 %v1433, 16
    %v1438 = vshll.u32 %v1434, 16
    %v1439 = vshrl.u32 %v1434, 16
    %vm1440 = vc.u32 %v1432, %v1436
    %v1441 = vsel %vm1440, 1, 0
    %v1442 = vadd.s32 %v1432, %v1436
    %v1443 = vadd.s32 %v1435, %v1441
    %vm1444 = vc.u32 %v1442, %v1438
    %v1445 = vsel %vm1444, 1, 0
    %v1446 = vadd.s32 %v1442, %v1438
    %v1447 = vadd.s32 %v1443, %v1445
    %v1448 = vadd.s32 %v1447, %v1437
    %v1449 = vadd.s32 %v1448, %v1439
    %v1450 = vand.u32 %v1427, 65535
    %v1451 = vshrl.u32 %v1427, 16
    %v1452 = vand.u32 %v1422, 65535
    %v1453 = vshrl.u32 %v1422, 16
    %v1454 = vmul.u32 %v1450, %v1452
    %v1455 = vmul.u32 %v1450, %v1453
    %v1456 = vmul.u32 %v1451, %v1452
    %v1457 = vmul.u32 %v1451, %v1453
    %v1458 = vshll.u32 %v1455, 16
    %v1459 = vshrl.u32 %v1455, 16
    %v1460 = vshll.u32 %v1456, 16
    %v1461 = vshrl.u32 %v1456, 16
    %vm1462 = vc.u32 %v1454, %v1458
    %v1463 = vsel %vm1462, 1, 0
    %v1464 = vadd.s32 %v1454, %v1458
    %v1465 = vadd.s32 %v1457, %v1463
    %vm1466 = vc.u32 %v1464, %v1460
    %v1467 = vsel %vm1466, 1, 0
    %v1468 = vadd.s32 %v1464, %v1460
    %v1469 = vadd.s32 %v1465, %v1467
    %v1470 = vadd.s32 %v1469, %v1459
    %v1471 = vadd.s32 %v1470, %v1461
    %v1472 = vmul.u32 %v1427, %v1418
    %v1473 = vadd.s32 %v1449, %v1468
    %vm1474 = vc.u32 %v1449, %v1468
    %v1475 = vadd.s32 %v1471, 1
    %v1476 = vsel %vm1474, %v1475, %v1471
    %v1477 = vadd.s32 %v1472, %v1476
    %v1478 = vadd.s32 %v1477, 536870912
    %v1479 = vshrl.u32 %v1478, 30
    %v1480 = vshll.u32 %v1479, 30
    %v1481 = vsub.s32 %v1477, %v1480
    %vm1482 = vcmp.lt.s32.totalorder %v1481, 0
    %v1483 = vsub.s32 0, %v1481
    %v1484 = vsel %vm1482, %v1483, %v1481
    %v1485 = vclz %v1484
    %v1486 = vsub.s32 %v1485, 2
    %vm1487 = vcmp.gt.s32.totalorder 0, %v1486
    %v1488 = vsel %vm1487, 0, %v1486
    %v1489 = vsub.s32 32, %v1488
    %v1490 = vshll.u32 %v1481, %v1488
    %v1491 = vshrl.u32 %v1473, %v1489
    %v1492 = vor.u32 %v1490, %v1491
    %v1493 = vsub.s32 4294967266, %v1488
    %v1494 = vadd.s32 %v1493, 127
    %v1495 = vshll.u32 %v1494, 23
    %v1496 = vor.u32 4788187, %v1495
    %v1497 = vand.u32 2147483647, %v1496
    %v1499 = vcvt.s32.f32 %v1492
    %v1500 = vmul.f32 %v1499, %v1497
    %v1501 = vxor.u32 %v1500, 2147483648
    %v1502 = vsel %vm1381, %v1501, %v1500
    %v1503 = vsub.s32 4, %v1479
    %v1504 = vsel %vm1381, %v1503, %v1479
    %v1505 = vsel %vm1380, %v1377, %v1502
    %v1506 = vsel %vm1380, 0, %v1504
    %v1507 = vmul.f32 %v1505, %v1505
    %v1508 = vmul.f32 %v1507, -0.001358992
    %v1509 = vadd.f32 %v1508, 0.041655596
    %v1510 = vmul.f32 %v1507, %v1509
    %v1511 = vadd.f32 %v1510, -0.4999988
    %v1512 = vmul.f32 %v1507, %v1511
    %v1513 = vadd.f32 1.0, %v1512
    %v1514 = vmul.f32 %v1505, %v1505
    %v1515 = vmul.f32 %v1514, -0.00019511016
    %v1516 = vadd.f32 %v1515, 0.008332121
    %v1517 = vmul.f32 %v1514, %v1516
    %v1518 = vadd.f32 %v1517, -0.16666654
    %v1519 = vmul.f32 %v1514, %v1518
    %v1520 = vadd.f32 %v1519, 1.0
    %v1521 = vmul.f32 %v1520, %v1505
    %vm1522 = vweird.f32 %v1377
    %v1523 = vadd.s32 %v1506, 3
    %v1524 = vand.u32 %v1523, 3
    %vm1525 = vcmp.lt.s32.totalorder %v1524, 2
    %vm1526 = vcmp.eq.s32.totalorder %v1524, 0
    %v1527 = vxor.u32 %v1521, 2147483648
    %v1528 = vsel %vm1526, %v1513, %v1527
    %vm1529 = vcmp.eq.s32.totalorder %v1524, 2
    %v1530 = vxor.u32 %v1513, 2147483648
    %v1531 = vsel %vm1529, %v1530, %v1521
    %v1532 = vsel %vm1525, %v1528, %v1531
    %v1533 = vsel %vm1522, nan, %v1532
    %v1534 = vand.u32 2147483647, %v1378
    %vm1535 = vcmp.le.f32.partialorder %v1534, 0.7853982
    %vm1536 = vcmp.lt.s32.totalorder %v1378, 0
    %v1537 = vand.u32 %v1378, 2139095040
    %v1538 = vshrl.u32 %v1537, 23
    %v1539 = vsub.s32 %v1538, 127
    %v1540 = vand.u32 2147483647, %v1378
    %v1541 = vand.u32 %v1540, 8388607
    %v1542 = vor.u32 %v1541, 8388608
    %v1543 = vsub.s32 0, %v1542
    %v1544 = vadd.s32 %v1539, 1
    %vm1545 = vcmp.gt.s32.totalorder %v1544, 0
    %v1546 = vsel %vm1545, %v1544, 0
    %v1547 = vshrl.u32 %v1546, 5
    %v1548 = vand.u32 %v1546, 31
    %v1549 = vsub.s32 32, %v1548
    %v1550 = vshrl.u32 683565275, %v1549
    %v1551 = vshll.u32 683565275, %v1548
    %v1552 = vshrl.u32 2475754826, %v1549
    %v1553 = vor.u32 %v1551, %v1552
    %v1554 = vshll.u32 2475754826, %v1548
    %v1555 = vshrl.u32 2131351028, %v1549
    %v1556 = vor.u32 %v1554, %v1555
    %v1557 = vshll.u32 2131351028, %v1548
    %v1558 = vshrl.u32 2102212464, %v1549
    %v1559 = vor.u32 %v1557, %v1558
    %v1560 = vshll.u32 2102212464, %v1548
    %v1561 = vshrl.u32 920167782, %v1549
    %v1562 = vor.u32 %v1560, %v1561
    %v1563 = vshll.u32 920167782, %v1548
    %v1564 = vshrl.u32 1326507024, %v1549
    %v1565 = vor.u32 %v1563, %v1564
    %vm1566 = vcmp.lt.s32.totalorder %v1547, 1
    %vm1567 = vcmp.lt.s32.totalorder %v1547, 2
    %vm1568 = vcmp.lt.s32.totalorder %v1547, 3
    %vm1569 = vcmp.lt.s32.totalorder %v1547, 4
    %v1570 = vsel %vm1566, %v1550, %v1553
    %v1571 = vsel %vm1569, %v1559, 2102212464
    %v1572 = vsel %vm1568, %v1556, %v1571
    %v1573 = vsel %vm1567, %v1570, %v1572
    %v1574 = vsel %vm1566, %v1553, %v1556
    %v1575 = vsel %vm1569, %v1562, 920167782
    %v1576 = vsel %vm1568, %v1559, %v1575
    %v1577 = vsel %vm1567, %v1574, %v1576
    %v1578 = vsel %vm1566, %v1556, %v1559
    %v1579 = vsel %vm1569, %v1565, 1326507024
    %v1580 = vsel %vm1568, %v1562, %v1579
    %v1581 = vsel %vm1567, %v1578, %v1580
    %v1582 = vshll.u32 %v1542, 8
    %v1583 = vand.u32 %v1582, 65535
    %v1584 = vshrl.u32 %v1582, 16
    %v1585 = vand.u32 %v1581, 65535
    %v1586 = vshrl.u32 %v1581, 16
    %v1587 = vmul.u32 %v1583, %v1585
    %v1588 = vmul.u32 %v1583, %v1586
    %v1589 = vmul.u32 %v1584, %v1585
    %v1590 = vmul.u32 %v1584, %v1586
    %v1591 = vshll.u32 %v1588, 16
    %v1592 = vshrl.u32 %v1588, 16
    %v1593 = vshll.u32 %v1589, 16
    %v1594 = vshrl.u32 %v1589, 16
    %vm1595 = vc.u32 %v1587, %v1591
    %v1596 = vsel %vm1595, 1, 0
    %v1597 = vadd.s32 %v1587, %v1591
    %v1598 = vadd.s32 %v1590, %v1596
    %vm1599 = vc.u32 %v1597, %v1593
    %v1600 = vsel %vm1599, 1, 0
    %v1601 = vadd.s32 %v1597, %v1593
    %v1602 = vadd.s32 %v1598, %v1600
    %v1603 = vadd.s32 %v1602, %v1592
    %v1604 = vadd.s32 %v1603, %v1594
    %v1605 = vand.u32 %v1582, 65535
    %v1606 = vshrl.u32 %v1582, 16
    %v1607 = vand.u32 %v1577, 65535
    %v1608 = vshrl.u32 %v1577, 16
    %v1609 = vmul.u32 %v1605, %v1607
    %v1610 = vmul.u32 %v1605, %v1608
    %v1611 = vmul.u32 %v1606, %v1607
    %v1612 = vmul.u32 %v1606, %v1608
    %v1613 = vshll.u32 %v1610, 16
    %v1614 = vshrl.u32 %v1610, 16
    %v1615 = vshll.u32 %v1611, 16
    %v1616 = vshrl.u32 %v1611, 16
    %vm1617 = vc.u32 %v1609, %v1613
    %v1618 = vsel %vm1617, 1, 0
    %v1619 = vadd.s32 %v1609, %v1613
    %v1620 = vadd.s32 %v1612, %v1618
    %vm1621 = vc.u32 %v1619, %v1615
    %v1622 = vsel %vm1621, 1, 0
    %v1623 = vadd.s32 %v1619, %v1615
    %v1624 = vadd.s32 %v1620, %v1622
    %v1625 = vadd.s32 %v1624, %v1614
    %v1626 = vadd.s32 %v1625, %v1616
    %v1627 = vmul.u32 %v1582, %v1573
    %v1628 = vadd.s32 %v1604, %v1623
    %vm1629 = vc.u32 %v1604, %v1623
    %v1630 = vadd.s32 %v1626, 1
    %v1631 = vsel %vm1629, %v1630, %v1626
    %v1632 = vadd.s32 %v1627, %v1631
    %v1633 = vadd.s32 %v1632, 536870912
    %v1634 = vshrl.u32 %v1633, 30
    %v1635 = vshll.u32 %v1634, 30
    %v1636 = vsub.s32 %v1632, %v1635
    %vm1637 = vcmp.lt.s32.totalorder %v1636, 0
    %v1638 = vsub.s32 0, %v1636
    %v1639 = vsel %vm1637, %v1638, %v1636
    %v1640 = vclz %v1639
    %v1641 = vsub.s32 %v1640, 2
    %vm1642 = vcmp.gt.s32.totalorder 0, %v1641
    %v1643 = vsel %vm1642, 0, %v1641
    %v1644 = vsub.s32 32, %v1643
    %v1645 = vshll.u32 %v1636, %v1643
    %v1646 = vshrl.u32 %v1628, %v1644
    %v1647 = vor.u32 %v1645, %v1646
    %v1648 = vsub.s32 4294967266, %v1643
    %v1649 = vadd.s32 %v1648, 127
    %v1650 = vshll.u32 %v1649, 23
    %v1651 = vor.u32 4788187, %v1650
    %v1652 = vand.u32 2147483647, %v1651
    %v1654 = vcvt.s32.f32 %v1647
    %v1655 = vmul.f32 %v1654, %v1652
    %v1656 = vxor.u32 %v1655, 2147483648
    %v1657 = vsel %vm1536, %v1656, %v1655
    %v1658 = vsub.s32 4, %v1634
    %v1659 = vsel %vm1536, %v1658, %v1634
    %v1660 = vsel %vm1535, %v1378, %v1657
    %v1661 = vsel %vm1535, 0, %v1659
    %v1662 = vmul.f32 %v1660, %v1660
    %v1663 = vmul.f32 %v1662, -0.001358992
    %v1664 = vadd.f32 %v1663, 0.041655596
    %v1665 = vmul.f32 %v1662, %v1664
    %v1666 = vadd.f32 %v1665, -0.4999988
    %v1667 = vmul.f32 %v1662, %v1666
    %v1668 = vadd.f32 1.0, %v1667
    %v1669 = vmul.f32 %v1660, %v1660
    %v1670 = vmul.f32 %v1669, -0.00019511016
    %v1671 = vadd.f32 %v1670, 0.008332121
    %v1672 = vmul.f32 %v1669, %v1671
    %v1673 = vadd.f32 %v1672, -0.16666654
    %v1674 = vmul.f32 %v1669, %v1673
    %v1675 = vadd.f32 %v1674, 1.0
    %v1676 = vmul.f32 %v1675, %v1660
    %vm1677 = vweird.f32 %v1378
    %v1678 = vadd.s32 %v1661, 3
    %v1679 = vand.u32 %v1678, 3
    %vm1680 = vcmp.lt.s32.totalorder %v1679, 2
    %vm1681 = vcmp.eq.s32.totalorder %v1679, 0
    %v1682 = vxor.u32 %v1676, 2147483648
    %v1683 = vsel %vm1681, %v1668, %v1682
    %vm1684 = vcmp.eq.s32.totalorder %v1679, 2
    %v1685 = vxor.u32 %v1668, 2147483648
    %v1686 = vsel %vm1684, %v1685, %v1676
    %v1687 = vsel %vm1680, %v1683, %v1686
    %v1688 = vsel %vm1677, nan, %v1687
    %v1689 = vmul.f32 %v118, 0.03125
    %v1690 = vmul.f32 %v130, 0.03125
    %v1691 = vand.u32 2147483647, %v1689
    %vm1692 = vcmp.le.f32.partialorder %v1691, 0.7853982
    %vm1693 = vcmp.lt.s32.totalorder %v1689, 0
    %v1694 = vand.u32 %v1689, 2139095040
    %v1695 = vshrl.u32 %v1694, 23
    %v1696 = vsub.s32 %v1695, 127
    %v1697 = vand.u32 2147483647, %v1689
    %v1698 = vand.u32 %v1697, 8388607
    %v1699 = vor.u32 %v1698, 8388608
    %v1700 = vsub.s32 0, %v1699
    %v1701 = vadd.s32 %v1696, 1
    %vm1702 = vcmp.gt.s32.totalorder %v1701, 0
    %v1703 = vsel %vm1702, %v1701, 0
    %v1704 = vshrl.u32 %v1703, 5
    %v1705 = vand.u32 %v1703, 31
    %v1706 = vsub.s32 32, %v1705
    %v1707 = vshrl.u32 683565275, %v1706
    %v1708 = vshll.u32 683565275, %v1705
    %v1709 = vshrl.u32 2475754826, %v1706
    %v1710 = vor.u32 %v1708, %v1709
    %v1711 = vshll.u32 2475754826, %v1705
    %v1712 = vshrl.u32 2131351028, %v1706
    %v1713 = vor.u32 %v1711, %v1712
    %v1714 = vshll.u32 2131351028, %v1705
    %v1715 = vshrl.u32 2102212464, %v1706
    %v1716 = vor.u32 %v1714, %v1715
    %v1717 = vshll.u32 2102212464, %v1705
    %v1718 = vshrl.u32 920167782, %v1706
    %v1719 = vor.u32 %v1717, %v1718
    %v1720 = vshll.u32 920167782, %v1705
    %v1721 = vshrl.u32 1326507024, %v1706
    %v1722 = vor.u32 %v1720, %v1721
    %vm1723 = vcmp.lt.s32.totalorder %v1704, 1
    %vm1724 = vcmp.lt.s32.totalorder %v1704, 2
    %vm1725 = vcmp.lt.s32.totalorder %v1704, 3
    %vm1726 = vcmp.lt.s32.totalorder %v1704, 4
    %v1727 = vsel %vm1723, %v1707, %v1710
    %v1728 = vsel %vm1726, %v1716, 2102212464
    %v1729 = vsel %vm1725, %v1713, %v1728
    %v1730 = vsel %vm1724, %v1727, %v1729
    %v1731 = vsel %vm1723, %v1710, %v1713
    %v1732 = vsel %vm1726, %v1719, 920167782
    %v1733 = vsel %vm1725, %v1716, %v1732
    %v1734 = vsel %vm1724, %v1731, %v1733
    %v1735 = vsel %vm1723, %v1713, %v1716
    %v1736 = vsel %vm1726, %v1722, 1326507024
    %v1737 = vsel %vm1725, %v1719, %v1736
    %v1738 = vsel %vm1724, %v1735, %v1737
    %v1739 = vshll.u32 %v1699, 8
    %v1740 = vand.u32 %v1739, 65535
    %v1741 = vshrl.u32 %v1739, 16
    %v1742 = vand.u32 %v1738, 65535
    %v1743 = vshrl.u32 %v1738, 16
    %v1744 = vmul.u32 %v1740, %v1742
    %v1745 = vmul.u32 %v1740, %v1743
    %v1746 = vmul.u32 %v1741, %v1742
    %v1747 = vmul.u32 %v1741, %v1743
    %v1748 = vshll.u32 %v1745, 16
    %v1749 = vshrl.u32 %v1745, 16
    %v1750 = vshll.u32 %v1746, 16
    %v1751 = vshrl.u32 %v1746, 16
    %vm1752 = vc.u32 %v1744, %v1748
    %v1753 = vsel %vm1752, 1, 0
    %v1754 = vadd.s32 %v1744, %v1748
    %v1755 = vadd.s32 %v1747, %v1753
    %vm1756 = vc.u32 %v1754, %v1750
    %v1757 = vsel %vm1756, 1, 0
    %v1758 = vadd.s32 %v1754, %v1750
    %v1759 = vadd.s32 %v1755, %v1757
    %v1760 = vadd.s32 %v1759, %v1749
    %v1761 = vadd.s32 %v1760, %v1751
    %v1762 = vand.u32 %v1739, 65535
    %v1763 = vshrl.u32 %v1739, 16
    %v1764 = vand.u32 %v1734, 65535
    %v1765 = vshrl.u32 %v1734, 16
    %v1766 = vmul.u32 %v1762, %v1764
    %v1767 = vmul.u32 %v1762, %v1765
    %v1768 = vmul.u32 %v1763, %v1764
    %v1769 = vmul.u32 %v1763, %v1765
    %v1770 = vshll.u32 %v1767, 16
    %v1771 = vshrl.u32 %v1767, 16
    %v1772 = vshll.u32 %v1768, 16
    %v1773 = vshrl.u32 %v1768, 16
    %vm1774 = vc.u32 %v1766, %v1770
    %v1775 = vsel %vm1774, 1, 0
    %v1776 = vadd.s32 %v1766, %v1770
    %v1777 = vadd.s32 %v1769, %v1775
    %vm1778 = vc.u32 %v1776, %v1772
    %v1779 = vsel %vm1778, 1, 0
    %v1780 = vadd.s32 %v1776, %v1772
    %v1781 = vadd.s32 %v1777, %v1779
    %v1782 = vadd.s32 %v1781, %v1771
    %v1783 = vadd.s32 %v1782, %v1773
    %v1784 = vmul.u32 %v1739, %v1730
    %v1785 = vadd.s32 %v1761, %v1780
    %vm1786 = vc.u32 %v1761, %v1780
    %v1787 = vadd.s32 %v1783, 1
    %v1788 = vsel %vm1786, %v1787, %v1783
    %v1789 = vadd.s32 %v1784, %v1788
    %v1790 = vadd.s32 %v1789, 536870912
    %v1791 = vshrl.u32 %v1790, 30
    %v1792 = vshll.u32 %v1791, 30
    %v1793 = vsub.s32 %v1789, %v1792
    %vm1794 = vcmp.lt.s32.totalorder %v1793, 0
    %v1795 = vsub.s32 0, %v1793
    %v1796 = vsel %vm1794, %v1795, %v1793
    %v1797 = vclz %v1796
    %v1798 = vsub.s32 %v1797, 2
    %vm1799 = vcmp.gt.s32.totalorder 0, %v1798
    %v1800 = vsel %vm1799, 0, %v1798
    %v1801 = vsub.s32 32, %v1800
    %v1802 = vshll.u32 %v1793, %v1800
    %v1803 = vshrl.u32 %v1785, %v1801
    %v1804 = vor.u32 %v1802, %v1803
    %v1805 = vsub.s32 4294967266, %v1800
    %v1806 = vadd.s32 %v1805, 127
    %v1807 = vshll.u32 %v1806, 23
    %v1808 = vor.u32 4788187, %v1807
    %v1809 = vand.u32 2147483647, %v1808
    %v1811 = vcvt.s32.f32 %v1804
    %v1812 = vmul.f32 %v1811, %v1809
    %v1813 = vxor.u32 %v1812, 2147483648
    %v1814 = vsel %vm1693, %v1813, %v1812
    %v1815 = vsub.s32 4, %v1791
    %v1816 = vsel %vm1693, %v1815, %v1791
    %v1817 = vsel %vm1692, %v1689, %v1814
    %v1818 = vsel %vm1692, 0, %v1816
    %v1819 = vmul.f32 %v1817, %v1817
    %v1820 = vmul.f32 %v1819, -0.001358992
    %v1821 = vadd.f32 %v1820, 0.041655596
    %v1822 = vmul.f32 %v1819, %v1821
    %v1823 = vadd.f32 %v1822, -0.4999988
    %v1824 = vmul.f32 %v1819, %v1823
    %v1825 = vadd.f32 1.0, %v1824
    %v1826 = vmul.f32 %v1817, %v1817
    %v1827 = vmul.f32 %v1826, -0.00019511016
    %v1828 = vadd.f32 %v1827, 0.008332121
    %v1829 = vmul.f32 %v1826, %v1828
    %v1830 = vadd.f32 %v1829, -0.16666654
    %v1831 = vmul.f32 %v1826, %v1830
    %v1832 = vadd.f32 %v1831, 1.0
    %v1833 = vmul.f32 %v1832, %v1817
    %vm1834 = vweird.f32 %v1689
    %v1835 = vadd.s32 %v1818, 3
    %v1836 = vand.u32 %v1835, 3
    %vm1837 = vcmp.lt.s32.totalorder %v1836, 2
    %vm1838 = vcmp.eq.s32.totalorder %v1836, 0
    %v1839 = vxor.u32 %v1833, 2147483648
    %v1840 = vsel %vm1838, %v1825, %v1839
    %vm1841 = vcmp.eq.s32.totalorder %v1836, 2
    %v1842 = vxor.u32 %v1825, 2147483648
    %v1843 = vsel %vm1841, %v1842, %v1833
    %v1844 = vsel %vm1837, %v1840, %v1843
    %v1845 = vsel %vm1834, nan, %v1844
    %v1846 = vand.u32 2147483647, %v1690
    %vm1847 = vcmp.le.f32.partialorder %v1846, 0.7853982
    %vm1848 = vcmp.lt.s32.totalorder %v1690, 0
    %v1849 = vand.u32 %v1690, 2139095040
    %v1850 = vshrl.u32 %v1849, 23
    %v1851 = vsub.s32 %v1850, 127
    %v1852 = vand.u32 2147483647, %v1690
    %v1853 = vand.u32 %v1852, 8388607
    %v1854 = vor.u32 %v1853, 8388608
    %v1855 = vsub.s32 0, %v1854
    %v1856 = vadd.s32 %v1851, 1
    %vm1857 = vcmp.gt.s32.totalorder %v1856, 0
    %v1858 = vsel %vm1857, %v1856, 0
    %v1859 = vshrl.u32 %v1858, 5
    %v1860 = vand.u32 %v1858, 31
    %v1861 = vsub.s32 32, %v1860
    %v1862 = vshrl.u32 683565275, %v1861
    %v1863 = vshll.u32 683565275, %v1860
    %v1864 = vshrl.u32 2475754826, %v1861
    %v1865 = vor.u32 %v1863, %v1864
    %v1866 = vshll.u32 2475754826, %v1860
    %v1867 = vshrl.u32 2131351028, %v1861
    %v1868 = vor.u32 %v1866, %v1867
    %v1869 = vshll.u32 2131351028, %v1860
    %v1870 = vshrl.u32 2102212464, %v1861
    %v1871 = vor.u32 %v1869, %v1870
    %v1872 = vshll.u32 2102212464, %v1860
    %v1873 = vshrl.u32 920167782, %v1861
    %v1874 = vor.u32 %v1872, %v1873
    %v1875 = vshll.u32 920167782, %v1860
    %v1876 = vshrl.u32 1326507024, %v1861
    %v1877 = vor.u32 %v1875, %v1876
    %vm1878 = vcmp.lt.s32.totalorder %v1859, 1
    %vm1879 = vcmp.lt.s32.totalorder %v1859, 2
    %vm1880 = vcmp.lt.s32.totalorder %v1859, 3
    %vm1881 = vcmp.lt.s32.totalorder %v1859, 4
    %v1882 = vsel %vm1878, %v1862, %v1865
    %v1883 = vsel %vm1881, %v1871, 2102212464
    %v1884 = vsel %vm1880, %v1868, %v1883
    %v1885 = vsel %vm1879, %v1882, %v1884
    %v1886 = vsel %vm1878, %v1865, %v1868
    %v1887 = vsel %vm1881, %v1874, 920167782
    %v1888 = vsel %vm1880, %v1871, %v1887
    %v1889 = vsel %vm1879, %v1886, %v1888
    %v1890 = vsel %vm1878, %v1868, %v1871
    %v1891 = vsel %vm1881, %v1877, 1326507024
    %v1892 = vsel %vm1880, %v1874, %v1891
    %v1893 = vsel %vm1879, %v1890, %v1892
    %v1894 = vshll.u32 %v1854, 8
    %v1895 = vand.u32 %v1894, 65535
    %v1896 = vshrl.u32 %v1894, 16
    %v1897 = vand.u32 %v1893, 65535
    %v1898 = vshrl.u32 %v1893, 16
    %v1899 = vmul.u32 %v1895, %v1897
    %v1900 = vmul.u32 %v1895, %v1898
    %v1901 = vmul.u32 %v1896, %v1897
    %v1902 = vmul.u32 %v1896, %v1898
    %v1903 = vshll.u32 %v1900, 16
    %v1904 = vshrl.u32 %v1900, 16
    %v1905 = vshll.u32 %v1901, 16
    %v1906 = vshrl.u32 %v1901, 16
    %vm1907 = vc.u32 %v1899, %v1903
    %v1908 = vsel %vm1907, 1, 0
    %v1909 = vadd.s32 %v1899, %v1903
    %v1910 = vadd.s32 %v1902, %v1908
    %vm1911 = vc.u32 %v1909, %v1905
    %v1912 = vsel %vm1911, 1, 0
    %v1913 = vadd.s32 %v1909, %v1905
    %v1914 = vadd.s32 %v1910, %v1912
    %v1915 = vadd.s32 %v1914, %v1904
    %v1916 = vadd.s32 %v1915, %v1906
    %v1917 = vand.u32 %v1894, 65535
    %v1918 = vshrl.u32 %v1894, 16
    %v1919 = vand.u32 %v1889, 65535
    %v1920 = vshrl.u32 %v1889, 16
    %v1921 = vmul.u32 %v1917, %v1919
    %v1922 = vmul.u32 %v1917, %v1920
    %v1923 = vmul.u32 %v1918, %v1919
    %v1924 = vmul.u32 %v1918, %v1920
    %v1925 = vshll.u32 %v1922, 16
    %v1926 = vshrl.u32 %v1922, 16
    %v1927 = vshll.u32 %v1923, 16
    %v1928 = vshrl.u32 %v1923, 16
    %vm1929 = vc.u32 %v1921, %v1925
    %v1930 = vsel %vm1929, 1, 0
    %v1931 = vadd.s32 %v1921, %v1925
    %v1932 = vadd.s32 %v1924, %v1930
    %vm1933 = vc.u32 %v1931, %v1927
    %v1934 = vsel %vm1933, 1, 0
    %v1935 = vadd.s32 %v1931, %v1927
    %v1936 = vadd.s32 %v1932, %v1934
    %v1937 = vadd.s32 %v1936, %v1926
    %v1938 = vadd.s32 %v1937, %v1928
    %v1939 = vmul.u32 %v1894, %v1885
    %v1940 = vadd.s32 %v1916, %v1935
    %vm1941 = vc.u32 %v1916, %v1935
    %v1942 = vadd.s32 %v1938, 1
    %v1943 = vsel %vm1941, %v1942, %v1938
    %v1944 = vadd.s32 %v1939, %v1943
    %v1945 = vadd.s32 %v1944, 536870912
    %v1946 = vshrl.u32 %v1945, 30
    %v1947 = vshll.u32 %v1946, 30
    %v1948 = vsub.s32 %v1944, %v1947
    %vm1949 = vcmp.lt.s32.totalorder %v1948, 0
    %v1950 = vsub.s32 0, %v1948
    %v1951 = vsel %vm1949, %v1950, %v1948
    %v1952 = vclz %v1951
    %v1953 = vsub.s32 %v1952, 2
    %vm1954 = vcmp.gt.s32.totalorder 0, %v1953
    %v1955 = vsel %vm1954, 0, %v1953
    %v1956 = vsub.s32 32, %v1955
    %v1957 = vshll.u32 %v1948, %v1955
    %v1958 = vshrl.u32 %v1940, %v1956
    %v1959 = vor.u32 %v1957, %v1958
    %v1960 = vsub.s32 4294967266, %v1955
    %v1961 = vadd.s32 %v1960, 127
    %v1962 = vshll.u32 %v1961, 23
    %v1963 = vor.u32 4788187, %v1962
    %v1964 = vand.u32 2147483647, %v1963
    %v1966 = vcvt.s32.f32 %v1959
    %v1967 = vmul.f32 %v1966, %v1964
    %v1968 = vxor.u32 %v1967, 2147483648
    %v1969 = vsel %vm1848, %v1968, %v1967
    %v1970 = vsub.s32 4, %v1946
    %v1971 = vsel %vm1848, %v1970, %v1946
    %v1972 = vsel %vm1847, %v1690, %v1969
    %v1973 = vsel %vm1847, 0, %v1971
    %v1974 = vmul.f32 %v1972, %v1972
    %v1975 = vmul.f32 %v1974, -0.001358992
    %v1976 = vadd.f32 %v1975, 0.041655596
    %v1977 = vmul.f32 %v1974, %v1976
    %v1978 = vadd.f32 %v1977, -0.4999988
    %v1979 = vmul.f32 %v1974, %v1978
    %v1980 = vadd.f32 1.0, %v1979
    %v1981 = vmul.f32 %v1972, %v1972
    %v1982 = vmul.f32 %v1981, -0.00019511016
    %v1983 = vadd.f32 %v1982, 0.008332121
    %v1984 = vmul.f32 %v1981, %v1983
    %v1985 = vadd.f32 %v1984, -0.16666654
    %v1986 = vmul.f32 %v1981, %v1985
    %v1987 = vadd.f32 %v1986, 1.0
    %v1988 = vmul.f32 %v1987, %v1972
    %vm1989 = vweird.f32 %v1690
    %v1990 = vadd.s32 %v1973, 3
    %v1991 = vand.u32 %v1990, 3
    %vm1992 = vcmp.lt.s32.totalorder %v1991, 2
    %vm1993 = vcmp.eq.s32.totalorder %v1991, 0
    %v1994 = vxor.u32 %v1988, 2147483648
    %v1995 = vsel %vm1993, %v1980, %v1994
    %vm1996 = vcmp.eq.s32.totalorder %v1991, 2
    %v1997 = vxor.u32 %v1980, 2147483648
    %v1998 = vsel %vm1996, %v1997, %v1988
    %v1999 = vsel %vm1992, %v1995, %v1998
    %v2000 = vsel %vm1989, nan, %v1999
    %v2001 = vmul.f32 %v118, 0.015625
    %v2002 = vmul.f32 %v130, 0.015625
    %v2003 = vand.u32 2147483647, %v2001
    %vm2004 = vcmp.le.f32.partialorder %v2003, 0.7853982
    %vm2005 = vcmp.lt.s32.totalorder %v2001, 0
    %v2006 = vand.u32 %v2001, 2139095040
    %v2007 = vshrl.u32 %v2006, 23
    %v2008 = vsub.s32 %v2007, 127
    %v2009 = vand.u32 2147483647, %v2001
    %v2010 = vand.u32 %v2009, 8388607
    %v2011 = vor.u32 %v2010, 8388608
    %v2012 = vsub.s32 0, %v2011
    %v2013 = vadd.s32 %v2008, 1
    %vm2014 = vcmp.gt.s32.totalorder %v2013, 0
    %v2015 = vsel %vm2014, %v2013, 0
    %v2016 = vshrl.u32 %v2015, 5
    %v2017 = vand.u32 %v2015, 31
    %v2018 = vsub.s32 32, %v2017
    %v2019 = vshrl.u32 683565275, %v2018
    %v2020 = vshll.u32 683565275, %v2017
    %v2021 = vshrl.u32 2475754826, %v2018
    %v2022 = vor.u32 %v2020, %v2021
    %v2023 = vshll.u32 2475754826, %v2017
    %v2024 = vshrl.u32 2131351028, %v2018
    %v2025 = vor.u32 %v2023, %v2024
    %v2026 = vshll.u32 2131351028, %v2017
    %v2027 = vshrl.u32 2102212464, %v2018
    %v2028 = vor.u32 %v2026, %v2027
    %v2029 = vshll.u32 2102212464, %v2017
    %v2030 = vshrl.u32 920167782, %v2018
    %v2031 = vor.u32 %v2029, %v2030
    %v2032 = vshll.u32 920167782, %v2017
    %v2033 = vshrl.u32 1326507024, %v2018
    %v2034 = vor.u32 %v2032, %v2033
    %vm2035 = vcmp.lt.s32.totalorder %v2016, 1
    %vm2036 = vcmp.lt.s32.totalorder %v2016, 2
    %vm2037 = vcmp.lt.s32.totalorder %v2016, 3
    %vm2038 = vcmp.lt.s32.totalorder %v2016, 4
    %v2039 = vsel %vm2035, %v2019, %v2022
    %v2040 = vsel %vm2038, %v2028, 2102212464
    %v2041 = vsel %vm2037, %v2025, %v2040
    %v2042 = vsel %vm2036, %v2039, %v2041
    %v2043 = vsel %vm2035, %v2022, %v2025
    %v2044 = vsel %vm2038, %v2031, 920167782
    %v2045 = vsel %vm2037, %v2028, %v2044
    %v2046 = vsel %vm2036, %v2043, %v2045
    %v2047 = vsel %vm2035, %v2025, %v2028
    %v2048 = vsel %vm2038, %v2034, 1326507024
    %v2049 = vsel %vm2037, %v2031, %v2048
    %v2050 = vsel %vm2036, %v2047, %v2049
    %v2051 = vshll.u32 %v2011, 8
    %v2052 = vand.u32 %v2051, 65535
    %v2053 = vshrl.u32 %v2051, 16
    %v2054 = vand.u32 %v2050, 65535
    %v2055 = vshrl.u32 %v2050, 16
    %v2056 = vmul.u32 %v2052, %v2054
    %v2057 = vmul.u32 %v2052, %v2055
    %v2058 = vmul.u32 %v2053, %v2054
    %v2059 = vmul.u32 %v2053, %v2055
    %v2060 = vshll.u32 %v2057, 16
    %v2061 = vshrl.u32 %v2057, 16
    %v2062 = vshll.u32 %v2058, 16
    %v2063 = vshrl.u32 %v2058, 16
    %vm2064 = vc.u32 %v2056, %v2060
    %v2065 = vsel %vm2064, 1, 0
    %v2066 = vadd.s32 %v2056, %v2060
    %v2067 = vadd.s32 %v2059, %v2065
    %vm2068 = vc.u32 %v2066, %v2062
    %v2069 = vsel %vm2068, 1, 0
    %v2070 = vadd.s32 %v2066, %v2062
    %v2071 = vadd.s32 %v2067, %v2069
    %v2072 = vadd.s32 %v2071, %v2061
    %v2073 = vadd.s32 %v2072, %v2063
    %v2074 = vand.u32 %v2051, 65535
    %v2075 = vshrl.u32 %v2051, 16
    %v2076 = vand.u32 %v2046, 65535
    %v2077 = vshrl.u32 %v2046, 16
    %v2078 = vmul.u32 %v2074, %v2076
    %v2079 = vmul.u32 %v2074, %v2077
    %v2080 = vmul.u32 %v2075, %v2076
    %v2081 = vmul.u32 %v2075, %v2077
    %v2082 = vshll.u32 %v2079, 16
    %v2083 = vshrl.u32 %v2079, 16
    %v2084 = vshll.u32 %v2080, 16
    %v2085 = vshrl.u32 %v2080, 16
    %vm2086 = vc.u32 %v2078, %v2082
    %v2087 = vsel %vm2086, 1, 0
    %v2088 = vadd.s32 %v2078, %v2082
    %v2089 = vadd.s32 %v2081, %v2087
    %vm2090 = vc.u32 %v2088, %v2084
    %v2091 = vsel %vm2090, 1, 0
    %v2092 = vadd.s32 %v2088, %v2084
    %v2093 = vadd.s32 %v2089, %v2091
    %v2094 = vadd.s32 %v2093, %v2083
    %v2095 = vadd.s32 %v2094, %v2085
    %v2096 = vmul.u32 %v2051, %v2042
    %v2097 = vadd.s32 %v2073, %v2092
    %vm2098 = vc.u32 %v2073, %v2092
    %v2099 = vadd.s32 %v2095, 1
    %v2100 = vsel %vm2098, %v2099, %v2095
    %v2101 = vadd.s32 %v2096, %v2100
    %v2102 = vadd.s32 %v2101, 536870912
    %v2103 = vshrl.u32 %v2102, 30
    %v2104 = vshll.u32 %v2103, 30
    %v2105 = vsub.s32 %v2101, %v2104
    %vm2106 = vcmp.lt.s32.totalorder %v2105, 0
    %v2107 = vsub.s32 0, %v2105
    %v2108 = vsel %vm2106, %v2107, %v2105
    %v2109 = vclz %v2108
    %v2110 = vsub.s32 %v2109, 2
    %vm2111 = vcmp.gt.s32.totalorder 0, %v2110
    %v2112 = vsel %vm2111, 0, %v2110
    %v2113 = vsub.s32 32, %v2112
    %v2114 = vshll.u32 %v2105, %v2112
    %v2115 = vshrl.u32 %v2097, %v2113
    %v2116 = vor.u32 %v2114, %v2115
    %v2117 = vsub.s32 4294967266, %v2112
    %v2118 = vadd.s32 %v2117, 127
    %v2119 = vshll.u32 %v2118, 23
    %v2120 = vor.u32 4788187, %v2119
    %v2121 = vand.u32 2147483647, %v2120
    %v2123 = vcvt.s32.f32 %v2116
    %v2124 = vmul.f32 %v2123, %v2121
    %v2125 = vxor.u32 %v2124, 2147483648
    %v2126 = vsel %vm2005, %v2125, %v2124
    %v2127 = vsub.s32 4, %v2103
    %v2128 = vsel %vm2005, %v2127, %v2103
    %v2129 = vsel %vm2004, %v2001, %v2126
    %v2130 = vsel %vm2004, 0, %v2128
    %v2131 = vmul.f32 %v2129, %v2129
    %v2132 = vmul.f32 %v2131, -0.001358992
    %v2133 = vadd.f32 %v2132, 0.041655596
    %v2134 = vmul.f32 %v2131, %v2133
    %v2135 = vadd.f32 %v2134, -0.4999988
    %v2136 = vmul.f32 %v2131, %v2135
    %v2137 = vadd.f32 1.0, %v2136
    %v2138 = vmul.f32 %v2129, %v2129
    %v2139 = vmul.f32 %v2138, -0.00019511016
    %v2140 = vadd.f32 %v2139, 0.008332121
    %v2141 = vmul.f32 %v2138, %v2140
    %v2142 = vadd.f32 %v2141, -0.16666654
    %v2143 = vmul.f32 %v2138, %v2142
    %v2144 = vadd.f32 %v2143, 1.0
    %v2145 = vmul.f32 %v2144, %v2129
    %vm2146 = vweird.f32 %v2001
    %v2147 = vadd.s32 %v2130, 3
    %v2148 = vand.u32 %v2147, 3
    %vm2149 = vcmp.lt.s32.totalorder %v2148, 2
    %vm2150 = vcmp.eq.s32.totalorder %v2148, 0
    %v2151 = vxor.u32 %v2145, 2147483648
    %v2152 = vsel %vm2150, %v2137, %v2151
    %vm2153 = vcmp.eq.s32.totalorder %v2148, 2
    %v2154 = vxor.u32 %v2137, 2147483648
    %v2155 = vsel %vm2153, %v2154, %v2145
    %v2156 = vsel %vm2149, %v2152, %v2155
    %v2157 = vsel %vm2146, nan, %v2156
    %v2158 = vand.u32 2147483647, %v2002
    %vm2159 = vcmp.le.f32.partialorder %v2158, 0.7853982
    %vm2160 = vcmp.lt.s32.totalorder %v2002, 0
    %v2161 = vand.u32 %v2002, 2139095040
    %v2162 = vshrl.u32 %v2161, 23
    %v2163 = vsub.s32 %v2162, 127
    %v2164 = vand.u32 2147483647, %v2002
    %v2165 = vand.u32 %v2164, 8388607
    %v2166 = vor.u32 %v2165, 8388608
    %v2167 = vsub.s32 0, %v2166
    %v2168 = vadd.s32 %v2163, 1
    %vm2169 = vcmp.gt.s32.totalorder %v2168, 0
    %v2170 = vsel %vm2169, %v2168, 0
    %v2171 = vshrl.u32 %v2170, 5
    %v2172 = vand.u32 %v2170, 31
    %v2173 = vsub.s32 32, %v2172
    %v2174 = vshrl.u32 683565275, %v2173
    %v2175 = vshll.u32 683565275, %v2172
    %v2176 = vshrl.u32 2475754826, %v2173
    %v2177 = vor.u32 %v2175, %v2176
    %v2178 = vshll.u32 2475754826, %v2172
    %v2179 = vshrl.u32 2131351028, %v2173
    %v2180 = vor.u32 %v2178, %v2179
    %v2181 = vshll.u32 2131351028, %v2172
    %v2182 = vshrl.u32 2102212464, %v2173
    %v2183 = vor.u32 %v2181, %v2182
    %v2184 = vshll.u32 2102212464, %v2172
    %v2185 = vshrl.u32 920167782, %v2173
    %v2186 = vor.u32 %v2184, %v2185
    %v2187 = vshll.u32 920167782, %v2172
    %v2188 = vshrl.u32 1326507024, %v2173
    %v2189 = vor.u32 %v2187, %v2188
    %vm2190 = vcmp.lt.s32.totalorder %v2171, 1
    %vm2191 = vcmp.lt.s32.totalorder %v2171, 2
    %vm2192 = vcmp.lt.s32.totalorder %v2171, 3
    %vm2193 = vcmp.lt.s32.totalorder %v2171, 4
    %v2194 = vsel %vm2190, %v2174, %v2177
    %v2195 = vsel %vm2193, %v2183, 2102212464
    %v2196 = vsel %vm2192, %v2180, %v2195
    %v2197 = vsel %vm2191, %v2194, %v2196
    %v2198 = vsel %vm2190, %v2177, %v2180
    %v2199 = vsel %vm2193, %v2186, 920167782
    %v2200 = vsel %vm2192, %v2183, %v2199
    %v2201 = vsel %vm2191, %v2198, %v2200
    %v2202 = vsel %vm2190, %v2180, %v2183
    %v2203 = vsel %vm2193, %v2189, 1326507024
    %v2204 = vsel %vm2192, %v2186, %v2203
    %v2205 = vsel %vm2191, %v2202, %v2204
    %v2206 = vshll.u32 %v2166, 8
    %v2207 = vand.u32 %v2206, 65535
    %v2208 = vshrl.u32 %v2206, 16
    %v2209 = vand.u32 %v2205, 65535
    %v2210 = vshrl.u32 %v2205, 16
    %v2211 = vmul.u32 %v2207, %v2209
    %v2212 = vmul.u32 %v2207, %v2210
    %v2213 = vmul.u32 %v2208, %v2209
    %v2214 = vmul.u32 %v2208, %v2210
    %v2215 = vshll.u32 %v2212, 16
    %v2216 = vshrl.u32 %v2212, 16
    %v2217 = vshll.u32 %v2213, 16
    %v2218 = vshrl.u32 %v2213, 16
    %vm2219 = vc.u32 %v2211, %v2215
    %v2220 = vsel %vm2219, 1, 0
    %v2221 = vadd.s32 %v2211, %v2215
    %v2222 = vadd.s32 %v2214, %v2220
    %vm2223 = vc.u32 %v2221, %v2217
    %v2224 = vsel %vm2223, 1, 0
    %v2225 = vadd.s32 %v2221, %v2217
    %v2226 = vadd.s32 %v2222, %v2224
    %v2227 = vadd.s32 %v2226, %v2216
    %v2228 = vadd.s32 %v2227, %v2218
    %v2229 = vand.u32 %v2206, 65535
    %v2230 = vshrl.u32 %v2206, 16
    %v2231 = vand.u32 %v2201, 65535
    %v2232 = vshrl.u32 %v2201, 16
    %v2233 = vmul.u32 %v2229, %v2231
    %v2234 = vmul.u32 %v2229, %v2232
    %v2235 = vmul.u32 %v2230, %v2231
    %v2236 = vmul.u32 %v2230, %v2232
    %v2237 = vshll.u32 %v2234, 16
    %v2238 = vshrl.u32 %v2234, 16
    %v2239 = vshll.u32 %v2235, 16
    %v2240 = vshrl.u32 %v2235, 16
    %vm2241 = vc.u32 %v2233, %v2237
    %v2242 = vsel %vm2241, 1, 0
    %v2243 = vadd.s32 %v2233, %v2237
    %v2244 = vadd.s32 %v2236, %v2242
    %vm2245 = vc.u32 %v2243, %v2239
    %v2246 = vsel %vm2245, 1, 0
    %v2247 = vadd.s32 %v2243, %v2239
    %v2248 = vadd.s32 %v2244, %v2246
    %v2249 = vadd.s32 %v2248, %v2238
    %v2250 = vadd.s32 %v2249, %v2240
    %v2251 = vmul.u32 %v2206, %v2197
    %v2252 = vadd.s32 %v2228, %v2247
    %vm2253 = vc.u32 %v2228, %v2247
    %v2254 = vadd.s32 %v2250, 1
    %v2255 = vsel %vm2253, %v2254, %v2250
    %v2256 = vadd.s32 %v2251, %v2255
    %v2257 = vadd.s32 %v2256, 536870912
    %v2258 = vshrl.u32 %v2257, 30
    %v2259 = vshll.u32 %v2258, 30
    %v2260 = vsub.s32 %v2256, %v2259
    %vm2261 = vcmp.lt.s32.totalorder %v2260, 0
    %v2262 = vsub.s32 0, %v2260
    %v2263 = vsel %vm2261, %v2262, %v2260
    %v2264 = vclz %v2263
    %v2265 = vsub.s32 %v2264, 2
    %vm2266 = vcmp.gt.s32.totalorder 0, %v2265
    %v2267 = vsel %vm2266, 0, %v2265
    %v2268 = vsub.s32 32, %v2267
    %v2269 = vshll.u32 %v2260, %v2267
    %v2270 = vshrl.u32 %v2252, %v2268
    %v2271 = vor.u32 %v2269, %v2270
    %v2272 = vsub.s32 4294967266, %v2267
    %v2273 = vadd.s32 %v2272, 127
    %v2274 = vshll.u32 %v2273, 23
    %v2275 = vor.u32 4788187, %v2274
    %v2276 = vand.u32 2147483647, %v2275
    %v2278 = vcvt.s32.f32 %v2271
    %v2279 = vmul.f32 %v2278, %v2276
    %v2280 = vxor.u32 %v2279, 2147483648
    %v2281 = vsel %vm2160, %v2280, %v2279
    %v2282 = vsub.s32 4, %v2258
    %v2283 = vsel %vm2160, %v2282, %v2258
    %v2284 = vsel %vm2159, %v2002, %v2281
    %v2285 = vsel %vm2159, 0, %v2283
    %v2286 = vmul.f32 %v2284, %v2284
    %v2287 = vmul.f32 %v2286, -0.001358992
    %v2288 = vadd.f32 %v2287, 0.041655596
    %v2289 = vmul.f32 %v2286, %v2288
    %v2290 = vadd.f32 %v2289, -0.4999988
    %v2291 = vmul.f32 %v2286, %v2290
    %v2292 = vadd.f32 1.0, %v2291
    %v2293 = vmul.f32 %v2284, %v2284
    %v2294 = vmul.f32 %v2293, -0.00019511016
    %v2295 = vadd.f32 %v2294, 0.008332121
    %v2296 = vmul.f32 %v2293, %v2295
    %v2297 = vadd.f32 %v2296, -0.16666654
    %v2298 = vmul.f32 %v2293, %v2297
    %v2299 = vadd.f32 %v2298, 1.0
    %v2300 = vmul.f32 %v2299, %v2284
    %vm2301 = vweird.f32 %v2002
    %v2302 = vadd.s32 %v2285, 3
    %v2303 = vand.u32 %v2302, 3
    %vm2304 = vcmp.lt.s32.totalorder %v2303, 2
    %vm2305 = vcmp.eq.s32.totalorder %v2303, 0
    %v2306 = vxor.u32 %v2300, 2147483648
    %v2307 = vsel %vm2305, %v2292, %v2306
    %vm2308 = vcmp.eq.s32.totalorder %v2303, 2
    %v2309 = vxor.u32 %v2292, 2147483648
    %v2310 = vsel %vm2308, %v2309, %v2300
    %v2311 = vsel %vm2304, %v2307, %v2310
    %v2312 = vsel %vm2301, nan, %v2311
    %v2313 = vmul.f32 %v118, 0.0078125
    %v2314 = vmul.f32 %v130, 0.0078125
    %v2315 = vand.u32 2147483647, %v2313
    %vm2316 = vcmp.le.f32.partialorder %v2315, 0.7853982
    %vm2317 = vcmp.lt.s32.totalorder %v2313, 0
    %v2318 = vand.u32 %v2313, 2139095040
    %v2319 = vshrl.u32 %v2318, 23
    %v2320 = vsub.s32 %v2319, 127
    %v2321 = vand.u32 2147483647, %v2313
    %v2322 = vand.u32 %v2321, 8388607
    %v2323 = vor.u32 %v2322, 8388608
    %v2324 = vsub.s32 0, %v2323
    %v2325 = vadd.s32 %v2320, 1
    %vm2326 = vcmp.gt.s32.totalorder %v2325, 0
    %v2327 = vsel %vm2326, %v2325, 0
    %v2328 = vshrl.u32 %v2327, 5
    %v2329 = vand.u32 %v2327, 31
    %v2330 = vsub.s32 32, %v2329
    %v2331 = vshrl.u32 683565275, %v2330
    %v2332 = vshll.u32 683565275, %v2329
    %v2333 = vshrl.u32 2475754826, %v2330
    %v2334 = vor.u32 %v2332, %v2333
    %v2335 = vshll.u32 2475754826, %v2329
    %v2336 = vshrl.u32 2131351028, %v2330
    %v2337 = vor.u32 %v2335, %v2336
    %v2338 = vshll.u32 2131351028, %v2329
    %v2339 = vshrl.u32 2102212464, %v2330
    %v2340 = vor.u32 %v2338, %v2339
    %v2341 = vshll.u32 2102212464, %v2329
    %v2342 = vshrl.u32 920167782, %v2330
    %v2343 = vor.u32 %v2341, %v2342
    %v2344 = vshll.u32 920167782, %v2329
    %v2345 = vshrl.u32 1326507024, %v2330
    %v2346 = vor.u32 %v2344, %v2345
    %vm2347 = vcmp.lt.s32.totalorder %v2328, 1
    %vm2348 = vcmp.lt.s32.totalorder %v2328, 2
    %vm2349 = vcmp.lt.s32.totalorder %v2328, 3
    %vm2350 = vcmp.lt.s32.totalorder %v2328, 4
    %v2351 = vsel %vm2347, %v2331, %v2334
    %v2352 = vsel %vm2350, %v2340, 2102212464
    %v2353 = vsel %vm2349, %v2337, %v2352
    %v2354 = vsel %vm2348, %v2351, %v2353
    %v2355 = vsel %vm2347, %v2334, %v2337
    %v2356 = vsel %vm2350, %v2343, 920167782
    %v2357 = vsel %vm2349, %v2340, %v2356
    %v2358 = vsel %vm2348, %v2355, %v2357
    %v2359 = vsel %vm2347, %v2337, %v2340
    %v2360 = vsel %vm2350, %v2346, 1326507024
    %v2361 = vsel %vm2349, %v2343, %v2360
    %v2362 = vsel %vm2348, %v2359, %v2361
    %v2363 = vshll.u32 %v2323, 8
    %v2364 = vand.u32 %v2363, 65535
    %v2365 = vshrl.u32 %v2363, 16
    %v2366 = vand.u32 %v2362, 65535
    %v2367 = vshrl.u32 %v2362, 16
    %v2368 = vmul.u32 %v2364, %v2366
    %v2369 = vmul.u32 %v2364, %v2367
    %v2370 = vmul.u32 %v2365, %v2366
    %v2371 = vmul.u32 %v2365, %v2367
    %v2372 = vshll.u32 %v2369, 16
    %v2373 = vshrl.u32 %v2369, 16
    %v2374 = vshll.u32 %v2370, 16
    %v2375 = vshrl.u32 %v2370, 16
    %vm2376 = vc.u32 %v2368, %v2372
    %v2377 = vsel %vm2376, 1, 0
    %v2378 = vadd.s32 %v2368, %v2372
    %v2379 = vadd.s32 %v2371, %v2377
    %vm2380 = vc.u32 %v2378, %v2374
    %v2381 = vsel %vm2380, 1, 0
    %v2382 = vadd.s32 %v2378, %v2374
    %v2383 = vadd.s32 %v2379, %v2381
    %v2384 = vadd.s32 %v2383, %v2373
    %v2385 = vadd.s32 %v2384, %v2375
    %v2386 = vand.u32 %v2363, 65535
    %v2387 = vshrl.u32 %v2363, 16
    %v2388 = vand.u32 %v2358, 65535
    %v2389 = vshrl.u32 %v2358, 16
    %v2390 = vmul.u32 %v2386, %v2388
    %v2391 = vmul.u32 %v2386, %v2389
    %v2392 = vmul.u32 %v2387, %v2388
    %v2393 = vmul.u32 %v2387, %v2389
    %v2394 = vshll.u32 %v2391, 16
    %v2395 = vshrl.u32 %v2391, 16
    %v2396 = vshll.u32 %v2392, 16
    %v2397 = vshrl.u32 %v2392, 16
    %vm2398 = vc.u32 %v2390, %v2394
    %v2399 = vsel %vm2398, 1, 0
    %v2400 = vadd.s32 %v2390, %v2394
    %v2401 = vadd.s32 %v2393, %v2399
    %vm2402 = vc.u32 %v2400, %v2396
    %v2403 = vsel %vm2402, 1, 0
    %v2404 = vadd.s32 %v2400, %v2396
    %v2405 = vadd.s32 %v2401, %v2403
    %v2406 = vadd.s32 %v2405, %v2395
    %v2407 = vadd.s32 %v2406, %v2397
    %v2408 = vmul.u32 %v2363, %v2354
    %v2409 = vadd.s32 %v2385, %v2404
    %vm2410 = vc.u32 %v2385, %v2404
    %v2411 = vadd.s32 %v2407, 1
    %v2412 = vsel %vm2410, %v2411, %v2407
    %v2413 = vadd.s32 %v2408, %v2412
    %v2414 = vadd.s32 %v2413, 536870912
    %v2415 = vshrl.u32 %v2414, 30
    %v2416 = vshll.u32 %v2415, 30
    %v2417 = vsub.s32 %v2413, %v2416
    %vm2418 = vcmp.lt.s32.totalorder %v2417, 0
    %v2419 = vsub.s32 0, %v2417
    %v2420 = vsel %vm2418, %v2419, %v2417
    %v2421 = vclz %v2420
    %v2422 = vsub.s32 %v2421, 2
    %vm2423 = vcmp.gt.s32.totalorder 0, %v2422
    %v2424 = vsel %vm2423, 0, %v2422
    %v2425 = vsub.s32 32, %v2424
    %v2426 = vshll.u32 %v2417, %v2424
    %v2427 = vshrl.u32 %v2409, %v2425
    %v2428 = vor.u32 %v2426, %v2427
    %v2429 = vsub.s32 4294967266, %v2424
    %v2430 = vadd.s32 %v2429, 127
    %v2431 = vshll.u32 %v2430, 23
    %v2432 = vor.u32 4788187, %v2431
    %v2433 = vand.u32 2147483647, %v2432
    %v2435 = vcvt.s32.f32 %v2428
    %v2436 = vmul.f32 %v2435, %v2433
    %v2437 = vxor.u32 %v2436, 2147483648
    %v2438 = vsel %vm2317, %v2437, %v2436
    %v2439 = vsub.s32 4, %v2415
    %v2440 = vsel %vm2317, %v2439, %v2415
    %v2441 = vsel %vm2316, %v2313, %v2438
    %v2442 = vsel %vm2316, 0, %v2440
    %v2443 = vmul.f32 %v2441, %v2441
    %v2444 = vmul.f32 %v2443, -0.001358992
    %v2445 = vadd.f32 %v2444, 0.041655596
    %v2446 = vmul.f32 %v2443, %v2445
    %v2447 = vadd.f32 %v2446, -0.4999988
    %v2448 = vmul.f32 %v2443, %v2447
    %v2449 = vadd.f32 1.0, %v2448
    %v2450 = vmul.f32 %v2441, %v2441
    %v2451 = vmul.f32 %v2450, -0.00019511016
    %v2452 = vadd.f32 %v2451, 0.008332121
    %v2453 = vmul.f32 %v2450, %v2452
    %v2454 = vadd.f32 %v2453, -0.16666654
    %v2455 = vmul.f32 %v2450, %v2454
    %v2456 = vadd.f32 %v2455, 1.0
    %v2457 = vmul.f32 %v2456, %v2441
    %vm2458 = vweird.f32 %v2313
    %v2459 = vadd.s32 %v2442, 3
    %v2460 = vand.u32 %v2459, 3
    %vm2461 = vcmp.lt.s32.totalorder %v2460, 2
    %vm2462 = vcmp.eq.s32.totalorder %v2460, 0
    %v2463 = vxor.u32 %v2457, 2147483648
    %v2464 = vsel %vm2462, %v2449, %v2463
    %vm2465 = vcmp.eq.s32.totalorder %v2460, 2
    %v2466 = vxor.u32 %v2449, 2147483648
    %v2467 = vsel %vm2465, %v2466, %v2457
    %v2468 = vsel %vm2461, %v2464, %v2467
    %v2469 = vsel %vm2458, nan, %v2468
    %v2470 = vand.u32 2147483647, %v2314
    %vm2471 = vcmp.le.f32.partialorder %v2470, 0.7853982
    %vm2472 = vcmp.lt.s32.totalorder %v2314, 0
    %v2473 = vand.u32 %v2314, 2139095040
    %v2474 = vshrl.u32 %v2473, 23
    %v2475 = vsub.s32 %v2474, 127
    %v2476 = vand.u32 2147483647, %v2314
    %v2477 = vand.u32 %v2476, 8388607
    %v2478 = vor.u32 %v2477, 8388608
    %v2479 = vsub.s32 0, %v2478
    %v2480 = vadd.s32 %v2475, 1
    %vm2481 = vcmp.gt.s32.totalorder %v2480, 0
    %v2482 = vsel %vm2481, %v2480, 0
    %v2483 = vshrl.u32 %v2482, 5
    %v2484 = vand.u32 %v2482, 31
    %v2485 = vsub.s32 32, %v2484
    %v2486 = vshrl.u32 683565275, %v2485
    %v2487 = vshll.u32 683565275, %v2484
    %v2488 = vshrl.u32 2475754826, %v2485
    %v2489 = vor.u32 %v2487, %v2488
    %v2490 = vshll.u32 2475754826, %v2484
    %v2491 = vshrl.u32 2131351028, %v2485
    %v2492 = vor.u32 %v2490, %v2491
    %v2493 = vshll.u32 2131351028, %v2484
    %v2494 = vshrl.u32 2102212464, %v2485
    %v2495 = vor.u32 %v2493, %v2494
    %v2496 = vshll.u32 2102212464, %v2484
    %v2497 = vshrl.u32 920167782, %v2485
    %v2498 = vor.u32 %v2496, %v2497
    %v2499 = vshll.u32 920167782, %v2484
    %v2500 = vshrl.u32 1326507024, %v2485
    %v2501 = vor.u32 %v2499, %v2500
    %vm2502 = vcmp.lt.s32.totalorder %v2483, 1
    %vm2503 = vcmp.lt.s32.totalorder %v2483, 2
    %vm2504 = vcmp.lt.s32.totalorder %v2483, 3
    %vm2505 = vcmp.lt.s32.totalorder %v2483, 4
    %v2506 = vsel %vm2502, %v2486, %v2489
    %v2507 = vsel %vm2505, %v2495, 2102212464
    %v2508 = vsel %vm2504, %v2492, %v2507
    %v2509 = vsel %vm2503, %v2506, %v2508
    %v2510 = vsel %vm2502, %v2489, %v2492
    %v2511 = vsel %vm2505, %v2498, 920167782
    %v2512 = vsel %vm2504, %v2495, %v2511
    %v2513 = vsel %vm2503, %v2510, %v2512
    %v2514 = vsel %vm2502, %v2492, %v2495
    %v2515 = vsel %vm2505, %v2501, 1326507024
    %v2516 = vsel %vm2504, %v2498, %v2515
    %v2517 = vsel %vm2503, %v2514, %v2516
    %v2518 = vshll.u32 %v2478, 8
    %v2519 = vand.u32 %v2518, 65535
    %v2520 = vshrl.u32 %v2518, 16
    %v2521 = vand.u32 %v2517, 65535
    %v2522 = vshrl.u32 %v2517, 16
    %v2523 = vmul.u32 %v2519, %v2521
    %v2524 = vmul.u32 %v2519, %v2522
    %v2525 = vmul.u32 %v2520, %v2521
    %v2526 = vmul.u32 %v2520, %v2522
    %v2527 = vshll.u32 %v2524, 16
    %v2528 = vshrl.u32 %v2524, 16
    %v2529 = vshll.u32 %v2525, 16
    %v2530 = vshrl.u32 %v2525, 16
    %vm2531 = vc.u32 %v2523, %v2527
    %v2532 = vsel %vm2531, 1, 0
    %v2533 = vadd.s32 %v2523, %v2527
    %v2534 = vadd.s32 %v2526, %v2532
    %vm2535 = vc.u32 %v2533, %v2529
    %v2536 = vsel %vm2535, 1, 0
    %v2537 = vadd.s32 %v2533, %v2529
    %v2538 = vadd.s32 %v2534, %v2536
    %v2539 = vadd.s32 %v2538, %v2528
    %v2540 = vadd.s32 %v2539, %v2530
    %v2541 = vand.u32 %v2518, 65535
    %v2542 = vshrl.u32 %v2518, 16
    %v2543 = vand.u32 %v2513, 65535
    %v2544 = vshrl.u32 %v2513, 16
    %v2545 = vmul.u32 %v2541, %v2543
    %v2546 = vmul.u32 %v2541, %v2544
    %v2547 = vmul.u32 %v2542, %v2543
    %v2548 = vmul.u32 %v2542, %v2544
    %v2549 = vshll.u32 %v2546, 16
    %v2550 = vshrl.u32 %v2546, 16
    %v2551 = vshll.u32 %v2547, 16
    %v2552 = vshrl.u32 %v2547, 16
    %vm2553 = vc.u32 %v2545, %v2549
    %v2554 = vsel %vm2553, 1, 0
    %v2555 = vadd.s32 %v2545, %v2549
    %v2556 = vadd.s32 %v2548, %v2554
    %vm2557 = vc.u32 %v2555, %v2551
    %v2558 = vsel %vm2557, 1, 0
    %v2559 = vadd.s32 %v2555, %v2551
    %v2560 = vadd.s32 %v2556, %v2558
    %v2561 = vadd.s32 %v2560, %v2550
    %v2562 = vadd.s32 %v2561, %v2552
    %v2563 = vmul.u32 %v2518, %v2509
    %v2564 = vadd.s32 %v2540, %v2559
    %vm2565 = vc.u32 %v2540, %v2559
    %v2566 = vadd.s32 %v2562, 1
    %v2567 = vsel %vm2565, %v2566, %v2562
    %v2568 = vadd.s32 %v2563, %v2567
    %v2569 = vadd.s32 %v2568, 536870912
    %v2570 = vshrl.u32 %v2569, 30
    %v2571 = vshll.u32 %v2570, 30
    %v2572 = vsub.s32 %v2568, %v2571
    %vm2573 = vcmp.lt.s32.totalorder %v2572, 0
    %v2574 = vsub.s32 0, %v2572
    %v2575 = vsel %vm2573, %v2574, %v2572
    %v2576 = vclz %v2575
    %v2577 = vsub.s32 %v2576, 2
    %vm2578 = vcmp.gt.s32.totalorder 0, %v2577
    %v2579 = vsel %vm2578, 0, %v2577
    %v2580 = vsub.s32 32, %v2579
    %v2581 = vshll.u32 %v2572, %v2579
    %v2582 = vshrl.u32 %v2564, %v2580
    %v2583 = vor.u32 %v2581, %v2582
    %v2584 = vsub.s32 4294967266, %v2579
    %v2585 = vadd.s32 %v2584, 127
    %v2586 = vshll.u32 %v2585, 23
    %v2587 = vor.u32 4788187, %v2586
    %v2588 = vand.u32 2147483647, %v2587
    %v2590 = vcvt.s32.f32 %v2583
    %v2591 = vmul.f32 %v2590, %v2588
    %v2592 = vxor.u32 %v2591, 2147483648
    %v2593 = vsel %vm2472, %v2592, %v2591
    %v2594 = vsub.s32 4, %v2570
    %v2595 = vsel %vm2472, %v2594, %v2570
    %v2596 = vsel %vm2471, %v2314, %v2593
    %v2597 = vsel %vm2471, 0, %v2595
    %v2598 = vmul.f32 %v2596, %v2596
    %v2599 = vmul.f32 %v2598, -0.001358992
    %v2600 = vadd.f32 %v2599, 0.041655596
    %v2601 = vmul.f32 %v2598, %v2600
    %v2602 = vadd.f32 %v2601, -0.4999988
    %v2603 = vmul.f32 %v2598, %v2602
    %v2604 = vadd.f32 1.0, %v2603
    %v2605 = vmul.f32 %v2596, %v2596
    %v2606 = vmul.f32 %v2605, -0.00019511016
    %v2607 = vadd.f32 %v2606, 0.008332121
    %v2608 = vmul.f32 %v2605, %v2607
    %v2609 = vadd.f32 %v2608, -0.16666654
    %v2610 = vmul.f32 %v2605, %v2609
    %v2611 = vadd.f32 %v2610, 1.0
    %v2612 = vmul.f32 %v2611, %v2596
    %vm2613 = vweird.f32 %v2314
    %v2614 = vadd.s32 %v2597, 3
    %v2615 = vand.u32 %v2614, 3
    %vm2616 = vcmp.lt.s32.totalorder %v2615, 2
    %vm2617 = vcmp.eq.s32.totalorder %v2615, 0
    %v2618 = vxor.u32 %v2612, 2147483648
    %v2619 = vsel %vm2617, %v2604, %v2618
    %vm2620 = vcmp.eq.s32.totalorder %v2615, 2
    %v2621 = vxor.u32 %v2604, 2147483648
    %v2622 = vsel %vm2620, %v2621, %v2612
    %v2623 = vsel %vm2616, %v2619, %v2622
    %v2624 = vsel %vm2613, nan, %v2623
    %v2625 = vand.u32 2147483647, %v118
    %vm2626 = vcmp.le.f32.partialorder %v2625, 0.7853982
    %vm2627 = vcmp.lt.s32.totalorder %v118, 0
    %v2628 = vand.u32 %v118, 2139095040
    %v2629 = vshrl.u32 %v2628, 23
    %v2630 = vsub.s32 %v2629, 127
    %v2631 = vand.u32 2147483647, %v118
    %v2632 = vand.u32 %v2631, 8388607
    %v2633 = vor.u32 %v2632, 8388608
    %v2634 = vsub.s32 0, %v2633
    %v2635 = vadd.s32 %v2630, 1
    %vm2636 = vcmp.gt.s32.totalorder %v2635, 0
    %v2637 = vsel %vm2636, %v2635, 0
    %v2638 = vshrl.u32 %v2637, 5
    %v2639 = vand.u32 %v2637, 31
    %v2640 = vsub.s32 32, %v2639
    %v2641 = vshrl.u32 683565275, %v2640
    %v2642 = vshll.u32 683565275, %v2639
    %v2643 = vshrl.u32 2475754826, %v2640
    %v2644 = vor.u32 %v2642, %v2643
    %v2645 = vshll.u32 2475754826, %v2639
    %v2646 = vshrl.u32 2131351028, %v2640
    %v2647 = vor.u32 %v2645, %v2646
    %v2648 = vshll.u32 2131351028, %v2639
    %v2649 = vshrl.u32 2102212464, %v2640
    %v2650 = vor.u32 %v2648, %v2649
    %v2651 = vshll.u32 2102212464, %v2639
    %v2652 = vshrl.u32 920167782, %v2640
    %v2653 = vor.u32 %v2651, %v2652
    %v2654 = vshll.u32 920167782, %v2639
    %v2655 = vshrl.u32 1326507024, %v2640
    %v2656 = vor.u32 %v2654, %v2655
    %vm2657 = vcmp.lt.s32.totalorder %v2638, 1
    %vm2658 = vcmp.lt.s32.totalorder %v2638, 2
    %vm2659 = vcmp.lt.s32.totalorder %v2638, 3
    %vm2660 = vcmp.lt.s32.totalorder %v2638, 4
    %v2661 = vsel %vm2657, %v2641, %v2644
    %v2662 = vsel %vm2660, %v2650, 2102212464
    %v2663 = vsel %vm2659, %v2647, %v2662
    %v2664 = vsel %vm2658, %v2661, %v2663
    %v2665 = vsel %vm2657, %v2644, %v2647
    %v2666 = vsel %vm2660, %v2653, 920167782
    %v2667 = vsel %vm2659, %v2650, %v2666
    %v2668 = vsel %vm2658, %v2665, %v2667
    %v2669 = vsel %vm2657, %v2647, %v2650
    %v2670 = vsel %vm2660, %v2656, 1326507024
    %v2671 = vsel %vm2659, %v2653, %v2670
    %v2672 = vsel %vm2658, %v2669, %v2671
    %v2673 = vshll.u32 %v2633, 8
    %v2674 = vand.u32 %v2673, 65535
    %v2675 = vshrl.u32 %v2673, 16
    %v2676 = vand.u32 %v2672, 65535
    %v2677 = vshrl.u32 %v2672, 16
    %v2678 = vmul.u32 %v2674, %v2676
    %v2679 = vmul.u32 %v2674, %v2677
    %v2680 = vmul.u32 %v2675, %v2676
    %v2681 = vmul.u32 %v2675, %v2677
    %v2682 = vshll.u32 %v2679, 16
    %v2683 = vshrl.u32 %v2679, 16
    %v2684 = vshll.u32 %v2680, 16
    %v2685 = vshrl.u32 %v2680, 16
    %vm2686 = vc.u32 %v2678, %v2682
    %v2687 = vsel %vm2686, 1, 0
    %v2688 = vadd.s32 %v2678, %v2682
    %v2689 = vadd.s32 %v2681, %v2687
    %vm2690 = vc.u32 %v2688, %v2684
    %v2691 = vsel %vm2690, 1, 0
    %v2692 = vadd.s32 %v2688, %v2684
    %v2693 = vadd.s32 %v2689, %v2691
    %v2694 = vadd.s32 %v2693, %v2683
    %v2695 = vadd.s32 %v2694, %v2685
    %v2696 = vand.u32 %v2673, 65535
    %v2697 = vshrl.u32 %v2673, 16
    %v2698 = vand.u32 %v2668, 65535
    %v2699 = vshrl.u32 %v2668, 16
    %v2700 = vmul.u32 %v2696, %v2698
    %v2701 = vmul.u32 %v2696, %v2699
    %v2702 = vmul.u32 %v2697, %v2698
    %v2703 = vmul.u32 %v2697, %v2699
    %v2704 = vshll.u32 %v2701, 16
    %v2705 = vshrl.u32 %v2701, 16
    %v2706 = vshll.u32 %v2702, 16
    %v2707 = vshrl.u32 %v2702, 16
    %vm2708 = vc.u32 %v2700, %v2704
    %v2709 = vsel %vm2708, 1, 0
    %v2710 = vadd.s32 %v2700, %v2704
    %v2711 = vadd.s32 %v2703, %v2709
    %vm2712 = vc.u32 %v2710, %v2706
    %v2713 = vsel %vm2712, 1, 0
    %v2714 = vadd.s32 %v2710, %v2706
    %v2715 = vadd.s32 %v2711, %v2713
    %v2716 = vadd.s32 %v2715, %v2705
    %v2717 = vadd.s32 %v2716, %v2707
    %v2718 = vmul.u32 %v2673, %v2664
    %v2719 = vadd.s32 %v2695, %v2714
    %vm2720 = vc.u32 %v2695, %v2714
    %v2721 = vadd.s32 %v2717, 1
    %v2722 = vsel %vm2720, %v2721, %v2717
    %v2723 = vadd.s32 %v2718, %v2722
    %v2724 = vadd.s32 %v2723, 536870912
    %v2725 = vshrl.u32 %v2724, 30
    %v2726 = vshll.u32 %v2725, 30
    %v2727 = vsub.s32 %v2723, %v2726
    %vm2728 = vcmp.lt.s32.totalorder %v2727, 0
    %v2729 = vsub.s32 0, %v2727
    %v2730 = vsel %vm2728, %v2729, %v2727
    %v2731 = vclz %v2730
    %v2732 = vsub.s32 %v2731, 2
    %vm2733 = vcmp.gt.s32.totalorder 0, %v2732
    %v2734 = vsel %vm2733, 0, %v2732
    %v2735 = vsub.s32 32, %v2734
    %v2736 = vshll.u32 %v2727, %v2734
    %v2737 = vshrl.u32 %v2719, %v2735
    %v2738 = vor.u32 %v2736, %v2737
    %v2739 = vsub.s32 4294967266, %v2734
    %v2740 = vadd.s32 %v2739, 127
    %v2741 = vshll.u32 %v2740, 23
    %v2742 = vor.u32 4788187, %v2741
    %v2743 = vand.u32 2147483647, %v2742
    %v2745 = vcvt.s32.f32 %v2738
    %v2746 = vmul.f32 %v2745, %v2743
    %v2747 = vxor.u32 %v2746, 2147483648
    %v2748 = vsel %vm2627, %v2747, %v2746
    %v2749 = vsub.s32 4, %v2725
    %v2750 = vsel %vm2627, %v2749, %v2725
    %v2751 = vsel %vm2626, %v118, %v2748
    %v2752 = vsel %vm2626, 0, %v2750
    %v2753 = vmul.f32 %v2751, %v2751
    %v2754 = vmul.f32 %v2753, -0.001358992
    %v2755 = vadd.f32 %v2754, 0.041655596
    %v2756 = vmul.f32 %v2753, %v2755
    %v2757 = vadd.f32 %v2756, -0.4999988
    %v2758 = vmul.f32 %v2753, %v2757
    %v2759 = vadd.f32 1.0, %v2758
    %v2760 = vmul.f32 %v2751, %v2751
    %v2761 = vmul.f32 %v2760, -0.00019511016
    %v2762 = vadd.f32 %v2761, 0.008332121
    %v2763 = vmul.f32 %v2760, %v2762
    %v2764 = vadd.f32 %v2763, -0.16666654
    %v2765 = vmul.f32 %v2760, %v2764
    %v2766 = vadd.f32 %v2765, 1.0
    %v2767 = vmul.f32 %v2766, %v2751
    %vm2768 = vweird.f32 %v118
    %v2769 = vand.u32 %v2752, 3
    %vm2770 = vcmp.lt.s32.totalorder %v2769, 2
    %vm2771 = vcmp.eq.s32.totalorder %v2769, 0
    %v2772 = vxor.u32 %v2767, 2147483648
    %v2773 = vsel %vm2771, %v2759, %v2772
    %vm2774 = vcmp.eq.s32.totalorder %v2769, 2
    %v2775 = vxor.u32 %v2759, 2147483648
    %v2776 = vsel %vm2774, %v2775, %v2767
    %v2777 = vsel %vm2770, %v2773, %v2776
    %v2778 = vsel %vm2768, nan, %v2777
    %v2779 = vand.u32 2147483647, %v130
    %vm2780 = vcmp.le.f32.partialorder %v2779, 0.7853982
    %vm2781 = vcmp.lt.s32.totalorder %v130, 0
    %v2782 = vand.u32 %v130, 2139095040
    %v2783 = vshrl.u32 %v2782, 23
    %v2784 = vsub.s32 %v2783, 127
    %v2785 = vand.u32 2147483647, %v130
    %v2786 = vand.u32 %v2785, 8388607
    %v2787 = vor.u32 %v2786, 8388608
    %v2788 = vsub.s32 0, %v2787
    %v2789 = vadd.s32 %v2784, 1
    %vm2790 = vcmp.gt.s32.totalorder %v2789, 0
    %v2791 = vsel %vm2790, %v2789, 0
    %v2792 = vshrl.u32 %v2791, 5
    %v2793 = vand.u32 %v2791, 31
    %v2794 = vsub.s32 32, %v2793
    %v2795 = vshrl.u32 683565275, %v2794
    %v2796 = vshll.u32 683565275, %v2793
    %v2797 = vshrl.u32 2475754826, %v2794
    %v2798 = vor.u32 %v2796, %v2797
    %v2799 = vshll.u32 2475754826, %v2793
    %v2800 = vshrl.u32 2131351028, %v2794
    %v2801 = vor.u32 %v2799, %v2800
    %v2802 = vshll.u32 2131351028, %v2793
    %v2803 = vshrl.u32 2102212464, %v2794
    %v2804 = vor.u32 %v2802, %v2803
    %v2805 = vshll.u32 2102212464, %v2793
    %v2806 = vshrl.u32 920167782, %v2794
    %v2807 = vor.u32 %v2805, %v2806
    %v2808 = vshll.u32 920167782, %v2793
    %v2809 = vshrl.u32 1326507024, %v2794
    %v2810 = vor.u32 %v2808, %v2809
    %vm2811 = vcmp.lt.s32.totalorder %v2792, 1
    %vm2812 = vcmp.lt.s32.totalorder %v2792, 2
    %vm2813 = vcmp.lt.s32.totalorder %v2792, 3
    %vm2814 = vcmp.lt.s32.totalorder %v2792, 4
    %v2815 = vsel %vm2811, %v2795, %v2798
    %v2816 = vsel %vm2814, %v2804, 2102212464
    %v2817 = vsel %vm2813, %v2801, %v2816
    %v2818 = vsel %vm2812, %v2815, %v2817
    %v2819 = vsel %vm2811, %v2798, %v2801
    %v2820 = vsel %vm2814, %v2807, 920167782
    %v2821 = vsel %vm2813, %v2804, %v2820
    %v2822 = vsel %vm2812, %v2819, %v2821
    %v2823 = vsel %vm2811, %v2801, %v2804
    %v2824 = vsel %vm2814, %v2810, 1326507024
    %v2825 = vsel %vm2813, %v2807, %v2824
    %v2826 = vsel %vm2812, %v2823, %v2825
    %v2827 = vshll.u32 %v2787, 8
    %v2828 = vand.u32 %v2827, 65535
    %v2829 = vshrl.u32 %v2827, 16
    %v2830 = vand.u32 %v2826, 65535
    %v2831 = vshrl.u32 %v2826, 16
    %v2832 = vmul.u32 %v2828, %v2830
    %v2833 = vmul.u32 %v2828, %v2831
    %v2834 = vmul.u32 %v2829, %v2830
    %v2835 = vmul.u32 %v2829, %v2831
    %v2836 = vshll.u32 %v2833, 16
    %v2837 = vshrl.u32 %v2833, 16
    %v2838 = vshll.u32 %v2834, 16
    %v2839 = vshrl.u32 %v2834, 16
    %vm2840 = vc.u32 %v2832, %v2836
    %v2841 = vsel %vm2840, 1, 0
    %v2842 = vadd.s32 %v2832, %v2836
    %v2843 = vadd.s32 %v2835, %v2841
    %vm2844 = vc.u32 %v2842, %v2838
    %v2845 = vsel %vm2844, 1, 0
    %v2846 = vadd.s32 %v2842, %v2838
    %v2847 = vadd.s32 %v2843, %v2845
    %v2848 = vadd.s32 %v2847, %v2837
    %v2849 = vadd.s32 %v2848, %v2839
    %v2850 = vand.u32 %v2827, 65535
    %v2851 = vshrl.u32 %v2827, 16
    %v2852 = vand.u32 %v2822, 65535
    %v2853 = vshrl.u32 %v2822, 16
    %v2854 = vmul.u32 %v2850, %v2852
    %v2855 = vmul.u32 %v2850, %v2853
    %v2856 = vmul.u32 %v2851, %v2852
    %v2857 = vmul.u32 %v2851, %v2853
    %v2858 = vshll.u32 %v2855, 16
    %v2859 = vshrl.u32 %v2855, 16
    %v2860 = vshll.u32 %v2856, 16
    %v2861 = vshrl.u32 %v2856, 16
    %vm2862 = vc.u32 %v2854, %v2858
    %v2863 = vsel %vm2862, 1, 0
    %v2864 = vadd.s32 %v2854, %v2858
    %v2865 = vadd.s32 %v2857, %v2863
    %vm2866 = vc.u32 %v2864, %v2860
    %v2867 = vsel %vm2866, 1, 0
    %v2868 = vadd.s32 %v2864, %v2860
    %v2869 = vadd.s32 %v2865, %v2867
    %v2870 = vadd.s32 %v2869, %v2859
    %v2871 = vadd.s32 %v2870, %v2861
    %v2872 = vmul.u32 %v2827, %v2818
    %v2873 = vadd.s32 %v2849, %v2868
    %vm2874 = vc.u32 %v2849, %v2868
    %v2875 = vadd.s32 %v2871, 1
    %v2876 = vsel %vm2874, %v2875, %v2871
    %v2877 = vadd.s32 %v2872, %v2876
    %v2878 = vadd.s32 %v2877, 536870912
    %v2879 = vshrl.u32 %v2878, 30
    %v2880 = vshll.u32 %v2879, 30
    %v2881 = vsub.s32 %v2877, %v2880
    %vm2882 = vcmp.lt.s32.totalorder %v2881, 0
    %v2883 = vsub.s32 0, %v2881
    %v2884 = vsel %vm2882, %v2883, %v2881
    %v2885 = vclz %v2884
    %v2886 = vsub.s32 %v2885, 2
    %vm2887 = vcmp.gt.s32.totalorder 0, %v2886
    %v2888 = vsel %vm2887, 0, %v2886
    %v2889 = vsub.s32 32, %v2888
    %v2890 = vshll.u32 %v2881, %v2888
    %v2891 = vshrl.u32 %v2873, %v2889
    %v2892 = vor.u32 %v2890, %v2891
    %v2893 = vsub.s32 4294967266, %v2888
    %v2894 = vadd.s32 %v2893, 127
    %v2895 = vshll.u32 %v2894, 23
    %v2896 = vor.u32 4788187, %v2895
    %v2897 = vand.u32 2147483647, %v2896
    %v2899 = vcvt.s32.f32 %v2892
    %v2900 = vmul.f32 %v2899, %v2897
    %v2901 = vxor.u32 %v2900, 2147483648
    %v2902 = vsel %vm2781, %v2901, %v2900
    %v2903 = vsub.s32 4, %v2879
    %v2904 = vsel %vm2781, %v2903, %v2879
    %v2905 = vsel %vm2780, %v130, %v2902
    %v2906 = vsel %vm2780, 0, %v2904
    %v2907 = vmul.f32 %v2905, %v2905
    %v2908 = vmul.f32 %v2907, -0.001358992
    %v2909 = vadd.f32 %v2908, 0.041655596
    %v2910 = vmul.f32 %v2907, %v2909
    %v2911 = vadd.f32 %v2910, -0.4999988
    %v2912 = vmul.f32 %v2907, %v2911
    %v2913 = vadd.f32 1.0, %v2912
    %v2914 = vmul.f32 %v2905, %v2905
    %v2915 = vmul.f32 %v2914, -0.00019511016
    %v2916 = vadd.f32 %v2915, 0.008332121
    %v2917 = vmul.f32 %v2914, %v2916
    %v2918 = vadd.f32 %v2917, -0.16666654
    %v2919 = vmul.f32 %v2914, %v2918
    %v2920 = vadd.f32 %v2919, 1.0
    %v2921 = vmul.f32 %v2920, %v2905
    %vm2922 = vweird.f32 %v130
    %v2923 = vand.u32 %v2906, 3
    %vm2924 = vcmp.lt.s32.totalorder %v2923, 2
    %vm2925 = vcmp.eq.s32.totalorder %v2923, 0
    %v2926 = vxor.u32 %v2921, 2147483648
    %v2927 = vsel %vm2925, %v2913, %v2926
    %vm2928 = vcmp.eq.s32.totalorder %v2923, 2
    %v2929 = vxor.u32 %v2913, 2147483648
    %v2930 = vsel %vm2928, %v2929, %v2921
    %v2931 = vsel %vm2924, %v2927, %v2930
    %v2932 = vsel %vm2922, nan, %v2931
    %v2933 = vand.u32 2147483647, %v441
    %vm2934 = vcmp.le.f32.partialorder %v2933, 0.7853982
    %vm2935 = vcmp.lt.s32.totalorder %v441, 0
    %v2936 = vand.u32 %v441, 2139095040
    %v2937 = vshrl.u32 %v2936, 23
    %v2938 = vsub.s32 %v2937, 127
    %v2939 = vand.u32 2147483647, %v441
    %v2940 = vand.u32 %v2939, 8388607
    %v2941 = vor.u32 %v2940, 8388608
    %v2942 = vsub.s32 0, %v2941
    %v2943 = vadd.s32 %v2938, 1
    %vm2944 = vcmp.gt.s32.totalorder %v2943, 0
    %v2945 = vsel %vm2944, %v2943, 0
    %v2946 = vshrl.u32 %v2945, 5
    %v2947 = vand.u32 %v2945, 31
    %v2948 = vsub.s32 32, %v2947
    %v2949 = vshrl.u32 683565275, %v2948
    %v2950 = vshll.u32 683565275, %v2947
    %v2951 = vshrl.u32 2475754826, %v2948
    %v2952 = vor.u32 %v2950, %v2951
    %v2953 = vshll.u32 2475754826, %v2947
    %v2954 = vshrl.u32 2131351028, %v2948
    %v2955 = vor.u32 %v2953, %v2954
    %v2956 = vshll.u32 2131351028, %v2947
    %v2957 = vshrl.u32 2102212464, %v2948
    %v2958 = vor.u32 %v2956, %v2957
    %v2959 = vshll.u32 2102212464, %v2947
    %v2960 = vshrl.u32 920167782, %v2948
    %v2961 = vor.u32 %v2959, %v2960
    %v2962 = vshll.u32 920167782, %v2947
    %v2963 = vshrl.u32 1326507024, %v2948
    %v2964 = vor.u32 %v2962, %v2963
    %vm2965 = vcmp.lt.s32.totalorder %v2946, 1
    %vm2966 = vcmp.lt.s32.totalorder %v2946, 2
    %vm2967 = vcmp.lt.s32.totalorder %v2946, 3
    %vm2968 = vcmp.lt.s32.totalorder %v2946, 4
    %v2969 = vsel %vm2965, %v2949, %v2952
    %v2970 = vsel %vm2968, %v2958, 2102212464
    %v2971 = vsel %vm2967, %v2955, %v2970
    %v2972 = vsel %vm2966, %v2969, %v2971
    %v2973 = vsel %vm2965, %v2952, %v2955
    %v2974 = vsel %vm2968, %v2961, 920167782
    %v2975 = vsel %vm2967, %v2958, %v2974
    %v2976 = vsel %vm2966, %v2973, %v2975
    %v2977 = vsel %vm2965, %v2955, %v2958
    %v2978 = vsel %vm2968, %v2964, 1326507024
    %v2979 = vsel %vm2967, %v2961, %v2978
    %v2980 = vsel %vm2966, %v2977, %v2979
    %v2981 = vshll.u32 %v2941, 8
    %v2982 = vand.u32 %v2981, 65535
    %v2983 = vshrl.u32 %v2981, 16
    %v2984 = vand.u32 %v2980, 65535
    %v2985 = vshrl.u32 %v2980, 16
    %v2986 = vmul.u32 %v2982, %v2984
    %v2987 = vmul.u32 %v2982, %v2985
    %v2988 = vmul.u32 %v2983, %v2984
    %v2989 = vmul.u32 %v2983, %v2985
    %v2990 = vshll.u32 %v2987, 16
    %v2991 = vshrl.u32 %v2987, 16
    %v2992 = vshll.u32 %v2988, 16
    %v2993 = vshrl.u32 %v2988, 16
    %vm2994 = vc.u32 %v2986, %v2990
    %v2995 = vsel %vm2994, 1, 0
    %v2996 = vadd.s32 %v2986, %v2990
    %v2997 = vadd.s32 %v2989, %v2995
    %vm2998 = vc.u32 %v2996, %v2992
    %v2999 = vsel %vm2998, 1, 0
    %v3000 = vadd.s32 %v2996, %v2992
    %v3001 = vadd.s32 %v2997, %v2999
    %v3002 = vadd.s32 %v3001, %v2991
    %v3003 = vadd.s32 %v3002, %v2993
    %v3004 = vand.u32 %v2981, 65535
    %v3005 = vshrl.u32 %v2981, 16
    %v3006 = vand.u32 %v2976, 65535
    %v3007 = vshrl.u32 %v2976, 16
    %v3008 = vmul.u32 %v3004, %v3006
    %v3009 = vmul.u32 %v3004, %v3007
    %v3010 = vmul.u32 %v3005, %v3006
    %v3011 = vmul.u32 %v3005, %v3007
    %v3012 = vshll.u32 %v3009, 16
    %v3013 = vshrl.u32 %v3009, 16
    %v3014 = vshll.u32 %v3010, 16
    %v3015 = vshrl.u32 %v3010, 16
    %vm3016 = vc.u32 %v3008, %v3012
    %v3017 = vsel %vm3016, 1, 0
    %v3018 = vadd.s32 %v3008, %v3012
    %v3019 = vadd.s32 %v3011, %v3017
    %vm3020 = vc.u32 %v3018, %v3014
    %v3021 = vsel %vm3020, 1, 0
    %v3022 = vadd.s32 %v3018, %v3014
    %v3023 = vadd.s32 %v3019, %v3021
    %v3024 = vadd.s32 %v3023, %v3013
    %v3025 = vadd.s32 %v3024, %v3015
    %v3026 = vmul.u32 %v2981, %v2972
    %v3027 = vadd.s32 %v3003, %v3022
    %vm3028 = vc.u32 %v3003, %v3022
    %v3029 = vadd.s32 %v3025, 1
    %v3030 = vsel %vm3028, %v3029, %v3025
    %v3031 = vadd.s32 %v3026, %v3030
    %v3032 = vadd.s32 %v3031, 536870912
    %v3033 = vshrl.u32 %v3032, 30
    %v3034 = vshll.u32 %v3033, 30
    %v3035 = vsub.s32 %v3031, %v3034
    %vm3036 = vcmp.lt.s32.totalorder %v3035, 0
    %v3037 = vsub.s32 0, %v3035
    %v3038 = vsel %vm3036, %v3037, %v3035
    %v3039 = vclz %v3038
    %v3040 = vsub.s32 %v3039, 2
    %vm3041 = vcmp.gt.s32.totalorder 0, %v3040
    %v3042 = vsel %vm3041, 0, %v3040
    %v3043 = vsub.s32 32, %v3042
    %v3044 = vshll.u32 %v3035, %v3042
    %v3045 = vshrl.u32 %v3027, %v3043
    %v3046 = vor.u32 %v3044, %v3045
    %v3047 = vsub.s32 4294967266, %v3042
    %v3048 = vadd.s32 %v3047, 127
    %v3049 = vshll.u32 %v3048, 23
    %v3050 = vor.u32 4788187, %v3049
    %v3051 = vand.u32 2147483647, %v3050
    %v3053 = vcvt.s32.f32 %v3046
    %v3054 = vmul.f32 %v3053, %v3051
    %v3055 = vxor.u32 %v3054, 2147483648
    %v3056 = vsel %vm2935, %v3055, %v3054
    %v3057 = vsub.s32 4, %v3033
    %v3058 = vsel %vm2935, %v3057, %v3033
    %v3059 = vsel %vm2934, %v441, %v3056
    %v3060 = vsel %vm2934, 0, %v3058
    %v3061 = vmul.f32 %v3059, %v3059
    %v3062 = vmul.f32 %v3061, -0.001358992
    %v3063 = vadd.f32 %v3062, 0.041655596
    %v3064 = vmul.f32 %v3061, %v3063
    %v3065 = vadd.f32 %v3064, -0.4999988
    %v3066 = vmul.f32 %v3061, %v3065
    %v3067 = vadd.f32 1.0, %v3066
    %v3068 = vmul.f32 %v3059, %v3059
    %v3069 = vmul.f32 %v3068, -0.00019511016
    %v3070 = vadd.f32 %v3069, 0.008332121
    %v3071 = vmul.f32 %v3068, %v3070
    %v3072 = vadd.f32 %v3071, -0.16666654
    %v3073 = vmul.f32 %v3068, %v3072
    %v3074 = vadd.f32 %v3073, 1.0
    %v3075 = vmul.f32 %v3074, %v3059
    %vm3076 = vweird.f32 %v441
    %v3077 = vand.u32 %v3060, 3
    %vm3078 = vcmp.lt.s32.totalorder %v3077, 2
    %vm3079 = vcmp.eq.s32.totalorder %v3077, 0
    %v3080 = vxor.u32 %v3075, 2147483648
    %v3081 = vsel %vm3079, %v3067, %v3080
    %vm3082 = vcmp.eq.s32.totalorder %v3077, 2
    %v3083 = vxor.u32 %v3067, 2147483648
    %v3084 = vsel %vm3082, %v3083, %v3075
    %v3085 = vsel %vm3078, %v3081, %v3084
    %v3086 = vsel %vm3076, nan, %v3085
    %v3087 = vand.u32 2147483647, %v442
    %vm3088 = vcmp.le.f32.partialorder %v3087, 0.7853982
    %vm3089 = vcmp.lt.s32.totalorder %v442, 0
    %v3090 = vand.u32 %v442, 2139095040
    %v3091 = vshrl.u32 %v3090, 23
    %v3092 = vsub.s32 %v3091, 127
    %v3093 = vand.u32 2147483647, %v442
    %v3094 = vand.u32 %v3093, 8388607
    %v3095 = vor.u32 %v3094, 8388608
    %v3096 = vsub.s32 0, %v3095
    %v3097 = vadd.s32 %v3092, 1
    %vm3098 = vcmp.gt.s32.totalorder %v3097, 0
    %v3099 = vsel %vm3098, %v3097, 0
    %v3100 = vshrl.u32 %v3099, 5
    %v3101 = vand.u32 %v3099, 31
    %v3102 = vsub.s32 32, %v3101
    %v3103 = vshrl.u32 683565275, %v3102
    %v3104 = vshll.u32 683565275, %v3101
    %v3105 = vshrl.u32 2475754826, %v3102
    %v3106 = vor.u32 %v3104, %v3105
    %v3107 = vshll.u32 2475754826, %v3101
    %v3108 = vshrl.u32 2131351028, %v3102
    %v3109 = vor.u32 %v3107, %v3108
    %v3110 = vshll.u32 2131351028, %v3101
    %v3111 = vshrl.u32 2102212464, %v3102
    %v3112 = vor.u32 %v3110, %v3111
    %v3113 = vshll.u32 2102212464, %v3101
    %v3114 = vshrl.u32 920167782, %v3102
    %v3115 = vor.u32 %v3113, %v3114
    %v3116 = vshll.u32 920167782, %v3101
    %v3117 = vshrl.u32 1326507024, %v3102
    %v3118 = vor.u32 %v3116, %v3117
    %vm3119 = vcmp.lt.s32.totalorder %v3100, 1
    %vm3120 = vcmp.lt.s32.totalorder %v3100, 2
    %vm3121 = vcmp.lt.s32.totalorder %v3100, 3
    %vm3122 = vcmp.lt.s32.totalorder %v3100, 4
    %v3123 = vsel %vm3119, %v3103, %v3106
    %v3124 = vsel %vm3122, %v3112, 2102212464
    %v3125 = vsel %vm3121, %v3109, %v3124
    %v3126 = vsel %vm3120, %v3123, %v3125
    %v3127 = vsel %vm3119, %v3106, %v3109
    %v3128 = vsel %vm3122, %v3115, 920167782
    %v3129 = vsel %vm3121, %v3112, %v3128
    %v3130 = vsel %vm3120, %v3127, %v3129
    %v3131 = vsel %vm3119, %v3109, %v3112
    %v3132 = vsel %vm3122, %v3118, 1326507024
    %v3133 = vsel %vm3121, %v3115, %v3132
    %v3134 = vsel %vm3120, %v3131, %v3133
    %v3135 = vshll.u32 %v3095, 8
    %v3136 = vand.u32 %v3135, 65535
    %v3137 = vshrl.u32 %v3135, 16
    %v3138 = vand.u32 %v3134, 65535
    %v3139 = vshrl.u32 %v3134, 16
    %v3140 = vmul.u32 %v3136, %v3138
    %v3141 = vmul.u32 %v3136, %v3139
    %v3142 = vmul.u32 %v3137, %v3138
    %v3143 = vmul.u32 %v3137, %v3139
    %v3144 = vshll.u32 %v3141, 16
    %v3145 = vshrl.u32 %v3141, 16
    %v3146 = vshll.u32 %v3142, 16
    %v3147 = vshrl.u32 %v3142, 16
    %vm3148 = vc.u32 %v3140, %v3144
    %v3149 = vsel %vm3148, 1, 0
    %v3150 = vadd.s32 %v3140, %v3144
    %v3151 = vadd.s32 %v3143, %v3149
    %vm3152 = vc.u32 %v3150, %v3146
    %v3153 = vsel %vm3152, 1, 0
    %v3154 = vadd.s32 %v3150, %v3146
    %v3155 = vadd.s32 %v3151, %v3153
    %v3156 = vadd.s32 %v3155, %v3145
    %v3157 = vadd.s32 %v3156, %v3147
    %v3158 = vand.u32 %v3135, 65535
    %v3159 = vshrl.u32 %v3135, 16
    %v3160 = vand.u32 %v3130, 65535
    %v3161 = vshrl.u32 %v3130, 16
    %v3162 = vmul.u32 %v3158, %v3160
    %v3163 = vmul.u32 %v3158, %v3161
    %v3164 = vmul.u32 %v3159, %v3160
    %v3165 = vmul.u32 %v3159, %v3161
    %v3166 = vshll.u32 %v3163, 16
    %v3167 = vshrl.u32 %v3163, 16
    %v3168 = vshll.u32 %v3164, 16
    %v3169 = vshrl.u32 %v3164, 16
    %vm3170 = vc.u32 %v3162, %v3166
    %v3171 = vsel %vm3170, 1, 0
    %v3172 = vadd.s32 %v3162, %v3166
    %v3173 = vadd.s32 %v3165, %v3171
    %vm3174 = vc.u32 %v3172, %v3168
    %v3175 = vsel %vm3174, 1, 0
    %v3176 = vadd.s32 %v3172, %v3168
    %v3177 = vadd.s32 %v3173, %v3175
    %v3178 = vadd.s32 %v3177, %v3167
    %v3179 = vadd.s32 %v3178, %v3169
    %v3180 = vmul.u32 %v3135, %v3126
    %v3181 = vadd.s32 %v3157, %v3176
    %vm3182 = vc.u32 %v3157, %v3176
    %v3183 = vadd.s32 %v3179, 1
    %v3184 = vsel %vm3182, %v3183, %v3179
    %v3185 = vadd.s32 %v3180, %v3184
    %v3186 = vadd.s32 %v3185, 536870912
    %v3187 = vshrl.u32 %v3186, 30
    %v3188 = vshll.u32 %v3187, 30
    %v3189 = vsub.s32 %v3185, %v3188
    %vm3190 = vcmp.lt.s32.totalorder %v3189, 0
    %v3191 = vsub.s32 0, %v3189
    %v3192 = vsel %vm3190, %v3191, %v3189
    %v3193 = vclz %v3192
    %v3194 = vsub.s32 %v3193, 2
    %vm3195 = vcmp.gt.s32.totalorder 0, %v3194
    %v3196 = vsel %vm3195, 0, %v3194
    %v3197 = vsub.s32 32, %v3196
    %v3198 = vshll.u32 %v3189, %v3196
    %v3199 = vshrl.u32 %v3181, %v3197
    %v3200 = vor.u32 %v3198, %v3199
    %v3201 = vsub.s32 4294967266, %v3196
    %v3202 = vadd.s32 %v3201, 127
    %v3203 = vshll.u32 %v3202, 23
    %v3204 = vor.u32 4788187, %v3203
    %v3205 = vand.u32 2147483647, %v3204
    %v3207 = vcvt.s32.f32 %v3200
    %v3208 = vmul.f32 %v3207, %v3205
    %v3209 = vxor.u32 %v3208, 2147483648
    %v3210 = vsel %vm3089, %v3209, %v3208
    %v3211 = vsub.s32 4, %v3187
    %v3212 = vsel %vm3089, %v3211, %v3187
    %v3213 = vsel %vm3088, %v442, %v3210
    %v3214 = vsel %vm3088, 0, %v3212
    %v3215 = vmul.f32 %v3213, %v3213
    %v3216 = vmul.f32 %v3215, -0.001358992
    %v3217 = vadd.f32 %v3216, 0.041655596
    %v3218 = vmul.f32 %v3215, %v3217
    %v3219 = vadd.f32 %v3218, -0.4999988
    %v3220 = vmul.f32 %v3215, %v3219
    %v3221 = vadd.f32 1.0, %v3220
    %v3222 = vmul.f32 %v3213, %v3213
    %v3223 = vmul.f32 %v3222, -0.00019511016
    %v3224 = vadd.f32 %v3223, 0.008332121
    %v3225 = vmul.f32 %v3222, %v3224
    %v3226 = vadd.f32 %v3225, -0.16666654
    %v3227 = vmul.f32 %v3222, %v3226
    %v3228 = vadd.f32 %v3227, 1.0
    %v3229 = vmul.f32 %v3228, %v3213
    %vm3230 = vweird.f32 %v442
    %v3231 = vand.u32 %v3214, 3
    %vm3232 = vcmp.lt.s32.totalorder %v3231, 2
    %vm3233 = vcmp.eq.s32.totalorder %v3231, 0
    %v3234 = vxor.u32 %v3229, 2147483648
    %v3235 = vsel %vm3233, %v3221, %v3234
    %vm3236 = vcmp.eq.s32.totalorder %v3231, 2
    %v3237 = vxor.u32 %v3221, 2147483648
    %v3238 = vsel %vm3236, %v3237, %v3229
    %v3239 = vsel %vm3232, %v3235, %v3238
    %v3240 = vsel %vm3230, nan, %v3239
    %v3241 = vand.u32 2147483647, %v753
    %vm3242 = vcmp.le.f32.partialorder %v3241, 0.7853982
    %vm3243 = vcmp.lt.s32.totalorder %v753, 0
    %v3244 = vand.u32 %v753, 2139095040
    %v3245 = vshrl.u32 %v3244, 23
    %v3246 = vsub.s32 %v3245, 127
    %v3247 = vand.u32 2147483647, %v753
    %v3248 = vand.u32 %v3247, 8388607
    %v3249 = vor.u32 %v3248, 8388608
    %v3250 = vsub.s32 0, %v3249
    %v3251 = vadd.s32 %v3246, 1
    %vm3252 = vcmp.gt.s32.totalorder %v3251, 0
    %v3253 = vsel %vm3252, %v3251, 0
    %v3254 = vshrl.u32 %v3253, 5
    %v3255 = vand.u32 %v3253, 31
    %v3256 = vsub.s32 32, %v3255
    %v3257 = vshrl.u32 683565275, %v3256
    %v3258 = vshll.u32 683565275, %v3255
    %v3259 = vshrl.u32 2475754826, %v3256
    %v3260 = vor.u32 %v3258, %v3259
    %v3261 = vshll.u32 2475754826, %v3255
    %v3262 = vshrl.u32 2131351028, %v3256
    %v3263 = vor.u32 %v3261, %v3262
    %v3264 = vshll.u32 2131351028, %v3255
    %v3265 = vshrl.u32 2102212464, %v3256
    %v3266 = vor.u32 %v3264, %v3265
    %v3267 = vshll.u32 2102212464, %v3255
    %v3268 = vshrl.u32 920167782, %v3256
    %v3269 = vor.u32 %v3267, %v3268
    %v3270 = vshll.u32 920167782, %v3255
    %v3271 = vshrl.u32 1326507024, %v3256
    %v3272 = vor.u32 %v3270, %v3271
    %vm3273 = vcmp.lt.s32.totalorder %v3254, 1
    %vm3274 = vcmp.lt.s32.totalorder %v3254, 2
    %vm3275 = vcmp.lt.s32.totalorder %v3254, 3
    %vm3276 = vcmp.lt.s32.totalorder %v3254, 4
    %v3277 = vsel %vm3273, %v3257, %v3260
    %v3278 = vsel %vm3276, %v3266, 2102212464
    %v3279 = vsel %vm3275, %v3263, %v3278
    %v3280 = vsel %vm3274, %v3277, %v3279
    %v3281 = vsel %vm3273, %v3260, %v3263
    %v3282 = vsel %vm3276, %v3269, 920167782
    %v3283 = vsel %vm3275, %v3266, %v3282
    %v3284 = vsel %vm3274, %v3281, %v3283
    %v3285 = vsel %vm3273, %v3263, %v3266
    %v3286 = vsel %vm3276, %v3272, 1326507024
    %v3287 = vsel %vm3275, %v3269, %v3286
    %v3288 = vsel %vm3274, %v3285, %v3287
    %v3289 = vshll.u32 %v3249, 8
    %v3290 = vand.u32 %v3289, 65535
    %v3291 = vshrl.u32 %v3289, 16
    %v3292 = vand.u32 %v3288, 65535
    %v3293 = vshrl.u32 %v3288, 16
    %v3294 = vmul.u32 %v3290, %v3292
    %v3295 = vmul.u32 %v3290, %v3293
    %v3296 = vmul.u32 %v3291, %v3292
    %v3297 = vmul.u32 %v3291, %v3293
    %v3298 = vshll.u32 %v3295, 16
    %v3299 = vshrl.u32 %v3295, 16
    %v3300 = vshll.u32 %v3296, 16
    %v3301 = vshrl.u32 %v3296, 16
    %vm3302 = vc.u32 %v3294, %v3298
    %v3303 = vsel %vm3302, 1, 0
    %v3304 = vadd.s32 %v3294, %v3298
    %v3305 = vadd.s32 %v3297, %v3303
    %vm3306 = vc.u32 %v3304, %v3300
    %v3307 = vsel %vm3306, 1, 0
    %v3308 = vadd.s32 %v3304, %v3300
    %v3309 = vadd.s32 %v3305, %v3307
    %v3310 = vadd.s32 %v3309, %v3299
    %v3311 = vadd.s32 %v3310, %v3301
    %v3312 = vand.u32 %v3289, 65535
    %v3313 = vshrl.u32 %v3289, 16
    %v3314 = vand.u32 %v3284, 65535
    %v3315 = vshrl.u32 %v3284, 16
    %v3316 = vmul.u32 %v3312, %v3314
    %v3317 = vmul.u32 %v3312, %v3315
    %v3318 = vmul.u32 %v3313, %v3314
    %v3319 = vmul.u32 %v3313, %v3315
    %v3320 = vshll.u32 %v3317, 16
    %v3321 = vshrl.u32 %v3317, 16
    %v3322 = vshll.u32 %v3318, 16
    %v3323 = vshrl.u32 %v3318, 16
    %vm3324 = vc.u32 %v3316, %v3320
    %v3325 = vsel %vm3324, 1, 0
    %v3326 = vadd.s32 %v3316, %v3320
    %v3327 = vadd.s32 %v3319, %v3325
    %vm3328 = vc.u32 %v3326, %v3322
    %v3329 = vsel %vm3328, 1, 0
    %v3330 = vadd.s32 %v3326, %v3322
    %v3331 = vadd.s32 %v3327, %v3329
    %v3332 = vadd.s32 %v3331, %v3321
    %v3333 = vadd.s32 %v3332, %v3323
    %v3334 = vmul.u32 %v3289, %v3280
    %v3335 = vadd.s32 %v3311, %v3330
    %vm3336 = vc.u32 %v3311, %v3330
    %v3337 = vadd.s32 %v3333, 1
    %v3338 = vsel %vm3336, %v3337, %v3333
    %v3339 = vadd.s32 %v3334, %v3338
    %v3340 = vadd.s32 %v3339, 536870912
    %v3341 = vshrl.u32 %v3340, 30
    %v3342 = vshll.u32 %v3341, 30
    %v3343 = vsub.s32 %v3339, %v3342
    %vm3344 = vcmp.lt.s32.totalorder %v3343, 0
    %v3345 = vsub.s32 0, %v3343
    %v3346 = vsel %vm3344, %v3345, %v3343
    %v3347 = vclz %v3346
    %v3348 = vsub.s32 %v3347, 2
    %vm3349 = vcmp.gt.s32.totalorder 0, %v3348
    %v3350 = vsel %vm3349, 0, %v3348
    %v3351 = vsub.s32 32, %v3350
    %v3352 = vshll.u32 %v3343, %v3350
    %v3353 = vshrl.u32 %v3335, %v3351
    %v3354 = vor.u32 %v3352, %v3353
    %v3355 = vsub.s32 4294967266, %v3350
    %v3356 = vadd.s32 %v3355, 127
    %v3357 = vshll.u32 %v3356, 23
    %v3358 = vor.u32 4788187, %v3357
    %v3359 = vand.u32 2147483647, %v3358
    %v3361 = vcvt.s32.f32 %v3354
    %v3362 = vmul.f32 %v3361, %v3359
    %v3363 = vxor.u32 %v3362, 2147483648
    %v3364 = vsel %vm3243, %v3363, %v3362
    %v3365 = vsub.s32 4, %v3341
    %v3366 = vsel %vm3243, %v3365, %v3341
    %v3367 = vsel %vm3242, %v753, %v3364
    %v3368 = vsel %vm3242, 0, %v3366
    %v3369 = vmul.f32 %v3367, %v3367
    %v3370 = vmul.f32 %v3369, -0.001358992
    %v3371 = vadd.f32 %v3370, 0.041655596
    %v3372 = vmul.f32 %v3369, %v3371
    %v3373 = vadd.f32 %v3372, -0.4999988
    %v3374 = vmul.f32 %v3369, %v3373
    %v3375 = vadd.f32 1.0, %v3374
    %v3376 = vmul.f32 %v3367, %v3367
    %v3377 = vmul.f32 %v3376, -0.00019511016
    %v3378 = vadd.f32 %v3377, 0.008332121
    %v3379 = vmul.f32 %v3376, %v3378
    %v3380 = vadd.f32 %v3379, -0.16666654
    %v3381 = vmul.f32 %v3376, %v3380
    %v3382 = vadd.f32 %v3381, 1.0
    %v3383 = vmul.f32 %v3382, %v3367
    %vm3384 = vweird.f32 %v753
    %v3385 = vand.u32 %v3368, 3
    %vm3386 = vcmp.lt.s32.totalorder %v3385, 2
    %vm3387 = vcmp.eq.s32.totalorder %v3385, 0
    %v3388 = vxor.u32 %v3383, 2147483648
    %v3389 = vsel %vm3387, %v3375, %v3388
    %vm3390 = vcmp.eq.s32.totalorder %v3385, 2
    %v3391 = vxor.u32 %v3375, 2147483648
    %v3392 = vsel %vm3390, %v3391, %v3383
    %v3393 = vsel %vm3386, %v3389, %v3392
    %v3394 = vsel %vm3384, nan, %v3393
    %v3395 = vand.u32 2147483647, %v754
    %vm3396 = vcmp.le.f32.partialorder %v3395, 0.7853982
    %vm3397 = vcmp.lt.s32.totalorder %v754, 0
    %v3398 = vand.u32 %v754, 2139095040
    %v3399 = vshrl.u32 %v3398, 23
    %v3400 = vsub.s32 %v3399, 127
    %v3401 = vand.u32 2147483647, %v754
    %v3402 = vand.u32 %v3401, 8388607
    %v3403 = vor.u32 %v3402, 8388608
    %v3404 = vsub.s32 0, %v3403
    %v3405 = vadd.s32 %v3400, 1
    %vm3406 = vcmp.gt.s32.totalorder %v3405, 0
    %v3407 = vsel %vm3406, %v3405, 0
    %v3408 = vshrl.u32 %v3407, 5
    %v3409 = vand.u32 %v3407, 31
    %v3410 = vsub.s32 32, %v3409
    %v3411 = vshrl.u32 683565275, %v3410
    %v3412 = vshll.u32 683565275, %v3409
    %v3413 = vshrl.u32 2475754826, %v3410
    %v3414 = vor.u32 %v3412, %v3413
    %v3415 = vshll.u32 2475754826, %v3409
    %v3416 = vshrl.u32 2131351028, %v3410
    %v3417 = vor.u32 %v3415, %v3416
    %v3418 = vshll.u32 2131351028, %v3409
    %v3419 = vshrl.u32 2102212464, %v3410
    %v3420 = vor.u32 %v3418, %v3419
    %v3421 = vshll.u32 2102212464, %v3409
    %v3422 = vshrl.u32 920167782, %v3410
    %v3423 = vor.u32 %v3421, %v3422
    %v3424 = vshll.u32 920167782, %v3409
    %v3425 = vshrl.u32 1326507024, %v3410
    %v3426 = vor.u32 %v3424, %v3425
    %vm3427 = vcmp.lt.s32.totalorder %v3408, 1
    %vm3428 = vcmp.lt.s32.totalorder %v3408, 2
    %vm3429 = vcmp.lt.s32.totalorder %v3408, 3
    %vm3430 = vcmp.lt.s32.totalorder %v3408, 4
    %v3431 = vsel %vm3427, %v3411, %v3414
    %v3432 = vsel %vm3430, %v3420, 2102212464
    %v3433 = vsel %vm3429, %v3417, %v3432
    %v3434 = vsel %vm3428, %v3431, %v3433
    %v3435 = vsel %vm3427, %v3414, %v3417
    %v3436 = vsel %vm3430, %v3423, 920167782
    %v3437 = vsel %vm3429, %v3420, %v3436
    %v3438 = vsel %vm3428, %v3435, %v3437
    %v3439 = vsel %vm3427, %v3417, %v3420
    %v3440 = vsel %vm3430, %v3426, 1326507024
    %v3441 = vsel %vm3429, %v3423, %v3440
    %v3442 = vsel %vm3428, %v3439, %v3441
    %v3443 = vshll.u32 %v3403, 8
    %v3444 = vand.u32 %v3443, 65535
    %v3445 = vshrl.u32 %v3443, 16
    %v3446 = vand.u32 %v3442, 65535
    %v3447 = vshrl.u32 %v3442, 16
    %v3448 = vmul.u32 %v3444, %v3446
    %v3449 = vmul.u32 %v3444, %v3447
    %v3450 = vmul.u32 %v3445, %v3446
    %v3451 = vmul.u32 %v3445, %v3447
    %v3452 = vshll.u32 %v3449, 16
    %v3453 = vshrl.u32 %v3449, 16
    %v3454 = vshll.u32 %v3450, 16
    %v3455 = vshrl.u32 %v3450, 16
    %vm3456 = vc.u32 %v3448, %v3452
    %v3457 = vsel %vm3456, 1, 0
    %v3458 = vadd.s32 %v3448, %v3452
    %v3459 = vadd.s32 %v3451, %v3457
    %vm3460 = vc.u32 %v3458, %v3454
    %v3461 = vsel %vm3460, 1, 0
    %v3462 = vadd.s32 %v3458, %v3454
    %v3463 = vadd.s32 %v3459, %v3461
    %v3464 = vadd.s32 %v3463, %v3453
    %v3465 = vadd.s32 %v3464, %v3455
    %v3466 = vand.u32 %v3443, 65535
    %v3467 = vshrl.u32 %v3443, 16
    %v3468 = vand.u32 %v3438, 65535
    %v3469 = vshrl.u32 %v3438, 16
    %v3470 = vmul.u32 %v3466, %v3468
    %v3471 = vmul.u32 %v3466, %v3469
    %v3472 = vmul.u32 %v3467, %v3468
    %v3473 = vmul.u32 %v3467, %v3469
    %v3474 = vshll.u32 %v3471, 16
    %v3475 = vshrl.u32 %v3471, 16
    %v3476 = vshll.u32 %v3472, 16
    %v3477 = vshrl.u32 %v3472, 16
    %vm3478 = vc.u32 %v3470, %v3474
    %v3479 = vsel %vm3478, 1, 0
    %v3480 = vadd.s32 %v3470, %v3474
    %v3481 = vadd.s32 %v3473, %v3479
    %vm3482 = vc.u32 %v3480, %v3476
    %v3483 = vsel %vm3482, 1, 0
    %v3484 = vadd.s32 %v3480, %v3476
    %v3485 = vadd.s32 %v3481, %v3483
    %v3486 = vadd.s32 %v3485, %v3475
    %v3487 = vadd.s32 %v3486, %v3477
    %v3488 = vmul.u32 %v3443, %v3434
    %v3489 = vadd.s32 %v3465, %v3484
    %vm3490 = vc.u32 %v3465, %v3484
    %v3491 = vadd.s32 %v3487, 1
    %v3492 = vsel %vm3490, %v3491, %v3487
    %v3493 = vadd.s32 %v3488, %v3492
    %v3494 = vadd.s32 %v3493, 536870912
    %v3495 = vshrl.u32 %v3494, 30
    %v3496 = vshll.u32 %v3495, 30
    %v3497 = vsub.s32 %v3493, %v3496
    %vm3498 = vcmp.lt.s32.totalorder %v3497, 0
    %v3499 = vsub.s32 0, %v3497
    %v3500 = vsel %vm3498, %v3499, %v3497
    %v3501 = vclz %v3500
    %v3502 = vsub.s32 %v3501, 2
    %vm3503 = vcmp.gt.s32.totalorder 0, %v3502
    %v3504 = vsel %vm3503, 0, %v3502
    %v3505 = vsub.s32 32, %v3504
    %v3506 = vshll.u32 %v3497, %v3504
    %v3507 = vshrl.u32 %v3489, %v3505
    %v3508 = vor.u32 %v3506, %v3507
    %v3509 = vsub.s32 4294967266, %v3504
    %v3510 = vadd.s32 %v3509, 127
    %v3511 = vshll.u32 %v3510, 23
    %v3512 = vor.u32 4788187, %v3511
    %v3513 = vand.u32 2147483647, %v3512
    %v3515 = vcvt.s32.f32 %v3508
    %v3516 = vmul.f32 %v3515, %v3513
    %v3517 = vxor.u32 %v3516, 2147483648
    %v3518 = vsel %vm3397, %v3517, %v3516
    %v3519 = vsub.s32 4, %v3495
    %v3520 = vsel %vm3397, %v3519, %v3495
    %v3521 = vsel %vm3396, %v754, %v3518
    %v3522 = vsel %vm3396, 0, %v3520
    %v3523 = vmul.f32 %v3521, %v3521
    %v3524 = vmul.f32 %v3523, -0.001358992
    %v3525 = vadd.f32 %v3524, 0.041655596
    %v3526 = vmul.f32 %v3523, %v3525
    %v3527 = vadd.f32 %v3526, -0.4999988
    %v3528 = vmul.f32 %v3523, %v3527
    %v3529 = vadd.f32 1.0, %v3528
    %v3530 = vmul.f32 %v3521, %v3521
    %v3531 = vmul.f32 %v3530, -0.00019511016
    %v3532 = vadd.f32 %v3531, 0.008332121
    %v3533 = vmul.f32 %v3530, %v3532
    %v3534 = vadd.f32 %v3533, -0.16666654
    %v3535 = vmul.f32 %v3530, %v3534
    %v3536 = vadd.f32 %v3535, 1.0
    %v3537 = vmul.f32 %v3536, %v3521
    %vm3538 = vweird.f32 %v754
    %v3539 = vand.u32 %v3522, 3
    %vm3540 = vcmp.lt.s32.totalorder %v3539, 2
    %vm3541 = vcmp.eq.s32.totalorder %v3539, 0
    %v3542 = vxor.u32 %v3537, 2147483648
    %v3543 = vsel %vm3541, %v3529, %v3542
    %vm3544 = vcmp.eq.s32.totalorder %v3539, 2
    %v3545 = vxor.u32 %v3529, 2147483648
    %v3546 = vsel %vm3544, %v3545, %v3537
    %v3547 = vsel %vm3540, %v3543, %v3546
    %v3548 = vsel %vm3538, nan, %v3547
    %v3549 = vand.u32 2147483647, %v1065
    %vm3550 = vcmp.le.f32.partialorder %v3549, 0.7853982
    %vm3551 = vcmp.lt.s32.totalorder %v1065, 0
    %v3552 = vand.u32 %v1065, 2139095040
    %v3553 = vshrl.u32 %v3552, 23
    %v3554 = vsub.s32 %v3553, 127
    %v3555 = vand.u32 2147483647, %v1065
    %v3556 = vand.u32 %v3555, 8388607
    %v3557 = vor.u32 %v3556, 8388608
    %v3558 = vsub.s32 0, %v3557
    %v3559 = vadd.s32 %v3554, 1
    %vm3560 = vcmp.gt.s32.totalorder %v3559, 0
    %v3561 = vsel %vm3560, %v3559, 0
    %v3562 = vshrl.u32 %v3561, 5
    %v3563 = vand.u32 %v3561, 31
    %v3564 = vsub.s32 32, %v3563
    %v3565 = vshrl.u32 683565275, %v3564
    %v3566 = vshll.u32 683565275, %v3563
    %v3567 = vshrl.u32 2475754826, %v3564
    %v3568 = vor.u32 %v3566, %v3567
    %v3569 = vshll.u32 2475754826, %v3563
    %v3570 = vshrl.u32 2131351028, %v3564
    %v3571 = vor.u32 %v3569, %v3570
    %v3572 = vshll.u32 2131351028, %v3563
    %v3573 = vshrl.u32 2102212464, %v3564
    %v3574 = vor.u32 %v3572, %v3573
    %v3575 = vshll.u32 2102212464, %v3563
    %v3576 = vshrl.u32 920167782, %v3564
    %v3577 = vor.u32 %v3575, %v3576
    %v3578 = vshll.u32 920167782, %v3563
    %v3579 = vshrl.u32 1326507024, %v3564
    %v3580 = vor.u32 %v3578, %v3579
    %vm3581 = vcmp.lt.s32.totalorder %v3562, 1
    %vm3582 = vcmp.lt.s32.totalorder %v3562, 2
    %vm3583 = vcmp.lt.s32.totalorder %v3562, 3
    %vm3584 = vcmp.lt.s32.totalorder %v3562, 4
    %v3585 = vsel %vm3581, %v3565, %v3568
    %v3586 = vsel %vm3584, %v3574, 2102212464
    %v3587 = vsel %vm3583, %v3571, %v3586
    %v3588 = vsel %vm3582, %v3585, %v3587
    %v3589 = vsel %vm3581, %v3568, %v3571
    %v3590 = vsel %vm3584, %v3577, 920167782
    %v3591 = vsel %vm3583, %v3574, %v3590
    %v3592 = vsel %vm3582, %v3589, %v3591
    %v3593 = vsel %vm3581, %v3571, %v3574
    %v3594 = vsel %vm3584, %v3580, 1326507024
    %v3595 = vsel %vm3583, %v3577, %v3594
    %v3596 = vsel %vm3582, %v3593, %v3595
    %v3597 = vshll.u32 %v3557, 8
    %v3598 = vand.u32 %v3597, 65535
    %v3599 = vshrl.u32 %v3597, 16
    %v3600 = vand.u32 %v3596, 65535
    %v3601 = vshrl.u32 %v3596, 16
    %v3602 = vmul.u32 %v3598, %v3600
    %v3603 = vmul.u32 %v3598, %v3601
    %v3604 = vmul.u32 %v3599, %v3600
    %v3605 = vmul.u32 %v3599, %v3601
    %v3606 = vshll.u32 %v3603, 16
    %v3607 = vshrl.u32 %v3603, 16
    %v3608 = vshll.u32 %v3604, 16
    %v3609 = vshrl.u32 %v3604, 16
    %vm3610 = vc.u32 %v3602, %v3606
    %v3611 = vsel %vm3610, 1, 0
    %v3612 = vadd.s32 %v3602, %v3606
    %v3613 = vadd.s32 %v3605, %v3611
    %vm3614 = vc.u32 %v3612, %v3608
    %v3615 = vsel %vm3614, 1, 0
    %v3616 = vadd.s32 %v3612, %v3608
    %v3617 = vadd.s32 %v3613, %v3615
    %v3618 = vadd.s32 %v3617, %v3607
    %v3619 = vadd.s32 %v3618, %v3609
    %v3620 = vand.u32 %v3597, 65535
    %v3621 = vshrl.u32 %v3597, 16
    %v3622 = vand.u32 %v3592, 65535
    %v3623 = vshrl.u32 %v3592, 16
    %v3624 = vmul.u32 %v3620, %v3622
    %v3625 = vmul.u32 %v3620, %v3623
    %v3626 = vmul.u32 %v3621, %v3622
    %v3627 = vmul.u32 %v3621, %v3623
    %v3628 = vshll.u32 %v3625, 16
    %v3629 = vshrl.u32 %v3625, 16
    %v3630 = vshll.u32 %v3626, 16
    %v3631 = vshrl.u32 %v3626, 16
    %vm3632 = vc.u32 %v3624, %v3628
    %v3633 = vsel %vm3632, 1, 0
    %v3634 = vadd.s32 %v3624, %v3628
    %v3635 = vadd.s32 %v3627, %v3633
    %vm3636 = vc.u32 %v3634, %v3630
    %v3637 = vsel %vm3636, 1, 0
    %v3638 = vadd.s32 %v3634, %v3630
    %v3639 = vadd.s32 %v3635, %v3637
    %v3640 = vadd.s32 %v3639, %v3629
    %v3641 = vadd.s32 %v3640, %v3631
    %v3642 = vmul.u32 %v3597, %v3588
    %v3643 = vadd.s32 %v3619, %v3638
    %vm3644 = vc.u32 %v3619, %v3638
    %v3645 = vadd.s32 %v3641, 1
    %v3646 = vsel %vm3644, %v3645, %v3641
    %v3647 = vadd.s32 %v3642, %v3646
    %v3648 = vadd.s32 %v3647, 536870912
    %v3649 = vshrl.u32 %v3648, 30
    %v3650 = vshll.u32 %v3649, 30
    %v3651 = vsub.s32 %v3647, %v3650
    %vm3652 = vcmp.lt.s32.totalorder %v3651, 0
    %v3653 = vsub.s32 0, %v3651
    %v3654 = vsel %vm3652, %v3653, %v3651
    %v3655 = vclz %v3654
    %v3656 = vsub.s32 %v3655, 2
    %vm3657 = vcmp.gt.s32.totalorder 0, %v3656
    %v3658 = vsel %vm3657, 0, %v3656
    %v3659 = vsub.s32 32, %v3658
    %v3660 = vshll.u32 %v3651, %v3658
    %v3661 = vshrl.u32 %v3643, %v3659
    %v3662 = vor.u32 %v3660, %v3661
    %v3663 = vsub.s32 4294967266, %v3658
    %v3664 = vadd.s32 %v3663, 127
    %v3665 = vshll.u32 %v3664, 23
    %v3666 = vor.u32 4788187, %v3665
    %v3667 = vand.u32 2147483647, %v3666
    %v3669 = vcvt.s32.f32 %v3662
    %v3670 = vmul.f32 %v3669, %v3667
    %v3671 = vxor.u32 %v3670, 2147483648
    %v3672 = vsel %vm3551, %v3671, %v3670
    %v3673 = vsub.s32 4, %v3649
    %v3674 = vsel %vm3551, %v3673, %v3649
    %v3675 = vsel %vm3550, %v1065, %v3672
    %v3676 = vsel %vm3550, 0, %v3674
    %v3677 = vmul.f32 %v3675, %v3675
    %v3678 = vmul.f32 %v3677, -0.001358992
    %v3679 = vadd.f32 %v3678, 0.041655596
    %v3680 = vmul.f32 %v3677, %v3679
    %v3681 = vadd.f32 %v3680, -0.4999988
    %v3682 = vmul.f32 %v3677, %v3681
    %v3683 = vadd.f32 1.0, %v3682
    %v3684 = vmul.f32 %v3675, %v3675
    %v3685 = vmul.f32 %v3684, -0.00019511016
    %v3686 = vadd.f32 %v3685, 0.008332121
    %v3687 = vmul.f32 %v3684, %v3686
    %v3688 = vadd.f32 %v3687, -0.16666654
    %v3689 = vmul.f32 %v3684, %v3688
    %v3690 = vadd.f32 %v3689, 1.0
    %v3691 = vmul.f32 %v3690, %v3675
    %vm3692 = vweird.f32 %v1065
    %v3693 = vand.u32 %v3676, 3
    %vm3694 = vcmp.lt.s32.totalorder %v3693, 2
    %vm3695 = vcmp.eq.s32.totalorder %v3693, 0
    %v3696 = vxor.u32 %v3691, 2147483648
    %v3697 = vsel %vm3695, %v3683, %v3696
    %vm3698 = vcmp.eq.s32.totalorder %v3693, 2
    %v3699 = vxor.u32 %v3683, 2147483648
    %v3700 = vsel %vm3698, %v3699, %v3691
    %v3701 = vsel %vm3694, %v3697, %v3700
    %v3702 = vsel %vm3692, nan, %v3701
    %v3703 = vand.u32 2147483647, %v1066
    %vm3704 = vcmp.le.f32.partialorder %v3703, 0.7853982
    %vm3705 = vcmp.lt.s32.totalorder %v1066, 0
    %v3706 = vand.u32 %v1066, 2139095040
    %v3707 = vshrl.u32 %v3706, 23
    %v3708 = vsub.s32 %v3707, 127
    %v3709 = vand.u32 2147483647, %v1066
    %v3710 = vand.u32 %v3709, 8388607
    %v3711 = vor.u32 %v3710, 8388608
    %v3712 = vsub.s32 0, %v3711
    %v3713 = vadd.s32 %v3708, 1
    %vm3714 = vcmp.gt.s32.totalorder %v3713, 0
    %v3715 = vsel %vm3714, %v3713, 0
    %v3716 = vshrl.u32 %v3715, 5
    %v3717 = vand.u32 %v3715, 31
    %v3718 = vsub.s32 32, %v3717
    %v3719 = vshrl.u32 683565275, %v3718
    %v3720 = vshll.u32 683565275, %v3717
    %v3721 = vshrl.u32 2475754826, %v3718
    %v3722 = vor.u32 %v3720, %v3721
    %v3723 = vshll.u32 2475754826, %v3717
    %v3724 = vshrl.u32 2131351028, %v3718
    %v3725 = vor.u32 %v3723, %v3724
    %v3726 = vshll.u32 2131351028, %v3717
    %v3727 = vshrl.u32 2102212464, %v3718
    %v3728 = vor.u32 %v3726, %v3727
    %v3729 = vshll.u32 2102212464, %v3717
    %v3730 = vshrl.u32 920167782, %v3718
    %v3731 = vor.u32 %v3729, %v3730
    %v3732 = vshll.u32 920167782, %v3717
    %v3733 = vshrl.u32 1326507024, %v3718
    %v3734 = vor.u32 %v3732, %v3733
    %vm3735 = vcmp.lt.s32.totalorder %v3716, 1
    %vm3736 = vcmp.lt.s32.totalorder %v3716, 2
    %vm3737 = vcmp.lt.s32.totalorder %v3716, 3
    %vm3738 = vcmp.lt.s32.totalorder %v3716, 4
    %v3739 = vsel %vm3735, %v3719, %v3722
    %v3740 = vsel %vm3738, %v3728, 2102212464
    %v3741 = vsel %vm3737, %v3725, %v3740
    %v3742 = vsel %vm3736, %v3739, %v3741
    %v3743 = vsel %vm3735, %v3722, %v3725
    %v3744 = vsel %vm3738, %v3731, 920167782
    %v3745 = vsel %vm3737, %v3728, %v3744
    %v3746 = vsel %vm3736, %v3743, %v3745
    %v3747 = vsel %vm3735, %v3725, %v3728
    %v3748 = vsel %vm3738, %v3734, 1326507024
    %v3749 = vsel %vm3737, %v3731, %v3748
    %v3750 = vsel %vm3736, %v3747, %v3749
    %v3751 = vshll.u32 %v3711, 8
    %v3752 = vand.u32 %v3751, 65535
    %v3753 = vshrl.u32 %v3751, 16
    %v3754 = vand.u32 %v3750, 65535
    %v3755 = vshrl.u32 %v3750, 16
    %v3756 = vmul.u32 %v3752, %v3754
    %v3757 = vmul.u32 %v3752, %v3755
    %v3758 = vmul.u32 %v3753, %v3754
    %v3759 = vmul.u32 %v3753, %v3755
    %v3760 = vshll.u32 %v3757, 16
    %v3761 = vshrl.u32 %v3757, 16
    %v3762 = vshll.u32 %v3758, 16
    %v3763 = vshrl.u32 %v3758, 16
    %vm3764 = vc.u32 %v3756, %v3760
    %v3765 = vsel %vm3764, 1, 0
    %v3766 = vadd.s32 %v3756, %v3760
    %v3767 = vadd.s32 %v3759, %v3765
    %vm3768 = vc.u32 %v3766, %v3762
    %v3769 = vsel %vm3768, 1, 0
    %v3770 = vadd.s32 %v3766, %v3762
    %v3771 = vadd.s32 %v3767, %v3769
    %v3772 = vadd.s32 %v3771, %v3761
    %v3773 = vadd.s32 %v3772, %v3763
    %v3774 = vand.u32 %v3751, 65535
    %v3775 = vshrl.u32 %v3751, 16
    %v3776 = vand.u32 %v3746, 65535
    %v3777 = vshrl.u32 %v3746, 16
    %v3778 = vmul.u32 %v3774, %v3776
    %v3779 = vmul.u32 %v3774, %v3777
    %v3780 = vmul.u32 %v3775, %v3776
    %v3781 = vmul.u32 %v3775, %v3777
    %v3782 = vshll.u32 %v3779, 16
    %v3783 = vshrl.u32 %v3779, 16
    %v3784 = vshll.u32 %v3780, 16
    %v3785 = vshrl.u32 %v3780, 16
    %vm3786 = vc.u32 %v3778, %v3782
    %v3787 = vsel %vm3786, 1, 0
    %v3788 = vadd.s32 %v3778, %v3782
    %v3789 = vadd.s32 %v3781, %v3787
    %vm3790 = vc.u32 %v3788, %v3784
    %v3791 = vsel %vm3790, 1, 0
    %v3792 = vadd.s32 %v3788, %v3784
    %v3793 = vadd.s32 %v3789, %v3791
    %v3794 = vadd.s32 %v3793, %v3783
    %v3795 = vadd.s32 %v3794, %v3785
    %v3796 = vmul.u32 %v3751, %v3742
    %v3797 = vadd.s32 %v3773, %v3792
    %vm3798 = vc.u32 %v3773, %v3792
    %v3799 = vadd.s32 %v3795, 1
    %v3800 = vsel %vm3798, %v3799, %v3795
    %v3801 = vadd.s32 %v3796, %v3800
    %v3802 = vadd.s32 %v3801, 536870912
    %v3803 = vshrl.u32 %v3802, 30
    %v3804 = vshll.u32 %v3803, 30
    %v3805 = vsub.s32 %v3801, %v3804
    %vm3806 = vcmp.lt.s32.totalorder %v3805, 0
    %v3807 = vsub.s32 0, %v3805
    %v3808 = vsel %vm3806, %v3807, %v3805
    %v3809 = vclz %v3808
    %v3810 = vsub.s32 %v3809, 2
    %vm3811 = vcmp.gt.s32.totalorder 0, %v3810
    %v3812 = vsel %vm3811, 0, %v3810
    %v3813 = vsub.s32 32, %v3812
    %v3814 = vshll.u32 %v3805, %v3812
    %v3815 = vshrl.u32 %v3797, %v3813
    %v3816 = vor.u32 %v3814, %v3815
    %v3817 = vsub.s32 4294967266, %v3812
    %v3818 = vadd.s32 %v3817, 127
    %v3819 = vshll.u32 %v3818, 23
    %v3820 = vor.u32 4788187, %v3819
    %v3821 = vand.u32 2147483647, %v3820
    %v3823 = vcvt.s32.f32 %v3816
    %v3824 = vmul.f32 %v3823, %v3821
    %v3825 = vxor.u32 %v3824, 2147483648
    %v3826 = vsel %vm3705, %v3825, %v3824
    %v3827 = vsub.s32 4, %v3803
    %v3828 = vsel %vm3705, %v3827, %v3803
    %v3829 = vsel %vm3704, %v1066, %v3826
    %v3830 = vsel %vm3704, 0, %v3828
    %v3831 = vmul.f32 %v3829, %v3829
    %v3832 = vmul.f32 %v3831, -0.001358992
    %v3833 = vadd.f32 %v3832, 0.041655596
    %v3834 = vmul.f32 %v3831, %v3833
    %v3835 = vadd.f32 %v3834, -0.4999988
    %v3836 = vmul.f32 %v3831, %v3835
    %v3837 = vadd.f32 1.0, %v3836
    %v3838 = vmul.f32 %v3829, %v3829
    %v3839 = vmul.f32 %v3838, -0.00019511016
    %v3840 = vadd.f32 %v3839, 0.008332121
    %v3841 = vmul.f32 %v3838, %v3840
    %v3842 = vadd.f32 %v3841, -0.16666654
    %v3843 = vmul.f32 %v3838, %v3842
    %v3844 = vadd.f32 %v3843, 1.0
    %v3845 = vmul.f32 %v3844, %v3829
    %vm3846 = vweird.f32 %v1066
    %v3847 = vand.u32 %v3830, 3
    %vm3848 = vcmp.lt.s32.totalorder %v3847, 2
    %vm3849 = vcmp.eq.s32.totalorder %v3847, 0
    %v3850 = vxor.u32 %v3845, 2147483648
    %v3851 = vsel %vm3849, %v3837, %v3850
    %vm3852 = vcmp.eq.s32.totalorder %v3847, 2
    %v3853 = vxor.u32 %v3837, 2147483648
    %v3854 = vsel %vm3852, %v3853, %v3845
    %v3855 = vsel %vm3848, %v3851, %v3854
    %v3856 = vsel %vm3846, nan, %v3855
    %v3857 = vand.u32 2147483647, %v1377
    %vm3858 = vcmp.le.f32.partialorder %v3857, 0.7853982
    %vm3859 = vcmp.lt.s32.totalorder %v1377, 0
    %v3860 = vand.u32 %v1377, 2139095040
    %v3861 = vshrl.u32 %v3860, 23
    %v3862 = vsub.s32 %v3861, 127
    %v3863 = vand.u32 2147483647, %v1377
    %v3864 = vand.u32 %v3863, 8388607
    %v3865 = vor.u32 %v3864, 8388608
    %v3866 = vsub.s32 0, %v3865
    %v3867 = vadd.s32 %v3862, 1
    %vm3868 = vcmp.gt.s32.totalorder %v3867, 0
    %v3869 = vsel %vm3868, %v3867, 0
    %v3870 = vshrl.u32 %v3869, 5
    %v3871 = vand.u32 %v3869, 31
    %v3872 = vsub.s32 32, %v3871
    %v3873 = vshrl.u32 683565275, %v3872
    %v3874 = vshll.u32 683565275, %v3871
    %v3875 = vshrl.u32 2475754826, %v3872
    %v3876 = vor.u32 %v3874, %v3875
    %v3877 = vshll.u32 2475754826, %v3871
    %v3878 = vshrl.u32 2131351028, %v3872
    %v3879 = vor.u32 %v3877, %v3878
    %v3880 = vshll.u32 2131351028, %v3871
    %v3881 = vshrl.u32 2102212464, %v3872
    %v3882 = vor.u32 %v3880, %v3881
    %v3883 = vshll.u32 2102212464, %v3871
    %v3884 = vshrl.u32 920167782, %v3872
    %v3885 = vor.u32 %v3883, %v3884
    %v3886 = vshll.u32 920167782, %v3871
    %v3887 = vshrl.u32 1326507024, %v3872
    %v3888 = vor.u32 %v3886, %v3887
    %vm3889 = vcmp.lt.s32.totalorder %v3870, 1
    %vm3890 = vcmp.lt.s32.totalorder %v3870, 2
    %vm3891 = vcmp.lt.s32.totalorder %v3870, 3
    %vm3892 = vcmp.lt.s32.totalorder %v3870, 4
    %v3893 = vsel %vm3889, %v3873, %v3876
    %v3894 = vsel %vm3892, %v3882, 2102212464
    %v3895 = vsel %vm3891, %v3879, %v3894
    %v3896 = vsel %vm3890, %v3893, %v3895
    %v3897 = vsel %vm3889, %v3876, %v3879
    %v3898 = vsel %vm3892, %v3885, 920167782
    %v3899 = vsel %vm3891, %v3882, %v3898
    %v3900 = vsel %vm3890, %v3897, %v3899
    %v3901 = vsel %vm3889, %v3879, %v3882
    %v3902 = vsel %vm3892, %v3888, 1326507024
    %v3903 = vsel %vm3891, %v3885, %v3902
    %v3904 = vsel %vm3890, %v3901, %v3903
    %v3905 = vshll.u32 %v3865, 8
    %v3906 = vand.u32 %v3905, 65535
    %v3907 = vshrl.u32 %v3905, 16
    %v3908 = vand.u32 %v3904, 65535
    %v3909 = vshrl.u32 %v3904, 16
    %v3910 = vmul.u32 %v3906, %v3908
    %v3911 = vmul.u32 %v3906, %v3909
    %v3912 = vmul.u32 %v3907, %v3908
    %v3913 = vmul.u32 %v3907, %v3909
    %v3914 = vshll.u32 %v3911, 16
    %v3915 = vshrl.u32 %v3911, 16
    %v3916 = vshll.u32 %v3912, 16
    %v3917 = vshrl.u32 %v3912, 16
    %vm3918 = vc.u32 %v3910, %v3914
    %v3919 = vsel %vm3918, 1, 0
    %v3920 = vadd.s32 %v3910, %v3914
    %v3921 = vadd.s32 %v3913, %v3919
    %vm3922 = vc.u32 %v3920, %v3916
    %v3923 = vsel %vm3922, 1, 0
    %v3924 = vadd.s32 %v3920, %v3916
    %v3925 = vadd.s32 %v3921, %v3923
    %v3926 = vadd.s32 %v3925, %v3915
    %v3927 = vadd.s32 %v3926, %v3917
    %v3928 = vand.u32 %v3905, 65535
    %v3929 = vshrl.u32 %v3905, 16
    %v3930 = vand.u32 %v3900, 65535
    %v3931 = vshrl.u32 %v3900, 16
    %v3932 = vmul.u32 %v3928, %v3930
    %v3933 = vmul.u32 %v3928, %v3931
    %v3934 = vmul.u32 %v3929, %v3930
    %v3935 = vmul.u32 %v3929, %v3931
    %v3936 = vshll.u32 %v3933, 16
    %v3937 = vshrl.u32 %v3933, 16
    %v3938 = vshll.u32 %v3934, 16
    %v3939 = vshrl.u32 %v3934, 16
    %vm3940 = vc.u32 %v3932, %v3936
    %v3941 = vsel %vm3940, 1, 0
    %v3942 = vadd.s32 %v3932, %v3936
    %v3943 = vadd.s32 %v3935, %v3941
    %vm3944 = vc.u32 %v3942, %v3938
    %v3945 = vsel %vm3944, 1, 0
    %v3946 = vadd.s32 %v3942, %v3938
    %v3947 = vadd.s32 %v3943, %v3945
    %v3948 = vadd.s32 %v3947, %v3937
    %v3949 = vadd.s32 %v3948, %v3939
    %v3950 = vmul.u32 %v3905, %v3896
    %v3951 = vadd.s32 %v3927, %v3946
    %vm3952 = vc.u32 %v3927, %v3946
    %v3953 = vadd.s32 %v3949, 1
    %v3954 = vsel %vm3952, %v3953, %v3949
    %v3955 = vadd.s32 %v3950, %v3954
    %v3956 = vadd.s32 %v3955, 536870912
    %v3957 = vshrl.u32 %v3956, 30
    %v3958 = vshll.u32 %v3957, 30
    %v3959 = vsub.s32 %v3955, %v3958
    %vm3960 = vcmp.lt.s32.totalorder %v3959, 0
    %v3961 = vsub.s32 0, %v3959
    %v3962 = vsel %vm3960, %v3961, %v3959
    %v3963 = vclz %v3962
    %v3964 = vsub.s32 %v3963, 2
    %vm3965 = vcmp.gt.s32.totalorder 0, %v3964
    %v3966 = vsel %vm3965, 0, %v3964
    %v3967 = vsub.s32 32, %v3966
    %v3968 = vshll.u32 %v3959, %v3966
    %v3969 = vshrl.u32 %v3951, %v3967
    %v3970 = vor.u32 %v3968, %v3969
    %v3971 = vsub.s32 4294967266, %v3966
    %v3972 = vadd.s32 %v3971, 127
    %v3973 = vshll.u32 %v3972, 23
    %v3974 = vor.u32 4788187, %v3973
    %v3975 = vand.u32 2147483647, %v3974
    %v3977 = vcvt.s32.f32 %v3970
    %v3978 = vmul.f32 %v3977, %v3975
    %v3979 = vxor.u32 %v3978, 2147483648
    %v3980 = vsel %vm3859, %v3979, %v3978
    %v3981 = vsub.s32 4, %v3957
    %v3982 = vsel %vm3859, %v3981, %v3957
    %v3983 = vsel %vm3858, %v1377, %v3980
    %v3984 = vsel %vm3858, 0, %v3982
    %v3985 = vmul.f32 %v3983, %v3983
    %v3986 = vmul.f32 %v3985, -0.001358992
    %v3987 = vadd.f32 %v3986, 0.041655596
    %v3988 = vmul.f32 %v3985, %v3987
    %v3989 = vadd.f32 %v3988, -0.4999988
    %v3990 = vmul.f32 %v3985, %v3989
    %v3991 = vadd.f32 1.0, %v3990
    %v3992 = vmul.f32 %v3983, %v3983
    %v3993 = vmul.f32 %v3992, -0.00019511016
    %v3994 = vadd.f32 %v3993, 0.008332121
    %v3995 = vmul.f32 %v3992, %v3994
    %v3996 = vadd.f32 %v3995, -0.16666654
    %v3997 = vmul.f32 %v3992, %v3996
    %v3998 = vadd.f32 %v3997, 1.0
    %v3999 = vmul.f32 %v3998, %v3983
    %vm4000 = vweird.f32 %v1377
    %v4001 = vand.u32 %v3984, 3
    %vm4002 = vcmp.lt.s32.totalorder %v4001, 2
    %vm4003 = vcmp.eq.s32.totalorder %v4001, 0
    %v4004 = vxor.u32 %v3999, 2147483648
    %v4005 = vsel %vm4003, %v3991, %v4004
    %vm4006 = vcmp.eq.s32.totalorder %v4001, 2
    %v4007 = vxor.u32 %v3991, 2147483648
    %v4008 = vsel %vm4006, %v4007, %v3999
    %v4009 = vsel %vm4002, %v4005, %v4008
    %v4010 = vsel %vm4000, nan, %v4009
    %v4011 = vand.u32 2147483647, %v1378
    %vm4012 = vcmp.le.f32.partialorder %v4011, 0.7853982
    %vm4013 = vcmp.lt.s32.totalorder %v1378, 0
    %v4014 = vand.u32 %v1378, 2139095040
    %v4015 = vshrl.u32 %v4014, 23
    %v4016 = vsub.s32 %v4015, 127
    %v4017 = vand.u32 2147483647, %v1378
    %v4018 = vand.u32 %v4017, 8388607
    %v4019 = vor.u32 %v4018, 8388608
    %v4020 = vsub.s32 0, %v4019
    %v4021 = vadd.s32 %v4016, 1
    %vm4022 = vcmp.gt.s32.totalorder %v4021, 0
    %v4023 = vsel %vm4022, %v4021, 0
    %v4024 = vshrl.u32 %v4023, 5
    %v4025 = vand.u32 %v4023, 31
    %v4026 = vsub.s32 32, %v4025
    %v4027 = vshrl.u32 683565275, %v4026
    %v4028 = vshll.u32 683565275, %v4025
    %v4029 = vshrl.u32 2475754826, %v4026
    %v4030 = vor.u32 %v4028, %v4029
    %v4031 = vshll.u32 2475754826, %v4025
    %v4032 = vshrl.u32 2131351028, %v4026
    %v4033 = vor.u32 %v4031, %v4032
    %v4034 = vshll.u32 2131351028, %v4025
    %v4035 = vshrl.u32 2102212464, %v4026
    %v4036 = vor.u32 %v4034, %v4035
    %v4037 = vshll.u32 2102212464, %v4025
    %v4038 = vshrl.u32 920167782, %v4026
    %v4039 = vor.u32 %v4037, %v4038
    %v4040 = vshll.u32 920167782, %v4025
    %v4041 = vshrl.u32 1326507024, %v4026
    %v4042 = vor.u32 %v4040, %v4041
    %vm4043 = vcmp.lt.s32.totalorder %v4024, 1
    %vm4044 = vcmp.lt.s32.totalorder %v4024, 2
    %vm4045 = vcmp.lt.s32.totalorder %v4024, 3
    %vm4046 = vcmp.lt.s32.totalorder %v4024, 4
    %v4047 = vsel %vm4043, %v4027, %v4030
    %v4048 = vsel %vm4046, %v4036, 2102212464
    %v4049 = vsel %vm4045, %v4033, %v4048
    %v4050 = vsel %vm4044, %v4047, %v4049
    %v4051 = vsel %vm4043, %v4030, %v4033
    %v4052 = vsel %vm4046, %v4039, 920167782
    %v4053 = vsel %vm4045, %v4036, %v4052
    %v4054 = vsel %vm4044, %v4051, %v4053
    %v4055 = vsel %vm4043, %v4033, %v4036
    %v4056 = vsel %vm4046, %v4042, 1326507024
    %v4057 = vsel %vm4045, %v4039, %v4056
    %v4058 = vsel %vm4044, %v4055, %v4057
    %v4059 = vshll.u32 %v4019, 8
    %v4060 = vand.u32 %v4059, 65535
    %v4061 = vshrl.u32 %v4059, 16
    %v4062 = vand.u32 %v4058, 65535
    %v4063 = vshrl.u32 %v4058, 16
    %v4064 = vmul.u32 %v4060, %v4062
    %v4065 = vmul.u32 %v4060, %v4063
    %v4066 = vmul.u32 %v4061, %v4062
    %v4067 = vmul.u32 %v4061, %v4063
    %v4068 = vshll.u32 %v4065, 16
    %v4069 = vshrl.u32 %v4065, 16
    %v4070 = vshll.u32 %v4066, 16
    %v4071 = vshrl.u32 %v4066, 16
    %vm4072 = vc.u32 %v4064, %v4068
    %v4073 = vsel %vm4072, 1, 0
    %v4074 = vadd.s32 %v4064, %v4068
    %v4075 = vadd.s32 %v4067, %v4073
    %vm4076 = vc.u32 %v4074, %v4070
    %v4077 = vsel %vm4076, 1, 0
    %v4078 = vadd.s32 %v4074, %v4070
    %v4079 = vadd.s32 %v4075, %v4077
    %v4080 = vadd.s32 %v4079, %v4069
    %v4081 = vadd.s32 %v4080, %v4071
    %v4082 = vand.u32 %v4059, 65535
    %v4083 = vshrl.u32 %v4059, 16
    %v4084 = vand.u32 %v4054, 65535
    %v4085 = vshrl.u32 %v4054, 16
    %v4086 = vmul.u32 %v4082, %v4084
    %v4087 = vmul.u32 %v4082, %v4085
    %v4088 = vmul.u32 %v4083, %v4084
    %v4089 = vmul.u32 %v4083, %v4085
    %v4090 = vshll.u32 %v4087, 16
    %v4091 = vshrl.u32 %v4087, 16
    %v4092 = vshll.u32 %v4088, 16
    %v4093 = vshrl.u32 %v4088, 16
    %vm4094 = vc.u32 %v4086, %v4090
    %v4095 = vsel %vm4094, 1, 0
    %v4096 = vadd.s32 %v4086, %v4090
    %v4097 = vadd.s32 %v4089, %v4095
    %vm4098 = vc.u32 %v4096, %v4092
    %v4099 = vsel %vm4098, 1, 0
    %v4100 = vadd.s32 %v4096, %v4092
    %v4101 = vadd.s32 %v4097, %v4099
    %v4102 = vadd.s32 %v4101, %v4091
    %v4103 = vadd.s32 %v4102, %v4093
    %v4104 = vmul.u32 %v4059, %v4050
    %v4105 = vadd.s32 %v4081, %v4100
    %vm4106 = vc.u32 %v4081, %v4100
    %v4107 = vadd.s32 %v4103, 1
    %v4108 = vsel %vm4106, %v4107, %v4103
    %v4109 = vadd.s32 %v4104, %v4108
    %v4110 = vadd.s32 %v4109, 536870912
    %v4111 = vshrl.u32 %v4110, 30
    %v4112 = vshll.u32 %v4111, 30
    %v4113 = vsub.s32 %v4109, %v4112
    %vm4114 = vcmp.lt.s32.totalorder %v4113, 0
    %v4115 = vsub.s32 0, %v4113
    %v4116 = vsel %vm4114, %v4115, %v4113
    %v4117 = vclz %v4116
    %v4118 = vsub.s32 %v4117, 2
    %vm4119 = vcmp.gt.s32.totalorder 0, %v4118
    %v4120 = vsel %vm4119, 0, %v4118
    %v4121 = vsub.s32 32, %v4120
    %v4122 = vshll.u32 %v4113, %v4120
    %v4123 = vshrl.u32 %v4105, %v4121
    %v4124 = vor.u32 %v4122, %v4123
    %v4125 = vsub.s32 4294967266, %v4120
    %v4126 = vadd.s32 %v4125, 127
    %v4127 = vshll.u32 %v4126, 23
    %v4128 = vor.u32 4788187, %v4127
    %v4129 = vand.u32 2147483647, %v4128
    %v4131 = vcvt.s32.f32 %v4124
    %v4132 = vmul.f32 %v4131, %v4129
    %v4133 = vxor.u32 %v4132, 2147483648
    %v4134 = vsel %vm4013, %v4133, %v4132
    %v4135 = vsub.s32 4, %v4111
    %v4136 = vsel %vm4013, %v4135, %v4111
    %v4137 = vsel %vm4012, %v1378, %v4134
    %v4138 = vsel %vm4012, 0, %v4136
    %v4139 = vmul.f32 %v4137, %v4137
    %v4140 = vmul.f32 %v4139, -0.001358992
    %v4141 = vadd.f32 %v4140, 0.041655596
    %v4142 = vmul.f32 %v4139, %v4141
    %v4143 = vadd.f32 %v4142, -0.4999988
    %v4144 = vmul.f32 %v4139, %v4143
    %v4145 = vadd.f32 1.0, %v4144
    %v4146 = vmul.f32 %v4137, %v4137
    %v4147 = vmul.f32 %v4146, -0.00019511016
    %v4148 = vadd.f32 %v4147, 0.008332121
    %v4149 = vmul.f32 %v4146, %v4148
    %v4150 = vadd.f32 %v4149, -0.16666654
    %v4151 = vmul.f32 %v4146, %v4150
    %v4152 = vadd.f32 %v4151, 1.0
    %v4153 = vmul.f32 %v4152, %v4137
    %vm4154 = vweird.f32 %v1378
    %v4155 = vand.u32 %v4138, 3
    %vm4156 = vcmp.lt.s32.totalorder %v4155, 2
    %vm4157 = vcmp.eq.s32.totalorder %v4155, 0
    %v4158 = vxor.u32 %v4153, 2147483648
    %v4159 = vsel %vm4157, %v4145, %v4158
    %vm4160 = vcmp.eq.s32.totalorder %v4155, 2
    %v4161 = vxor.u32 %v4145, 2147483648
    %v4162 = vsel %vm4160, %v4161, %v4153
    %v4163 = vsel %vm4156, %v4159, %v4162
    %v4164 = vsel %vm4154, nan, %v4163
    %v4165 = vand.u32 2147483647, %v1689
    %vm4166 = vcmp.le.f32.partialorder %v4165, 0.7853982
    %vm4167 = vcmp.lt.s32.totalorder %v1689, 0
    %v4168 = vand.u32 %v1689, 2139095040
    %v4169 = vshrl.u32 %v4168, 23
    %v4170 = vsub.s32 %v4169, 127
    %v4171 = vand.u32 2147483647, %v1689
    %v4172 = vand.u32 %v4171, 8388607
    %v4173 = vor.u32 %v4172, 8388608
    %v4174 = vsub.s32 0, %v4173
    %v4175 = vadd.s32 %v4170, 1
    %vm4176 = vcmp.gt.s32.totalorder %v4175, 0
    %v4177 = vsel %vm4176, %v4175, 0
    %v4178 = vshrl.u32 %v4177, 5
    %v4179 = vand.u32 %v4177, 31
    %v4180 = vsub.s32 32, %v4179
    %v4181 = vshrl.u32 683565275, %v4180
    %v4182 = vshll.u32 683565275, %v4179
    %v4183 = vshrl.u32 2475754826, %v4180
    %v4184 = vor.u32 %v4182, %v4183
    %v4185 = vshll.u32 2475754826, %v4179
    %v4186 = vshrl.u32 2131351028, %v4180
    %v4187 = vor.u32 %v4185, %v4186
    %v4188 = vshll.u32 2131351028, %v4179
    %v4189 = vshrl.u32 2102212464, %v4180
    %v4190 = vor.u32 %v4188, %v4189
    %v4191 = vshll.u32 2102212464, %v4179
    %v4192 = vshrl.u32 920167782, %v4180
    %v4193 = vor.u32 %v4191, %v4192
    %v4194 = vshll.u32 920167782, %v4179
    %v4195 = vshrl.u32 1326507024, %v4180
    %v4196 = vor.u32 %v4194, %v4195
    %vm4197 = vcmp.lt.s32.totalorder %v4178, 1
    %vm4198 = vcmp.lt.s32.totalorder %v4178, 2
    %vm4199 = vcmp.lt.s32.totalorder %v4178, 3
    %vm4200 = vcmp.lt.s32.totalorder %v4178, 4
    %v4201 = vsel %vm4197, %v4181, %v4184
    %v4202 = vsel %vm4200, %v4190, 2102212464
    %v4203 = vsel %vm4199, %v4187, %v4202
    %v4204 = vsel %vm4198, %v4201, %v4203
    %v4205 = vsel %vm4197, %v4184, %v4187
    %v4206 = vsel %vm4200, %v4193, 920167782
    %v4207 = vsel %vm4199, %v4190, %v4206
    %v4208 = vsel %vm4198, %v4205, %v4207
    %v4209 = vsel %vm4197, %v4187, %v4190
    %v4210 = vsel %vm4200, %v4196, 1326507024
    %v4211 = vsel %vm4199, %v4193, %v4210
    %v4212 = vsel %vm4198, %v4209, %v4211
    %v4213 = vshll.u32 %v4173, 8
    %v4214 = vand.u32 %v4213, 65535
    %v4215 = vshrl.u32 %v4213, 16
    %v4216 = vand.u32 %v4212, 65535
    %v4217 = vshrl.u32 %v4212, 16
    %v4218 = vmul.u32 %v4214, %v4216
    %v4219 = vmul.u32 %v4214, %v4217
    %v4220 = vmul.u32 %v4215, %v4216
    %v4221 = vmul.u32 %v4215, %v4217
    %v4222 = vshll.u32 %v4219, 16
    %v4223 = vshrl.u32 %v4219, 16
    %v4224 = vshll.u32 %v4220, 16
    %v4225 = vshrl.u32 %v4220, 16
    %vm4226 = vc.u32 %v4218, %v4222
    %v4227 = vsel %vm4226, 1, 0
    %v4228 = vadd.s32 %v4218, %v4222
    %v4229 = vadd.s32 %v4221, %v4227
    %vm4230 = vc.u32 %v4228, %v4224
    %v4231 = vsel %vm4230, 1, 0
    %v4232 = vadd.s32 %v4228, %v4224
    %v4233 = vadd.s32 %v4229, %v4231
    %v4234 = vadd.s32 %v4233, %v4223
    %v4235 = vadd.s32 %v4234, %v4225
    %v4236 = vand.u32 %v4213, 65535
    %v4237 = vshrl.u32 %v4213, 16
    %v4238 = vand.u32 %v4208, 65535
    %v4239 = vshrl.u32 %v4208, 16
    %v4240 = vmul.u32 %v4236, %v4238
    %v4241 = vmul.u32 %v4236, %v4239
    %v4242 = vmul.u32 %v4237, %v4238
    %v4243 = vmul.u32 %v4237, %v4239
    %v4244 = vshll.u32 %v4241, 16
    %v4245 = vshrl.u32 %v4241, 16
    %v4246 = vshll.u32 %v4242, 16
    %v4247 = vshrl.u32 %v4242, 16
    %vm4248 = vc.u32 %v4240, %v4244
    %v4249 = vsel %vm4248, 1, 0
    %v4250 = vadd.s32 %v4240, %v4244
    %v4251 = vadd.s32 %v4243, %v4249
    %vm4252 = vc.u32 %v4250, %v4246
    %v4253 = vsel %vm4252, 1, 0
    %v4254 = vadd.s32 %v4250, %v4246
    %v4255 = vadd.s32 %v4251, %v4253
    %v4256 = vadd.s32 %v4255, %v4245
    %v4257 = vadd.s32 %v4256, %v4247
    %v4258 = vmul.u32 %v4213, %v4204
    %v4259 = vadd.s32 %v4235, %v4254
    %vm4260 = vc.u32 %v4235, %v4254
    %v4261 = vadd.s32 %v4257, 1
    %v4262 = vsel %vm4260, %v4261, %v4257
    %v4263 = vadd.s32 %v4258, %v4262
    %v4264 = vadd.s32 %v4263, 536870912
    %v4265 = vshrl.u32 %v4264, 30
    %v4266 = vshll.u32 %v4265, 30
    %v4267 = vsub.s32 %v4263, %v4266
    %vm4268 = vcmp.lt.s32.totalorder %v4267, 0
    %v4269 = vsub.s32 0, %v4267
    %v4270 = vsel %vm4268, %v4269, %v4267
    %v4271 = vclz %v4270
    %v4272 = vsub.s32 %v4271, 2
    %vm4273 = vcmp.gt.s32.totalorder 0, %v4272
    %v4274 = vsel %vm4273, 0, %v4272
    %v4275 = vsub.s32 32, %v4274
    %v4276 = vshll.u32 %v4267, %v4274
    %v4277 = vshrl.u32 %v4259, %v4275
    %v4278 = vor.u32 %v4276, %v4277
    %v4279 = vsub.s32 4294967266, %v4274
    %v4280 = vadd.s32 %v4279, 127
    %v4281 = vshll.u32 %v4280, 23
    %v4282 = vor.u32 4788187, %v4281
    %v4283 = vand.u32 2147483647, %v4282
    %v4285 = vcvt.s32.f32 %v4278
    %v4286 = vmul.f32 %v4285, %v4283
    %v4287 = vxor.u32 %v4286, 2147483648
    %v4288 = vsel %vm4167, %v4287, %v4286
    %v4289 = vsub.s32 4, %v4265
    %v4290 = vsel %vm4167, %v4289, %v4265
    %v4291 = vsel %vm4166, %v1689, %v4288
    %v4292 = vsel %vm4166, 0, %v4290
    %v4293 = vmul.f32 %v4291, %v4291
    %v4294 = vmul.f32 %v4293, -0.001358992
    %v4295 = vadd.f32 %v4294, 0.041655596
    %v4296 = vmul.f32 %v4293, %v4295
    %v4297 = vadd.f32 %v4296, -0.4999988
    %v4298 = vmul.f32 %v4293, %v4297
    %v4299 = vadd.f32 1.0, %v4298
    %v4300 = vmul.f32 %v4291, %v4291
    %v4301 = vmul.f32 %v4300, -0.00019511016
    %v4302 = vadd.f32 %v4301, 0.008332121
    %v4303 = vmul.f32 %v4300, %v4302
    %v4304 = vadd.f32 %v4303, -0.16666654
    %v4305 = vmul.f32 %v4300, %v4304
    %v4306 = vadd.f32 %v4305, 1.0
    %v4307 = vmul.f32 %v4306, %v4291
    %vm4308 = vweird.f32 %v1689
    %v4309 = vand.u32 %v4292, 3
    %vm4310 = vcmp.lt.s32.totalorder %v4309, 2
    %vm4311 = vcmp.eq.s32.totalorder %v4309, 0
    %v4312 = vxor.u32 %v4307, 2147483648
    %v4313 = vsel %vm4311, %v4299, %v4312
    %vm4314 = vcmp.eq.s32.totalorder %v4309, 2
    %v4315 = vxor.u32 %v4299, 2147483648
    %v4316 = vsel %vm4314, %v4315, %v4307
    %v4317 = vsel %vm4310, %v4313, %v4316
    %v4318 = vsel %vm4308, nan, %v4317
    %v4319 = vand.u32 2147483647, %v1690
    %vm4320 = vcmp.le.f32.partialorder %v4319, 0.7853982
    %vm4321 = vcmp.lt.s32.totalorder %v1690, 0
    %v4322 = vand.u32 %v1690, 2139095040
    %v4323 = vshrl.u32 %v4322, 23
    %v4324 = vsub.s32 %v4323, 127
    %v4325 = vand.u32 2147483647, %v1690
    %v4326 = vand.u32 %v4325, 8388607
    %v4327 = vor.u32 %v4326, 8388608
    %v4328 = vsub.s32 0, %v4327
    %v4329 = vadd.s32 %v4324, 1
    %vm4330 = vcmp.gt.s32.totalorder %v4329, 0
    %v4331 = vsel %vm4330, %v4329, 0
    %v4332 = vshrl.u32 %v4331, 5
    %v4333 = vand.u32 %v4331, 31
    %v4334 = vsub.s32 32, %v4333
    %v4335 = vshrl.u32 683565275, %v4334
    %v4336 = vshll.u32 683565275, %v4333
    %v4337 = vshrl.u32 2475754826, %v4334
    %v4338 = vor.u32 %v4336, %v4337
    %v4339 = vshll.u32 2475754826, %v4333
    %v4340 = vshrl.u32 2131351028, %v4334
    %v4341 = vor.u32 %v4339, %v4340
    %v4342 = vshll.u32 2131351028, %v4333
    %v4343 = vshrl.u32 2102212464, %v4334
    %v4344 = vor.u32 %v4342, %v4343
    %v4345 = vshll.u32 2102212464, %v4333
    %v4346 = vshrl.u32 920167782, %v4334
    %v4347 = vor.u32 %v4345, %v4346
    %v4348 = vshll.u32 920167782, %v4333
    %v4349 = vshrl.u32 1326507024, %v4334
    %v4350 = vor.u32 %v4348, %v4349
    %vm4351 = vcmp.lt.s32.totalorder %v4332, 1
    %vm4352 = vcmp.lt.s32.totalorder %v4332, 2
    %vm4353 = vcmp.lt.s32.totalorder %v4332, 3
    %vm4354 = vcmp.lt.s32.totalorder %v4332, 4
    %v4355 = vsel %vm4351, %v4335, %v4338
    %v4356 = vsel %vm4354, %v4344, 2102212464
    %v4357 = vsel %vm4353, %v4341, %v4356
    %v4358 = vsel %vm4352, %v4355, %v4357
    %v4359 = vsel %vm4351, %v4338, %v4341
    %v4360 = vsel %vm4354, %v4347, 920167782
    %v4361 = vsel %vm4353, %v4344, %v4360
    %v4362 = vsel %vm4352, %v4359, %v4361
    %v4363 = vsel %vm4351, %v4341, %v4344
    %v4364 = vsel %vm4354, %v4350, 1326507024
    %v4365 = vsel %vm4353, %v4347, %v4364
    %v4366 = vsel %vm4352, %v4363, %v4365
    %v4367 = vshll.u32 %v4327, 8
    %v4368 = vand.u32 %v4367, 65535
    %v4369 = vshrl.u32 %v4367, 16
    %v4370 = vand.u32 %v4366, 65535
    %v4371 = vshrl.u32 %v4366, 16
    %v4372 = vmul.u32 %v4368, %v4370
    %v4373 = vmul.u32 %v4368, %v4371
    %v4374 = vmul.u32 %v4369, %v4370
    %v4375 = vmul.u32 %v4369, %v4371
    %v4376 = vshll.u32 %v4373, 16
    %v4377 = vshrl.u32 %v4373, 16
    %v4378 = vshll.u32 %v4374, 16
    %v4379 = vshrl.u32 %v4374, 16
    %vm4380 = vc.u32 %v4372, %v4376
    %v4381 = vsel %vm4380, 1, 0
    %v4382 = vadd.s32 %v4372, %v4376
    %v4383 = vadd.s32 %v4375, %v4381
    %vm4384 = vc.u32 %v4382, %v4378
    %v4385 = vsel %vm4384, 1, 0
    %v4386 = vadd.s32 %v4382, %v4378
    %v4387 = vadd.s32 %v4383, %v4385
    %v4388 = vadd.s32 %v4387, %v4377
    %v4389 = vadd.s32 %v4388, %v4379
    %v4390 = vand.u32 %v4367, 65535
    %v4391 = vshrl.u32 %v4367, 16
    %v4392 = vand.u32 %v4362, 65535
    %v4393 = vshrl.u32 %v4362, 16
    %v4394 = vmul.u32 %v4390, %v4392
    %v4395 = vmul.u32 %v4390, %v4393
    %v4396 = vmul.u32 %v4391, %v4392
    %v4397 = vmul.u32 %v4391, %v4393
    %v4398 = vshll.u32 %v4395, 16
    %v4399 = vshrl.u32 %v4395, 16
    %v4400 = vshll.u32 %v4396, 16
    %v4401 = vshrl.u32 %v4396, 16
    %vm4402 = vc.u32 %v4394, %v4398
    %v4403 = vsel %vm4402, 1, 0
    %v4404 = vadd.s32 %v4394, %v4398
    %v4405 = vadd.s32 %v4397, %v4403
    %vm4406 = vc.u32 %v4404, %v4400
    %v4407 = vsel %vm4406, 1, 0
    %v4408 = vadd.s32 %v4404, %v4400
    %v4409 = vadd.s32 %v4405, %v4407
    %v4410 = vadd.s32 %v4409, %v4399
    %v4411 = vadd.s32 %v4410, %v4401
    %v4412 = vmul.u32 %v4367, %v4358
    %v4413 = vadd.s32 %v4389, %v4408
    %vm4414 = vc.u32 %v4389, %v4408
    %v4415 = vadd.s32 %v4411, 1
    %v4416 = vsel %vm4414, %v4415, %v4411
    %v4417 = vadd.s32 %v4412, %v4416
    %v4418 = vadd.s32 %v4417, 536870912
    %v4419 = vshrl.u32 %v4418, 30
    %v4420 = vshll.u32 %v4419, 30
    %v4421 = vsub.s32 %v4417, %v4420
    %vm4422 = vcmp.lt.s32.totalorder %v4421, 0
    %v4423 = vsub.s32 0, %v4421
    %v4424 = vsel %vm4422, %v4423, %v4421
    %v4425 = vclz %v4424
    %v4426 = vsub.s32 %v4425, 2
    %vm4427 = vcmp.gt.s32.totalorder 0, %v4426
    %v4428 = vsel %vm4427, 0, %v4426
    %v4429 = vsub.s32 32, %v4428
    %v4430 = vshll.u32 %v4421, %v4428
    %v4431 = vshrl.u32 %v4413, %v4429
    %v4432 = vor.u32 %v4430, %v4431
    %v4433 = vsub.s32 4294967266, %v4428
    %v4434 = vadd.s32 %v4433, 127
    %v4435 = vshll.u32 %v4434, 23
    %v4436 = vor.u32 4788187, %v4435
    %v4437 = vand.u32 2147483647, %v4436
    %v4439 = vcvt.s32.f32 %v4432
    %v4440 = vmul.f32 %v4439, %v4437
    %v4441 = vxor.u32 %v4440, 2147483648
    %v4442 = vsel %vm4321, %v4441, %v4440
    %v4443 = vsub.s32 4, %v4419
    %v4444 = vsel %vm4321, %v4443, %v4419
    %v4445 = vsel %vm4320, %v1690, %v4442
    %v4446 = vsel %vm4320, 0, %v4444
    %v4447 = vmul.f32 %v4445, %v4445
    %v4448 = vmul.f32 %v4447, -0.001358992
    %v4449 = vadd.f32 %v4448, 0.041655596
    %v4450 = vmul.f32 %v4447, %v4449
    %v4451 = vadd.f32 %v4450, -0.4999988
    %v4452 = vmul.f32 %v4447, %v4451
    %v4453 = vadd.f32 1.0, %v4452
    %v4454 = vmul.f32 %v4445, %v4445
    %v4455 = vmul.f32 %v4454, -0.00019511016
    %v4456 = vadd.f32 %v4455, 0.008332121
    %v4457 = vmul.f32 %v4454, %v4456
    %v4458 = vadd.f32 %v4457, -0.16666654
    %v4459 = vmul.f32 %v4454, %v4458
    %v4460 = vadd.f32 %v4459, 1.0
    %v4461 = vmul.f32 %v4460, %v4445
    %vm4462 = vweird.f32 %v1690
    %v4463 = vand.u32 %v4446, 3
    %vm4464 = vcmp.lt.s32.totalorder %v4463, 2
    %vm4465 = vcmp.eq.s32.totalorder %v4463, 0
    %v4466 = vxor.u32 %v4461, 2147483648
    %v4467 = vsel %vm4465, %v4453, %v4466
    %vm4468 = vcmp.eq.s32.totalorder %v4463, 2
    %v4469 = vxor.u32 %v4453, 2147483648
    %v4470 = vsel %vm4468, %v4469, %v4461
    %v4471 = vsel %vm4464, %v4467, %v4470
    %v4472 = vsel %vm4462, nan, %v4471
    %v4473 = vand.u32 2147483647, %v2001
    %vm4474 = vcmp.le.f32.partialorder %v4473, 0.7853982
    %vm4475 = vcmp.lt.s32.totalorder %v2001, 0
    %v4476 = vand.u32 %v2001, 2139095040
    %v4477 = vshrl.u32 %v4476, 23
    %v4478 = vsub.s32 %v4477, 127
    %v4479 = vand.u32 2147483647, %v2001
    %v4480 = vand.u32 %v4479, 8388607
    %v4481 = vor.u32 %v4480, 8388608
    %v4482 = vsub.s32 0, %v4481
    %v4483 = vadd.s32 %v4478, 1
    %vm4484 = vcmp.gt.s32.totalorder %v4483, 0
    %v4485 = vsel %vm4484, %v4483, 0
    %v4486 = vshrl.u32 %v4485, 5
    %v4487 = vand.u32 %v4485, 31
    %v4488 = vsub.s32 32, %v4487
    %v4489 = vshrl.u32 683565275, %v4488
    %v4490 = vshll.u32 683565275, %v4487
    %v4491 = vshrl.u32 2475754826, %v4488
    %v4492 = vor.u32 %v4490, %v4491
    %v4493 = vshll.u32 2475754826, %v4487
    %v4494 = vshrl.u32 2131351028, %v4488
    %v4495 = vor.u32 %v4493, %v4494
    %v4496 = vshll.u32 2131351028, %v4487
    %v4497 = vshrl.u32 2102212464, %v4488
    %v4498 = vor.u32 %v4496, %v4497
    %v4499 = vshll.u32 2102212464, %v4487
    %v4500 = vshrl.u32 920167782, %v4488
    %v4501 = vor.u32 %v4499, %v4500
    %v4502 = vshll.u32 920167782, %v4487
    %v4503 = vshrl.u32 1326507024, %v4488
    %v4504 = vor.u32 %v4502, %v4503
    %vm4505 = vcmp.lt.s32.totalorder %v4486, 1
    %vm4506 = vcmp.lt.s32.totalorder %v4486, 2
    %vm4507 = vcmp.lt.s32.totalorder %v4486, 3
    %vm4508 = vcmp.lt.s32.totalorder %v4486, 4
    %v4509 = vsel %vm4505, %v4489, %v4492
    %v4510 = vsel %vm4508, %v4498, 2102212464
    %v4511 = vsel %vm4507, %v4495, %v4510
    %v4512 = vsel %vm4506, %v4509, %v4511
    %v4513 = vsel %vm4505, %v4492, %v4495
    %v4514 = vsel %vm4508, %v4501, 920167782
    %v4515 = vsel %vm4507, %v4498, %v4514
    %v4516 = vsel %vm4506, %v4513, %v4515
    %v4517 = vsel %vm4505, %v4495, %v4498
    %v4518 = vsel %vm4508, %v4504, 1326507024
    %v4519 = vsel %vm4507, %v4501, %v4518
    %v4520 = vsel %vm4506, %v4517, %v4519
    %v4521 = vshll.u32 %v4481, 8
    %v4522 = vand.u32 %v4521, 65535
    %v4523 = vshrl.u32 %v4521, 16
    %v4524 = vand.u32 %v4520, 65535
    %v4525 = vshrl.u32 %v4520, 16
    %v4526 = vmul.u32 %v4522, %v4524
    %v4527 = vmul.u32 %v4522, %v4525
    %v4528 = vmul.u32 %v4523, %v4524
    %v4529 = vmul.u32 %v4523, %v4525
    %v4530 = vshll.u32 %v4527, 16
    %v4531 = vshrl.u32 %v4527, 16
    %v4532 = vshll.u32 %v4528, 16
    %v4533 = vshrl.u32 %v4528, 16
    %vm4534 = vc.u32 %v4526, %v4530
    %v4535 = vsel %vm4534, 1, 0
    %v4536 = vadd.s32 %v4526, %v4530
    %v4537 = vadd.s32 %v4529, %v4535
    %vm4538 = vc.u32 %v4536, %v4532
    %v4539 = vsel %vm4538, 1, 0
    %v4540 = vadd.s32 %v4536, %v4532
    %v4541 = vadd.s32 %v4537, %v4539
    %v4542 = vadd.s32 %v4541, %v4531
    %v4543 = vadd.s32 %v4542, %v4533
    %v4544 = vand.u32 %v4521, 65535
    %v4545 = vshrl.u32 %v4521, 16
    %v4546 = vand.u32 %v4516, 65535
    %v4547 = vshrl.u32 %v4516, 16
    %v4548 = vmul.u32 %v4544, %v4546
    %v4549 = vmul.u32 %v4544, %v4547
    %v4550 = vmul.u32 %v4545, %v4546
    %v4551 = vmul.u32 %v4545, %v4547
    %v4552 = vshll.u32 %v4549, 16
    %v4553 = vshrl.u32 %v4549, 16
    %v4554 = vshll.u32 %v4550, 16
    %v4555 = vshrl.u32 %v4550, 16
    %vm4556 = vc.u32 %v4548, %v4552
    %v4557 = vsel %vm4556, 1, 0
    %v4558 = vadd.s32 %v4548, %v4552
    %v4559 = vadd.s32 %v4551, %v4557
    %vm4560 = vc.u32 %v4558, %v4554
    %v4561 = vsel %vm4560, 1, 0
    %v4562 = vadd.s32 %v4558, %v4554
    %v4563 = vadd.s32 %v4559, %v4561
    %v4564 = vadd.s32 %v4563, %v4553
    %v4565 = vadd.s32 %v4564, %v4555
    %v4566 = vmul.u32 %v4521, %v4512
    %v4567 = vadd.s32 %v4543, %v4562
    %vm4568 = vc.u32 %v4543, %v4562
    %v4569 = vadd.s32 %v4565, 1
    %v4570 = vsel %vm4568, %v4569, %v4565
    %v4571 = vadd.s32 %v4566, %v4570
    %v4572 = vadd.s32 %v4571, 536870912
    %v4573 = vshrl.u32 %v4572, 30
    %v4574 = vshll.u32 %v4573, 30
    %v4575 = vsub.s32 %v4571, %v4574
    %vm4576 = vcmp.lt.s32.totalorder %v4575, 0
    %v4577 = vsub.s32 0, %v4575
    %v4578 = vsel %vm4576, %v4577, %v4575
    %v4579 = vclz %v4578
    %v4580 = vsub.s32 %v4579, 2
    %vm4581 = vcmp.gt.s32.totalorder 0, %v4580
    %v4582 = vsel %vm4581, 0, %v4580
    %v4583 = vsub.s32 32, %v4582
    %v4584 = vshll.u32 %v4575, %v4582
    %v4585 = vshrl.u32 %v4567, %v4583
    %v4586 = vor.u32 %v4584, %v4585
    %v4587 = vsub.s32 4294967266, %v4582
    %v4588 = vadd.s32 %v4587, 127
    %v4589 = vshll.u32 %v4588, 23
    %v4590 = vor.u32 4788187, %v4589
    %v4591 = vand.u32 2147483647, %v4590
    %v4593 = vcvt.s32.f32 %v4586
    %v4594 = vmul.f32 %v4593, %v4591
    %v4595 = vxor.u32 %v4594, 2147483648
    %v4596 = vsel %vm4475, %v4595, %v4594
    %v4597 = vsub.s32 4, %v4573
    %v4598 = vsel %vm4475, %v4597, %v4573
    %v4599 = vsel %vm4474, %v2001, %v4596
    %v4600 = vsel %vm4474, 0, %v4598
    %v4601 = vmul.f32 %v4599, %v4599
    %v4602 = vmul.f32 %v4601, -0.001358992
    %v4603 = vadd.f32 %v4602, 0.041655596
    %v4604 = vmul.f32 %v4601, %v4603
    %v4605 = vadd.f32 %v4604, -0.4999988
    %v4606 = vmul.f32 %v4601, %v4605
    %v4607 = vadd.f32 1.0, %v4606
    %v4608 = vmul.f32 %v4599, %v4599
    %v4609 = vmul.f32 %v4608, -0.00019511016
    %v4610 = vadd.f32 %v4609, 0.008332121
    %v4611 = vmul.f32 %v4608, %v4610
    %v4612 = vadd.f32 %v4611, -0.16666654
    %v4613 = vmul.f32 %v4608, %v4612
    %v4614 = vadd.f32 %v4613, 1.0
    %v4615 = vmul.f32 %v4614, %v4599
    %vm4616 = vweird.f32 %v2001
    %v4617 = vand.u32 %v4600, 3
    %vm4618 = vcmp.lt.s32.totalorder %v4617, 2
    %vm4619 = vcmp.eq.s32.totalorder %v4617, 0
    %v4620 = vxor.u32 %v4615, 2147483648
    %v4621 = vsel %vm4619, %v4607, %v4620
    %vm4622 = vcmp.eq.s32.totalorder %v4617, 2
    %v4623 = vxor.u32 %v4607, 2147483648
    %v4624 = vsel %vm4622, %v4623, %v4615
    %v4625 = vsel %vm4618, %v4621, %v4624
    %v4626 = vsel %vm4616, nan, %v4625
    %v4627 = vand.u32 2147483647, %v2002
    %vm4628 = vcmp.le.f32.partialorder %v4627, 0.7853982
    %vm4629 = vcmp.lt.s32.totalorder %v2002, 0
    %v4630 = vand.u32 %v2002, 2139095040
    %v4631 = vshrl.u32 %v4630, 23
    %v4632 = vsub.s32 %v4631, 127
    %v4633 = vand.u32 2147483647, %v2002
    %v4634 = vand.u32 %v4633, 8388607
    %v4635 = vor.u32 %v4634, 8388608
    %v4636 = vsub.s32 0, %v4635
    %v4637 = vadd.s32 %v4632, 1
    %vm4638 = vcmp.gt.s32.totalorder %v4637, 0
    %v4639 = vsel %vm4638, %v4637, 0
    %v4640 = vshrl.u32 %v4639, 5
    %v4641 = vand.u32 %v4639, 31
    %v4642 = vsub.s32 32, %v4641
    %v4643 = vshrl.u32 683565275, %v4642
    %v4644 = vshll.u32 683565275, %v4641
    %v4645 = vshrl.u32 2475754826, %v4642
    %v4646 = vor.u32 %v4644, %v4645
    %v4647 = vshll.u32 2475754826, %v4641
    %v4648 = vshrl.u32 2131351028, %v4642
    %v4649 = vor.u32 %v4647, %v4648
    %v4650 = vshll.u32 2131351028, %v4641
    %v4651 = vshrl.u32 2102212464, %v4642
    %v4652 = vor.u32 %v4650, %v4651
    %v4653 = vshll.u32 2102212464, %v4641
    %v4654 = vshrl.u32 920167782, %v4642
    %v4655 = vor.u32 %v4653, %v4654
    %v4656 = vshll.u32 920167782, %v4641
    %v4657 = vshrl.u32 1326507024, %v4642
    %v4658 = vor.u32 %v4656, %v4657
    %vm4659 = vcmp.lt.s32.totalorder %v4640, 1
    %vm4660 = vcmp.lt.s32.totalorder %v4640, 2
    %vm4661 = vcmp.lt.s32.totalorder %v4640, 3
    %vm4662 = vcmp.lt.s32.totalorder %v4640, 4
    %v4663 = vsel %vm4659, %v4643, %v4646
    %v4664 = vsel %vm4662, %v4652, 2102212464
    %v4665 = vsel %vm4661, %v4649, %v4664
    %v4666 = vsel %vm4660, %v4663, %v4665
    %v4667 = vsel %vm4659, %v4646, %v4649
    %v4668 = vsel %vm4662, %v4655, 920167782
    %v4669 = vsel %vm4661, %v4652, %v4668
    %v4670 = vsel %vm4660, %v4667, %v4669
    %v4671 = vsel %vm4659, %v4649, %v4652
    %v4672 = vsel %vm4662, %v4658, 1326507024
    %v4673 = vsel %vm4661, %v4655, %v4672
    %v4674 = vsel %vm4660, %v4671, %v4673
    %v4675 = vshll.u32 %v4635, 8
    %v4676 = vand.u32 %v4675, 65535
    %v4677 = vshrl.u32 %v4675, 16
    %v4678 = vand.u32 %v4674, 65535
    %v4679 = vshrl.u32 %v4674, 16
    %v4680 = vmul.u32 %v4676, %v4678
    %v4681 = vmul.u32 %v4676, %v4679
    %v4682 = vmul.u32 %v4677, %v4678
    %v4683 = vmul.u32 %v4677, %v4679
    %v4684 = vshll.u32 %v4681, 16
    %v4685 = vshrl.u32 %v4681, 16
    %v4686 = vshll.u32 %v4682, 16
    %v4687 = vshrl.u32 %v4682, 16
    %vm4688 = vc.u32 %v4680, %v4684
    %v4689 = vsel %vm4688, 1, 0
    %v4690 = vadd.s32 %v4680, %v4684
    %v4691 = vadd.s32 %v4683, %v4689
    %vm4692 = vc.u32 %v4690, %v4686
    %v4693 = vsel %vm4692, 1, 0
    %v4694 = vadd.s32 %v4690, %v4686
    %v4695 = vadd.s32 %v4691, %v4693
    %v4696 = vadd.s32 %v4695, %v4685
    %v4697 = vadd.s32 %v4696, %v4687
    %v4698 = vand.u32 %v4675, 65535
    %v4699 = vshrl.u32 %v4675, 16
    %v4700 = vand.u32 %v4670, 65535
    %v4701 = vshrl.u32 %v4670, 16
    %v4702 = vmul.u32 %v4698, %v4700
    %v4703 = vmul.u32 %v4698, %v4701
    %v4704 = vmul.u32 %v4699, %v4700
    %v4705 = vmul.u32 %v4699, %v4701
    %v4706 = vshll.u32 %v4703, 16
    %v4707 = vshrl.u32 %v4703, 16
    %v4708 = vshll.u32 %v4704, 16
    %v4709 = vshrl.u32 %v4704, 16
    %vm4710 = vc.u32 %v4702, %v4706
    %v4711 = vsel %vm4710, 1, 0
    %v4712 = vadd.s32 %v4702, %v4706
    %v4713 = vadd.s32 %v4705, %v4711
    %vm4714 = vc.u32 %v4712, %v4708
    %v4715 = vsel %vm4714, 1, 0
    %v4716 = vadd.s32 %v4712, %v4708
    %v4717 = vadd.s32 %v4713, %v4715
    %v4718 = vadd.s32 %v4717, %v4707
    %v4719 = vadd.s32 %v4718, %v4709
    %v4720 = vmul.u32 %v4675, %v4666
    %v4721 = vadd.s32 %v4697, %v4716
    %vm4722 = vc.u32 %v4697, %v4716
    %v4723 = vadd.s32 %v4719, 1
    %v4724 = vsel %vm4722, %v4723, %v4719
    %v4725 = vadd.s32 %v4720, %v4724
    %v4726 = vadd.s32 %v4725, 536870912
    %v4727 = vshrl.u32 %v4726, 30
    %v4728 = vshll.u32 %v4727, 30
    %v4729 = vsub.s32 %v4725, %v4728
    %vm4730 = vcmp.lt.s32.totalorder %v4729, 0
    %v4731 = vsub.s32 0, %v4729
    %v4732 = vsel %vm4730, %v4731, %v4729
    %v4733 = vclz %v4732
    %v4734 = vsub.s32 %v4733, 2
    %vm4735 = vcmp.gt.s32.totalorder 0, %v4734
    %v4736 = vsel %vm4735, 0, %v4734
    %v4737 = vsub.s32 32, %v4736
    %v4738 = vshll.u32 %v4729, %v4736
    %v4739 = vshrl.u32 %v4721, %v4737
    %v4740 = vor.u32 %v4738, %v4739
    %v4741 = vsub.s32 4294967266, %v4736
    %v4742 = vadd.s32 %v4741, 127
    %v4743 = vshll.u32 %v4742, 23
    %v4744 = vor.u32 4788187, %v4743
    %v4745 = vand.u32 2147483647, %v4744
    %v4747 = vcvt.s32.f32 %v4740
    %v4748 = vmul.f32 %v4747, %v4745
    %v4749 = vxor.u32 %v4748, 2147483648
    %v4750 = vsel %vm4629, %v4749, %v4748
    %v4751 = vsub.s32 4, %v4727
    %v4752 = vsel %vm4629, %v4751, %v4727
    %v4753 = vsel %vm4628, %v2002, %v4750
    %v4754 = vsel %vm4628, 0, %v4752
    %v4755 = vmul.f32 %v4753, %v4753
    %v4756 = vmul.f32 %v4755, -0.001358992
    %v4757 = vadd.f32 %v4756, 0.041655596
    %v4758 = vmul.f32 %v4755, %v4757
    %v4759 = vadd.f32 %v4758, -0.4999988
    %v4760 = vmul.f32 %v4755, %v4759
    %v4761 = vadd.f32 1.0, %v4760
    %v4762 = vmul.f32 %v4753, %v4753
    %v4763 = vmul.f32 %v4762, -0.00019511016
    %v4764 = vadd.f32 %v4763, 0.008332121
    %v4765 = vmul.f32 %v4762, %v4764
    %v4766 = vadd.f32 %v4765, -0.16666654
    %v4767 = vmul.f32 %v4762, %v4766
    %v4768 = vadd.f32 %v4767, 1.0
    %v4769 = vmul.f32 %v4768, %v4753
    %vm4770 = vweird.f32 %v2002
    %v4771 = vand.u32 %v4754, 3
    %vm4772 = vcmp.lt.s32.totalorder %v4771, 2
    %vm4773 = vcmp.eq.s32.totalorder %v4771, 0
    %v4774 = vxor.u32 %v4769, 2147483648
    %v4775 = vsel %vm4773, %v4761, %v4774
    %vm4776 = vcmp.eq.s32.totalorder %v4771, 2
    %v4777 = vxor.u32 %v4761, 2147483648
    %v4778 = vsel %vm4776, %v4777, %v4769
    %v4779 = vsel %vm4772, %v4775, %v4778
    %v4780 = vsel %vm4770, nan, %v4779
    %v4781 = vand.u32 2147483647, %v2313
    %vm4782 = vcmp.le.f32.partialorder %v4781, 0.7853982
    %vm4783 = vcmp.lt.s32.totalorder %v2313, 0
    %v4784 = vand.u32 %v2313, 2139095040
    %v4785 = vshrl.u32 %v4784, 23
    %v4786 = vsub.s32 %v4785, 127
    %v4787 = vand.u32 2147483647, %v2313
    %v4788 = vand.u32 %v4787, 8388607
    %v4789 = vor.u32 %v4788, 8388608
    %v4790 = vsub.s32 0, %v4789
    %v4791 = vadd.s32 %v4786, 1
    %vm4792 = vcmp.gt.s32.totalorder %v4791, 0
    %v4793 = vsel %vm4792, %v4791, 0
    %v4794 = vshrl.u32 %v4793, 5
    %v4795 = vand.u32 %v4793, 31
    %v4796 = vsub.s32 32, %v4795
    %v4797 = vshrl.u32 683565275, %v4796
    %v4798 = vshll.u32 683565275, %v4795
    %v4799 = vshrl.u32 2475754826, %v4796
    %v4800 = vor.u32 %v4798, %v4799
    %v4801 = vshll.u32 2475754826, %v4795
    %v4802 = vshrl.u32 2131351028, %v4796
    %v4803 = vor.u32 %v4801, %v4802
    %v4804 = vshll.u32 2131351028, %v4795
    %v4805 = vshrl.u32 2102212464, %v4796
    %v4806 = vor.u32 %v4804, %v4805
    %v4807 = vshll.u32 2102212464, %v4795
    %v4808 = vshrl.u32 920167782, %v4796
    %v4809 = vor.u32 %v4807, %v4808
    %v4810 = vshll.u32 920167782, %v4795
    %v4811 = vshrl.u32 1326507024, %v4796
    %v4812 = vor.u32 %v4810, %v4811
    %vm4813 = vcmp.lt.s32.totalorder %v4794, 1
    %vm4814 = vcmp.lt.s32.totalorder %v4794, 2
    %vm4815 = vcmp.lt.s32.totalorder %v4794, 3
    %vm4816 = vcmp.lt.s32.totalorder %v4794, 4
    %v4817 = vsel %vm4813, %v4797, %v4800
    %v4818 = vsel %vm4816, %v4806, 2102212464
    %v4819 = vsel %vm4815, %v4803, %v4818
    %v4820 = vsel %vm4814, %v4817, %v4819
    %v4821 = vsel %vm4813, %v4800, %v4803
    %v4822 = vsel %vm4816, %v4809, 920167782
    %v4823 = vsel %vm4815, %v4806, %v4822
    %v4824 = vsel %vm4814, %v4821, %v4823
    %v4825 = vsel %vm4813, %v4803, %v4806
    %v4826 = vsel %vm4816, %v4812, 1326507024
    %v4827 = vsel %vm4815, %v4809, %v4826
    %v4828 = vsel %vm4814, %v4825, %v4827
    %v4829 = vshll.u32 %v4789, 8
    %v4830 = vand.u32 %v4829, 65535
    %v4831 = vshrl.u32 %v4829, 16
    %v4832 = vand.u32 %v4828, 65535
    %v4833 = vshrl.u32 %v4828, 16
    %v4834 = vmul.u32 %v4830, %v4832
    %v4835 = vmul.u32 %v4830, %v4833
    %v4836 = vmul.u32 %v4831, %v4832
    %v4837 = vmul.u32 %v4831, %v4833
    %v4838 = vshll.u32 %v4835, 16
    %v4839 = vshrl.u32 %v4835, 16
    %v4840 = vshll.u32 %v4836, 16
    %v4841 = vshrl.u32 %v4836, 16
    %vm4842 = vc.u32 %v4834, %v4838
    %v4843 = vsel %vm4842, 1, 0
    %v4844 = vadd.s32 %v4834, %v4838
    %v4845 = vadd.s32 %v4837, %v4843
    %vm4846 = vc.u32 %v4844, %v4840
    %v4847 = vsel %vm4846, 1, 0
    %v4848 = vadd.s32 %v4844, %v4840
    %v4849 = vadd.s32 %v4845, %v4847
    %v4850 = vadd.s32 %v4849, %v4839
    %v4851 = vadd.s32 %v4850, %v4841
    %v4852 = vand.u32 %v4829, 65535
    %v4853 = vshrl.u32 %v4829, 16
    %v4854 = vand.u32 %v4824, 65535
    %v4855 = vshrl.u32 %v4824, 16
    %v4856 = vmul.u32 %v4852, %v4854
    %v4857 = vmul.u32 %v4852, %v4855
    %v4858 = vmul.u32 %v4853, %v4854
    %v4859 = vmul.u32 %v4853, %v4855
    %v4860 = vshll.u32 %v4857, 16
    %v4861 = vshrl.u32 %v4857, 16
    %v4862 = vshll.u32 %v4858, 16
    %v4863 = vshrl.u32 %v4858, 16
    %vm4864 = vc.u32 %v4856, %v4860
    %v4865 = vsel %vm4864, 1, 0
    %v4866 = vadd.s32 %v4856, %v4860
    %v4867 = vadd.s32 %v4859, %v4865
    %vm4868 = vc.u32 %v4866, %v4862
    %v4869 = vsel %vm4868, 1, 0
    %v4870 = vadd.s32 %v4866, %v4862
    %v4871 = vadd.s32 %v4867, %v4869
    %v4872 = vadd.s32 %v4871, %v4861
    %v4873 = vadd.s32 %v4872, %v4863
    %v4874 = vmul.u32 %v4829, %v4820
    %v4875 = vadd.s32 %v4851, %v4870
    %vm4876 = vc.u32 %v4851, %v4870
    %v4877 = vadd.s32 %v4873, 1
    %v4878 = vsel %vm4876, %v4877, %v4873
    %v4879 = vadd.s32 %v4874, %v4878
    %v4880 = vadd.s32 %v4879, 536870912
    %v4881 = vshrl.u32 %v4880, 30
    %v4882 = vshll.u32 %v4881, 30
    %v4883 = vsub.s32 %v4879, %v4882
    %vm4884 = vcmp.lt.s32.totalorder %v4883, 0
    %v4885 = vsub.s32 0, %v4883
    %v4886 = vsel %vm4884, %v4885, %v4883
    %v4887 = vclz %v4886
    %v4888 = vsub.s32 %v4887, 2
    %vm4889 = vcmp.gt.s32.totalorder 0, %v4888
    %v4890 = vsel %vm4889, 0, %v4888
    %v4891 = vsub.s32 32, %v4890
    %v4892 = vshll.u32 %v4883, %v4890
    %v4893 = vshrl.u32 %v4875, %v4891
    %v4894 = vor.u32 %v4892, %v4893
    %v4895 = vsub.s32 4294967266, %v4890
    %v4896 = vadd.s32 %v4895, 127
    %v4897 = vshll.u32 %v4896, 23
    %v4898 = vor.u32 4788187, %v4897
    %v4899 = vand.u32 2147483647, %v4898
    %v4901 = vcvt.s32.f32 %v4894
    %v4902 = vmul.f32 %v4901, %v4899
    %v4903 = vxor.u32 %v4902, 2147483648
    %v4904 = vsel %vm4783, %v4903, %v4902
    %v4905 = vsub.s32 4, %v4881
    %v4906 = vsel %vm4783, %v4905, %v4881
    %v4907 = vsel %vm4782, %v2313, %v4904
    %v4908 = vsel %vm4782, 0, %v4906
    %v4909 = vmul.f32 %v4907, %v4907
    %v4910 = vmul.f32 %v4909, -0.001358992
    %v4911 = vadd.f32 %v4910, 0.041655596
    %v4912 = vmul.f32 %v4909, %v4911
    %v4913 = vadd.f32 %v4912, -0.4999988
    %v4914 = vmul.f32 %v4909, %v4913
    %v4915 = vadd.f32 1.0, %v4914
    %v4916 = vmul.f32 %v4907, %v4907
    %v4917 = vmul.f32 %v4916, -0.00019511016
    %v4918 = vadd.f32 %v4917, 0.008332121
    %v4919 = vmul.f32 %v4916, %v4918
    %v4920 = vadd.f32 %v4919, -0.16666654
    %v4921 = vmul.f32 %v4916, %v4920
    %v4922 = vadd.f32 %v4921, 1.0
    %v4923 = vmul.f32 %v4922, %v4907
    %vm4924 = vweird.f32 %v2313
    %v4925 = vand.u32 %v4908, 3
    %vm4926 = vcmp.lt.s32.totalorder %v4925, 2
    %vm4927 = vcmp.eq.s32.totalorder %v4925, 0
    %v4928 = vxor.u32 %v4923, 2147483648
    %v4929 = vsel %vm4927, %v4915, %v4928
    %vm4930 = vcmp.eq.s32.totalorder %v4925, 2
    %v4931 = vxor.u32 %v4915, 2147483648
    %v4932 = vsel %vm4930, %v4931, %v4923
    %v4933 = vsel %vm4926, %v4929, %v4932
    %v4934 = vsel %vm4924, nan, %v4933
    %v4935 = vand.u32 2147483647, %v2314
    %vm4936 = vcmp.le.f32.partialorder %v4935, 0.7853982
    %vm4937 = vcmp.lt.s32.totalorder %v2314, 0
    %v4938 = vand.u32 %v2314, 2139095040
    %v4939 = vshrl.u32 %v4938, 23
    %v4940 = vsub.s32 %v4939, 127
    %v4941 = vand.u32 2147483647, %v2314
    %v4942 = vand.u32 %v4941, 8388607
    %v4943 = vor.u32 %v4942, 8388608
    %v4944 = vsub.s32 0, %v4943
    %v4945 = vadd.s32 %v4940, 1
    %vm4946 = vcmp.gt.s32.totalorder %v4945, 0
    %v4947 = vsel %vm4946, %v4945, 0
    %v4948 = vshrl.u32 %v4947, 5
    %v4949 = vand.u32 %v4947, 31
    %v4950 = vsub.s32 32, %v4949
    %v4951 = vshrl.u32 683565275, %v4950
    %v4952 = vshll.u32 683565275, %v4949
    %v4953 = vshrl.u32 2475754826, %v4950
    %v4954 = vor.u32 %v4952, %v4953
    %v4955 = vshll.u32 2475754826, %v4949
    %v4956 = vshrl.u32 2131351028, %v4950
    %v4957 = vor.u32 %v4955, %v4956
    %v4958 = vshll.u32 2131351028, %v4949
    %v4959 = vshrl.u32 2102212464, %v4950
    %v4960 = vor.u32 %v4958, %v4959
    %v4961 = vshll.u32 2102212464, %v4949
    %v4962 = vshrl.u32 920167782, %v4950
    %v4963 = vor.u32 %v4961, %v4962
    %v4964 = vshll.u32 920167782, %v4949
    %v4965 = vshrl.u32 1326507024, %v4950
    %v4966 = vor.u32 %v4964, %v4965
    %vm4967 = vcmp.lt.s32.totalorder %v4948, 1
    %vm4968 = vcmp.lt.s32.totalorder %v4948, 2
    %vm4969 = vcmp.lt.s32.totalorder %v4948, 3
    %vm4970 = vcmp.lt.s32.totalorder %v4948, 4
    %v4971 = vsel %vm4967, %v4951, %v4954
    %v4972 = vsel %vm4970, %v4960, 2102212464
    %v4973 = vsel %vm4969, %v4957, %v4972
    %v4974 = vsel %vm4968, %v4971, %v4973
    %v4975 = vsel %vm4967, %v4954, %v4957
    %v4976 = vsel %vm4970, %v4963, 920167782
    %v4977 = vsel %vm4969, %v4960, %v4976
    %v4978 = vsel %vm4968, %v4975, %v4977
    %v4979 = vsel %vm4967, %v4957, %v4960
    %v4980 = vsel %vm4970, %v4966, 1326507024
    %v4981 = vsel %vm4969, %v4963, %v4980
    %v4982 = vsel %vm4968, %v4979, %v4981
    %v4983 = vshll.u32 %v4943, 8
    %v4984 = vand.u32 %v4983, 65535
    %v4985 = vshrl.u32 %v4983, 16
    %v4986 = vand.u32 %v4982, 65535
    %v4987 = vshrl.u32 %v4982, 16
    %v4988 = vmul.u32 %v4984, %v4986
    %v4989 = vmul.u32 %v4984, %v4987
    %v4990 = vmul.u32 %v4985, %v4986
    %v4991 = vmul.u32 %v4985, %v4987
    %v4992 = vshll.u32 %v4989, 16
    %v4993 = vshrl.u32 %v4989, 16
    %v4994 = vshll.u32 %v4990, 16
    %v4995 = vshrl.u32 %v4990, 16
    %vm4996 = vc.u32 %v4988, %v4992
    %v4997 = vsel %vm4996, 1, 0
    %v4998 = vadd.s32 %v4988, %v4992
    %v4999 = vadd.s32 %v4991, %v4997
    %vm5000 = vc.u32 %v4998, %v4994
    %v5001 = vsel %vm5000, 1, 0
    %v5002 = vadd.s32 %v4998, %v4994
    %v5003 = vadd.s32 %v4999, %v5001
    %v5004 = vadd.s32 %v5003, %v4993
    %v5005 = vadd.s32 %v5004, %v4995
    %v5006 = vand.u32 %v4983, 65535
    %v5007 = vshrl.u32 %v4983, 16
    %v5008 = vand.u32 %v4978, 65535
    %v5009 = vshrl.u32 %v4978, 16
    %v5010 = vmul.u32 %v5006, %v5008
    %v5011 = vmul.u32 %v5006, %v5009
    %v5012 = vmul.u32 %v5007, %v5008
    %v5013 = vmul.u32 %v5007, %v5009
    %v5014 = vshll.u32 %v5011, 16
    %v5015 = vshrl.u32 %v5011, 16
    %v5016 = vshll.u32 %v5012, 16
    %v5017 = vshrl.u32 %v5012, 16
    %vm5018 = vc.u32 %v5010, %v5014
    %v5019 = vsel %vm5018, 1, 0
    %v5020 = vadd.s32 %v5010, %v5014
    %v5021 = vadd.s32 %v5013, %v5019
    %vm5022 = vc.u32 %v5020, %v5016
    %v5023 = vsel %vm5022, 1, 0
    %v5024 = vadd.s32 %v5020, %v5016
    %v5025 = vadd.s32 %v5021, %v5023
    %v5026 = vadd.s32 %v5025, %v5015
    %v5027 = vadd.s32 %v5026, %v5017
    %v5028 = vmul.u32 %v4983, %v4974
    %v5029 = vadd.s32 %v5005, %v5024
    %vm5030 = vc.u32 %v5005, %v5024
    %v5031 = vadd.s32 %v5027, 1
    %v5032 = vsel %vm5030, %v5031, %v5027
    %v5033 = vadd.s32 %v5028, %v5032
    %v5034 = vadd.s32 %v5033, 536870912
    %v5035 = vshrl.u32 %v5034, 30
    %v5036 = vshll.u32 %v5035, 30
    %v5037 = vsub.s32 %v5033, %v5036
    %vm5038 = vcmp.lt.s32.totalorder %v5037, 0
    %v5039 = vsub.s32 0, %v5037
    %v5040 = vsel %vm5038, %v5039, %v5037
    %v5041 = vclz %v5040
    %v5042 = vsub.s32 %v5041, 2
    %vm5043 = vcmp.gt.s32.totalorder 0, %v5042
    %v5044 = vsel %vm5043, 0, %v5042
    %v5045 = vsub.s32 32, %v5044
    %v5046 = vshll.u32 %v5037, %v5044
    %v5047 = vshrl.u32 %v5029, %v5045
    %v5048 = vor.u32 %v5046, %v5047
    %v5049 = vsub.s32 4294967266, %v5044
    %v5050 = vadd.s32 %v5049, 127
    %v5051 = vshll.u32 %v5050, 23
    %v5052 = vor.u32 4788187, %v5051
    %v5053 = vand.u32 2147483647, %v5052
    %v5055 = vcvt.s32.f32 %v5048
    %v5056 = vmul.f32 %v5055, %v5053
    %v5057 = vxor.u32 %v5056, 2147483648
    %v5058 = vsel %vm4937, %v5057, %v5056
    %v5059 = vsub.s32 4, %v5035
    %v5060 = vsel %vm4937, %v5059, %v5035
    %v5061 = vsel %vm4936, %v2314, %v5058
    %v5062 = vsel %vm4936, 0, %v5060
    %v5063 = vmul.f32 %v5061, %v5061
    %v5064 = vmul.f32 %v5063, -0.001358992
    %v5065 = vadd.f32 %v5064, 0.041655596
    %v5066 = vmul.f32 %v5063, %v5065
    %v5067 = vadd.f32 %v5066, -0.4999988
    %v5068 = vmul.f32 %v5063, %v5067
    %v5069 = vadd.f32 1.0, %v5068
    %v5070 = vmul.f32 %v5061, %v5061
    %v5071 = vmul.f32 %v5070, -0.00019511016
    %v5072 = vadd.f32 %v5071, 0.008332121
    %v5073 = vmul.f32 %v5070, %v5072
    %v5074 = vadd.f32 %v5073, -0.16666654
    %v5075 = vmul.f32 %v5070, %v5074
    %v5076 = vadd.f32 %v5075, 1.0
    %v5077 = vmul.f32 %v5076, %v5061
    %vm5078 = vweird.f32 %v2314
    %v5079 = vand.u32 %v5062, 3
    %vm5080 = vcmp.lt.s32.totalorder %v5079, 2
    %vm5081 = vcmp.eq.s32.totalorder %v5079, 0
    %v5082 = vxor.u32 %v5077, 2147483648
    %v5083 = vsel %vm5081, %v5069, %v5082
    %vm5084 = vcmp.eq.s32.totalorder %v5079, 2
    %v5085 = vxor.u32 %v5069, 2147483648
    %v5086 = vsel %vm5084, %v5085, %v5077
    %v5087 = vsel %vm5080, %v5083, %v5086
    %v5088 = vsel %vm5078, nan, %v5087
    %v5089 = vperm.slane %v285, 0
    %v5090 = vlaneseq
    %v5091 = vshrl.u32 %v5090, 7
    %5093 = vset.pattern.permute.xlu0 %v5091
    %5094 = vperm.xlu0 %5093, %v5089
    %v5095 = vpop.permute.xlu0 %5094
    %v5096 = vlaneseq
    %v5097 = vshrl.u32 %v5096, 7
    %v5098 = vadd.s32 %v5097, 8
    %5099 = vset.pattern.permute.xlu0 %v5098
    %5100 = vperm.xlu0 %5099, %v5089
    %v5101 = vpop.permute.xlu0 %5100
    %v5102 = vperm.slane %v285, 1
    %v5103 = vlaneseq
    %v5104 = vshrl.u32 %v5103, 7
    %5106 = vset.pattern.permute.xlu0 %v5104
    %5107 = vperm.xlu0 %5106, %v5102
    %v5108 = vpop.permute.xlu0 %5107
    %v5109 = vlaneseq
    %v5110 = vshrl.u32 %v5109, 7
    %v5111 = vadd.s32 %v5110, 8
    %5112 = vset.pattern.permute.xlu0 %v5111
    %5113 = vperm.xlu0 %5112, %v5102
    %v5114 = vpop.permute.xlu0 %5113
    %v5115 = vperm.slane %v285, 2
    %v5116 = vlaneseq
    %v5117 = vshrl.u32 %v5116, 7
    %5119 = vset.pattern.permute.xlu0 %v5117
    %5120 = vperm.xlu0 %5119, %v5115
    %v5121 = vpop.permute.xlu0 %5120
    %v5122 = vlaneseq
    %v5123 = vshrl.u32 %v5122, 7
    %v5124 = vadd.s32 %v5123, 8
    %5125 = vset.pattern.permute.xlu0 %v5124
    %5126 = vperm.xlu0 %5125, %v5115
    %v5127 = vpop.permute.xlu0 %5126
    %v5128 = vperm.slane %v285, 3
    %v5129 = vlaneseq
    %v5130 = vshrl.u32 %v5129, 7
    %5132 = vset.pattern.permute.xlu0 %v5130
    %5133 = vperm.xlu0 %5132, %v5128
    %v5134 = vpop.permute.xlu0 %5133
    %v5135 = vlaneseq
    %v5136 = vshrl.u32 %v5135, 7
    %v5137 = vadd.s32 %v5136, 8
    %5138 = vset.pattern.permute.xlu0 %v5137
    %5139 = vperm.xlu0 %5138, %v5128
    %v5140 = vpop.permute.xlu0 %5139
    %v5141 = vperm.slane %v285, 4
    %v5142 = vlaneseq
    %v5143 = vshrl.u32 %v5142, 7
    %5145 = vset.pattern.permute.xlu0 %v5143
    %5146 = vperm.xlu0 %5145, %v5141
    %v5147 = vpop.permute.xlu0 %5146
    %v5148 = vlaneseq
    %v5149 = vshrl.u32 %v5148, 7
    %v5150 = vadd.s32 %v5149, 8
    %5151 = vset.pattern.permute.xlu0 %v5150
    %5152 = vperm.xlu0 %5151, %v5141
    %v5153 = vpop.permute.xlu0 %5152
    %v5154 = vperm.slane %v285, 5
    %v5155 = vlaneseq
    %v5156 = vshrl.u32 %v5155, 7
    %5158 = vset.pattern.permute.xlu0 %v5156
    %5159 = vperm.xlu0 %5158, %v5154
    %v5160 = vpop.permute.xlu0 %5159
    %v5161 = vlaneseq
    %v5162 = vshrl.u32 %v5161, 7
    %v5163 = vadd.s32 %v5162, 8
    %5164 = vset.pattern.permute.xlu0 %v5163
    %5165 = vperm.xlu0 %5164, %v5154
    %v5166 = vpop.permute.xlu0 %5165
    %v5167 = vperm.slane %v285, 6
    %v5168 = vlaneseq
    %v5169 = vshrl.u32 %v5168, 7
    %5171 = vset.pattern.permute.xlu0 %v5169
    %5172 = vperm.xlu0 %5171, %v5167
    %v5173 = vpop.permute.xlu0 %5172
    %v5174 = vlaneseq
    %v5175 = vshrl.u32 %v5174, 7
    %v5176 = vadd.s32 %v5175, 8
    %5177 = vset.pattern.permute.xlu0 %v5176
    %5178 = vperm.xlu0 %5177, %v5167
    %v5179 = vpop.permute.xlu0 %5178
    %v5180 = vperm.slane %v285, 7
    %v5181 = vlaneseq
    %v5182 = vshrl.u32 %v5181, 7
    %5184 = vset.pattern.permute.xlu0 %v5182
    %5185 = vperm.xlu0 %5184, %v5180
    %v5186 = vpop.permute.xlu0 %5185
    %v5187 = vlaneseq
    %v5188 = vshrl.u32 %v5187, 7
    %v5189 = vadd.s32 %v5188, 8
    %5190 = vset.pattern.permute.xlu0 %v5189
    %5191 = vperm.xlu0 %5190, %v5180
    %v5192 = vpop.permute.xlu0 %5191
    %v5193 = vperm.slane %v440, 0
    %v5194 = vlaneseq
    %v5195 = vshrl.u32 %v5194, 7
    %5197 = vset.pattern.permute.xlu0 %v5195
    %5198 = vperm.xlu0 %5197, %v5193
    %v5199 = vpop.permute.xlu0 %5198
    %v5200 = vlaneseq
    %v5201 = vshrl.u32 %v5200, 7
    %v5202 = vadd.s32 %v5201, 8
    %5203 = vset.pattern.permute.xlu0 %v5202
    %5204 = vperm.xlu0 %5203, %v5193
    %v5205 = vpop.permute.xlu0 %5204
    %v5206 = vperm.slane %v440, 1
    %v5207 = vlaneseq
    %v5208 = vshrl.u32 %v5207, 7
    %5210 = vset.pattern.permute.xlu0 %v5208
    %5211 = vperm.xlu0 %5210, %v5206
    %v5212 = vpop.permute.xlu0 %5211
    %v5213 = vlaneseq
    %v5214 = vshrl.u32 %v5213, 7
    %v5215 = vadd.s32 %v5214, 8
    %5216 = vset.pattern.permute.xlu0 %v5215
    %5217 = vperm.xlu0 %5216, %v5206
    %v5218 = vpop.permute.xlu0 %5217
    %v5219 = vperm.slane %v440, 2
    %v5220 = vlaneseq
    %v5221 = vshrl.u32 %v5220, 7
    %5223 = vset.pattern.permute.xlu0 %v5221
    %5224 = vperm.xlu0 %5223, %v5219
    %v5225 = vpop.permute.xlu0 %5224
    %v5226 = vlaneseq
    %v5227 = vshrl.u32 %v5226, 7
    %v5228 = vadd.s32 %v5227, 8
    %5229 = vset.pattern.permute.xlu0 %v5228
    %5230 = vperm.xlu0 %5229, %v5219
    %v5231 = vpop.permute.xlu0 %5230
    %v5232 = vperm.slane %v440, 3
    %v5233 = vlaneseq
    %v5234 = vshrl.u32 %v5233, 7
    %5236 = vset.pattern.permute.xlu0 %v5234
    %5237 = vperm.xlu0 %5236, %v5232
    %v5238 = vpop.permute.xlu0 %5237
    %v5239 = vlaneseq
    %v5240 = vshrl.u32 %v5239, 7
    %v5241 = vadd.s32 %v5240, 8
    %5242 = vset.pattern.permute.xlu0 %v5241
    %5243 = vperm.xlu0 %5242, %v5232
    %v5244 = vpop.permute.xlu0 %5243
    %v5245 = vperm.slane %v440, 4
    %v5246 = vlaneseq
    %v5247 = vshrl.u32 %v5246, 7
    %5249 = vset.pattern.permute.xlu0 %v5247
    %5250 = vperm.xlu0 %5249, %v5245
    %v5251 = vpop.permute.xlu0 %5250
    %v5252 = vlaneseq
    %v5253 = vshrl.u32 %v5252, 7
    %v5254 = vadd.s32 %v5253, 8
    %5255 = vset.pattern.permute.xlu0 %v5254
    %5256 = vperm.xlu0 %5255, %v5245
    %v5257 = vpop.permute.xlu0 %5256
    %v5258 = vperm.slane %v440, 5
    %v5259 = vlaneseq
    %v5260 = vshrl.u32 %v5259, 7
    %5262 = vset.pattern.permute.xlu0 %v5260
    %5263 = vperm.xlu0 %5262, %v5258
    %v5264 = vpop.permute.xlu0 %5263
    %v5265 = vlaneseq
    %v5266 = vshrl.u32 %v5265, 7
    %v5267 = vadd.s32 %v5266, 8
    %5268 = vset.pattern.permute.xlu0 %v5267
    %5269 = vperm.xlu0 %5268, %v5258
    %v5270 = vpop.permute.xlu0 %5269
    %v5271 = vperm.slane %v440, 6
    %v5272 = vlaneseq
    %v5273 = vshrl.u32 %v5272, 7
    %5275 = vset.pattern.permute.xlu0 %v5273
    %5276 = vperm.xlu0 %5275, %v5271
    %v5277 = vpop.permute.xlu0 %5276
    %v5278 = vlaneseq
    %v5279 = vshrl.u32 %v5278, 7
    %v5280 = vadd.s32 %v5279, 8
    %5281 = vset.pattern.permute.xlu0 %v5280
    %5282 = vperm.xlu0 %5281, %v5271
    %v5283 = vpop.permute.xlu0 %5282
    %v5284 = vperm.slane %v440, 7
    %v5285 = vlaneseq
    %v5286 = vshrl.u32 %v5285, 7
    %5288 = vset.pattern.permute.xlu0 %v5286
    %5289 = vperm.xlu0 %5288, %v5284
    %v5290 = vpop.permute.xlu0 %5289
    %v5291 = vlaneseq
    %v5292 = vshrl.u32 %v5291, 7
    %v5293 = vadd.s32 %v5292, 8
    %5294 = vset.pattern.permute.xlu0 %v5293
    %5295 = vperm.xlu0 %5294, %v5284
    %v5296 = vpop.permute.xlu0 %5295
    %v5297 = vperm.slane %v597, 0
    %v5298 = vlaneseq
    %v5299 = vshrl.u32 %v5298, 7
    %5301 = vset.pattern.permute.xlu0 %v5299
    %5302 = vperm.xlu0 %5301, %v5297
    %v5303 = vpop.permute.xlu0 %5302
    %v5304 = vlaneseq
    %v5305 = vshrl.u32 %v5304, 7
    %v5306 = vadd.s32 %v5305, 8
    %5307 = vset.pattern.permute.xlu0 %v5306
    %5308 = vperm.xlu0 %5307, %v5297
    %v5309 = vpop.permute.xlu0 %5308
    %v5310 = vperm.slane %v597, 1
    %v5311 = vlaneseq
    %v5312 = vshrl.u32 %v5311, 7
    %5314 = vset.pattern.permute.xlu0 %v5312
    %5315 = vperm.xlu0 %5314, %v5310
    %v5316 = vpop.permute.xlu0 %5315
    %v5317 = vlaneseq
    %v5318 = vshrl.u32 %v5317, 7
    %v5319 = vadd.s32 %v5318, 8
    %5320 = vset.pattern.permute.xlu0 %v5319
    %5321 = vperm.xlu0 %5320, %v5310
    %v5322 = vpop.permute.xlu0 %5321
    %v5323 = vperm.slane %v597, 2
    %v5324 = vlaneseq
    %v5325 = vshrl.u32 %v5324, 7
    %5327 = vset.pattern.permute.xlu0 %v5325
    %5328 = vperm.xlu0 %5327, %v5323
    %v5329 = vpop.permute.xlu0 %5328
    %v5330 = vlaneseq
    %v5331 = vshrl.u32 %v5330, 7
    %v5332 = vadd.s32 %v5331, 8
    %5333 = vset.pattern.permute.xlu0 %v5332
    %5334 = vperm.xlu0 %5333, %v5323
    %v5335 = vpop.permute.xlu0 %5334
    %v5336 = vperm.slane %v597, 3
    %v5337 = vlaneseq
    %v5338 = vshrl.u32 %v5337, 7
    %5340 = vset.pattern.permute.xlu0 %v5338
    %5341 = vperm.xlu0 %5340, %v5336
    %v5342 = vpop.permute.xlu0 %5341
    %v5343 = vlaneseq
    %v5344 = vshrl.u32 %v5343, 7
    %v5345 = vadd.s32 %v5344, 8
    %5346 = vset.pattern.permute.xlu0 %v5345
    %5347 = vperm.xlu0 %5346, %v5336
    %v5348 = vpop.permute.xlu0 %5347
    %v5349 = vperm.slane %v597, 4
    %v5350 = vlaneseq
    %v5351 = vshrl.u32 %v5350, 7
    %5353 = vset.pattern.permute.xlu0 %v5351
    %5354 = vperm.xlu0 %5353, %v5349
    %v5355 = vpop.permute.xlu0 %5354
    %v5356 = vlaneseq
    %v5357 = vshrl.u32 %v5356, 7
    %v5358 = vadd.s32 %v5357, 8
    %5359 = vset.pattern.permute.xlu0 %v5358
    %5360 = vperm.xlu0 %5359, %v5349
    %v5361 = vpop.permute.xlu0 %5360
    %v5362 = vperm.slane %v597, 5
    %v5363 = vlaneseq
    %v5364 = vshrl.u32 %v5363, 7
    %5366 = vset.pattern.permute.xlu0 %v5364
    %5367 = vperm.xlu0 %5366, %v5362
    %v5368 = vpop.permute.xlu0 %5367
    %v5369 = vlaneseq
    %v5370 = vshrl.u32 %v5369, 7
    %v5371 = vadd.s32 %v5370, 8
    %5372 = vset.pattern.permute.xlu0 %v5371
    %5373 = vperm.xlu0 %5372, %v5362
    %v5374 = vpop.permute.xlu0 %5373
    %v5375 = vperm.slane %v597, 6
    %v5376 = vlaneseq
    %v5377 = vshrl.u32 %v5376, 7
    %5379 = vset.pattern.permute.xlu0 %v5377
    %5380 = vperm.xlu0 %5379, %v5375
    %v5381 = vpop.permute.xlu0 %5380
    %v5382 = vlaneseq
    %v5383 = vshrl.u32 %v5382, 7
    %v5384 = vadd.s32 %v5383, 8
    %5385 = vset.pattern.permute.xlu0 %v5384
    %5386 = vperm.xlu0 %5385, %v5375
    %v5387 = vpop.permute.xlu0 %5386
    %v5388 = vperm.slane %v597, 7
    %v5389 = vlaneseq
    %v5390 = vshrl.u32 %v5389, 7
    %5392 = vset.pattern.permute.xlu0 %v5390
    %5393 = vperm.xlu0 %5392, %v5388
    %v5394 = vpop.permute.xlu0 %5393
    %v5395 = vlaneseq
    %v5396 = vshrl.u32 %v5395, 7
    %v5397 = vadd.s32 %v5396, 8
    %5398 = vset.pattern.permute.xlu0 %v5397
    %5399 = vperm.xlu0 %5398, %v5388
    %v5400 = vpop.permute.xlu0 %5399
    %v5401 = vperm.slane %v752, 0
    %v5402 = vlaneseq
    %v5403 = vshrl.u32 %v5402, 7
    %5405 = vset.pattern.permute.xlu0 %v5403
    %5406 = vperm.xlu0 %5405, %v5401
    %v5407 = vpop.permute.xlu0 %5406
    %v5408 = vlaneseq
    %v5409 = vshrl.u32 %v5408, 7
    %v5410 = vadd.s32 %v5409, 8
    %5411 = vset.pattern.permute.xlu0 %v5410
    %5412 = vperm.xlu0 %5411, %v5401
    %v5413 = vpop.permute.xlu0 %5412
    %v5414 = vperm.slane %v752, 1
    %v5415 = vlaneseq
    %v5416 = vshrl.u32 %v5415, 7
    %5418 = vset.pattern.permute.xlu0 %v5416
    %5419 = vperm.xlu0 %5418, %v5414
    %v5420 = vpop.permute.xlu0 %5419
    %v5421 = vlaneseq
    %v5422 = vshrl.u32 %v5421, 7
    %v5423 = vadd.s32 %v5422, 8
    %5424 = vset.pattern.permute.xlu0 %v5423
    %5425 = vperm.xlu0 %5424, %v5414
    %v5426 = vpop.permute.xlu0 %5425
    %v5427 = vperm.slane %v752, 2
    %v5428 = vlaneseq
    %v5429 = vshrl.u32 %v5428, 7
    %5431 = vset.pattern.permute.xlu0 %v5429
    %5432 = vperm.xlu0 %5431, %v5427
    %v5433 = vpop.permute.xlu0 %5432
    %v5434 = vlaneseq
    %v5435 = vshrl.u32 %v5434, 7
    %v5436 = vadd.s32 %v5435, 8
    %5437 = vset.pattern.permute.xlu0 %v5436
    %5438 = vperm.xlu0 %5437, %v5427
    %v5439 = vpop.permute.xlu0 %5438
    %v5440 = vperm.slane %v752, 3
    %v5441 = vlaneseq
    %v5442 = vshrl.u32 %v5441, 7
    %5444 = vset.pattern.permute.xlu0 %v5442
    %5445 = vperm.xlu0 %5444, %v5440
    %v5446 = vpop.permute.xlu0 %5445
    %v5447 = vlaneseq
    %v5448 = vshrl.u32 %v5447, 7
    %v5449 = vadd.s32 %v5448, 8
    %5450 = vset.pattern.permute.xlu0 %v5449
    %5451 = vperm.xlu0 %5450, %v5440
    %v5452 = vpop.permute.xlu0 %5451
    %v5453 = vperm.slane %v752, 4
    %v5454 = vlaneseq
    %v5455 = vshrl.u32 %v5454, 7
    %5457 = vset.pattern.permute.xlu0 %v5455
    %5458 = vperm.xlu0 %5457, %v5453
    %v5459 = vpop.permute.xlu0 %5458
    %v5460 = vlaneseq
    %v5461 = vshrl.u32 %v5460, 7
    %v5462 = vadd.s32 %v5461, 8
    %5463 = vset.pattern.permute.xlu0 %v5462
    %5464 = vperm.xlu0 %5463, %v5453
    %v5465 = vpop.permute.xlu0 %5464
    %v5466 = vperm.slane %v752, 5
    %v5467 = vlaneseq
    %v5468 = vshrl.u32 %v5467, 7
    %5470 = vset.pattern.permute.xlu0 %v5468
    %5471 = vperm.xlu0 %5470, %v5466
    %v5472 = vpop.permute.xlu0 %5471
    %v5473 = vlaneseq
    %v5474 = vshrl.u32 %v5473, 7
    %v5475 = vadd.s32 %v5474, 8
    %5476 = vset.pattern.permute.xlu0 %v5475
    %5477 = vperm.xlu0 %5476, %v5466
    %v5478 = vpop.permute.xlu0 %5477
    %v5479 = vperm.slane %v752, 6
    %v5480 = vlaneseq
    %v5481 = vshrl.u32 %v5480, 7
    %5483 = vset.pattern.permute.xlu0 %v5481
    %5484 = vperm.xlu0 %5483, %v5479
    %v5485 = vpop.permute.xlu0 %5484
    %v5486 = vlaneseq
    %v5487 = vshrl.u32 %v5486, 7
    %v5488 = vadd.s32 %v5487, 8
    %5489 = vset.pattern.permute.xlu0 %v5488
    %5490 = vperm.xlu0 %5489, %v5479
    %v5491 = vpop.permute.xlu0 %5490
    %v5492 = vperm.slane %v752, 7
    %v5493 = vlaneseq
    %v5494 = vshrl.u32 %v5493, 7
    %5496 = vset.pattern.permute.xlu0 %v5494
    %5497 = vperm.xlu0 %5496, %v5492
    %v5498 = vpop.permute.xlu0 %5497
    %v5499 = vlaneseq
    %v5500 = vshrl.u32 %v5499, 7
    %v5501 = vadd.s32 %v5500, 8
    %5502 = vset.pattern.permute.xlu0 %v5501
    %5503 = vperm.xlu0 %5502, %v5492
    %v5504 = vpop.permute.xlu0 %5503
    %v5505 = vperm.slane %v909, 0
    %v5506 = vlaneseq
    %v5507 = vshrl.u32 %v5506, 7
    %5509 = vset.pattern.permute.xlu0 %v5507
    %5510 = vperm.xlu0 %5509, %v5505
    %v5511 = vpop.permute.xlu0 %5510
    %v5512 = vlaneseq
    %v5513 = vshrl.u32 %v5512, 7
    %v5514 = vadd.s32 %v5513, 8
    %5515 = vset.pattern.permute.xlu0 %v5514
    %5516 = vperm.xlu0 %5515, %v5505
    %v5517 = vpop.permute.xlu0 %5516
    %v5518 = vperm.slane %v909, 1
    %v5519 = vlaneseq
    %v5520 = vshrl.u32 %v5519, 7
    %5522 = vset.pattern.permute.xlu0 %v5520
    %5523 = vperm.xlu0 %5522, %v5518
    %v5524 = vpop.permute.xlu0 %5523
    %v5525 = vlaneseq
    %v5526 = vshrl.u32 %v5525, 7
    %v5527 = vadd.s32 %v5526, 8
    %5528 = vset.pattern.permute.xlu0 %v5527
    %5529 = vperm.xlu0 %5528, %v5518
    %v5530 = vpop.permute.xlu0 %5529
    %v5531 = vperm.slane %v909, 2
    %v5532 = vlaneseq
    %v5533 = vshrl.u32 %v5532, 7
    %5535 = vset.pattern.permute.xlu0 %v5533
    %5536 = vperm.xlu0 %5535, %v5531
    %v5537 = vpop.permute.xlu0 %5536
    %v5538 = vlaneseq
    %v5539 = vshrl.u32 %v5538, 7
    %v5540 = vadd.s32 %v5539, 8
    %5541 = vset.pattern.permute.xlu0 %v5540
    %5542 = vperm.xlu0 %5541, %v5531
    %v5543 = vpop.permute.xlu0 %5542
    %v5544 = vperm.slane %v909, 3
    %v5545 = vlaneseq
    %v5546 = vshrl.u32 %v5545, 7
    %5548 = vset.pattern.permute.xlu0 %v5546
    %5549 = vperm.xlu0 %5548, %v5544
    %v5550 = vpop.permute.xlu0 %5549
    %v5551 = vlaneseq
    %v5552 = vshrl.u32 %v5551, 7
    %v5553 = vadd.s32 %v5552, 8
    %5554 = vset.pattern.permute.xlu0 %v5553
    %5555 = vperm.xlu0 %5554, %v5544
    %v5556 = vpop.permute.xlu0 %5555
    %v5557 = vperm.slane %v909, 4
    %v5558 = vlaneseq
    %v5559 = vshrl.u32 %v5558, 7
    %5561 = vset.pattern.permute.xlu0 %v5559
    %5562 = vperm.xlu0 %5561, %v5557
    %v5563 = vpop.permute.xlu0 %5562
    %v5564 = vlaneseq
    %v5565 = vshrl.u32 %v5564, 7
    %v5566 = vadd.s32 %v5565, 8
    %5567 = vset.pattern.permute.xlu0 %v5566
    %5568 = vperm.xlu0 %5567, %v5557
    %v5569 = vpop.permute.xlu0 %5568
    %v5570 = vperm.slane %v909, 5
    %v5571 = vlaneseq
    %v5572 = vshrl.u32 %v5571, 7
    %5574 = vset.pattern.permute.xlu0 %v5572
    %5575 = vperm.xlu0 %5574, %v5570
    %v5576 = vpop.permute.xlu0 %5575
    %v5577 = vlaneseq
    %v5578 = vshrl.u32 %v5577, 7
    %v5579 = vadd.s32 %v5578, 8
    %5580 = vset.pattern.permute.xlu0 %v5579
    %5581 = vperm.xlu0 %5580, %v5570
    %v5582 = vpop.permute.xlu0 %5581
    %v5583 = vperm.slane %v909, 6
    %v5584 = vlaneseq
    %v5585 = vshrl.u32 %v5584, 7
    %5587 = vset.pattern.permute.xlu0 %v5585
    %5588 = vperm.xlu0 %5587, %v5583
    %v5589 = vpop.permute.xlu0 %5588
    %v5590 = vlaneseq
    %v5591 = vshrl.u32 %v5590, 7
    %v5592 = vadd.s32 %v5591, 8
    %5593 = vset.pattern.permute.xlu0 %v5592
    %5594 = vperm.xlu0 %5593, %v5583
    %v5595 = vpop.permute.xlu0 %5594
    %v5596 = vperm.slane %v909, 7
    %v5597 = vlaneseq
    %v5598 = vshrl.u32 %v5597, 7
    %5600 = vset.pattern.permute.xlu0 %v5598
    %5601 = vperm.xlu0 %5600, %v5596
    %v5602 = vpop.permute.xlu0 %5601
    %v5603 = vlaneseq
    %v5604 = vshrl.u32 %v5603, 7
    %v5605 = vadd.s32 %v5604, 8
    %5606 = vset.pattern.permute.xlu0 %v5605
    %5607 = vperm.xlu0 %5606, %v5596
    %v5608 = vpop.permute.xlu0 %5607
    %v5609 = vperm.slane %v1064, 0
    %v5610 = vlaneseq
    %v5611 = vshrl.u32 %v5610, 7
    %5613 = vset.pattern.permute.xlu0 %v5611
    %5614 = vperm.xlu0 %5613, %v5609
    %v5615 = vpop.permute.xlu0 %5614
    %v5616 = vlaneseq
    %v5617 = vshrl.u32 %v5616, 7
    %v5618 = vadd.s32 %v5617, 8
    %5619 = vset.pattern.permute.xlu0 %v5618
    %5620 = vperm.xlu0 %5619, %v5609
    %v5621 = vpop.permute.xlu0 %5620
    %v5622 = vperm.slane %v1064, 1
    %v5623 = vlaneseq
    %v5624 = vshrl.u32 %v5623, 7
    %5626 = vset.pattern.permute.xlu0 %v5624
    %5627 = vperm.xlu0 %5626, %v5622
    %v5628 = vpop.permute.xlu0 %5627
    %v5629 = vlaneseq
    %v5630 = vshrl.u32 %v5629, 7
    %v5631 = vadd.s32 %v5630, 8
    %5632 = vset.pattern.permute.xlu0 %v5631
    %5633 = vperm.xlu0 %5632, %v5622
    %v5634 = vpop.permute.xlu0 %5633
    %v5635 = vperm.slane %v1064, 2
    %v5636 = vlaneseq
    %v5637 = vshrl.u32 %v5636, 7
    %5639 = vset.pattern.permute.xlu0 %v5637
    %5640 = vperm.xlu0 %5639, %v5635
    %v5641 = vpop.permute.xlu0 %5640
    %v5642 = vlaneseq
    %v5643 = vshrl.u32 %v5642, 7
    %v5644 = vadd.s32 %v5643, 8
    %5645 = vset.pattern.permute.xlu0 %v5644
    %5646 = vperm.xlu0 %5645, %v5635
    %v5647 = vpop.permute.xlu0 %5646
    %v5648 = vperm.slane %v1064, 3
    %v5649 = vlaneseq
    %v5650 = vshrl.u32 %v5649, 7
    %5652 = vset.pattern.permute.xlu0 %v5650
    %5653 = vperm.xlu0 %5652, %v5648
    %v5654 = vpop.permute.xlu0 %5653
    %v5655 = vlaneseq
    %v5656 = vshrl.u32 %v5655, 7
    %v5657 = vadd.s32 %v5656, 8
    %5658 = vset.pattern.permute.xlu0 %v5657
    %5659 = vperm.xlu0 %5658, %v5648
    %v5660 = vpop.permute.xlu0 %5659
    %v5661 = vperm.slane %v1064, 4
    %v5662 = vlaneseq
    %v5663 = vshrl.u32 %v5662, 7
    %5665 = vset.pattern.permute.xlu0 %v5663
    %5666 = vperm.xlu0 %5665, %v5661
    %v5667 = vpop.permute.xlu0 %5666
    %v5668 = vlaneseq
    %v5669 = vshrl.u32 %v5668, 7
    %v5670 = vadd.s32 %v5669, 8
    %5671 = vset.pattern.permute.xlu0 %v5670
    %5672 = vperm.xlu0 %5671, %v5661
    %v5673 = vpop.permute.xlu0 %5672
    %v5674 = vperm.slane %v1064, 5
    %v5675 = vlaneseq
    %v5676 = vshrl.u32 %v5675, 7
    %5678 = vset.pattern.permute.xlu0 %v5676
    %5679 = vperm.xlu0 %5678, %v5674
    %v5680 = vpop.permute.xlu0 %5679
    %v5681 = vlaneseq
    %v5682 = vshrl.u32 %v5681, 7
    %v5683 = vadd.s32 %v5682, 8
    %5684 = vset.pattern.permute.xlu0 %v5683
    %5685 = vperm.xlu0 %5684, %v5674
    %v5686 = vpop.permute.xlu0 %5685
    %v5687 = vperm.slane %v1064, 6
    %v5688 = vlaneseq
    %v5689 = vshrl.u32 %v5688, 7
    %5691 = vset.pattern.permute.xlu0 %v5689
    %5692 = vperm.xlu0 %5691, %v5687
    %v5693 = vpop.permute.xlu0 %5692
    %v5694 = vlaneseq
    %v5695 = vshrl.u32 %v5694, 7
    %v5696 = vadd.s32 %v5695, 8
    %5697 = vset.pattern.permute.xlu0 %v5696
    %5698 = vperm.xlu0 %5697, %v5687
    %v5699 = vpop.permute.xlu0 %5698
    %v5700 = vperm.slane %v1064, 7
    %v5701 = vlaneseq
    %v5702 = vshrl.u32 %v5701, 7
    %5704 = vset.pattern.permute.xlu0 %v5702
    %5705 = vperm.xlu0 %5704, %v5700
    %v5706 = vpop.permute.xlu0 %5705
    %v5707 = vlaneseq
    %v5708 = vshrl.u32 %v5707, 7
    %v5709 = vadd.s32 %v5708, 8
    %5710 = vset.pattern.permute.xlu0 %v5709
    %5711 = vperm.xlu0 %5710, %v5700
    %v5712 = vpop.permute.xlu0 %5711
    %v5713 = vperm.slane %v1221, 0
    %v5714 = vlaneseq
    %v5715 = vshrl.u32 %v5714, 7
    %5717 = vset.pattern.permute.xlu0 %v5715
    %5718 = vperm.xlu0 %5717, %v5713
    %v5719 = vpop.permute.xlu0 %5718
    %v5720 = vlaneseq
    %v5721 = vshrl.u32 %v5720, 7
    %v5722 = vadd.s32 %v5721, 8
    %5723 = vset.pattern.permute.xlu0 %v5722
    %5724 = vperm.xlu0 %5723, %v5713
    %v5725 = vpop.permute.xlu0 %5724
    %v5726 = vperm.slane %v1221, 1
    %v5727 = vlaneseq
    %v5728 = vshrl.u32 %v5727, 7
    %5730 = vset.pattern.permute.xlu0 %v5728
    %5731 = vperm.xlu0 %5730, %v5726
    %v5732 = vpop.permute.xlu0 %5731
    %v5733 = vlaneseq
    %v5734 = vshrl.u32 %v5733, 7
    %v5735 = vadd.s32 %v5734, 8
    %5736 = vset.pattern.permute.xlu0 %v5735
    %5737 = vperm.xlu0 %5736, %v5726
    %v5738 = vpop.permute.xlu0 %5737
    %v5739 = vperm.slane %v1221, 2
    %v5740 = vlaneseq
    %v5741 = vshrl.u32 %v5740, 7
    %5743 = vset.pattern.permute.xlu0 %v5741
    %5744 = vperm.xlu0 %5743, %v5739
    %v5745 = vpop.permute.xlu0 %5744
    %v5746 = vlaneseq
    %v5747 = vshrl.u32 %v5746, 7
    %v5748 = vadd.s32 %v5747, 8
    %5749 = vset.pattern.permute.xlu0 %v5748
    %5750 = vperm.xlu0 %5749, %v5739
    %v5751 = vpop.permute.xlu0 %5750
    %v5752 = vperm.slane %v1221, 3
    %v5753 = vlaneseq
    %v5754 = vshrl.u32 %v5753, 7
    %5756 = vset.pattern.permute.xlu0 %v5754
    %5757 = vperm.xlu0 %5756, %v5752
    %v5758 = vpop.permute.xlu0 %5757
    %v5759 = vlaneseq
    %v5760 = vshrl.u32 %v5759, 7
    %v5761 = vadd.s32 %v5760, 8
    %5762 = vset.pattern.permute.xlu0 %v5761
    %5763 = vperm.xlu0 %5762, %v5752
    %v5764 = vpop.permute.xlu0 %5763
    %v5765 = vperm.slane %v1221, 4
    %v5766 = vlaneseq
    %v5767 = vshrl.u32 %v5766, 7
    %5769 = vset.pattern.permute.xlu0 %v5767
    %5770 = vperm.xlu0 %5769, %v5765
    %v5771 = vpop.permute.xlu0 %5770
    %v5772 = vlaneseq
    %v5773 = vshrl.u32 %v5772, 7
    %v5774 = vadd.s32 %v5773, 8
    %5775 = vset.pattern.permute.xlu0 %v5774
    %5776 = vperm.xlu0 %5775, %v5765
    %v5777 = vpop.permute.xlu0 %5776
    %v5778 = vperm.slane %v1221, 5
    %v5779 = vlaneseq
    %v5780 = vshrl.u32 %v5779, 7
    %5782 = vset.pattern.permute.xlu0 %v5780
    %5783 = vperm.xlu0 %5782, %v5778
    %v5784 = vpop.permute.xlu0 %5783
    %v5785 = vlaneseq
    %v5786 = vshrl.u32 %v5785, 7
    %v5787 = vadd.s32 %v5786, 8
    %5788 = vset.pattern.permute.xlu0 %v5787
    %5789 = vperm.xlu0 %5788, %v5778
    %v5790 = vpop.permute.xlu0 %5789
    %v5791 = vperm.slane %v1221, 6
    %v5792 = vlaneseq
    %v5793 = vshrl.u32 %v5792, 7
    %5795 = vset.pattern.permute.xlu0 %v5793
    %5796 = vperm.xlu0 %5795, %v5791
    %v5797 = vpop.permute.xlu0 %5796
    %v5798 = vlaneseq
    %v5799 = vshrl.u32 %v5798, 7
    %v5800 = vadd.s32 %v5799, 8
    %5801 = vset.pattern.permute.xlu0 %v5800
    %5802 = vperm.xlu0 %5801, %v5791
    %v5803 = vpop.permute.xlu0 %5802
    %v5804 = vperm.slane %v1221, 7
    %v5805 = vlaneseq
    %v5806 = vshrl.u32 %v5805, 7
    %5808 = vset.pattern.permute.xlu0 %v5806
    %5809 = vperm.xlu0 %5808, %v5804
    %v5810 = vpop.permute.xlu0 %5809
    %v5811 = vlaneseq
    %v5812 = vshrl.u32 %v5811, 7
    %v5813 = vadd.s32 %v5812, 8
    %5814 = vset.pattern.permute.xlu0 %v5813
    %5815 = vperm.xlu0 %5814, %v5804
    %v5816 = vpop.permute.xlu0 %5815
    %v5817 = vperm.slane %v1376, 0
    %v5818 = vlaneseq
    %v5819 = vshrl.u32 %v5818, 7
    %5821 = vset.pattern.permute.xlu0 %v5819
    %5822 = vperm.xlu0 %5821, %v5817
    %v5823 = vpop.permute.xlu0 %5822
    %v5824 = vlaneseq
    %v5825 = vshrl.u32 %v5824, 7
    %v5826 = vadd.s32 %v5825, 8
    %5827 = vset.pattern.permute.xlu0 %v5826
    %5828 = vperm.xlu0 %5827, %v5817
    %v5829 = vpop.permute.xlu0 %5828
    %v5830 = vperm.slane %v1376, 1
    %v5831 = vlaneseq
    %v5832 = vshrl.u32 %v5831, 7
    %5834 = vset.pattern.permute.xlu0 %v5832
    %5835 = vperm.xlu0 %5834, %v5830
    %v5836 = vpop.permute.xlu0 %5835
    %v5837 = vlaneseq
    %v5838 = vshrl.u32 %v5837, 7
    %v5839 = vadd.s32 %v5838, 8
    %5840 = vset.pattern.permute.xlu0 %v5839
    %5841 = vperm.xlu0 %5840, %v5830
    %v5842 = vpop.permute.xlu0 %5841
    %v5843 = vperm.slane %v1376, 2
    %v5844 = vlaneseq
    %v5845 = vshrl.u32 %v5844, 7
    %5847 = vset.pattern.permute.xlu0 %v5845
    %5848 = vperm.xlu0 %5847, %v5843
    %v5849 = vpop.permute.xlu0 %5848
    %v5850 = vlaneseq
    %v5851 = vshrl.u32 %v5850, 7
    %v5852 = vadd.s32 %v5851, 8
    %5853 = vset.pattern.permute.xlu0 %v5852
    %5854 = vperm.xlu0 %5853, %v5843
    %v5855 = vpop.permute.xlu0 %5854
    %v5856 = vperm.slane %v1376, 3
    %v5857 = vlaneseq
    %v5858 = vshrl.u32 %v5857, 7
    %5860 = vset.pattern.permute.xlu0 %v5858
    %5861 = vperm.xlu0 %5860, %v5856
    %v5862 = vpop.permute.xlu0 %5861
    %v5863 = vlaneseq
    %v5864 = vshrl.u32 %v5863, 7
    %v5865 = vadd.s32 %v5864, 8
    %5866 = vset.pattern.permute.xlu0 %v5865
    %5867 = vperm.xlu0 %5866, %v5856
    %v5868 = vpop.permute.xlu0 %5867
    %v5869 = vperm.slane %v1376, 4
    %v5870 = vlaneseq
    %v5871 = vshrl.u32 %v5870, 7
    %5873 = vset.pattern.permute.xlu0 %v5871
    %5874 = vperm.xlu0 %5873, %v5869
    %v5875 = vpop.permute.xlu0 %5874
    %v5876 = vlaneseq
    %v5877 = vshrl.u32 %v5876, 7
    %v5878 = vadd.s32 %v5877, 8
    %5879 = vset.pattern.permute.xlu0 %v5878
    %5880 = vperm.xlu0 %5879, %v5869
    %v5881 = vpop.permute.xlu0 %5880
    %v5882 = vperm.slane %v1376, 5
    %v5883 = vlaneseq
    %v5884 = vshrl.u32 %v5883, 7
    %5886 = vset.pattern.permute.xlu0 %v5884
    %5887 = vperm.xlu0 %5886, %v5882
    %v5888 = vpop.permute.xlu0 %5887
    %v5889 = vlaneseq
    %v5890 = vshrl.u32 %v5889, 7
    %v5891 = vadd.s32 %v5890, 8
    %5892 = vset.pattern.permute.xlu0 %v5891
    %5893 = vperm.xlu0 %5892, %v5882
    %v5894 = vpop.permute.xlu0 %5893
    %v5895 = vperm.slane %v1376, 6
    %v5896 = vlaneseq
    %v5897 = vshrl.u32 %v5896, 7
    %5899 = vset.pattern.permute.xlu0 %v5897
    %5900 = vperm.xlu0 %5899, %v5895
    %v5901 = vpop.permute.xlu0 %5900
    %v5902 = vlaneseq
    %v5903 = vshrl.u32 %v5902, 7
    %v5904 = vadd.s32 %v5903, 8
    %5905 = vset.pattern.permute.xlu0 %v5904
    %5906 = vperm.xlu0 %5905, %v5895
    %v5907 = vpop.permute.xlu0 %5906
    %v5908 = vperm.slane %v1376, 7
    %v5909 = vlaneseq
    %v5910 = vshrl.u32 %v5909, 7
    %5912 = vset.pattern.permute.xlu0 %v5910
    %5913 = vperm.xlu0 %5912, %v5908
    %v5914 = vpop.permute.xlu0 %5913
    %v5915 = vlaneseq
    %v5916 = vshrl.u32 %v5915, 7
    %v5917 = vadd.s32 %v5916, 8
    %5918 = vset.pattern.permute.xlu0 %v5917
    %5919 = vperm.xlu0 %5918, %v5908
    %v5920 = vpop.permute.xlu0 %5919
    %v5921 = vperm.slane %v1533, 0
    %v5922 = vlaneseq
    %v5923 = vshrl.u32 %v5922, 7
    %5925 = vset.pattern.permute.xlu0 %v5923
    %5926 = vperm.xlu0 %5925, %v5921
    %v5927 = vpop.permute.xlu0 %5926
    %v5928 = vlaneseq
    %v5929 = vshrl.u32 %v5928, 7
    %v5930 = vadd.s32 %v5929, 8
    %5931 = vset.pattern.permute.xlu0 %v5930
    %5932 = vperm.xlu0 %5931, %v5921
    %v5933 = vpop.permute.xlu0 %5932
    %v5934 = vperm.slane %v1533, 1
    %v5935 = vlaneseq
    %v5936 = vshrl.u32 %v5935, 7
    %5938 = vset.pattern.permute.xlu0 %v5936
    %5939 = vperm.xlu0 %5938, %v5934
    %v5940 = vpop.permute.xlu0 %5939
    %v5941 = vlaneseq
    %v5942 = vshrl.u32 %v5941, 7
    %v5943 = vadd.s32 %v5942, 8
    %5944 = vset.pattern.permute.xlu0 %v5943
    %5945 = vperm.xlu0 %5944, %v5934
    %v5946 = vpop.permute.xlu0 %5945
    %v5947 = vperm.slane %v1533, 2
    %v5948 = vlaneseq
    %v5949 = vshrl.u32 %v5948, 7
    %5951 = vset.pattern.permute.xlu0 %v5949
    %5952 = vperm.xlu0 %5951, %v5947
    %v5953 = vpop.permute.xlu0 %5952
    %v5954 = vlaneseq
    %v5955 = vshrl.u32 %v5954, 7
    %v5956 = vadd.s32 %v5955, 8
    %5957 = vset.pattern.permute.xlu0 %v5956
    %5958 = vperm.xlu0 %5957, %v5947
    %v5959 = vpop.permute.xlu0 %5958
    %v5960 = vperm.slane %v1533, 3
    %v5961 = vlaneseq
    %v5962 = vshrl.u32 %v5961, 7
    %5964 = vset.pattern.permute.xlu0 %v5962
    %5965 = vperm.xlu0 %5964, %v5960
    %v5966 = vpop.permute.xlu0 %5965
    %v5967 = vlaneseq
    %v5968 = vshrl.u32 %v5967, 7
    %v5969 = vadd.s32 %v5968, 8
    %5970 = vset.pattern.permute.xlu0 %v5969
    %5971 = vperm.xlu0 %5970, %v5960
    %v5972 = vpop.permute.xlu0 %5971
    %v5973 = vperm.slane %v1533, 4
    %v5974 = vlaneseq
    %v5975 = vshrl.u32 %v5974, 7
    %5977 = vset.pattern.permute.xlu0 %v5975
    %5978 = vperm.xlu0 %5977, %v5973
    %v5979 = vpop.permute.xlu0 %5978
    %v5980 = vlaneseq
    %v5981 = vshrl.u32 %v5980, 7
    %v5982 = vadd.s32 %v5981, 8
    %5983 = vset.pattern.permute.xlu0 %v5982
    %5984 = vperm.xlu0 %5983, %v5973
    %v5985 = vpop.permute.xlu0 %5984
    %v5986 = vperm.slane %v1533, 5
    %v5987 = vlaneseq
    %v5988 = vshrl.u32 %v5987, 7
    %5990 = vset.pattern.permute.xlu0 %v5988
    %5991 = vperm.xlu0 %5990, %v5986
    %v5992 = vpop.permute.xlu0 %5991
    %v5993 = vlaneseq
    %v5994 = vshrl.u32 %v5993, 7
    %v5995 = vadd.s32 %v5994, 8
    %5996 = vset.pattern.permute.xlu0 %v5995
    %5997 = vperm.xlu0 %5996, %v5986
    %v5998 = vpop.permute.xlu0 %5997
    %v5999 = vperm.slane %v1533, 6
    %v6000 = vlaneseq
    %v6001 = vshrl.u32 %v6000, 7
    %6003 = vset.pattern.permute.xlu0 %v6001
    %6004 = vperm.xlu0 %6003, %v5999
    %v6005 = vpop.permute.xlu0 %6004
    %v6006 = vlaneseq
    %v6007 = vshrl.u32 %v6006, 7
    %v6008 = vadd.s32 %v6007, 8
    %6009 = vset.pattern.permute.xlu0 %v6008
    %6010 = vperm.xlu0 %6009, %v5999
    %v6011 = vpop.permute.xlu0 %6010
    %v6012 = vperm.slane %v1533, 7
    %v6013 = vlaneseq
    %v6014 = vshrl.u32 %v6013, 7
    %6016 = vset.pattern.permute.xlu0 %v6014
    %6017 = vperm.xlu0 %6016, %v6012
    %v6018 = vpop.permute.xlu0 %6017
    %v6019 = vlaneseq
    %v6020 = vshrl.u32 %v6019, 7
    %v6021 = vadd.s32 %v6020, 8
    %6022 = vset.pattern.permute.xlu0 %v6021
    %6023 = vperm.xlu0 %6022, %v6012
    %v6024 = vpop.permute.xlu0 %6023
    %v6025 = vperm.slane %v1688, 0
    %v6026 = vlaneseq
    %v6027 = vshrl.u32 %v6026, 7
    %6029 = vset.pattern.permute.xlu0 %v6027
    %6030 = vperm.xlu0 %6029, %v6025
    %v6031 = vpop.permute.xlu0 %6030
    %v6032 = vlaneseq
    %v6033 = vshrl.u32 %v6032, 7
    %v6034 = vadd.s32 %v6033, 8
    %6035 = vset.pattern.permute.xlu0 %v6034
    %6036 = vperm.xlu0 %6035, %v6025
    %v6037 = vpop.permute.xlu0 %6036
    %v6038 = vperm.slane %v1688, 1
    %v6039 = vlaneseq
    %v6040 = vshrl.u32 %v6039, 7
    %6042 = vset.pattern.permute.xlu0 %v6040
    %6043 = vperm.xlu0 %6042, %v6038
    %v6044 = vpop.permute.xlu0 %6043
    %v6045 = vlaneseq
    %v6046 = vshrl.u32 %v6045, 7
    %v6047 = vadd.s32 %v6046, 8
    %6048 = vset.pattern.permute.xlu0 %v6047
    %6049 = vperm.xlu0 %6048, %v6038
    %v6050 = vpop.permute.xlu0 %6049
    %v6051 = vperm.slane %v1688, 2
    %v6052 = vlaneseq
    %v6053 = vshrl.u32 %v6052, 7
    %6055 = vset.pattern.permute.xlu0 %v6053
    %6056 = vperm.xlu0 %6055, %v6051
    %v6057 = vpop.permute.xlu0 %6056
    %v6058 = vlaneseq
    %v6059 = vshrl.u32 %v6058, 7
    %v6060 = vadd.s32 %v6059, 8
    %6061 = vset.pattern.permute.xlu0 %v6060
    %6062 = vperm.xlu0 %6061, %v6051
    %v6063 = vpop.permute.xlu0 %6062
    %v6064 = vperm.slane %v1688, 3
    %v6065 = vlaneseq
    %v6066 = vshrl.u32 %v6065, 7
    %6068 = vset.pattern.permute.xlu0 %v6066
    %6069 = vperm.xlu0 %6068, %v6064
    %v6070 = vpop.permute.xlu0 %6069
    %v6071 = vlaneseq
    %v6072 = vshrl.u32 %v6071, 7
    %v6073 = vadd.s32 %v6072, 8
    %6074 = vset.pattern.permute.xlu0 %v6073
    %6075 = vperm.xlu0 %6074, %v6064
    %v6076 = vpop.permute.xlu0 %6075
    %v6077 = vperm.slane %v1688, 4
    %v6078 = vlaneseq
    %v6079 = vshrl.u32 %v6078, 7
    %6081 = vset.pattern.permute.xlu0 %v6079
    %6082 = vperm.xlu0 %6081, %v6077
    %v6083 = vpop.permute.xlu0 %6082
    %v6084 = vlaneseq
    %v6085 = vshrl.u32 %v6084, 7
    %v6086 = vadd.s32 %v6085, 8
    %6087 = vset.pattern.permute.xlu0 %v6086
    %6088 = vperm.xlu0 %6087, %v6077
    %v6089 = vpop.permute.xlu0 %6088
    %v6090 = vperm.slane %v1688, 5
    %v6091 = vlaneseq
    %v6092 = vshrl.u32 %v6091, 7
    %6094 = vset.pattern.permute.xlu0 %v6092
    %6095 = vperm.xlu0 %6094, %v6090
    %v6096 = vpop.permute.xlu0 %6095
    %v6097 = vlaneseq
    %v6098 = vshrl.u32 %v6097, 7
    %v6099 = vadd.s32 %v6098, 8
    %6100 = vset.pattern.permute.xlu0 %v6099
    %6101 = vperm.xlu0 %6100, %v6090
    %v6102 = vpop.permute.xlu0 %6101
    %v6103 = vperm.slane %v1688, 6
    %v6104 = vlaneseq
    %v6105 = vshrl.u32 %v6104, 7
    %6107 = vset.pattern.permute.xlu0 %v6105
    %6108 = vperm.xlu0 %6107, %v6103
    %v6109 = vpop.permute.xlu0 %6108
    %v6110 = vlaneseq
    %v6111 = vshrl.u32 %v6110, 7
    %v6112 = vadd.s32 %v6111, 8
    %6113 = vset.pattern.permute.xlu0 %v6112
    %6114 = vperm.xlu0 %6113, %v6103
    %v6115 = vpop.permute.xlu0 %6114
    %v6116 = vperm.slane %v1688, 7
    %v6117 = vlaneseq
    %v6118 = vshrl.u32 %v6117, 7
    %6120 = vset.pattern.permute.xlu0 %v6118
    %6121 = vperm.xlu0 %6120, %v6116
    %v6122 = vpop.permute.xlu0 %6121
    %v6123 = vlaneseq
    %v6124 = vshrl.u32 %v6123, 7
    %v6125 = vadd.s32 %v6124, 8
    %6126 = vset.pattern.permute.xlu0 %v6125
    %6127 = vperm.xlu0 %6126, %v6116
    %v6128 = vpop.permute.xlu0 %6127
    %v6129 = vperm.slane %v1845, 0
    %v6130 = vlaneseq
    %v6131 = vshrl.u32 %v6130, 7
    %6133 = vset.pattern.permute.xlu0 %v6131
    %6134 = vperm.xlu0 %6133, %v6129
    %v6135 = vpop.permute.xlu0 %6134
    %v6136 = vlaneseq
    %v6137 = vshrl.u32 %v6136, 7
    %v6138 = vadd.s32 %v6137, 8
    %6139 = vset.pattern.permute.xlu0 %v6138
    %6140 = vperm.xlu0 %6139, %v6129
    %v6141 = vpop.permute.xlu0 %6140
    %v6142 = vperm.slane %v1845, 1
    %v6143 = vlaneseq
    %v6144 = vshrl.u32 %v6143, 7
    %6146 = vset.pattern.permute.xlu0 %v6144
    %6147 = vperm.xlu0 %6146, %v6142
    %v6148 = vpop.permute.xlu0 %6147
    %v6149 = vlaneseq
    %v6150 = vshrl.u32 %v6149, 7
    %v6151 = vadd.s32 %v6150, 8
    %6152 = vset.pattern.permute.xlu0 %v6151
    %6153 = vperm.xlu0 %6152, %v6142
    %v6154 = vpop.permute.xlu0 %6153
    %v6155 = vperm.slane %v1845, 2
    %v6156 = vlaneseq
    %v6157 = vshrl.u32 %v6156, 7
    %6159 = vset.pattern.permute.xlu0 %v6157
    %6160 = vperm.xlu0 %6159, %v6155
    %v6161 = vpop.permute.xlu0 %6160
    %v6162 = vlaneseq
    %v6163 = vshrl.u32 %v6162, 7
    %v6164 = vadd.s32 %v6163, 8
    %6165 = vset.pattern.permute.xlu0 %v6164
    %6166 = vperm.xlu0 %6165, %v6155
    %v6167 = vpop.permute.xlu0 %6166
    %v6168 = vperm.slane %v1845, 3
    %v6169 = vlaneseq
    %v6170 = vshrl.u32 %v6169, 7
    %6172 = vset.pattern.permute.xlu0 %v6170
    %6173 = vperm.xlu0 %6172, %v6168
    %v6174 = vpop.permute.xlu0 %6173
    %v6175 = vlaneseq
    %v6176 = vshrl.u32 %v6175, 7
    %v6177 = vadd.s32 %v6176, 8
    %6178 = vset.pattern.permute.xlu0 %v6177
    %6179 = vperm.xlu0 %6178, %v6168
    %v6180 = vpop.permute.xlu0 %6179
    %v6181 = vperm.slane %v1845, 4
    %v6182 = vlaneseq
    %v6183 = vshrl.u32 %v6182, 7
    %6185 = vset.pattern.permute.xlu0 %v6183
    %6186 = vperm.xlu0 %6185, %v6181
    %v6187 = vpop.permute.xlu0 %6186
    %v6188 = vlaneseq
    %v6189 = vshrl.u32 %v6188, 7
    %v6190 = vadd.s32 %v6189, 8
    %6191 = vset.pattern.permute.xlu0 %v6190
    %6192 = vperm.xlu0 %6191, %v6181
    %v6193 = vpop.permute.xlu0 %6192
    %v6194 = vperm.slane %v1845, 5
    %v6195 = vlaneseq
    %v6196 = vshrl.u32 %v6195, 7
    %6198 = vset.pattern.permute.xlu0 %v6196
    %6199 = vperm.xlu0 %6198, %v6194
    %v6200 = vpop.permute.xlu0 %6199
    %v6201 = vlaneseq
    %v6202 = vshrl.u32 %v6201, 7
    %v6203 = vadd.s32 %v6202, 8
    %6204 = vset.pattern.permute.xlu0 %v6203
    %6205 = vperm.xlu0 %6204, %v6194
    %v6206 = vpop.permute.xlu0 %6205
    %v6207 = vperm.slane %v1845, 6
    %v6208 = vlaneseq
    %v6209 = vshrl.u32 %v6208, 7
    %6211 = vset.pattern.permute.xlu0 %v6209
    %6212 = vperm.xlu0 %6211, %v6207
    %v6213 = vpop.permute.xlu0 %6212
    %v6214 = vlaneseq
    %v6215 = vshrl.u32 %v6214, 7
    %v6216 = vadd.s32 %v6215, 8
    %6217 = vset.pattern.permute.xlu0 %v6216
    %6218 = vperm.xlu0 %6217, %v6207
    %v6219 = vpop.permute.xlu0 %6218
    %v6220 = vperm.slane %v1845, 7
    %v6221 = vlaneseq
    %v6222 = vshrl.u32 %v6221, 7
    %6224 = vset.pattern.permute.xlu0 %v6222
    %6225 = vperm.xlu0 %6224, %v6220
    %v6226 = vpop.permute.xlu0 %6225
    %v6227 = vlaneseq
    %v6228 = vshrl.u32 %v6227, 7
    %v6229 = vadd.s32 %v6228, 8
    %6230 = vset.pattern.permute.xlu0 %v6229
    %6231 = vperm.xlu0 %6230, %v6220
    %v6232 = vpop.permute.xlu0 %6231
    %v6233 = vperm.slane %v2000, 0
    %v6234 = vlaneseq
    %v6235 = vshrl.u32 %v6234, 7
    %6237 = vset.pattern.permute.xlu0 %v6235
    %6238 = vperm.xlu0 %6237, %v6233
    %v6239 = vpop.permute.xlu0 %6238
    %v6240 = vlaneseq
    %v6241 = vshrl.u32 %v6240, 7
    %v6242 = vadd.s32 %v6241, 8
    %6243 = vset.pattern.permute.xlu0 %v6242
    %6244 = vperm.xlu0 %6243, %v6233
    %v6245 = vpop.permute.xlu0 %6244
    %v6246 = vperm.slane %v2000, 1
    %v6247 = vlaneseq
    %v6248 = vshrl.u32 %v6247, 7
    %6250 = vset.pattern.permute.xlu0 %v6248
    %6251 = vperm.xlu0 %6250, %v6246
    %v6252 = vpop.permute.xlu0 %6251
    %v6253 = vlaneseq
    %v6254 = vshrl.u32 %v6253, 7
    %v6255 = vadd.s32 %v6254, 8
    %6256 = vset.pattern.permute.xlu0 %v6255
    %6257 = vperm.xlu0 %6256, %v6246
    %v6258 = vpop.permute.xlu0 %6257
    %v6259 = vperm.slane %v2000, 2
    %v6260 = vlaneseq
    %v6261 = vshrl.u32 %v6260, 7
    %6263 = vset.pattern.permute.xlu0 %v6261
    %6264 = vperm.xlu0 %6263, %v6259
    %v6265 = vpop.permute.xlu0 %6264
    %v6266 = vlaneseq
    %v6267 = vshrl.u32 %v6266, 7
    %v6268 = vadd.s32 %v6267, 8
    %6269 = vset.pattern.permute.xlu0 %v6268
    %6270 = vperm.xlu0 %6269, %v6259
    %v6271 = vpop.permute.xlu0 %6270
    %v6272 = vperm.slane %v2000, 3
    %v6273 = vlaneseq
    %v6274 = vshrl.u32 %v6273, 7
    %6276 = vset.pattern.permute.xlu0 %v6274
    %6277 = vperm.xlu0 %6276, %v6272
    %v6278 = vpop.permute.xlu0 %6277
    %v6279 = vlaneseq
    %v6280 = vshrl.u32 %v6279, 7
    %v6281 = vadd.s32 %v6280, 8
    %6282 = vset.pattern.permute.xlu0 %v6281
    %6283 = vperm.xlu0 %6282, %v6272
    %v6284 = vpop.permute.xlu0 %6283
    %v6285 = vperm.slane %v2000, 4
    %v6286 = vlaneseq
    %v6287 = vshrl.u32 %v6286, 7
    %6289 = vset.pattern.permute.xlu0 %v6287
    %6290 = vperm.xlu0 %6289, %v6285
    %v6291 = vpop.permute.xlu0 %6290
    %v6292 = vlaneseq
    %v6293 = vshrl.u32 %v6292, 7
    %v6294 = vadd.s32 %v6293, 8
    %6295 = vset.pattern.permute.xlu0 %v6294
    %6296 = vperm.xlu0 %6295, %v6285
    %v6297 = vpop.permute.xlu0 %6296
    %v6298 = vperm.slane %v2000, 5
    %v6299 = vlaneseq
    %v6300 = vshrl.u32 %v6299, 7
    %6302 = vset.pattern.permute.xlu0 %v6300
    %6303 = vperm.xlu0 %6302, %v6298
    %v6304 = vpop.permute.xlu0 %6303
    %v6305 = vlaneseq
    %v6306 = vshrl.u32 %v6305, 7
    %v6307 = vadd.s32 %v6306, 8
    %6308 = vset.pattern.permute.xlu0 %v6307
    %6309 = vperm.xlu0 %6308, %v6298
    %v6310 = vpop.permute.xlu0 %6309
    %v6311 = vperm.slane %v2000, 6
    %v6312 = vlaneseq
    %v6313 = vshrl.u32 %v6312, 7
    %6315 = vset.pattern.permute.xlu0 %v6313
    %6316 = vperm.xlu0 %6315, %v6311
    %v6317 = vpop.permute.xlu0 %6316
    %v6318 = vlaneseq
    %v6319 = vshrl.u32 %v6318, 7
    %v6320 = vadd.s32 %v6319, 8
    %6321 = vset.pattern.permute.xlu0 %v6320
    %6322 = vperm.xlu0 %6321, %v6311
    %v6323 = vpop.permute.xlu0 %6322
    %v6324 = vperm.slane %v2000, 7
    %v6325 = vlaneseq
    %v6326 = vshrl.u32 %v6325, 7
    %6328 = vset.pattern.permute.xlu0 %v6326
    %6329 = vperm.xlu0 %6328, %v6324
    %v6330 = vpop.permute.xlu0 %6329
    %v6331 = vlaneseq
    %v6332 = vshrl.u32 %v6331, 7
    %v6333 = vadd.s32 %v6332, 8
    %6334 = vset.pattern.permute.xlu0 %v6333
    %6335 = vperm.xlu0 %6334, %v6324
    %v6336 = vpop.permute.xlu0 %6335
    %v6337 = vperm.slane %v2157, 0
    %v6338 = vlaneseq
    %v6339 = vshrl.u32 %v6338, 7
    %6341 = vset.pattern.permute.xlu0 %v6339
    %6342 = vperm.xlu0 %6341, %v6337
    %v6343 = vpop.permute.xlu0 %6342
    %v6344 = vlaneseq
    %v6345 = vshrl.u32 %v6344, 7
    %v6346 = vadd.s32 %v6345, 8
    %6347 = vset.pattern.permute.xlu0 %v6346
    %6348 = vperm.xlu0 %6347, %v6337
    %v6349 = vpop.permute.xlu0 %6348
    %v6350 = vperm.slane %v2157, 1
    %v6351 = vlaneseq
    %v6352 = vshrl.u32 %v6351, 7
    %6354 = vset.pattern.permute.xlu0 %v6352
    %6355 = vperm.xlu0 %6354, %v6350
    %v6356 = vpop.permute.xlu0 %6355
    %v6357 = vlaneseq
    %v6358 = vshrl.u32 %v6357, 7
    %v6359 = vadd.s32 %v6358, 8
    %6360 = vset.pattern.permute.xlu0 %v6359
    %6361 = vperm.xlu0 %6360, %v6350
    %v6362 = vpop.permute.xlu0 %6361
    %v6363 = vperm.slane %v2157, 2
    %v6364 = vlaneseq
    %v6365 = vshrl.u32 %v6364, 7
    %6367 = vset.pattern.permute.xlu0 %v6365
    %6368 = vperm.xlu0 %6367, %v6363
    %v6369 = vpop.permute.xlu0 %6368
    %v6370 = vlaneseq
    %v6371 = vshrl.u32 %v6370, 7
    %v6372 = vadd.s32 %v6371, 8
    %6373 = vset.pattern.permute.xlu0 %v6372
    %6374 = vperm.xlu0 %6373, %v6363
    %v6375 = vpop.permute.xlu0 %6374
    %v6376 = vperm.slane %v2157, 3
    %v6377 = vlaneseq
    %v6378 = vshrl.u32 %v6377, 7
    %6380 = vset.pattern.permute.xlu0 %v6378
    %6381 = vperm.xlu0 %6380, %v6376
    %v6382 = vpop.permute.xlu0 %6381
    %v6383 = vlaneseq
    %v6384 = vshrl.u32 %v6383, 7
    %v6385 = vadd.s32 %v6384, 8
    %6386 = vset.pattern.permute.xlu0 %v6385
    %6387 = vperm.xlu0 %6386, %v6376
    %v6388 = vpop.permute.xlu0 %6387
    %v6389 = vperm.slane %v2157, 4
    %v6390 = vlaneseq
    %v6391 = vshrl.u32 %v6390, 7
    %6393 = vset.pattern.permute.xlu0 %v6391
    %6394 = vperm.xlu0 %6393, %v6389
    %v6395 = vpop.permute.xlu0 %6394
    %v6396 = vlaneseq
    %v6397 = vshrl.u32 %v6396, 7
    %v6398 = vadd.s32 %v6397, 8
    %6399 = vset.pattern.permute.xlu0 %v6398
    %6400 = vperm.xlu0 %6399, %v6389
    %v6401 = vpop.permute.xlu0 %6400
    %v6402 = vperm.slane %v2157, 5
    %v6403 = vlaneseq
    %v6404 = vshrl.u32 %v6403, 7
    %6406 = vset.pattern.permute.xlu0 %v6404
    %6407 = vperm.xlu0 %6406, %v6402
    %v6408 = vpop.permute.xlu0 %6407
    %v6409 = vlaneseq
    %v6410 = vshrl.u32 %v6409, 7
    %v6411 = vadd.s32 %v6410, 8
    %6412 = vset.pattern.permute.xlu0 %v6411
    %6413 = vperm.xlu0 %6412, %v6402
    %v6414 = vpop.permute.xlu0 %6413
    %v6415 = vperm.slane %v2157, 6
    %v6416 = vlaneseq
    %v6417 = vshrl.u32 %v6416, 7
    %6419 = vset.pattern.permute.xlu0 %v6417
    %6420 = vperm.xlu0 %6419, %v6415
    %v6421 = vpop.permute.xlu0 %6420
    %v6422 = vlaneseq
    %v6423 = vshrl.u32 %v6422, 7
    %v6424 = vadd.s32 %v6423, 8
    %6425 = vset.pattern.permute.xlu0 %v6424
    %6426 = vperm.xlu0 %6425, %v6415
    %v6427 = vpop.permute.xlu0 %6426
    %v6428 = vperm.slane %v2157, 7
    %v6429 = vlaneseq
    %v6430 = vshrl.u32 %v6429, 7
    %6432 = vset.pattern.permute.xlu0 %v6430
    %6433 = vperm.xlu0 %6432, %v6428
    %v6434 = vpop.permute.xlu0 %6433
    %v6435 = vlaneseq
    %v6436 = vshrl.u32 %v6435, 7
    %v6437 = vadd.s32 %v6436, 8
    %6438 = vset.pattern.permute.xlu0 %v6437
    %6439 = vperm.xlu0 %6438, %v6428
    %v6440 = vpop.permute.xlu0 %6439
    %v6441 = vperm.slane %v2312, 0
    %v6442 = vlaneseq
    %v6443 = vshrl.u32 %v6442, 7
    %6445 = vset.pattern.permute.xlu0 %v6443
    %6446 = vperm.xlu0 %6445, %v6441
    %v6447 = vpop.permute.xlu0 %6446
    %v6448 = vlaneseq
    %v6449 = vshrl.u32 %v6448, 7
    %v6450 = vadd.s32 %v6449, 8
    %6451 = vset.pattern.permute.xlu0 %v6450
    %6452 = vperm.xlu0 %6451, %v6441
    %v6453 = vpop.permute.xlu0 %6452
    %v6454 = vperm.slane %v2312, 1
    %v6455 = vlaneseq
    %v6456 = vshrl.u32 %v6455, 7
    %6458 = vset.pattern.permute.xlu0 %v6456
    %6459 = vperm.xlu0 %6458, %v6454
    %v6460 = vpop.permute.xlu0 %6459
    %v6461 = vlaneseq
    %v6462 = vshrl.u32 %v6461, 7
    %v6463 = vadd.s32 %v6462, 8
    %6464 = vset.pattern.permute.xlu0 %v6463
    %6465 = vperm.xlu0 %6464, %v6454
    %v6466 = vpop.permute.xlu0 %6465
    %v6467 = vperm.slane %v2312, 2
    %v6468 = vlaneseq
    %v6469 = vshrl.u32 %v6468, 7
    %6471 = vset.pattern.permute.xlu0 %v6469
    %6472 = vperm.xlu0 %6471, %v6467
    %v6473 = vpop.permute.xlu0 %6472
    %v6474 = vlaneseq
    %v6475 = vshrl.u32 %v6474, 7
    %v6476 = vadd.s32 %v6475, 8
    %6477 = vset.pattern.permute.xlu0 %v6476
    %6478 = vperm.xlu0 %6477, %v6467
    %v6479 = vpop.permute.xlu0 %6478
    %v6480 = vperm.slane %v2312, 3
    %v6481 = vlaneseq
    %v6482 = vshrl.u32 %v6481, 7
    %6484 = vset.pattern.permute.xlu0 %v6482
    %6485 = vperm.xlu0 %6484, %v6480
    %v6486 = vpop.permute.xlu0 %6485
    %v6487 = vlaneseq
    %v6488 = vshrl.u32 %v6487, 7
    %v6489 = vadd.s32 %v6488, 8
    %6490 = vset.pattern.permute.xlu0 %v6489
    %6491 = vperm.xlu0 %6490, %v6480
    %v6492 = vpop.permute.xlu0 %6491
    %v6493 = vperm.slane %v2312, 4
    %v6494 = vlaneseq
    %v6495 = vshrl.u32 %v6494, 7
    %6497 = vset.pattern.permute.xlu0 %v6495
    %6498 = vperm.xlu0 %6497, %v6493
    %v6499 = vpop.permute.xlu0 %6498
    %v6500 = vlaneseq
    %v6501 = vshrl.u32 %v6500, 7
    %v6502 = vadd.s32 %v6501, 8
    %6503 = vset.pattern.permute.xlu0 %v6502
    %6504 = vperm.xlu0 %6503, %v6493
    %v6505 = vpop.permute.xlu0 %6504
    %v6506 = vperm.slane %v2312, 5
    %v6507 = vlaneseq
    %v6508 = vshrl.u32 %v6507, 7
    %6510 = vset.pattern.permute.xlu0 %v6508
    %6511 = vperm.xlu0 %6510, %v6506
    %v6512 = vpop.permute.xlu0 %6511
    %v6513 = vlaneseq
    %v6514 = vshrl.u32 %v6513, 7
    %v6515 = vadd.s32 %v6514, 8
    %6516 = vset.pattern.permute.xlu0 %v6515
    %6517 = vperm.xlu0 %6516, %v6506
    %v6518 = vpop.permute.xlu0 %6517
    %v6519 = vperm.slane %v2312, 6
    %v6520 = vlaneseq
    %v6521 = vshrl.u32 %v6520, 7
    %6523 = vset.pattern.permute.xlu0 %v6521
    %6524 = vperm.xlu0 %6523, %v6519
    %v6525 = vpop.permute.xlu0 %6524
    %v6526 = vlaneseq
    %v6527 = vshrl.u32 %v6526, 7
    %v6528 = vadd.s32 %v6527, 8
    %6529 = vset.pattern.permute.xlu0 %v6528
    %6530 = vperm.xlu0 %6529, %v6519
    %v6531 = vpop.permute.xlu0 %6530
    %v6532 = vperm.slane %v2312, 7
    %v6533 = vlaneseq
    %v6534 = vshrl.u32 %v6533, 7
    %6536 = vset.pattern.permute.xlu0 %v6534
    %6537 = vperm.xlu0 %6536, %v6532
    %v6538 = vpop.permute.xlu0 %6537
    %v6539 = vlaneseq
    %v6540 = vshrl.u32 %v6539, 7
    %v6541 = vadd.s32 %v6540, 8
    %6542 = vset.pattern.permute.xlu0 %v6541
    %6543 = vperm.xlu0 %6542, %v6532
    %v6544 = vpop.permute.xlu0 %6543
    %v6545 = vperm.slane %v2469, 0
    %v6546 = vlaneseq
    %v6547 = vshrl.u32 %v6546, 7
    %6549 = vset.pattern.permute.xlu0 %v6547
    %6550 = vperm.xlu0 %6549, %v6545
    %v6551 = vpop.permute.xlu0 %6550
    %v6552 = vlaneseq
    %v6553 = vshrl.u32 %v6552, 7
    %v6554 = vadd.s32 %v6553, 8
    %6555 = vset.pattern.permute.xlu0 %v6554
    %6556 = vperm.xlu0 %6555, %v6545
    %v6557 = vpop.permute.xlu0 %6556
    %v6558 = vperm.slane %v2469, 1
    %v6559 = vlaneseq
    %v6560 = vshrl.u32 %v6559, 7
    %6562 = vset.pattern.permute.xlu0 %v6560
    %6563 = vperm.xlu0 %6562, %v6558
    %v6564 = vpop.permute.xlu0 %6563
    %v6565 = vlaneseq
    %v6566 = vshrl.u32 %v6565, 7
    %v6567 = vadd.s32 %v6566, 8
    %6568 = vset.pattern.permute.xlu0 %v6567
    %6569 = vperm.xlu0 %6568, %v6558
    %v6570 = vpop.permute.xlu0 %6569
    %v6571 = vperm.slane %v2469, 2
    %v6572 = vlaneseq
    %v6573 = vshrl.u32 %v6572, 7
    %6575 = vset.pattern.permute.xlu0 %v6573
    %6576 = vperm.xlu0 %6575, %v6571
    %v6577 = vpop.permute.xlu0 %6576
    %v6578 = vlaneseq
    %v6579 = vshrl.u32 %v6578, 7
    %v6580 = vadd.s32 %v6579, 8
    %6581 = vset.pattern.permute.xlu0 %v6580
    %6582 = vperm.xlu0 %6581, %v6571
    %v6583 = vpop.permute.xlu0 %6582
    %v6584 = vperm.slane %v2469, 3
    %v6585 = vlaneseq
    %v6586 = vshrl.u32 %v6585, 7
    %6588 = vset.pattern.permute.xlu0 %v6586
    %6589 = vperm.xlu0 %6588, %v6584
    %v6590 = vpop.permute.xlu0 %6589
    %v6591 = vlaneseq
    %v6592 = vshrl.u32 %v6591, 7
    %v6593 = vadd.s32 %v6592, 8
    %6594 = vset.pattern.permute.xlu0 %v6593
    %6595 = vperm.xlu0 %6594, %v6584
    %v6596 = vpop.permute.xlu0 %6595
    %v6597 = vperm.slane %v2469, 4
    %v6598 = vlaneseq
    %v6599 = vshrl.u32 %v6598, 7
    %6601 = vset.pattern.permute.xlu0 %v6599
    %6602 = vperm.xlu0 %6601, %v6597
    %v6603 = vpop.permute.xlu0 %6602
    %v6604 = vlaneseq
    %v6605 = vshrl.u32 %v6604, 7
    %v6606 = vadd.s32 %v6605, 8
    %6607 = vset.pattern.permute.xlu0 %v6606
    %6608 = vperm.xlu0 %6607, %v6597
    %v6609 = vpop.permute.xlu0 %6608
    %v6610 = vperm.slane %v2469, 5
    %v6611 = vlaneseq
    %v6612 = vshrl.u32 %v6611, 7
    %6614 = vset.pattern.permute.xlu0 %v6612
    %6615 = vperm.xlu0 %6614, %v6610
    %v6616 = vpop.permute.xlu0 %6615
    %v6617 = vlaneseq
    %v6618 = vshrl.u32 %v6617, 7
    %v6619 = vadd.s32 %v6618, 8
    %6620 = vset.pattern.permute.xlu0 %v6619
    %6621 = vperm.xlu0 %6620, %v6610
    %v6622 = vpop.permute.xlu0 %6621
    %v6623 = vperm.slane %v2469, 6
    %v6624 = vlaneseq
    %v6625 = vshrl.u32 %v6624, 7
    %6627 = vset.pattern.permute.xlu0 %v6625
    %6628 = vperm.xlu0 %6627, %v6623
    %v6629 = vpop.permute.xlu0 %6628
    %v6630 = vlaneseq
    %v6631 = vshrl.u32 %v6630, 7
    %v6632 = vadd.s32 %v6631, 8
    %6633 = vset.pattern.permute.xlu0 %v6632
    %6634 = vperm.xlu0 %6633, %v6623
    %v6635 = vpop.permute.xlu0 %6634
    %v6636 = vperm.slane %v2469, 7
    %v6637 = vlaneseq
    %v6638 = vshrl.u32 %v6637, 7
    %6640 = vset.pattern.permute.xlu0 %v6638
    %6641 = vperm.xlu0 %6640, %v6636
    %v6642 = vpop.permute.xlu0 %6641
    %v6643 = vlaneseq
    %v6644 = vshrl.u32 %v6643, 7
    %v6645 = vadd.s32 %v6644, 8
    %6646 = vset.pattern.permute.xlu0 %v6645
    %6647 = vperm.xlu0 %6646, %v6636
    %v6648 = vpop.permute.xlu0 %6647
    %v6649 = vperm.slane %v2624, 0
    %v6650 = vlaneseq
    %v6651 = vshrl.u32 %v6650, 7
    %6653 = vset.pattern.permute.xlu0 %v6651
    %6654 = vperm.xlu0 %6653, %v6649
    %v6655 = vpop.permute.xlu0 %6654
    %v6656 = vlaneseq
    %v6657 = vshrl.u32 %v6656, 7
    %v6658 = vadd.s32 %v6657, 8
    %6659 = vset.pattern.permute.xlu0 %v6658
    %6660 = vperm.xlu0 %6659, %v6649
    %v6661 = vpop.permute.xlu0 %6660
    %v6662 = vperm.slane %v2624, 1
    %v6663 = vlaneseq
    %v6664 = vshrl.u32 %v6663, 7
    %6666 = vset.pattern.permute.xlu0 %v6664
    %6667 = vperm.xlu0 %6666, %v6662
    %v6668 = vpop.permute.xlu0 %6667
    %v6669 = vlaneseq
    %v6670 = vshrl.u32 %v6669, 7
    %v6671 = vadd.s32 %v6670, 8
    %6672 = vset.pattern.permute.xlu0 %v6671
    %6673 = vperm.xlu0 %6672, %v6662
    %v6674 = vpop.permute.xlu0 %6673
    %v6675 = vperm.slane %v2624, 2
    %v6676 = vlaneseq
    %v6677 = vshrl.u32 %v6676, 7
    %6679 = vset.pattern.permute.xlu0 %v6677
    %6680 = vperm.xlu0 %6679, %v6675
    %v6681 = vpop.permute.xlu0 %6680
    %v6682 = vlaneseq
    %v6683 = vshrl.u32 %v6682, 7
    %v6684 = vadd.s32 %v6683, 8
    %6685 = vset.pattern.permute.xlu0 %v6684
    %6686 = vperm.xlu0 %6685, %v6675
    %v6687 = vpop.permute.xlu0 %6686
    %v6688 = vperm.slane %v2624, 3
    %v6689 = vlaneseq
    %v6690 = vshrl.u32 %v6689, 7
    %6692 = vset.pattern.permute.xlu0 %v6690
    %6693 = vperm.xlu0 %6692, %v6688
    %v6694 = vpop.permute.xlu0 %6693
    %v6695 = vlaneseq
    %v6696 = vshrl.u32 %v6695, 7
    %v6697 = vadd.s32 %v6696, 8
    %6698 = vset.pattern.permute.xlu0 %v6697
    %6699 = vperm.xlu0 %6698, %v6688
    %v6700 = vpop.permute.xlu0 %6699
    %v6701 = vperm.slane %v2624, 4
    %v6702 = vlaneseq
    %v6703 = vshrl.u32 %v6702, 7
    %6705 = vset.pattern.permute.xlu0 %v6703
    %6706 = vperm.xlu0 %6705, %v6701
    %v6707 = vpop.permute.xlu0 %6706
    %v6708 = vlaneseq
    %v6709 = vshrl.u32 %v6708, 7
    %v6710 = vadd.s32 %v6709, 8
    %6711 = vset.pattern.permute.xlu0 %v6710
    %6712 = vperm.xlu0 %6711, %v6701
    %v6713 = vpop.permute.xlu0 %6712
    %v6714 = vperm.slane %v2624, 5
    %v6715 = vlaneseq
    %v6716 = vshrl.u32 %v6715, 7
    %6718 = vset.pattern.permute.xlu0 %v6716
    %6719 = vperm.xlu0 %6718, %v6714
    %v6720 = vpop.permute.xlu0 %6719
    %v6721 = vlaneseq
    %v6722 = vshrl.u32 %v6721, 7
    %v6723 = vadd.s32 %v6722, 8
    %6724 = vset.pattern.permute.xlu0 %v6723
    %6725 = vperm.xlu0 %6724, %v6714
    %v6726 = vpop.permute.xlu0 %6725
    %v6727 = vperm.slane %v2624, 6
    %v6728 = vlaneseq
    %v6729 = vshrl.u32 %v6728, 7
    %6731 = vset.pattern.permute.xlu0 %v6729
    %6732 = vperm.xlu0 %6731, %v6727
    %v6733 = vpop.permute.xlu0 %6732
    %v6734 = vlaneseq
    %v6735 = vshrl.u32 %v6734, 7
    %v6736 = vadd.s32 %v6735, 8
    %6737 = vset.pattern.permute.xlu0 %v6736
    %6738 = vperm.xlu0 %6737, %v6727
    %v6739 = vpop.permute.xlu0 %6738
    %v6740 = vperm.slane %v2624, 7
    %v6741 = vlaneseq
    %v6742 = vshrl.u32 %v6741, 7
    %6744 = vset.pattern.permute.xlu0 %v6742
    %6745 = vperm.xlu0 %6744, %v6740
    %v6746 = vpop.permute.xlu0 %6745
    %v6747 = vlaneseq
    %v6748 = vshrl.u32 %v6747, 7
    %v6749 = vadd.s32 %v6748, 8
    %6750 = vset.pattern.permute.xlu0 %v6749
    %6751 = vperm.xlu0 %6750, %v6740
    %v6752 = vpop.permute.xlu0 %6751
    %v6753 = vperm.slane %v2778, 0
    %v6754 = vlaneseq
    %v6755 = vshrl.u32 %v6754, 7
    %6757 = vset.pattern.permute.xlu0 %v6755
    %6758 = vperm.xlu0 %6757, %v6753
    %v6759 = vpop.permute.xlu0 %6758
    %v6760 = vlaneseq
    %v6761 = vshrl.u32 %v6760, 7
    %v6762 = vadd.s32 %v6761, 8
    %6763 = vset.pattern.permute.xlu0 %v6762
    %6764 = vperm.xlu0 %6763, %v6753
    %v6765 = vpop.permute.xlu0 %6764
    %v6766 = vperm.slane %v2778, 1
    %v6767 = vlaneseq
    %v6768 = vshrl.u32 %v6767, 7
    %6770 = vset.pattern.permute.xlu0 %v6768
    %6771 = vperm.xlu0 %6770, %v6766
    %v6772 = vpop.permute.xlu0 %6771
    %v6773 = vlaneseq
    %v6774 = vshrl.u32 %v6773, 7
    %v6775 = vadd.s32 %v6774, 8
    %6776 = vset.pattern.permute.xlu0 %v6775
    %6777 = vperm.xlu0 %6776, %v6766
    %v6778 = vpop.permute.xlu0 %6777
    %v6779 = vperm.slane %v2778, 2
    %v6780 = vlaneseq
    %v6781 = vshrl.u32 %v6780, 7
    %6783 = vset.pattern.permute.xlu0 %v6781
    %6784 = vperm.xlu0 %6783, %v6779
    %v6785 = vpop.permute.xlu0 %6784
    %v6786 = vlaneseq
    %v6787 = vshrl.u32 %v6786, 7
    %v6788 = vadd.s32 %v6787, 8
    %6789 = vset.pattern.permute.xlu0 %v6788
    %6790 = vperm.xlu0 %6789, %v6779
    %v6791 = vpop.permute.xlu0 %6790
    %v6792 = vperm.slane %v2778, 3
    %v6793 = vlaneseq
    %v6794 = vshrl.u32 %v6793, 7
    %6796 = vset.pattern.permute.xlu0 %v6794
    %6797 = vperm.xlu0 %6796, %v6792
    %v6798 = vpop.permute.xlu0 %6797
    %v6799 = vlaneseq
    %v6800 = vshrl.u32 %v6799, 7
    %v6801 = vadd.s32 %v6800, 8
    %6802 = vset.pattern.permute.xlu0 %v6801
    %6803 = vperm.xlu0 %6802, %v6792
    %v6804 = vpop.permute.xlu0 %6803
    %v6805 = vperm.slane %v2778, 4
    %v6806 = vlaneseq
    %v6807 = vshrl.u32 %v6806, 7
    %6809 = vset.pattern.permute.xlu0 %v6807
    %6810 = vperm.xlu0 %6809, %v6805
    %v6811 = vpop.permute.xlu0 %6810
    %v6812 = vlaneseq
    %v6813 = vshrl.u32 %v6812, 7
    %v6814 = vadd.s32 %v6813, 8
    %6815 = vset.pattern.permute.xlu0 %v6814
    %6816 = vperm.xlu0 %6815, %v6805
    %v6817 = vpop.permute.xlu0 %6816
    %v6818 = vperm.slane %v2778, 5
    %v6819 = vlaneseq
    %v6820 = vshrl.u32 %v6819, 7
    %6822 = vset.pattern.permute.xlu0 %v6820
    %6823 = vperm.xlu0 %6822, %v6818
    %v6824 = vpop.permute.xlu0 %6823
    %v6825 = vlaneseq
    %v6826 = vshrl.u32 %v6825, 7
    %v6827 = vadd.s32 %v6826, 8
    %6828 = vset.pattern.permute.xlu0 %v6827
    %6829 = vperm.xlu0 %6828, %v6818
    %v6830 = vpop.permute.xlu0 %6829
    %v6831 = vperm.slane %v2778, 6
    %v6832 = vlaneseq
    %v6833 = vshrl.u32 %v6832, 7
    %6835 = vset.pattern.permute.xlu0 %v6833
    %6836 = vperm.xlu0 %6835, %v6831
    %v6837 = vpop.permute.xlu0 %6836
    %v6838 = vlaneseq
    %v6839 = vshrl.u32 %v6838, 7
    %v6840 = vadd.s32 %v6839, 8
    %6841 = vset.pattern.permute.xlu0 %v6840
    %6842 = vperm.xlu0 %6841, %v6831
    %v6843 = vpop.permute.xlu0 %6842
    %v6844 = vperm.slane %v2778, 7
    %v6845 = vlaneseq
    %v6846 = vshrl.u32 %v6845, 7
    %6848 = vset.pattern.permute.xlu0 %v6846
    %6849 = vperm.xlu0 %6848, %v6844
    %v6850 = vpop.permute.xlu0 %6849
    %v6851 = vlaneseq
    %v6852 = vshrl.u32 %v6851, 7
    %v6853 = vadd.s32 %v6852, 8
    %6854 = vset.pattern.permute.xlu0 %v6853
    %6855 = vperm.xlu0 %6854, %v6844
    %v6856 = vpop.permute.xlu0 %6855
    %v6857 = vperm.slane %v2932, 0
    %v6858 = vlaneseq
    %v6859 = vshrl.u32 %v6858, 7
    %6861 = vset.pattern.permute.xlu0 %v6859
    %6862 = vperm.xlu0 %6861, %v6857
    %v6863 = vpop.permute.xlu0 %6862
    %v6864 = vlaneseq
    %v6865 = vshrl.u32 %v6864, 7
    %v6866 = vadd.s32 %v6865, 8
    %6867 = vset.pattern.permute.xlu0 %v6866
    %6868 = vperm.xlu0 %6867, %v6857
    %v6869 = vpop.permute.xlu0 %6868
    %v6870 = vperm.slane %v2932, 1
    %v6871 = vlaneseq
    %v6872 = vshrl.u32 %v6871, 7
    %6874 = vset.pattern.permute.xlu0 %v6872
    %6875 = vperm.xlu0 %6874, %v6870
    %v6876 = vpop.permute.xlu0 %6875
    %v6877 = vlaneseq
    %v6878 = vshrl.u32 %v6877, 7
    %v6879 = vadd.s32 %v6878, 8
    %6880 = vset.pattern.permute.xlu0 %v6879
    %6881 = vperm.xlu0 %6880, %v6870
    %v6882 = vpop.permute.xlu0 %6881
    %v6883 = vperm.slane %v2932, 2
    %v6884 = vlaneseq
    %v6885 = vshrl.u32 %v6884, 7
    %6887 = vset.pattern.permute.xlu0 %v6885
    %6888 = vperm.xlu0 %6887, %v6883
    %v6889 = vpop.permute.xlu0 %6888
    %v6890 = vlaneseq
    %v6891 = vshrl.u32 %v6890, 7
    %v6892 = vadd.s32 %v6891, 8
    %6893 = vset.pattern.permute.xlu0 %v6892
    %6894 = vperm.xlu0 %6893, %v6883
    %v6895 = vpop.permute.xlu0 %6894
    %v6896 = vperm.slane %v2932, 3
    %v6897 = vlaneseq
    %v6898 = vshrl.u32 %v6897, 7
    %6900 = vset.pattern.permute.xlu0 %v6898
    %6901 = vperm.xlu0 %6900, %v6896
    %v6902 = vpop.permute.xlu0 %6901
    %v6903 = vlaneseq
    %v6904 = vshrl.u32 %v6903, 7
    %v6905 = vadd.s32 %v6904, 8
    %6906 = vset.pattern.permute.xlu0 %v6905
    %6907 = vperm.xlu0 %6906, %v6896
    %v6908 = vpop.permute.xlu0 %6907
    %v6909 = vperm.slane %v2932, 4
    %v6910 = vlaneseq
    %v6911 = vshrl.u32 %v6910, 7
    %6913 = vset.pattern.permute.xlu0 %v6911
    %6914 = vperm.xlu0 %6913, %v6909
    %v6915 = vpop.permute.xlu0 %6914
    %v6916 = vlaneseq
    %v6917 = vshrl.u32 %v6916, 7
    %v6918 = vadd.s32 %v6917, 8
    %6919 = vset.pattern.permute.xlu0 %v6918
    %6920 = vperm.xlu0 %6919, %v6909
    %v6921 = vpop.permute.xlu0 %6920
    %v6922 = vperm.slane %v2932, 5
    %v6923 = vlaneseq
    %v6924 = vshrl.u32 %v6923, 7
    %6926 = vset.pattern.permute.xlu0 %v6924
    %6927 = vperm.xlu0 %6926, %v6922
    %v6928 = vpop.permute.xlu0 %6927
    %v6929 = vlaneseq
    %v6930 = vshrl.u32 %v6929, 7
    %v6931 = vadd.s32 %v6930, 8
    %6932 = vset.pattern.permute.xlu0 %v6931
    %6933 = vperm.xlu0 %6932, %v6922
    %v6934 = vpop.permute.xlu0 %6933
    %v6935 = vperm.slane %v2932, 6
    %v6936 = vlaneseq
    %v6937 = vshrl.u32 %v6936, 7
    %6939 = vset.pattern.permute.xlu0 %v6937
    %6940 = vperm.xlu0 %6939, %v6935
    %v6941 = vpop.permute.xlu0 %6940
    %v6942 = vlaneseq
    %v6943 = vshrl.u32 %v6942, 7
    %v6944 = vadd.s32 %v6943, 8
    %6945 = vset.pattern.permute.xlu0 %v6944
    %6946 = vperm.xlu0 %6945, %v6935
    %v6947 = vpop.permute.xlu0 %6946
    %v6948 = vperm.slane %v2932, 7
    %v6949 = vlaneseq
    %v6950 = vshrl.u32 %v6949, 7
    %6952 = vset.pattern.permute.xlu0 %v6950
    %6953 = vperm.xlu0 %6952, %v6948
    %v6954 = vpop.permute.xlu0 %6953
    %v6955 = vlaneseq
    %v6956 = vshrl.u32 %v6955, 7
    %v6957 = vadd.s32 %v6956, 8
    %6958 = vset.pattern.permute.xlu0 %v6957
    %6959 = vperm.xlu0 %6958, %v6948
    %v6960 = vpop.permute.xlu0 %6959
    %v6961 = vperm.slane %v3086, 0
    %v6962 = vlaneseq
    %v6963 = vshrl.u32 %v6962, 7
    %6965 = vset.pattern.permute.xlu0 %v6963
    %6966 = vperm.xlu0 %6965, %v6961
    %v6967 = vpop.permute.xlu0 %6966
    %v6968 = vlaneseq
    %v6969 = vshrl.u32 %v6968, 7
    %v6970 = vadd.s32 %v6969, 8
    %6971 = vset.pattern.permute.xlu0 %v6970
    %6972 = vperm.xlu0 %6971, %v6961
    %v6973 = vpop.permute.xlu0 %6972
    %v6974 = vperm.slane %v3086, 1
    %v6975 = vlaneseq
    %v6976 = vshrl.u32 %v6975, 7
    %6978 = vset.pattern.permute.xlu0 %v6976
    %6979 = vperm.xlu0 %6978, %v6974
    %v6980 = vpop.permute.xlu0 %6979
    %v6981 = vlaneseq
    %v6982 = vshrl.u32 %v6981, 7
    %v6983 = vadd.s32 %v6982, 8
    %6984 = vset.pattern.permute.xlu0 %v6983
    %6985 = vperm.xlu0 %6984, %v6974
    %v6986 = vpop.permute.xlu0 %6985
    %v6987 = vperm.slane %v3086, 2
    %v6988 = vlaneseq
    %v6989 = vshrl.u32 %v6988, 7
    %6991 = vset.pattern.permute.xlu0 %v6989
    %6992 = vperm.xlu0 %6991, %v6987
    %v6993 = vpop.permute.xlu0 %6992
    %v6994 = vlaneseq
    %v6995 = vshrl.u32 %v6994, 7
    %v6996 = vadd.s32 %v6995, 8
    %6997 = vset.pattern.permute.xlu0 %v6996
    %6998 = vperm.xlu0 %6997, %v6987
    %v6999 = vpop.permute.xlu0 %6998
    %v7000 = vperm.slane %v3086, 3
    %v7001 = vlaneseq
    %v7002 = vshrl.u32 %v7001, 7
    %7004 = vset.pattern.permute.xlu0 %v7002
    %7005 = vperm.xlu0 %7004, %v7000
    %v7006 = vpop.permute.xlu0 %7005
    %v7007 = vlaneseq
    %v7008 = vshrl.u32 %v7007, 7
    %v7009 = vadd.s32 %v7008, 8
    %7010 = vset.pattern.permute.xlu0 %v7009
    %7011 = vperm.xlu0 %7010, %v7000
    %v7012 = vpop.permute.xlu0 %7011
    %v7013 = vperm.slane %v3086, 4
    %v7014 = vlaneseq
    %v7015 = vshrl.u32 %v7014, 7
    %7017 = vset.pattern.permute.xlu0 %v7015
    %7018 = vperm.xlu0 %7017, %v7013
    %v7019 = vpop.permute.xlu0 %7018
    %v7020 = vlaneseq
    %v7021 = vshrl.u32 %v7020, 7
    %v7022 = vadd.s32 %v7021, 8
    %7023 = vset.pattern.permute.xlu0 %v7022
    %7024 = vperm.xlu0 %7023, %v7013
    %v7025 = vpop.permute.xlu0 %7024
    %v7026 = vperm.slane %v3086, 5
    %v7027 = vlaneseq
    %v7028 = vshrl.u32 %v7027, 7
    %7030 = vset.pattern.permute.xlu0 %v7028
    %7031 = vperm.xlu0 %7030, %v7026
    %v7032 = vpop.permute.xlu0 %7031
    %v7033 = vlaneseq
    %v7034 = vshrl.u32 %v7033, 7
    %v7035 = vadd.s32 %v7034, 8
    %7036 = vset.pattern.permute.xlu0 %v7035
    %7037 = vperm.xlu0 %7036, %v7026
    %v7038 = vpop.permute.xlu0 %7037
    %v7039 = vperm.slane %v3086, 6
    %v7040 = vlaneseq
    %v7041 = vshrl.u32 %v7040, 7
    %7043 = vset.pattern.permute.xlu0 %v7041
    %7044 = vperm.xlu0 %7043, %v7039
    %v7045 = vpop.permute.xlu0 %7044
    %v7046 = vlaneseq
    %v7047 = vshrl.u32 %v7046, 7
    %v7048 = vadd.s32 %v7047, 8
    %7049 = vset.pattern.permute.xlu0 %v7048
    %7050 = vperm.xlu0 %7049, %v7039
    %v7051 = vpop.permute.xlu0 %7050
    %v7052 = vperm.slane %v3086, 7
    %v7053 = vlaneseq
    %v7054 = vshrl.u32 %v7053, 7
    %7056 = vset.pattern.permute.xlu0 %v7054
    %7057 = vperm.xlu0 %7056, %v7052
    %v7058 = vpop.permute.xlu0 %7057
    %v7059 = vlaneseq
    %v7060 = vshrl.u32 %v7059, 7
    %v7061 = vadd.s32 %v7060, 8
    %7062 = vset.pattern.permute.xlu0 %v7061
    %7063 = vperm.xlu0 %7062, %v7052
    %v7064 = vpop.permute.xlu0 %7063
    %v7065 = vperm.slane %v3240, 0
    %v7066 = vlaneseq
    %v7067 = vshrl.u32 %v7066, 7
    %7069 = vset.pattern.permute.xlu0 %v7067
    %7070 = vperm.xlu0 %7069, %v7065
    %v7071 = vpop.permute.xlu0 %7070
    %v7072 = vlaneseq
    %v7073 = vshrl.u32 %v7072, 7
    %v7074 = vadd.s32 %v7073, 8
    %7075 = vset.pattern.permute.xlu0 %v7074
    %7076 = vperm.xlu0 %7075, %v7065
    %v7077 = vpop.permute.xlu0 %7076
    %v7078 = vperm.slane %v3240, 1
    %v7079 = vlaneseq
    %v7080 = vshrl.u32 %v7079, 7
    %7082 = vset.pattern.permute.xlu0 %v7080
    %7083 = vperm.xlu0 %7082, %v7078
    %v7084 = vpop.permute.xlu0 %7083
    %v7085 = vlaneseq
    %v7086 = vshrl.u32 %v7085, 7
    %v7087 = vadd.s32 %v7086, 8
    %7088 = vset.pattern.permute.xlu0 %v7087
    %7089 = vperm.xlu0 %7088, %v7078
    %v7090 = vpop.permute.xlu0 %7089
    %v7091 = vperm.slane %v3240, 2
    %v7092 = vlaneseq
    %v7093 = vshrl.u32 %v7092, 7
    %7095 = vset.pattern.permute.xlu0 %v7093
    %7096 = vperm.xlu0 %7095, %v7091
    %v7097 = vpop.permute.xlu0 %7096
    %v7098 = vlaneseq
    %v7099 = vshrl.u32 %v7098, 7
    %v7100 = vadd.s32 %v7099, 8
    %7101 = vset.pattern.permute.xlu0 %v7100
    %7102 = vperm.xlu0 %7101, %v7091
    %v7103 = vpop.permute.xlu0 %7102
    %v7104 = vperm.slane %v3240, 3
    %v7105 = vlaneseq
    %v7106 = vshrl.u32 %v7105, 7
    %7108 = vset.pattern.permute.xlu0 %v7106
    %7109 = vperm.xlu0 %7108, %v7104
    %v7110 = vpop.permute.xlu0 %7109
    %v7111 = vlaneseq
    %v7112 = vshrl.u32 %v7111, 7
    %v7113 = vadd.s32 %v7112, 8
    %7114 = vset.pattern.permute.xlu0 %v7113
    %7115 = vperm.xlu0 %7114, %v7104
    %v7116 = vpop.permute.xlu0 %7115
    %v7117 = vperm.slane %v3240, 4
    %v7118 = vlaneseq
    %v7119 = vshrl.u32 %v7118, 7
    %7121 = vset.pattern.permute.xlu0 %v7119
    %7122 = vperm.xlu0 %7121, %v7117
    %v7123 = vpop.permute.xlu0 %7122
    %v7124 = vlaneseq
    %v7125 = vshrl.u32 %v7124, 7
    %v7126 = vadd.s32 %v7125, 8
    %7127 = vset.pattern.permute.xlu0 %v7126
    %7128 = vperm.xlu0 %7127, %v7117
    %v7129 = vpop.permute.xlu0 %7128
    %v7130 = vperm.slane %v3240, 5
    %v7131 = vlaneseq
    %v7132 = vshrl.u32 %v7131, 7
    %7134 = vset.pattern.permute.xlu0 %v7132
    %7135 = vperm.xlu0 %7134, %v7130
    %v7136 = vpop.permute.xlu0 %7135
    %v7137 = vlaneseq
    %v7138 = vshrl.u32 %v7137, 7
    %v7139 = vadd.s32 %v7138, 8
    %7140 = vset.pattern.permute.xlu0 %v7139
    %7141 = vperm.xlu0 %7140, %v7130
    %v7142 = vpop.permute.xlu0 %7141
    %v7143 = vperm.slane %v3240, 6
    %v7144 = vlaneseq
    %v7145 = vshrl.u32 %v7144, 7
    %7147 = vset.pattern.permute.xlu0 %v7145
    %7148 = vperm.xlu0 %7147, %v7143
    %v7149 = vpop.permute.xlu0 %7148
    %v7150 = vlaneseq
    %v7151 = vshrl.u32 %v7150, 7
    %v7152 = vadd.s32 %v7151, 8
    %7153 = vset.pattern.permute.xlu0 %v7152
    %7154 = vperm.xlu0 %7153, %v7143
    %v7155 = vpop.permute.xlu0 %7154
    %v7156 = vperm.slane %v3240, 7
    %v7157 = vlaneseq
    %v7158 = vshrl.u32 %v7157, 7
    %7160 = vset.pattern.permute.xlu0 %v7158
    %7161 = vperm.xlu0 %7160, %v7156
    %v7162 = vpop.permute.xlu0 %7161
    %v7163 = vlaneseq
    %v7164 = vshrl.u32 %v7163, 7
    %v7165 = vadd.s32 %v7164, 8
    %7166 = vset.pattern.permute.xlu0 %v7165
    %7167 = vperm.xlu0 %7166, %v7156
    %v7168 = vpop.permute.xlu0 %7167
    %v7169 = vperm.slane %v3394, 0
    %v7170 = vlaneseq
    %v7171 = vshrl.u32 %v7170, 7
    %7173 = vset.pattern.permute.xlu0 %v7171
    %7174 = vperm.xlu0 %7173, %v7169
    %v7175 = vpop.permute.xlu0 %7174
    %v7176 = vlaneseq
    %v7177 = vshrl.u32 %v7176, 7
    %v7178 = vadd.s32 %v7177, 8
    %7179 = vset.pattern.permute.xlu0 %v7178
    %7180 = vperm.xlu0 %7179, %v7169
    %v7181 = vpop.permute.xlu0 %7180
    %v7182 = vperm.slane %v3394, 1
    %v7183 = vlaneseq
    %v7184 = vshrl.u32 %v7183, 7
    %7186 = vset.pattern.permute.xlu0 %v7184
    %7187 = vperm.xlu0 %7186, %v7182
    %v7188 = vpop.permute.xlu0 %7187
    %v7189 = vlaneseq
    %v7190 = vshrl.u32 %v7189, 7
    %v7191 = vadd.s32 %v7190, 8
    %7192 = vset.pattern.permute.xlu0 %v7191
    %7193 = vperm.xlu0 %7192, %v7182
    %v7194 = vpop.permute.xlu0 %7193
    %v7195 = vperm.slane %v3394, 2
    %v7196 = vlaneseq
    %v7197 = vshrl.u32 %v7196, 7
    %7199 = vset.pattern.permute.xlu0 %v7197
    %7200 = vperm.xlu0 %7199, %v7195
    %v7201 = vpop.permute.xlu0 %7200
    %v7202 = vlaneseq
    %v7203 = vshrl.u32 %v7202, 7
    %v7204 = vadd.s32 %v7203, 8
    %7205 = vset.pattern.permute.xlu0 %v7204
    %7206 = vperm.xlu0 %7205, %v7195
    %v7207 = vpop.permute.xlu0 %7206
    %v7208 = vperm.slane %v3394, 3
    %v7209 = vlaneseq
    %v7210 = vshrl.u32 %v7209, 7
    %7212 = vset.pattern.permute.xlu0 %v7210
    %7213 = vperm.xlu0 %7212, %v7208
    %v7214 = vpop.permute.xlu0 %7213
    %v7215 = vlaneseq
    %v7216 = vshrl.u32 %v7215, 7
    %v7217 = vadd.s32 %v7216, 8
    %7218 = vset.pattern.permute.xlu0 %v7217
    %7219 = vperm.xlu0 %7218, %v7208
    %v7220 = vpop.permute.xlu0 %7219
    %v7221 = vperm.slane %v3394, 4
    %v7222 = vlaneseq
    %v7223 = vshrl.u32 %v7222, 7
    %7225 = vset.pattern.permute.xlu0 %v7223
    %7226 = vperm.xlu0 %7225, %v7221
    %v7227 = vpop.permute.xlu0 %7226
    %v7228 = vlaneseq
    %v7229 = vshrl.u32 %v7228, 7
    %v7230 = vadd.s32 %v7229, 8
    %7231 = vset.pattern.permute.xlu0 %v7230
    %7232 = vperm.xlu0 %7231, %v7221
    %v7233 = vpop.permute.xlu0 %7232
    %v7234 = vperm.slane %v3394, 5
    %v7235 = vlaneseq
    %v7236 = vshrl.u32 %v7235, 7
    %7238 = vset.pattern.permute.xlu0 %v7236
    %7239 = vperm.xlu0 %7238, %v7234
    %v7240 = vpop.permute.xlu0 %7239
    %v7241 = vlaneseq
    %v7242 = vshrl.u32 %v7241, 7
    %v7243 = vadd.s32 %v7242, 8
    %7244 = vset.pattern.permute.xlu0 %v7243
    %7245 = vperm.xlu0 %7244, %v7234
    %v7246 = vpop.permute.xlu0 %7245
    %v7247 = vperm.slane %v3394, 6
    %v7248 = vlaneseq
    %v7249 = vshrl.u32 %v7248, 7
    %7251 = vset.pattern.permute.xlu0 %v7249
    %7252 = vperm.xlu0 %7251, %v7247
    %v7253 = vpop.permute.xlu0 %7252
    %v7254 = vlaneseq
    %v7255 = vshrl.u32 %v7254, 7
    %v7256 = vadd.s32 %v7255, 8
    %7257 = vset.pattern.permute.xlu0 %v7256
    %7258 = vperm.xlu0 %7257, %v7247
    %v7259 = vpop.permute.xlu0 %7258
    %v7260 = vperm.slane %v3394, 7
    %v7261 = vlaneseq
    %v7262 = vshrl.u32 %v7261, 7
    %7264 = vset.pattern.permute.xlu0 %v7262
    %7265 = vperm.xlu0 %7264, %v7260
    %v7266 = vpop.permute.xlu0 %7265
    %v7267 = vlaneseq
    %v7268 = vshrl.u32 %v7267, 7
    %v7269 = vadd.s32 %v7268, 8
    %7270 = vset.pattern.permute.xlu0 %v7269
    %7271 = vperm.xlu0 %7270, %v7260
    %v7272 = vpop.permute.xlu0 %7271
    %v7273 = vperm.slane %v3548, 0
    %v7274 = vlaneseq
    %v7275 = vshrl.u32 %v7274, 7
    %7277 = vset.pattern.permute.xlu0 %v7275
    %7278 = vperm.xlu0 %7277, %v7273
    %v7279 = vpop.permute.xlu0 %7278
    %v7280 = vlaneseq
    %v7281 = vshrl.u32 %v7280, 7
    %v7282 = vadd.s32 %v7281, 8
    %7283 = vset.pattern.permute.xlu0 %v7282
    %7284 = vperm.xlu0 %7283, %v7273
    %v7285 = vpop.permute.xlu0 %7284
    %v7286 = vperm.slane %v3548, 1
    %v7287 = vlaneseq
    %v7288 = vshrl.u32 %v7287, 7
    %7290 = vset.pattern.permute.xlu0 %v7288
    %7291 = vperm.xlu0 %7290, %v7286
    %v7292 = vpop.permute.xlu0 %7291
    %v7293 = vlaneseq
    %v7294 = vshrl.u32 %v7293, 7
    %v7295 = vadd.s32 %v7294, 8
    %7296 = vset.pattern.permute.xlu0 %v7295
    %7297 = vperm.xlu0 %7296, %v7286
    %v7298 = vpop.permute.xlu0 %7297
    %v7299 = vperm.slane %v3548, 2
    %v7300 = vlaneseq
    %v7301 = vshrl.u32 %v7300, 7
    %7303 = vset.pattern.permute.xlu0 %v7301
    %7304 = vperm.xlu0 %7303, %v7299
    %v7305 = vpop.permute.xlu0 %7304
    %v7306 = vlaneseq
    %v7307 = vshrl.u32 %v7306, 7
    %v7308 = vadd.s32 %v7307, 8
    %7309 = vset.pattern.permute.xlu0 %v7308
    %7310 = vperm.xlu0 %7309, %v7299
    %v7311 = vpop.permute.xlu0 %7310
    %v7312 = vperm.slane %v3548, 3
    %v7313 = vlaneseq
    %v7314 = vshrl.u32 %v7313, 7
    %7316 = vset.pattern.permute.xlu0 %v7314
    %7317 = vperm.xlu0 %7316, %v7312
    %v7318 = vpop.permute.xlu0 %7317
    %v7319 = vlaneseq
    %v7320 = vshrl.u32 %v7319, 7
    %v7321 = vadd.s32 %v7320, 8
    %7322 = vset.pattern.permute.xlu0 %v7321
    %7323 = vperm.xlu0 %7322, %v7312
    %v7324 = vpop.permute.xlu0 %7323
    %v7325 = vperm.slane %v3548, 4
    %v7326 = vlaneseq
    %v7327 = vshrl.u32 %v7326, 7
    %7329 = vset.pattern.permute.xlu0 %v7327
    %7330 = vperm.xlu0 %7329, %v7325
    %v7331 = vpop.permute.xlu0 %7330
    %v7332 = vlaneseq
    %v7333 = vshrl.u32 %v7332, 7
    %v7334 = vadd.s32 %v7333, 8
    %7335 = vset.pattern.permute.xlu0 %v7334
    %7336 = vperm.xlu0 %7335, %v7325
    %v7337 = vpop.permute.xlu0 %7336
    %v7338 = vperm.slane %v3548, 5
    %v7339 = vlaneseq
    %v7340 = vshrl.u32 %v7339, 7
    %7342 = vset.pattern.permute.xlu0 %v7340
    %7343 = vperm.xlu0 %7342, %v7338
    %v7344 = vpop.permute.xlu0 %7343
    %v7345 = vlaneseq
    %v7346 = vshrl.u32 %v7345, 7
    %v7347 = vadd.s32 %v7346, 8
    %7348 = vset.pattern.permute.xlu0 %v7347
    %7349 = vperm.xlu0 %7348, %v7338
    %v7350 = vpop.permute.xlu0 %7349
    %v7351 = vperm.slane %v3548, 6
    %v7352 = vlaneseq
    %v7353 = vshrl.u32 %v7352, 7
    %7355 = vset.pattern.permute.xlu0 %v7353
    %7356 = vperm.xlu0 %7355, %v7351
    %v7357 = vpop.permute.xlu0 %7356
    %v7358 = vlaneseq
    %v7359 = vshrl.u32 %v7358, 7
    %v7360 = vadd.s32 %v7359, 8
    %7361 = vset.pattern.permute.xlu0 %v7360
    %7362 = vperm.xlu0 %7361, %v7351
    %v7363 = vpop.permute.xlu0 %7362
    %v7364 = vperm.slane %v3548, 7
    %v7365 = vlaneseq
    %v7366 = vshrl.u32 %v7365, 7
    %7368 = vset.pattern.permute.xlu0 %v7366
    %7369 = vperm.xlu0 %7368, %v7364
    %v7370 = vpop.permute.xlu0 %7369
    %v7371 = vlaneseq
    %v7372 = vshrl.u32 %v7371, 7
    %v7373 = vadd.s32 %v7372, 8
    %7374 = vset.pattern.permute.xlu0 %v7373
    %7375 = vperm.xlu0 %7374, %v7364
    %v7376 = vpop.permute.xlu0 %7375
    %v7377 = vperm.slane %v3702, 0
    %v7378 = vlaneseq
    %v7379 = vshrl.u32 %v7378, 7
    %7381 = vset.pattern.permute.xlu0 %v7379
    %7382 = vperm.xlu0 %7381, %v7377
    %v7383 = vpop.permute.xlu0 %7382
    %v7384 = vlaneseq
    %v7385 = vshrl.u32 %v7384, 7
    %v7386 = vadd.s32 %v7385, 8
    %7387 = vset.pattern.permute.xlu0 %v7386
    %7388 = vperm.xlu0 %7387, %v7377
    %v7389 = vpop.permute.xlu0 %7388
    %v7390 = vperm.slane %v3702, 1
    %v7391 = vlaneseq
    %v7392 = vshrl.u32 %v7391, 7
    %7394 = vset.pattern.permute.xlu0 %v7392
    %7395 = vperm.xlu0 %7394, %v7390
    %v7396 = vpop.permute.xlu0 %7395
    %v7397 = vlaneseq
    %v7398 = vshrl.u32 %v7397, 7
    %v7399 = vadd.s32 %v7398, 8
    %7400 = vset.pattern.permute.xlu0 %v7399
    %7401 = vperm.xlu0 %7400, %v7390
    %v7402 = vpop.permute.xlu0 %7401
    %v7403 = vperm.slane %v3702, 2
    %v7404 = vlaneseq
    %v7405 = vshrl.u32 %v7404, 7
    %7407 = vset.pattern.permute.xlu0 %v7405
    %7408 = vperm.xlu0 %7407, %v7403
    %v7409 = vpop.permute.xlu0 %7408
    %v7410 = vlaneseq
    %v7411 = vshrl.u32 %v7410, 7
    %v7412 = vadd.s32 %v7411, 8
    %7413 = vset.pattern.permute.xlu0 %v7412
    %7414 = vperm.xlu0 %7413, %v7403
    %v7415 = vpop.permute.xlu0 %7414
    %v7416 = vperm.slane %v3702, 3
    %v7417 = vlaneseq
    %v7418 = vshrl.u32 %v7417, 7
    %7420 = vset.pattern.permute.xlu0 %v7418
    %7421 = vperm.xlu0 %7420, %v7416
    %v7422 = vpop.permute.xlu0 %7421
    %v7423 = vlaneseq
    %v7424 = vshrl.u32 %v7423, 7
    %v7425 = vadd.s32 %v7424, 8
    %7426 = vset.pattern.permute.xlu0 %v7425
    %7427 = vperm.xlu0 %7426, %v7416
    %v7428 = vpop.permute.xlu0 %7427
    %v7429 = vperm.slane %v3702, 4
    %v7430 = vlaneseq
    %v7431 = vshrl.u32 %v7430, 7
    %7433 = vset.pattern.permute.xlu0 %v7431
    %7434 = vperm.xlu0 %7433, %v7429
    %v7435 = vpop.permute.xlu0 %7434
    %v7436 = vlaneseq
    %v7437 = vshrl.u32 %v7436, 7
    %v7438 = vadd.s32 %v7437, 8
    %7439 = vset.pattern.permute.xlu0 %v7438
    %7440 = vperm.xlu0 %7439, %v7429
    %v7441 = vpop.permute.xlu0 %7440
    %v7442 = vperm.slane %v3702, 5
    %v7443 = vlaneseq
    %v7444 = vshrl.u32 %v7443, 7
    %7446 = vset.pattern.permute.xlu0 %v7444
    %7447 = vperm.xlu0 %7446, %v7442
    %v7448 = vpop.permute.xlu0 %7447
    %v7449 = vlaneseq
    %v7450 = vshrl.u32 %v7449, 7
    %v7451 = vadd.s32 %v7450, 8
    %7452 = vset.pattern.permute.xlu0 %v7451
    %7453 = vperm.xlu0 %7452, %v7442
    %v7454 = vpop.permute.xlu0 %7453
    %v7455 = vperm.slane %v3702, 6
    %v7456 = vlaneseq
    %v7457 = vshrl.u32 %v7456, 7
    %7459 = vset.pattern.permute.xlu0 %v7457
    %7460 = vperm.xlu0 %7459, %v7455
    %v7461 = vpop.permute.xlu0 %7460
    %v7462 = vlaneseq
    %v7463 = vshrl.u32 %v7462, 7
    %v7464 = vadd.s32 %v7463, 8
    %7465 = vset.pattern.permute.xlu0 %v7464
    %7466 = vperm.xlu0 %7465, %v7455
    %v7467 = vpop.permute.xlu0 %7466
    %v7468 = vperm.slane %v3702, 7
    %v7469 = vlaneseq
    %v7470 = vshrl.u32 %v7469, 7
    %7472 = vset.pattern.permute.xlu0 %v7470
    %7473 = vperm.xlu0 %7472, %v7468
    %v7474 = vpop.permute.xlu0 %7473
    %v7475 = vlaneseq
    %v7476 = vshrl.u32 %v7475, 7
    %v7477 = vadd.s32 %v7476, 8
    %7478 = vset.pattern.permute.xlu0 %v7477
    %7479 = vperm.xlu0 %7478, %v7468
    %v7480 = vpop.permute.xlu0 %7479
    %v7481 = vperm.slane %v3856, 0
    %v7482 = vlaneseq
    %v7483 = vshrl.u32 %v7482, 7
    %7485 = vset.pattern.permute.xlu0 %v7483
    %7486 = vperm.xlu0 %7485, %v7481
    %v7487 = vpop.permute.xlu0 %7486
    %v7488 = vlaneseq
    %v7489 = vshrl.u32 %v7488, 7
    %v7490 = vadd.s32 %v7489, 8
    %7491 = vset.pattern.permute.xlu0 %v7490
    %7492 = vperm.xlu0 %7491, %v7481
    %v7493 = vpop.permute.xlu0 %7492
    %v7494 = vperm.slane %v3856, 1
    %v7495 = vlaneseq
    %v7496 = vshrl.u32 %v7495, 7
    %7498 = vset.pattern.permute.xlu0 %v7496
    %7499 = vperm.xlu0 %7498, %v7494
    %v7500 = vpop.permute.xlu0 %7499
    %v7501 = vlaneseq
    %v7502 = vshrl.u32 %v7501, 7
    %v7503 = vadd.s32 %v7502, 8
    %7504 = vset.pattern.permute.xlu0 %v7503
    %7505 = vperm.xlu0 %7504, %v7494
    %v7506 = vpop.permute.xlu0 %7505
    %v7507 = vperm.slane %v3856, 2
    %v7508 = vlaneseq
    %v7509 = vshrl.u32 %v7508, 7
    %7511 = vset.pattern.permute.xlu0 %v7509
    %7512 = vperm.xlu0 %7511, %v7507
    %v7513 = vpop.permute.xlu0 %7512
    %v7514 = vlaneseq
    %v7515 = vshrl.u32 %v7514, 7
    %v7516 = vadd.s32 %v7515, 8
    %7517 = vset.pattern.permute.xlu0 %v7516
    %7518 = vperm.xlu0 %7517, %v7507
    %v7519 = vpop.permute.xlu0 %7518
    %v7520 = vperm.slane %v3856, 3
    %v7521 = vlaneseq
    %v7522 = vshrl.u32 %v7521, 7
    %7524 = vset.pattern.permute.xlu0 %v7522
    %7525 = vperm.xlu0 %7524, %v7520
    %v7526 = vpop.permute.xlu0 %7525
    %v7527 = vlaneseq
    %v7528 = vshrl.u32 %v7527, 7
    %v7529 = vadd.s32 %v7528, 8
    %7530 = vset.pattern.permute.xlu0 %v7529
    %7531 = vperm.xlu0 %7530, %v7520
    %v7532 = vpop.permute.xlu0 %7531
    %v7533 = vperm.slane %v3856, 4
    %v7534 = vlaneseq
    %v7535 = vshrl.u32 %v7534, 7
    %7537 = vset.pattern.permute.xlu0 %v7535
    %7538 = vperm.xlu0 %7537, %v7533
    %v7539 = vpop.permute.xlu0 %7538
    %v7540 = vlaneseq
    %v7541 = vshrl.u32 %v7540, 7
    %v7542 = vadd.s32 %v7541, 8
    %7543 = vset.pattern.permute.xlu0 %v7542
    %7544 = vperm.xlu0 %7543, %v7533
    %v7545 = vpop.permute.xlu0 %7544
    %v7546 = vperm.slane %v3856, 5
    %v7547 = vlaneseq
    %v7548 = vshrl.u32 %v7547, 7
    %7550 = vset.pattern.permute.xlu0 %v7548
    %7551 = vperm.xlu0 %7550, %v7546
    %v7552 = vpop.permute.xlu0 %7551
    %v7553 = vlaneseq
    %v7554 = vshrl.u32 %v7553, 7
    %v7555 = vadd.s32 %v7554, 8
    %7556 = vset.pattern.permute.xlu0 %v7555
    %7557 = vperm.xlu0 %7556, %v7546
    %v7558 = vpop.permute.xlu0 %7557
    %v7559 = vperm.slane %v3856, 6
    %v7560 = vlaneseq
    %v7561 = vshrl.u32 %v7560, 7
    %7563 = vset.pattern.permute.xlu0 %v7561
    %7564 = vperm.xlu0 %7563, %v7559
    %v7565 = vpop.permute.xlu0 %7564
    %v7566 = vlaneseq
    %v7567 = vshrl.u32 %v7566, 7
    %v7568 = vadd.s32 %v7567, 8
    %7569 = vset.pattern.permute.xlu0 %v7568
    %7570 = vperm.xlu0 %7569, %v7559
    %v7571 = vpop.permute.xlu0 %7570
    %v7572 = vperm.slane %v3856, 7
    %v7573 = vlaneseq
    %v7574 = vshrl.u32 %v7573, 7
    %7576 = vset.pattern.permute.xlu0 %v7574
    %7577 = vperm.xlu0 %7576, %v7572
    %v7578 = vpop.permute.xlu0 %7577
    %v7579 = vlaneseq
    %v7580 = vshrl.u32 %v7579, 7
    %v7581 = vadd.s32 %v7580, 8
    %7582 = vset.pattern.permute.xlu0 %v7581
    %7583 = vperm.xlu0 %7582, %v7572
    %v7584 = vpop.permute.xlu0 %7583
    %v7585 = vperm.slane %v4010, 0
    %v7586 = vlaneseq
    %v7587 = vshrl.u32 %v7586, 7
    %7589 = vset.pattern.permute.xlu0 %v7587
    %7590 = vperm.xlu0 %7589, %v7585
    %v7591 = vpop.permute.xlu0 %7590
    %v7592 = vlaneseq
    %v7593 = vshrl.u32 %v7592, 7
    %v7594 = vadd.s32 %v7593, 8
    %7595 = vset.pattern.permute.xlu0 %v7594
    %7596 = vperm.xlu0 %7595, %v7585
    %v7597 = vpop.permute.xlu0 %7596
    %v7598 = vperm.slane %v4010, 1
    %v7599 = vlaneseq
    %v7600 = vshrl.u32 %v7599, 7
    %7602 = vset.pattern.permute.xlu0 %v7600
    %7603 = vperm.xlu0 %7602, %v7598
    %v7604 = vpop.permute.xlu0 %7603
    %v7605 = vlaneseq
    %v7606 = vshrl.u32 %v7605, 7
    %v7607 = vadd.s32 %v7606, 8
    %7608 = vset.pattern.permute.xlu0 %v7607
    %7609 = vperm.xlu0 %7608, %v7598
    %v7610 = vpop.permute.xlu0 %7609
    %v7611 = vperm.slane %v4010, 2
    %v7612 = vlaneseq
    %v7613 = vshrl.u32 %v7612, 7
    %7615 = vset.pattern.permute.xlu0 %v7613
    %7616 = vperm.xlu0 %7615, %v7611
    %v7617 = vpop.permute.xlu0 %7616
    %v7618 = vlaneseq
    %v7619 = vshrl.u32 %v7618, 7
    %v7620 = vadd.s32 %v7619, 8
    %7621 = vset.pattern.permute.xlu0 %v7620
    %7622 = vperm.xlu0 %7621, %v7611
    %v7623 = vpop.permute.xlu0 %7622
    %v7624 = vperm.slane %v4010, 3
    %v7625 = vlaneseq
    %v7626 = vshrl.u32 %v7625, 7
    %7628 = vset.pattern.permute.xlu0 %v7626
    %7629 = vperm.xlu0 %7628, %v7624
    %v7630 = vpop.permute.xlu0 %7629
    %v7631 = vlaneseq
    %v7632 = vshrl.u32 %v7631, 7
    %v7633 = vadd.s32 %v7632, 8
    %7634 = vset.pattern.permute.xlu0 %v7633
    %7635 = vperm.xlu0 %7634, %v7624
    %v7636 = vpop.permute.xlu0 %7635
    %v7637 = vperm.slane %v4010, 4
    %v7638 = vlaneseq
    %v7639 = vshrl.u32 %v7638, 7
    %7641 = vset.pattern.permute.xlu0 %v7639
    %7642 = vperm.xlu0 %7641, %v7637
    %v7643 = vpop.permute.xlu0 %7642
    %v7644 = vlaneseq
    %v7645 = vshrl.u32 %v7644, 7
    %v7646 = vadd.s32 %v7645, 8
    %7647 = vset.pattern.permute.xlu0 %v7646
    %7648 = vperm.xlu0 %7647, %v7637
    %v7649 = vpop.permute.xlu0 %7648
    %v7650 = vperm.slane %v4010, 5
    %v7651 = vlaneseq
    %v7652 = vshrl.u32 %v7651, 7
    %7654 = vset.pattern.permute.xlu0 %v7652
    %7655 = vperm.xlu0 %7654, %v7650
    %v7656 = vpop.permute.xlu0 %7655
    %v7657 = vlaneseq
    %v7658 = vshrl.u32 %v7657, 7
    %v7659 = vadd.s32 %v7658, 8
    %7660 = vset.pattern.permute.xlu0 %v7659
    %7661 = vperm.xlu0 %7660, %v7650
    %v7662 = vpop.permute.xlu0 %7661
    %v7663 = vperm.slane %v4010, 6
    %v7664 = vlaneseq
    %v7665 = vshrl.u32 %v7664, 7
    %7667 = vset.pattern.permute.xlu0 %v7665
    %7668 = vperm.xlu0 %7667, %v7663
    %v7669 = vpop.permute.xlu0 %7668
    %v7670 = vlaneseq
    %v7671 = vshrl.u32 %v7670, 7
    %v7672 = vadd.s32 %v7671, 8
    %7673 = vset.pattern.permute.xlu0 %v7672
    %7674 = vperm.xlu0 %7673, %v7663
    %v7675 = vpop.permute.xlu0 %7674
    %v7676 = vperm.slane %v4010, 7
    %v7677 = vlaneseq
    %v7678 = vshrl.u32 %v7677, 7
    %7680 = vset.pattern.permute.xlu0 %v7678
    %7681 = vperm.xlu0 %7680, %v7676
    %v7682 = vpop.permute.xlu0 %7681
    %v7683 = vlaneseq
    %v7684 = vshrl.u32 %v7683, 7
    %v7685 = vadd.s32 %v7684, 8
    %7686 = vset.pattern.permute.xlu0 %v7685
    %7687 = vperm.xlu0 %7686, %v7676
    %v7688 = vpop.permute.xlu0 %7687
    %v7689 = vperm.slane %v4164, 0
    %v7690 = vlaneseq
    %v7691 = vshrl.u32 %v7690, 7
    %7693 = vset.pattern.permute.xlu0 %v7691
    %7694 = vperm.xlu0 %7693, %v7689
    %v7695 = vpop.permute.xlu0 %7694
    %v7696 = vlaneseq
    %v7697 = vshrl.u32 %v7696, 7
    %v7698 = vadd.s32 %v7697, 8
    %7699 = vset.pattern.permute.xlu0 %v7698
    %7700 = vperm.xlu0 %7699, %v7689
    %v7701 = vpop.permute.xlu0 %7700
    %v7702 = vperm.slane %v4164, 1
    %v7703 = vlaneseq
    %v7704 = vshrl.u32 %v7703, 7
    %7706 = vset.pattern.permute.xlu0 %v7704
    %7707 = vperm.xlu0 %7706, %v7702
    %v7708 = vpop.permute.xlu0 %7707
    %v7709 = vlaneseq
    %v7710 = vshrl.u32 %v7709, 7
    %v7711 = vadd.s32 %v7710, 8
    %7712 = vset.pattern.permute.xlu0 %v7711
    %7713 = vperm.xlu0 %7712, %v7702
    %v7714 = vpop.permute.xlu0 %7713
    %v7715 = vperm.slane %v4164, 2
    %v7716 = vlaneseq
    %v7717 = vshrl.u32 %v7716, 7
    %7719 = vset.pattern.permute.xlu0 %v7717
    %7720 = vperm.xlu0 %7719, %v7715
    %v7721 = vpop.permute.xlu0 %7720
    %v7722 = vlaneseq
    %v7723 = vshrl.u32 %v7722, 7
    %v7724 = vadd.s32 %v7723, 8
    %7725 = vset.pattern.permute.xlu0 %v7724
    %7726 = vperm.xlu0 %7725, %v7715
    %v7727 = vpop.permute.xlu0 %7726
    %v7728 = vperm.slane %v4164, 3
    %v7729 = vlaneseq
    %v7730 = vshrl.u32 %v7729, 7
    %7732 = vset.pattern.permute.xlu0 %v7730
    %7733 = vperm.xlu0 %7732, %v7728
    %v7734 = vpop.permute.xlu0 %7733
    %v7735 = vlaneseq
    %v7736 = vshrl.u32 %v7735, 7
    %v7737 = vadd.s32 %v7736, 8
    %7738 = vset.pattern.permute.xlu0 %v7737
    %7739 = vperm.xlu0 %7738, %v7728
    %v7740 = vpop.permute.xlu0 %7739
    %v7741 = vperm.slane %v4164, 4
    %v7742 = vlaneseq
    %v7743 = vshrl.u32 %v7742, 7
    %7745 = vset.pattern.permute.xlu0 %v7743
    %7746 = vperm.xlu0 %7745, %v7741
    %v7747 = vpop.permute.xlu0 %7746
    %v7748 = vlaneseq
    %v7749 = vshrl.u32 %v7748, 7
    %v7750 = vadd.s32 %v7749, 8
    %7751 = vset.pattern.permute.xlu0 %v7750
    %7752 = vperm.xlu0 %7751, %v7741
    %v7753 = vpop.permute.xlu0 %7752
    %v7754 = vperm.slane %v4164, 5
    %v7755 = vlaneseq
    %v7756 = vshrl.u32 %v7755, 7
    %7758 = vset.pattern.permute.xlu0 %v7756
    %7759 = vperm.xlu0 %7758, %v7754
    %v7760 = vpop.permute.xlu0 %7759
    %v7761 = vlaneseq
    %v7762 = vshrl.u32 %v7761, 7
    %v7763 = vadd.s32 %v7762, 8
    %7764 = vset.pattern.permute.xlu0 %v7763
    %7765 = vperm.xlu0 %7764, %v7754
    %v7766 = vpop.permute.xlu0 %7765
    %v7767 = vperm.slane %v4164, 6
    %v7768 = vlaneseq
    %v7769 = vshrl.u32 %v7768, 7
    %7771 = vset.pattern.permute.xlu0 %v7769
    %7772 = vperm.xlu0 %7771, %v7767
    %v7773 = vpop.permute.xlu0 %7772
    %v7774 = vlaneseq
    %v7775 = vshrl.u32 %v7774, 7
    %v7776 = vadd.s32 %v7775, 8
    %7777 = vset.pattern.permute.xlu0 %v7776
    %7778 = vperm.xlu0 %7777, %v7767
    %v7779 = vpop.permute.xlu0 %7778
    %v7780 = vperm.slane %v4164, 7
    %v7781 = vlaneseq
    %v7782 = vshrl.u32 %v7781, 7
    %7784 = vset.pattern.permute.xlu0 %v7782
    %7785 = vperm.xlu0 %7784, %v7780
    %v7786 = vpop.permute.xlu0 %7785
    %v7787 = vlaneseq
    %v7788 = vshrl.u32 %v7787, 7
    %v7789 = vadd.s32 %v7788, 8
    %7790 = vset.pattern.permute.xlu0 %v7789
    %7791 = vperm.xlu0 %7790, %v7780
    %v7792 = vpop.permute.xlu0 %7791
    %v7793 = vperm.slane %v4318, 0
    %v7794 = vlaneseq
    %v7795 = vshrl.u32 %v7794, 7
    %7797 = vset.pattern.permute.xlu0 %v7795
    %7798 = vperm.xlu0 %7797, %v7793
    %v7799 = vpop.permute.xlu0 %7798
    %v7800 = vlaneseq
    %v7801 = vshrl.u32 %v7800, 7
    %v7802 = vadd.s32 %v7801, 8
    %7803 = vset.pattern.permute.xlu0 %v7802
    %7804 = vperm.xlu0 %7803, %v7793
    %v7805 = vpop.permute.xlu0 %7804
    %v7806 = vperm.slane %v4318, 1
    %v7807 = vlaneseq
    %v7808 = vshrl.u32 %v7807, 7
    %7810 = vset.pattern.permute.xlu0 %v7808
    %7811 = vperm.xlu0 %7810, %v7806
    %v7812 = vpop.permute.xlu0 %7811
    %v7813 = vlaneseq
    %v7814 = vshrl.u32 %v7813, 7
    %v7815 = vadd.s32 %v7814, 8
    %7816 = vset.pattern.permute.xlu0 %v7815
    %7817 = vperm.xlu0 %7816, %v7806
    %v7818 = vpop.permute.xlu0 %7817
    %v7819 = vperm.slane %v4318, 2
    %v7820 = vlaneseq
    %v7821 = vshrl.u32 %v7820, 7
    %7823 = vset.pattern.permute.xlu0 %v7821
    %7824 = vperm.xlu0 %7823, %v7819
    %v7825 = vpop.permute.xlu0 %7824
    %v7826 = vlaneseq
    %v7827 = vshrl.u32 %v7826, 7
    %v7828 = vadd.s32 %v7827, 8
    %7829 = vset.pattern.permute.xlu0 %v7828
    %7830 = vperm.xlu0 %7829, %v7819
    %v7831 = vpop.permute.xlu0 %7830
    %v7832 = vperm.slane %v4318, 3
    %v7833 = vlaneseq
    %v7834 = vshrl.u32 %v7833, 7
    %7836 = vset.pattern.permute.xlu0 %v7834
    %7837 = vperm.xlu0 %7836, %v7832
    %v7838 = vpop.permute.xlu0 %7837
    %v7839 = vlaneseq
    %v7840 = vshrl.u32 %v7839, 7
    %v7841 = vadd.s32 %v7840, 8
    %7842 = vset.pattern.permute.xlu0 %v7841
    %7843 = vperm.xlu0 %7842, %v7832
    %v7844 = vpop.permute.xlu0 %7843
    %v7845 = vperm.slane %v4318, 4
    %v7846 = vlaneseq
    %v7847 = vshrl.u32 %v7846, 7
    %7849 = vset.pattern.permute.xlu0 %v7847
    %7850 = vperm.xlu0 %7849, %v7845
    %v7851 = vpop.permute.xlu0 %7850
    %v7852 = vlaneseq
    %v7853 = vshrl.u32 %v7852, 7
    %v7854 = vadd.s32 %v7853, 8
    %7855 = vset.pattern.permute.xlu0 %v7854
    %7856 = vperm.xlu0 %7855, %v7845
    %v7857 = vpop.permute.xlu0 %7856
    %v7858 = vperm.slane %v4318, 5
    %v7859 = vlaneseq
    %v7860 = vshrl.u32 %v7859, 7
    %7862 = vset.pattern.permute.xlu0 %v7860
    %7863 = vperm.xlu0 %7862, %v7858
    %v7864 = vpop.permute.xlu0 %7863
    %v7865 = vlaneseq
    %v7866 = vshrl.u32 %v7865, 7
    %v7867 = vadd.s32 %v7866, 8
    %7868 = vset.pattern.permute.xlu0 %v7867
    %7869 = vperm.xlu0 %7868, %v7858
    %v7870 = vpop.permute.xlu0 %7869
    %v7871 = vperm.slane %v4318, 6
    %v7872 = vlaneseq
    %v7873 = vshrl.u32 %v7872, 7
    %7875 = vset.pattern.permute.xlu0 %v7873
    %7876 = vperm.xlu0 %7875, %v7871
    %v7877 = vpop.permute.xlu0 %7876
    %v7878 = vlaneseq
    %v7879 = vshrl.u32 %v7878, 7
    %v7880 = vadd.s32 %v7879, 8
    %7881 = vset.pattern.permute.xlu0 %v7880
    %7882 = vperm.xlu0 %7881, %v7871
    %v7883 = vpop.permute.xlu0 %7882
    %v7884 = vperm.slane %v4318, 7
    %v7885 = vlaneseq
    %v7886 = vshrl.u32 %v7885, 7
    %7888 = vset.pattern.permute.xlu0 %v7886
    %7889 = vperm.xlu0 %7888, %v7884
    %v7890 = vpop.permute.xlu0 %7889
    %v7891 = vlaneseq
    %v7892 = vshrl.u32 %v7891, 7
    %v7893 = vadd.s32 %v7892, 8
    %7894 = vset.pattern.permute.xlu0 %v7893
    %7895 = vperm.xlu0 %7894, %v7884
    %v7896 = vpop.permute.xlu0 %7895
    %v7897 = vperm.slane %v4472, 0
    %v7898 = vlaneseq
    %v7899 = vshrl.u32 %v7898, 7
    %7901 = vset.pattern.permute.xlu0 %v7899
    %7902 = vperm.xlu0 %7901, %v7897
    %v7903 = vpop.permute.xlu0 %7902
    %v7904 = vlaneseq
    %v7905 = vshrl.u32 %v7904, 7
    %v7906 = vadd.s32 %v7905, 8
    %7907 = vset.pattern.permute.xlu0 %v7906
    %7908 = vperm.xlu0 %7907, %v7897
    %v7909 = vpop.permute.xlu0 %7908
    %v7910 = vperm.slane %v4472, 1
    %v7911 = vlaneseq
    %v7912 = vshrl.u32 %v7911, 7
    %7914 = vset.pattern.permute.xlu0 %v7912
    %7915 = vperm.xlu0 %7914, %v7910
    %v7916 = vpop.permute.xlu0 %7915
    %v7917 = vlaneseq
    %v7918 = vshrl.u32 %v7917, 7
    %v7919 = vadd.s32 %v7918, 8
    %7920 = vset.pattern.permute.xlu0 %v7919
    %7921 = vperm.xlu0 %7920, %v7910
    %v7922 = vpop.permute.xlu0 %7921
    %v7923 = vperm.slane %v4472, 2
    %v7924 = vlaneseq
    %v7925 = vshrl.u32 %v7924, 7
    %7927 = vset.pattern.permute.xlu0 %v7925
    %7928 = vperm.xlu0 %7927, %v7923
    %v7929 = vpop.permute.xlu0 %7928
    %v7930 = vlaneseq
    %v7931 = vshrl.u32 %v7930, 7
    %v7932 = vadd.s32 %v7931, 8
    %7933 = vset.pattern.permute.xlu0 %v7932
    %7934 = vperm.xlu0 %7933, %v7923
    %v7935 = vpop.permute.xlu0 %7934
    %v7936 = vperm.slane %v4472, 3
    %v7937 = vlaneseq
    %v7938 = vshrl.u32 %v7937, 7
    %7940 = vset.pattern.permute.xlu0 %v7938
    %7941 = vperm.xlu0 %7940, %v7936
    %v7942 = vpop.permute.xlu0 %7941
    %v7943 = vlaneseq
    %v7944 = vshrl.u32 %v7943, 7
    %v7945 = vadd.s32 %v7944, 8
    %7946 = vset.pattern.permute.xlu0 %v7945
    %7947 = vperm.xlu0 %7946, %v7936
    %v7948 = vpop.permute.xlu0 %7947
    %v7949 = vperm.slane %v4472, 4
    %v7950 = vlaneseq
    %v7951 = vshrl.u32 %v7950, 7
    %7953 = vset.pattern.permute.xlu0 %v7951
    %7954 = vperm.xlu0 %7953, %v7949
    %v7955 = vpop.permute.xlu0 %7954
    %v7956 = vlaneseq
    %v7957 = vshrl.u32 %v7956, 7
    %v7958 = vadd.s32 %v7957, 8
    %7959 = vset.pattern.permute.xlu0 %v7958
    %7960 = vperm.xlu0 %7959, %v7949
    %v7961 = vpop.permute.xlu0 %7960
    %v7962 = vperm.slane %v4472, 5
    %v7963 = vlaneseq
    %v7964 = vshrl.u32 %v7963, 7
    %7966 = vset.pattern.permute.xlu0 %v7964
    %7967 = vperm.xlu0 %7966, %v7962
    %v7968 = vpop.permute.xlu0 %7967
    %v7969 = vlaneseq
    %v7970 = vshrl.u32 %v7969, 7
    %v7971 = vadd.s32 %v7970, 8
    %7972 = vset.pattern.permute.xlu0 %v7971
    %7973 = vperm.xlu0 %7972, %v7962
    %v7974 = vpop.permute.xlu0 %7973
    %v7975 = vperm.slane %v4472, 6
    %v7976 = vlaneseq
    %v7977 = vshrl.u32 %v7976, 7
    %7979 = vset.pattern.permute.xlu0 %v7977
    %7980 = vperm.xlu0 %7979, %v7975
    %v7981 = vpop.permute.xlu0 %7980
    %v7982 = vlaneseq
    %v7983 = vshrl.u32 %v7982, 7
    %v7984 = vadd.s32 %v7983, 8
    %7985 = vset.pattern.permute.xlu0 %v7984
    %7986 = vperm.xlu0 %7985, %v7975
    %v7987 = vpop.permute.xlu0 %7986
    %v7988 = vperm.slane %v4472, 7
    %v7989 = vlaneseq
    %v7990 = vshrl.u32 %v7989, 7
    %7992 = vset.pattern.permute.xlu0 %v7990
    %7993 = vperm.xlu0 %7992, %v7988
    %v7994 = vpop.permute.xlu0 %7993
    %v7995 = vlaneseq
    %v7996 = vshrl.u32 %v7995, 7
    %v7997 = vadd.s32 %v7996, 8
    %7998 = vset.pattern.permute.xlu0 %v7997
    %7999 = vperm.xlu0 %7998, %v7988
    %v8000 = vpop.permute.xlu0 %7999
    %v8001 = vperm.slane %v4626, 0
    %v8002 = vlaneseq
    %v8003 = vshrl.u32 %v8002, 7
    %8005 = vset.pattern.permute.xlu0 %v8003
    %8006 = vperm.xlu0 %8005, %v8001
    %v8007 = vpop.permute.xlu0 %8006
    %v8008 = vlaneseq
    %v8009 = vshrl.u32 %v8008, 7
    %v8010 = vadd.s32 %v8009, 8
    %8011 = vset.pattern.permute.xlu0 %v8010
    %8012 = vperm.xlu0 %8011, %v8001
    %v8013 = vpop.permute.xlu0 %8012
    %v8014 = vperm.slane %v4626, 1
    %v8015 = vlaneseq
    %v8016 = vshrl.u32 %v8015, 7
    %8018 = vset.pattern.permute.xlu0 %v8016
    %8019 = vperm.xlu0 %8018, %v8014
    %v8020 = vpop.permute.xlu0 %8019
    %v8021 = vlaneseq
    %v8022 = vshrl.u32 %v8021, 7
    %v8023 = vadd.s32 %v8022, 8
    %8024 = vset.pattern.permute.xlu0 %v8023
    %8025 = vperm.xlu0 %8024, %v8014
    %v8026 = vpop.permute.xlu0 %8025
    %v8027 = vperm.slane %v4626, 2
    %v8028 = vlaneseq
    %v8029 = vshrl.u32 %v8028, 7
    %8031 = vset.pattern.permute.xlu0 %v8029
    %8032 = vperm.xlu0 %8031, %v8027
    %v8033 = vpop.permute.xlu0 %8032
    %v8034 = vlaneseq
    %v8035 = vshrl.u32 %v8034, 7
    %v8036 = vadd.s32 %v8035, 8
    %8037 = vset.pattern.permute.xlu0 %v8036
    %8038 = vperm.xlu0 %8037, %v8027
    %v8039 = vpop.permute.xlu0 %8038
    %v8040 = vperm.slane %v4626, 3
    %v8041 = vlaneseq
    %v8042 = vshrl.u32 %v8041, 7
    %8044 = vset.pattern.permute.xlu0 %v8042
    %8045 = vperm.xlu0 %8044, %v8040
    %v8046 = vpop.permute.xlu0 %8045
    %v8047 = vlaneseq
    %v8048 = vshrl.u32 %v8047, 7
    %v8049 = vadd.s32 %v8048, 8
    %8050 = vset.pattern.permute.xlu0 %v8049
    %8051 = vperm.xlu0 %8050, %v8040
    %v8052 = vpop.permute.xlu0 %8051
    %v8053 = vperm.slane %v4626, 4
    %v8054 = vlaneseq
    %v8055 = vshrl.u32 %v8054, 7
    %8057 = vset.pattern.permute.xlu0 %v8055
    %8058 = vperm.xlu0 %8057, %v8053
    %v8059 = vpop.permute.xlu0 %8058
    %v8060 = vlaneseq
    %v8061 = vshrl.u32 %v8060, 7
    %v8062 = vadd.s32 %v8061, 8
    %8063 = vset.pattern.permute.xlu0 %v8062
    %8064 = vperm.xlu0 %8063, %v8053
    %v8065 = vpop.permute.xlu0 %8064
    %v8066 = vperm.slane %v4626, 5
    %v8067 = vlaneseq
    %v8068 = vshrl.u32 %v8067, 7
    %8070 = vset.pattern.permute.xlu0 %v8068
    %8071 = vperm.xlu0 %8070, %v8066
    %v8072 = vpop.permute.xlu0 %8071
    %v8073 = vlaneseq
    %v8074 = vshrl.u32 %v8073, 7
    %v8075 = vadd.s32 %v8074, 8
    %8076 = vset.pattern.permute.xlu0 %v8075
    %8077 = vperm.xlu0 %8076, %v8066
    %v8078 = vpop.permute.xlu0 %8077
    %v8079 = vperm.slane %v4626, 6
    %v8080 = vlaneseq
    %v8081 = vshrl.u32 %v8080, 7
    %8083 = vset.pattern.permute.xlu0 %v8081
    %8084 = vperm.xlu0 %8083, %v8079
    %v8085 = vpop.permute.xlu0 %8084
    %v8086 = vlaneseq
    %v8087 = vshrl.u32 %v8086, 7
    %v8088 = vadd.s32 %v8087, 8
    %8089 = vset.pattern.permute.xlu0 %v8088
    %8090 = vperm.xlu0 %8089, %v8079
    %v8091 = vpop.permute.xlu0 %8090
    %v8092 = vperm.slane %v4626, 7
    %v8093 = vlaneseq
    %v8094 = vshrl.u32 %v8093, 7
    %8096 = vset.pattern.permute.xlu0 %v8094
    %8097 = vperm.xlu0 %8096, %v8092
    %v8098 = vpop.permute.xlu0 %8097
    %v8099 = vlaneseq
    %v8100 = vshrl.u32 %v8099, 7
    %v8101 = vadd.s32 %v8100, 8
    %8102 = vset.pattern.permute.xlu0 %v8101
    %8103 = vperm.xlu0 %8102, %v8092
    %v8104 = vpop.permute.xlu0 %8103
    %v8105 = vperm.slane %v4780, 0
    %v8106 = vlaneseq
    %v8107 = vshrl.u32 %v8106, 7
    %8109 = vset.pattern.permute.xlu0 %v8107
    %8110 = vperm.xlu0 %8109, %v8105
    %v8111 = vpop.permute.xlu0 %8110
    %v8112 = vlaneseq
    %v8113 = vshrl.u32 %v8112, 7
    %v8114 = vadd.s32 %v8113, 8
    %8115 = vset.pattern.permute.xlu0 %v8114
    %8116 = vperm.xlu0 %8115, %v8105
    %v8117 = vpop.permute.xlu0 %8116
    %v8118 = vperm.slane %v4780, 1
    %v8119 = vlaneseq
    %v8120 = vshrl.u32 %v8119, 7
    %8122 = vset.pattern.permute.xlu0 %v8120
    %8123 = vperm.xlu0 %8122, %v8118
    %v8124 = vpop.permute.xlu0 %8123
    %v8125 = vlaneseq
    %v8126 = vshrl.u32 %v8125, 7
    %v8127 = vadd.s32 %v8126, 8
    %8128 = vset.pattern.permute.xlu0 %v8127
    %8129 = vperm.xlu0 %8128, %v8118
    %v8130 = vpop.permute.xlu0 %8129
    %v8131 = vperm.slane %v4780, 2
    %v8132 = vlaneseq
    %v8133 = vshrl.u32 %v8132, 7
    %8135 = vset.pattern.permute.xlu0 %v8133
    %8136 = vperm.xlu0 %8135, %v8131
    %v8137 = vpop.permute.xlu0 %8136
    %v8138 = vlaneseq
    %v8139 = vshrl.u32 %v8138, 7
    %v8140 = vadd.s32 %v8139, 8
    %8141 = vset.pattern.permute.xlu0 %v8140
    %8142 = vperm.xlu0 %8141, %v8131
    %v8143 = vpop.permute.xlu0 %8142
    %v8144 = vperm.slane %v4780, 3
    %v8145 = vlaneseq
    %v8146 = vshrl.u32 %v8145, 7
    %8148 = vset.pattern.permute.xlu0 %v8146
    %8149 = vperm.xlu0 %8148, %v8144
    %v8150 = vpop.permute.xlu0 %8149
    %v8151 = vlaneseq
    %v8152 = vshrl.u32 %v8151, 7
    %v8153 = vadd.s32 %v8152, 8
    %8154 = vset.pattern.permute.xlu0 %v8153
    %8155 = vperm.xlu0 %8154, %v8144
    %v8156 = vpop.permute.xlu0 %8155
    %v8157 = vperm.slane %v4780, 4
    %v8158 = vlaneseq
    %v8159 = vshrl.u32 %v8158, 7
    %8161 = vset.pattern.permute.xlu0 %v8159
    %8162 = vperm.xlu0 %8161, %v8157
    %v8163 = vpop.permute.xlu0 %8162
    %v8164 = vlaneseq
    %v8165 = vshrl.u32 %v8164, 7
    %v8166 = vadd.s32 %v8165, 8
    %8167 = vset.pattern.permute.xlu0 %v8166
    %8168 = vperm.xlu0 %8167, %v8157
    %v8169 = vpop.permute.xlu0 %8168
    %v8170 = vperm.slane %v4780, 5
    %v8171 = vlaneseq
    %v8172 = vshrl.u32 %v8171, 7
    %8174 = vset.pattern.permute.xlu0 %v8172
    %8175 = vperm.xlu0 %8174, %v8170
    %v8176 = vpop.permute.xlu0 %8175
    %v8177 = vlaneseq
    %v8178 = vshrl.u32 %v8177, 7
    %v8179 = vadd.s32 %v8178, 8
    %8180 = vset.pattern.permute.xlu0 %v8179
    %8181 = vperm.xlu0 %8180, %v8170
    %v8182 = vpop.permute.xlu0 %8181
    %v8183 = vperm.slane %v4780, 6
    %v8184 = vlaneseq
    %v8185 = vshrl.u32 %v8184, 7
    %8187 = vset.pattern.permute.xlu0 %v8185
    %8188 = vperm.xlu0 %8187, %v8183
    %v8189 = vpop.permute.xlu0 %8188
    %v8190 = vlaneseq
    %v8191 = vshrl.u32 %v8190, 7
    %v8192 = vadd.s32 %v8191, 8
    %8193 = vset.pattern.permute.xlu0 %v8192
    %8194 = vperm.xlu0 %8193, %v8183
    %v8195 = vpop.permute.xlu0 %8194
    %v8196 = vperm.slane %v4780, 7
    %v8197 = vlaneseq
    %v8198 = vshrl.u32 %v8197, 7
    %8200 = vset.pattern.permute.xlu0 %v8198
    %8201 = vperm.xlu0 %8200, %v8196
    %v8202 = vpop.permute.xlu0 %8201
    %v8203 = vlaneseq
    %v8204 = vshrl.u32 %v8203, 7
    %v8205 = vadd.s32 %v8204, 8
    %8206 = vset.pattern.permute.xlu0 %v8205
    %8207 = vperm.xlu0 %8206, %v8196
    %v8208 = vpop.permute.xlu0 %8207
    %v8209 = vperm.slane %v4934, 0
    %v8210 = vlaneseq
    %v8211 = vshrl.u32 %v8210, 7
    %8213 = vset.pattern.permute.xlu0 %v8211
    %8214 = vperm.xlu0 %8213, %v8209
    %v8215 = vpop.permute.xlu0 %8214
    %v8216 = vlaneseq
    %v8217 = vshrl.u32 %v8216, 7
    %v8218 = vadd.s32 %v8217, 8
    %8219 = vset.pattern.permute.xlu0 %v8218
    %8220 = vperm.xlu0 %8219, %v8209
    %v8221 = vpop.permute.xlu0 %8220
    %v8222 = vperm.slane %v4934, 1
    %v8223 = vlaneseq
    %v8224 = vshrl.u32 %v8223, 7
    %8226 = vset.pattern.permute.xlu0 %v8224
    %8227 = vperm.xlu0 %8226, %v8222
    %v8228 = vpop.permute.xlu0 %8227
    %v8229 = vlaneseq
    %v8230 = vshrl.u32 %v8229, 7
    %v8231 = vadd.s32 %v8230, 8
    %8232 = vset.pattern.permute.xlu0 %v8231
    %8233 = vperm.xlu0 %8232, %v8222
    %v8234 = vpop.permute.xlu0 %8233
    %v8235 = vperm.slane %v4934, 2
    %v8236 = vlaneseq
    %v8237 = vshrl.u32 %v8236, 7
    %8239 = vset.pattern.permute.xlu0 %v8237
    %8240 = vperm.xlu0 %8239, %v8235
    %v8241 = vpop.permute.xlu0 %8240
    %v8242 = vlaneseq
    %v8243 = vshrl.u32 %v8242, 7
    %v8244 = vadd.s32 %v8243, 8
    %8245 = vset.pattern.permute.xlu0 %v8244
    %8246 = vperm.xlu0 %8245, %v8235
    %v8247 = vpop.permute.xlu0 %8246
    %v8248 = vperm.slane %v4934, 3
    %v8249 = vlaneseq
    %v8250 = vshrl.u32 %v8249, 7
    %8252 = vset.pattern.permute.xlu0 %v8250
    %8253 = vperm.xlu0 %8252, %v8248
    %v8254 = vpop.permute.xlu0 %8253
    %v8255 = vlaneseq
    %v8256 = vshrl.u32 %v8255, 7
    %v8257 = vadd.s32 %v8256, 8
    %8258 = vset.pattern.permute.xlu0 %v8257
    %8259 = vperm.xlu0 %8258, %v8248
    %v8260 = vpop.permute.xlu0 %8259
    %v8261 = vperm.slane %v4934, 4
    %v8262 = vlaneseq
    %v8263 = vshrl.u32 %v8262, 7
    %8265 = vset.pattern.permute.xlu0 %v8263
    %8266 = vperm.xlu0 %8265, %v8261
    %v8267 = vpop.permute.xlu0 %8266
    %v8268 = vlaneseq
    %v8269 = vshrl.u32 %v8268, 7
    %v8270 = vadd.s32 %v8269, 8
    %8271 = vset.pattern.permute.xlu0 %v8270
    %8272 = vperm.xlu0 %8271, %v8261
    %v8273 = vpop.permute.xlu0 %8272
    %v8274 = vperm.slane %v4934, 5
    %v8275 = vlaneseq
    %v8276 = vshrl.u32 %v8275, 7
    %8278 = vset.pattern.permute.xlu0 %v8276
    %8279 = vperm.xlu0 %8278, %v8274
    %v8280 = vpop.permute.xlu0 %8279
    %v8281 = vlaneseq
    %v8282 = vshrl.u32 %v8281, 7
    %v8283 = vadd.s32 %v8282, 8
    %8284 = vset.pattern.permute.xlu0 %v8283
    %8285 = vperm.xlu0 %8284, %v8274
    %v8286 = vpop.permute.xlu0 %8285
    %v8287 = vperm.slane %v4934, 6
    %v8288 = vlaneseq
    %v8289 = vshrl.u32 %v8288, 7
    %8291 = vset.pattern.permute.xlu0 %v8289
    %8292 = vperm.xlu0 %8291, %v8287
    %v8293 = vpop.permute.xlu0 %8292
    %v8294 = vlaneseq
    %v8295 = vshrl.u32 %v8294, 7
    %v8296 = vadd.s32 %v8295, 8
    %8297 = vset.pattern.permute.xlu0 %v8296
    %8298 = vperm.xlu0 %8297, %v8287
    %v8299 = vpop.permute.xlu0 %8298
    %v8300 = vperm.slane %v4934, 7
    %v8301 = vlaneseq
    %v8302 = vshrl.u32 %v8301, 7
    %8304 = vset.pattern.permute.xlu0 %v8302
    %8305 = vperm.xlu0 %8304, %v8300
    %v8306 = vpop.permute.xlu0 %8305
    %v8307 = vlaneseq
    %v8308 = vshrl.u32 %v8307, 7
    %v8309 = vadd.s32 %v8308, 8
    %8310 = vset.pattern.permute.xlu0 %v8309
    %8311 = vperm.xlu0 %8310, %v8300
    %v8312 = vpop.permute.xlu0 %8311
    %v8313 = vperm.slane %v5088, 0
    %v8314 = vlaneseq
    %v8315 = vshrl.u32 %v8314, 7
    %8317 = vset.pattern.permute.xlu0 %v8315
    %8318 = vperm.xlu0 %8317, %v8313
    %v8319 = vpop.permute.xlu0 %8318
    %v8320 = vlaneseq
    %v8321 = vshrl.u32 %v8320, 7
    %v8322 = vadd.s32 %v8321, 8
    %8323 = vset.pattern.permute.xlu0 %v8322
    %8324 = vperm.xlu0 %8323, %v8313
    %v8325 = vpop.permute.xlu0 %8324
    %v8326 = vperm.slane %v5088, 1
    %v8327 = vlaneseq
    %v8328 = vshrl.u32 %v8327, 7
    %8330 = vset.pattern.permute.xlu0 %v8328
    %8331 = vperm.xlu0 %8330, %v8326
    %v8332 = vpop.permute.xlu0 %8331
    %v8333 = vlaneseq
    %v8334 = vshrl.u32 %v8333, 7
    %v8335 = vadd.s32 %v8334, 8
    %8336 = vset.pattern.permute.xlu0 %v8335
    %8337 = vperm.xlu0 %8336, %v8326
    %v8338 = vpop.permute.xlu0 %8337
    %v8339 = vperm.slane %v5088, 2
    %v8340 = vlaneseq
    %v8341 = vshrl.u32 %v8340, 7
    %8343 = vset.pattern.permute.xlu0 %v8341
    %8344 = vperm.xlu0 %8343, %v8339
    %v8345 = vpop.permute.xlu0 %8344
    %v8346 = vlaneseq
    %v8347 = vshrl.u32 %v8346, 7
    %v8348 = vadd.s32 %v8347, 8
    %8349 = vset.pattern.permute.xlu0 %v8348
    %8350 = vperm.xlu0 %8349, %v8339
    %v8351 = vpop.permute.xlu0 %8350
    %v8352 = vperm.slane %v5088, 3
    %v8353 = vlaneseq
    %v8354 = vshrl.u32 %v8353, 7
    %8356 = vset.pattern.permute.xlu0 %v8354
    %8357 = vperm.xlu0 %8356, %v8352
    %v8358 = vpop.permute.xlu0 %8357
    %v8359 = vlaneseq
    %v8360 = vshrl.u32 %v8359, 7
    %v8361 = vadd.s32 %v8360, 8
    %8362 = vset.pattern.permute.xlu0 %v8361
    %8363 = vperm.xlu0 %8362, %v8352
    %v8364 = vpop.permute.xlu0 %8363
    %v8365 = vperm.slane %v5088, 4
    %v8366 = vlaneseq
    %v8367 = vshrl.u32 %v8366, 7
    %8369 = vset.pattern.permute.xlu0 %v8367
    %8370 = vperm.xlu0 %8369, %v8365
    %v8371 = vpop.permute.xlu0 %8370
    %v8372 = vlaneseq
    %v8373 = vshrl.u32 %v8372, 7
    %v8374 = vadd.s32 %v8373, 8
    %8375 = vset.pattern.permute.xlu0 %v8374
    %8376 = vperm.xlu0 %8375, %v8365
    %v8377 = vpop.permute.xlu0 %8376
    %v8378 = vperm.slane %v5088, 5
    %v8379 = vlaneseq
    %v8380 = vshrl.u32 %v8379, 7
    %8382 = vset.pattern.permute.xlu0 %v8380
    %8383 = vperm.xlu0 %8382, %v8378
    %v8384 = vpop.permute.xlu0 %8383
    %v8385 = vlaneseq
    %v8386 = vshrl.u32 %v8385, 7
    %v8387 = vadd.s32 %v8386, 8
    %8388 = vset.pattern.permute.xlu0 %v8387
    %8389 = vperm.xlu0 %8388, %v8378
    %v8390 = vpop.permute.xlu0 %8389
    %v8391 = vperm.slane %v5088, 6
    %v8392 = vlaneseq
    %v8393 = vshrl.u32 %v8392, 7
    %8395 = vset.pattern.permute.xlu0 %v8393
    %8396 = vperm.xlu0 %8395, %v8391
    %v8397 = vpop.permute.xlu0 %8396
    %v8398 = vlaneseq
    %v8399 = vshrl.u32 %v8398, 7
    %v8400 = vadd.s32 %v8399, 8
    %8401 = vset.pattern.permute.xlu0 %v8400
    %8402 = vperm.xlu0 %8401, %v8391
    %v8403 = vpop.permute.xlu0 %8402
    %v8404 = vperm.slane %v5088, 7
    %v8405 = vlaneseq
    %v8406 = vshrl.u32 %v8405, 7
    %8408 = vset.pattern.permute.xlu0 %v8406
    %8409 = vperm.xlu0 %8408, %v8404
    %v8410 = vpop.permute.xlu0 %8409
    %v8411 = vlaneseq
    %v8412 = vshrl.u32 %v8411, 7
    %v8413 = vadd.s32 %v8412, 8
    %8414 = vset.pattern.permute.xlu0 %v8413
    %8415 = vperm.xlu0 %8414, %v8404
    %v8416 = vpop.permute.xlu0 %8415
    %v8417 = vperm.slane %v118, 0
    %v8418 = vlaneseq
    %v8419 = vshrl.u32 %v8418, 7
    %8421 = vset.pattern.permute.xlu0 %v8419
    %8422 = vperm.xlu0 %8421, %v8417
    %v8423 = vpop.permute.xlu0 %8422
    %v8424 = vlaneseq
    %v8425 = vshrl.u32 %v8424, 7
    %v8426 = vadd.s32 %v8425, 8
    %8427 = vset.pattern.permute.xlu0 %v8426
    %8428 = vperm.xlu0 %8427, %v8417
    %v8429 = vpop.permute.xlu0 %8428
    %v8430 = vperm.slane %v118, 1
    %v8431 = vlaneseq
    %v8432 = vshrl.u32 %v8431, 7
    %8434 = vset.pattern.permute.xlu0 %v8432
    %8435 = vperm.xlu0 %8434, %v8430
    %v8436 = vpop.permute.xlu0 %8435
    %v8437 = vlaneseq
    %v8438 = vshrl.u32 %v8437, 7
    %v8439 = vadd.s32 %v8438, 8
    %8440 = vset.pattern.permute.xlu0 %v8439
    %8441 = vperm.xlu0 %8440, %v8430
    %v8442 = vpop.permute.xlu0 %8441
    %v8443 = vperm.slane %v118, 2
    %v8444 = vlaneseq
    %v8445 = vshrl.u32 %v8444, 7
    %8447 = vset.pattern.permute.xlu0 %v8445
    %8448 = vperm.xlu0 %8447, %v8443
    %v8449 = vpop.permute.xlu0 %8448
    %v8450 = vlaneseq
    %v8451 = vshrl.u32 %v8450, 7
    %v8452 = vadd.s32 %v8451, 8
    %8453 = vset.pattern.permute.xlu0 %v8452
    %8454 = vperm.xlu0 %8453, %v8443
    %v8455 = vpop.permute.xlu0 %8454
    %v8456 = vperm.slane %v118, 3
    %v8457 = vlaneseq
    %v8458 = vshrl.u32 %v8457, 7
    %8460 = vset.pattern.permute.xlu0 %v8458
    %8461 = vperm.xlu0 %8460, %v8456
    %v8462 = vpop.permute.xlu0 %8461
    %v8463 = vlaneseq
    %v8464 = vshrl.u32 %v8463, 7
    %v8465 = vadd.s32 %v8464, 8
    %8466 = vset.pattern.permute.xlu0 %v8465
    %8467 = vperm.xlu0 %8466, %v8456
    %v8468 = vpop.permute.xlu0 %8467
    %v8469 = vperm.slane %v118, 4
    %v8470 = vlaneseq
    %v8471 = vshrl.u32 %v8470, 7
    %8473 = vset.pattern.permute.xlu0 %v8471
    %8474 = vperm.xlu0 %8473, %v8469
    %v8475 = vpop.permute.xlu0 %8474
    %v8476 = vlaneseq
    %v8477 = vshrl.u32 %v8476, 7
    %v8478 = vadd.s32 %v8477, 8
    %8479 = vset.pattern.permute.xlu0 %v8478
    %8480 = vperm.xlu0 %8479, %v8469
    %v8481 = vpop.permute.xlu0 %8480
    %v8482 = vperm.slane %v118, 5
    %v8483 = vlaneseq
    %v8484 = vshrl.u32 %v8483, 7
    %8486 = vset.pattern.permute.xlu0 %v8484
    %8487 = vperm.xlu0 %8486, %v8482
    %v8488 = vpop.permute.xlu0 %8487
    %v8489 = vlaneseq
    %v8490 = vshrl.u32 %v8489, 7
    %v8491 = vadd.s32 %v8490, 8
    %8492 = vset.pattern.permute.xlu0 %v8491
    %8493 = vperm.xlu0 %8492, %v8482
    %v8494 = vpop.permute.xlu0 %8493
    %v8495 = vperm.slane %v118, 6
    %v8496 = vlaneseq
    %v8497 = vshrl.u32 %v8496, 7
    %8499 = vset.pattern.permute.xlu0 %v8497
    %8500 = vperm.xlu0 %8499, %v8495
    %v8501 = vpop.permute.xlu0 %8500
    %v8502 = vlaneseq
    %v8503 = vshrl.u32 %v8502, 7
    %v8504 = vadd.s32 %v8503, 8
    %8505 = vset.pattern.permute.xlu0 %v8504
    %8506 = vperm.xlu0 %8505, %v8495
    %v8507 = vpop.permute.xlu0 %8506
    %v8508 = vperm.slane %v118, 7
    %v8509 = vlaneseq
    %v8510 = vshrl.u32 %v8509, 7
    %8512 = vset.pattern.permute.xlu0 %v8510
    %8513 = vperm.xlu0 %8512, %v8508
    %v8514 = vpop.permute.xlu0 %8513
    %v8515 = vlaneseq
    %v8516 = vshrl.u32 %v8515, 7
    %v8517 = vadd.s32 %v8516, 8
    %8518 = vset.pattern.permute.xlu0 %v8517
    %8519 = vperm.xlu0 %8518, %v8508
    %v8520 = vpop.permute.xlu0 %8519
    %v8521 = vperm.slane %v130, 0
    %v8522 = vlaneseq
    %v8523 = vshrl.u32 %v8522, 7
    %8525 = vset.pattern.permute.xlu0 %v8523
    %8526 = vperm.xlu0 %8525, %v8521
    %v8527 = vpop.permute.xlu0 %8526
    %v8528 = vlaneseq
    %v8529 = vshrl.u32 %v8528, 7
    %v8530 = vadd.s32 %v8529, 8
    %8531 = vset.pattern.permute.xlu0 %v8530
    %8532 = vperm.xlu0 %8531, %v8521
    %v8533 = vpop.permute.xlu0 %8532
    %v8534 = vperm.slane %v130, 1
    %v8535 = vlaneseq
    %v8536 = vshrl.u32 %v8535, 7
    %8538 = vset.pattern.permute.xlu0 %v8536
    %8539 = vperm.xlu0 %8538, %v8534
    %v8540 = vpop.permute.xlu0 %8539
    %v8541 = vlaneseq
    %v8542 = vshrl.u32 %v8541, 7
    %v8543 = vadd.s32 %v8542, 8
    %8544 = vset.pattern.permute.xlu0 %v8543
    %8545 = vperm.xlu0 %8544, %v8534
    %v8546 = vpop.permute.xlu0 %8545
    %v8547 = vperm.slane %v130, 2
    %v8548 = vlaneseq
    %v8549 = vshrl.u32 %v8548, 7
    %8551 = vset.pattern.permute.xlu0 %v8549
    %8552 = vperm.xlu0 %8551, %v8547
    %v8553 = vpop.permute.xlu0 %8552
    %v8554 = vlaneseq
    %v8555 = vshrl.u32 %v8554, 7
    %v8556 = vadd.s32 %v8555, 8
    %8557 = vset.pattern.permute.xlu0 %v8556
    %8558 = vperm.xlu0 %8557, %v8547
    %v8559 = vpop.permute.xlu0 %8558
    %v8560 = vperm.slane %v130, 3
    %v8561 = vlaneseq
    %v8562 = vshrl.u32 %v8561, 7
    %8564 = vset.pattern.permute.xlu0 %v8562
    %8565 = vperm.xlu0 %8564, %v8560
    %v8566 = vpop.permute.xlu0 %8565
    %v8567 = vlaneseq
    %v8568 = vshrl.u32 %v8567, 7
    %v8569 = vadd.s32 %v8568, 8
    %8570 = vset.pattern.permute.xlu0 %v8569
    %8571 = vperm.xlu0 %8570, %v8560
    %v8572 = vpop.permute.xlu0 %8571
    %v8573 = vperm.slane %v130, 4
    %v8574 = vlaneseq
    %v8575 = vshrl.u32 %v8574, 7
    %8577 = vset.pattern.permute.xlu0 %v8575
    %8578 = vperm.xlu0 %8577, %v8573
    %v8579 = vpop.permute.xlu0 %8578
    %v8580 = vlaneseq
    %v8581 = vshrl.u32 %v8580, 7
    %v8582 = vadd.s32 %v8581, 8
    %8583 = vset.pattern.permute.xlu0 %v8582
    %8584 = vperm.xlu0 %8583, %v8573
    %v8585 = vpop.permute.xlu0 %8584
    %v8586 = vperm.slane %v130, 5
    %v8587 = vlaneseq
    %v8588 = vshrl.u32 %v8587, 7
    %8590 = vset.pattern.permute.xlu0 %v8588
    %8591 = vperm.xlu0 %8590, %v8586
    %v8592 = vpop.permute.xlu0 %8591
    %v8593 = vlaneseq
    %v8594 = vshrl.u32 %v8593, 7
    %v8595 = vadd.s32 %v8594, 8
    %8596 = vset.pattern.permute.xlu0 %v8595
    %8597 = vperm.xlu0 %8596, %v8586
    %v8598 = vpop.permute.xlu0 %8597
    %v8599 = vperm.slane %v130, 6
    %v8600 = vlaneseq
    %v8601 = vshrl.u32 %v8600, 7
    %8603 = vset.pattern.permute.xlu0 %v8601
    %8604 = vperm.xlu0 %8603, %v8599
    %v8605 = vpop.permute.xlu0 %8604
    %v8606 = vlaneseq
    %v8607 = vshrl.u32 %v8606, 7
    %v8608 = vadd.s32 %v8607, 8
    %8609 = vset.pattern.permute.xlu0 %v8608
    %8610 = vperm.xlu0 %8609, %v8599
    %v8611 = vpop.permute.xlu0 %8610
    %v8612 = vperm.slane %v130, 7
    %v8613 = vlaneseq
    %v8614 = vshrl.u32 %v8613, 7
    %8616 = vset.pattern.permute.xlu0 %v8614
    %8617 = vperm.xlu0 %8616, %v8612
    %v8618 = vpop.permute.xlu0 %8617
    %v8619 = vlaneseq
    %v8620 = vshrl.u32 %v8619, 7
    %v8621 = vadd.s32 %v8620, 8
    %8622 = vset.pattern.permute.xlu0 %v8621
    %8623 = vperm.xlu0 %8622, %v8612
    %v8624 = vpop.permute.xlu0 %8623
    %vm8625 = vcmask 7168
    %v8626 = vsel %vm8625, %v5095, %v5303
    %v8627 = vsel %vm8625, %v5101, %v5309
    %v8628 = vsel %vm8625, %v5108, %v5316
    %v8629 = vsel %vm8625, %v5114, %v5322
    %v8630 = vsel %vm8625, %v5121, %v5329
    %v8631 = vsel %vm8625, %v5127, %v5335
    %v8632 = vsel %vm8625, %v5134, %v5342
    %v8633 = vsel %vm8625, %v5140, %v5348
    %v8634 = vsel %vm8625, %v5147, %v5355
    %v8635 = vsel %vm8625, %v5153, %v5361
    %v8636 = vsel %vm8625, %v5160, %v5368
    %v8637 = vsel %vm8625, %v5166, %v5374
    %v8638 = vsel %vm8625, %v5173, %v5381
    %v8639 = vsel %vm8625, %v5179, %v5387
    %v8640 = vsel %vm8625, %v5186, %v5394
    %v8641 = vsel %vm8625, %v5192, %v5400
    %v8642 = vsel %vm8625, %v5199, %v5407
    %v8643 = vsel %vm8625, %v5205, %v5413
    %v8644 = vsel %vm8625, %v5212, %v5420
    %v8645 = vsel %vm8625, %v5218, %v5426
    %v8646 = vsel %vm8625, %v5225, %v5433
    %v8647 = vsel %vm8625, %v5231, %v5439
    %v8648 = vsel %vm8625, %v5238, %v5446
    %v8649 = vsel %vm8625, %v5244, %v5452
    %v8650 = vsel %vm8625, %v5251, %v5459
    %v8651 = vsel %vm8625, %v5257, %v5465
    %v8652 = vsel %vm8625, %v5264, %v5472
    %v8653 = vsel %vm8625, %v5270, %v5478
    %v8654 = vsel %vm8625, %v5277, %v5485
    %v8655 = vsel %vm8625, %v5283, %v5491
    %v8656 = vsel %vm8625, %v5290, %v5498
    %v8657 = vsel %vm8625, %v5296, %v5504
    %vm8658 = vcmask 15360
    %v8659 = vsel %vm8658, %v8626, %v5511
    %v8660 = vsel %vm8658, %v8627, %v5517
    %v8661 = vsel %vm8658, %v8628, %v5524
    %v8662 = vsel %vm8658, %v8629, %v5530
    %v8663 = vsel %vm8658, %v8630, %v5537
    %v8664 = vsel %vm8658, %v8631, %v5543
    %v8665 = vsel %vm8658, %v8632, %v5550
    %v8666 = vsel %vm8658, %v8633, %v5556
    %v8667 = vsel %vm8658, %v8634, %v5563
    %v8668 = vsel %vm8658, %v8635, %v5569
    %v8669 = vsel %vm8658, %v8636, %v5576
    %v8670 = vsel %vm8658, %v8637, %v5582
    %v8671 = vsel %vm8658, %v8638, %v5589
    %v8672 = vsel %vm8658, %v8639, %v5595
    %v8673 = vsel %vm8658, %v8640, %v5602
    %v8674 = vsel %vm8658, %v8641, %v5608
    %v8675 = vsel %vm8658, %v8642, %v5615
    %v8676 = vsel %vm8658, %v8643, %v5621
    %v8677 = vsel %vm8658, %v8644, %v5628
    %v8678 = vsel %vm8658, %v8645, %v5634
    %v8679 = vsel %vm8658, %v8646, %v5641
    %v8680 = vsel %vm8658, %v8647, %v5647
    %v8681 = vsel %vm8658, %v8648, %v5654
    %v8682 = vsel %vm8658, %v8649, %v5660
    %v8683 = vsel %vm8658, %v8650, %v5667
    %v8684 = vsel %vm8658, %v8651, %v5673
    %v8685 = vsel %vm8658, %v8652, %v5680
    %v8686 = vsel %vm8658, %v8653, %v5686
    %v8687 = vsel %vm8658, %v8654, %v5693
    %v8688 = vsel %vm8658, %v8655, %v5699
    %v8689 = vsel %vm8658, %v8656, %v5706
    %v8690 = vsel %vm8658, %v8657, %v5712
    %vm8691 = vcmask 23552
    %v8692 = vsel %vm8691, %v8659, %v5719
    %v8693 = vsel %vm8691, %v8660, %v5725
    %v8694 = vsel %vm8691, %v8661, %v5732
    %v8695 = vsel %vm8691, %v8662, %v5738
    %v8696 = vsel %vm8691, %v8663, %v5745
    %v8697 = vsel %vm8691, %v8664, %v5751
    %v8698 = vsel %vm8691, %v8665, %v5758
    %v8699 = vsel %vm8691, %v8666, %v5764
    %v8700 = vsel %vm8691, %v8667, %v5771
    %v8701 = vsel %vm8691, %v8668, %v5777
    %v8702 = vsel %vm8691, %v8669, %v5784
    %v8703 = vsel %vm8691, %v8670, %v5790
    %v8704 = vsel %vm8691, %v8671, %v5797
    %v8705 = vsel %vm8691, %v8672, %v5803
    %v8706 = vsel %vm8691, %v8673, %v5810
    %v8707 = vsel %vm8691, %v8674, %v5816
    %v8708 = vsel %vm8691, %v8675, %v5823
    %v8709 = vsel %vm8691, %v8676, %v5829
    %v8710 = vsel %vm8691, %v8677, %v5836
    %v8711 = vsel %vm8691, %v8678, %v5842
    %v8712 = vsel %vm8691, %v8679, %v5849
    %v8713 = vsel %vm8691, %v8680, %v5855
    %v8714 = vsel %vm8691, %v8681, %v5862
    %v8715 = vsel %vm8691, %v8682, %v5868
    %v8716 = vsel %vm8691, %v8683, %v5875
    %v8717 = vsel %vm8691, %v8684, %v5881
    %v8718 = vsel %vm8691, %v8685, %v5888
    %v8719 = vsel %vm8691, %v8686, %v5894
    %v8720 = vsel %vm8691, %v8687, %v5901
    %v8721 = vsel %vm8691, %v8688, %v5907
    %v8722 = vsel %vm8691, %v8689, %v5914
    %v8723 = vsel %vm8691, %v8690, %v5920
    %vm8724 = vcmask 31744
    %v8725 = vsel %vm8724, %v8692, %v5927
    %v8726 = vsel %vm8724, %v8693, %v5933
    %v8727 = vsel %vm8724, %v8694, %v5940
    %v8728 = vsel %vm8724, %v8695, %v5946
    %v8729 = vsel %vm8724, %v8696, %v5953
    %v8730 = vsel %vm8724, %v8697, %v5959
    %v8731 = vsel %vm8724, %v8698, %v5966
    %v8732 = vsel %vm8724, %v8699, %v5972
    %v8733 = vsel %vm8724, %v8700, %v5979
    %v8734 = vsel %vm8724, %v8701, %v5985
    %v8735 = vsel %vm8724, %v8702, %v5992
    %v8736 = vsel %vm8724, %v8703, %v5998
    %v8737 = vsel %vm8724, %v8704, %v6005
    %v8738 = vsel %vm8724, %v8705, %v6011
    %v8739 = vsel %vm8724, %v8706, %v6018
    %v8740 = vsel %vm8724, %v8707, %v6024
    %v8741 = vsel %vm8724, %v8708, %v6031
    %v8742 = vsel %vm8724, %v8709, %v6037
    %v8743 = vsel %vm8724, %v8710, %v6044
    %v8744 = vsel %vm8724, %v8711, %v6050
    %v8745 = vsel %vm8724, %v8712, %v6057
    %v8746 = vsel %vm8724, %v8713, %v6063
    %v8747 = vsel %vm8724, %v8714, %v6070
    %v8748 = vsel %vm8724, %v8715, %v6076
    %v8749 = vsel %vm8724, %v8716, %v6083
    %v8750 = vsel %vm8724, %v8717, %v6089
    %v8751 = vsel %vm8724, %v8718, %v6096
    %v8752 = vsel %vm8724, %v8719, %v6102
    %v8753 = vsel %vm8724, %v8720, %v6109
    %v8754 = vsel %vm8724, %v8721, %v6115
    %v8755 = vsel %vm8724, %v8722, %v6122
    %v8756 = vsel %vm8724, %v8723, %v6128
    %vm8757 = vcmask 39936
    %v8758 = vsel %vm8757, %v8725, %v6135
    %v8759 = vsel %vm8757, %v8726, %v6141
    %v8760 = vsel %vm8757, %v8727, %v6148
    %v8761 = vsel %vm8757, %v8728, %v6154
    %v8762 = vsel %vm8757, %v8729, %v6161
    %v8763 = vsel %vm8757, %v8730, %v6167
    %v8764 = vsel %vm8757, %v8731, %v6174
    %v8765 = vsel %vm8757, %v8732, %v6180
    %v8766 = vsel %vm8757, %v8733, %v6187
    %v8767 = vsel %vm8757, %v8734, %v6193
    %v8768 = vsel %vm8757, %v8735, %v6200
    %v8769 = vsel %vm8757, %v8736, %v6206
    %v8770 = vsel %vm8757, %v8737, %v6213
    %v8771 = vsel %vm8757, %v8738, %v6219
    %v8772 = vsel %vm8757, %v8739, %v6226
    %v8773 = vsel %vm8757, %v8740, %v6232
    %v8774 = vsel %vm8757, %v8741, %v6239
    %v8775 = vsel %vm8757, %v8742, %v6245
    %v8776 = vsel %vm8757, %v8743, %v6252
    %v8777 = vsel %vm8757, %v8744, %v6258
    %v8778 = vsel %vm8757, %v8745, %v6265
    %v8779 = vsel %vm8757, %v8746, %v6271
    %v8780 = vsel %vm8757, %v8747, %v6278
    %v8781 = vsel %vm8757, %v8748, %v6284
    %v8782 = vsel %vm8757, %v8749, %v6291
    %v8783 = vsel %vm8757, %v8750, %v6297
    %v8784 = vsel %vm8757, %v8751, %v6304
    %v8785 = vsel %vm8757, %v8752, %v6310
    %v8786 = vsel %vm8757, %v8753, %v6317
    %v8787 = vsel %vm8757, %v8754, %v6323
    %v8788 = vsel %vm8757, %v8755, %v6330
    %v8789 = vsel %vm8757, %v8756, %v6336
    %vm8790 = vcmask 48128
    %v8791 = vsel %vm8790, %v8758, %v6343
    %v8792 = vsel %vm8790, %v8759, %v6349
    %v8793 = vsel %vm8790, %v8760, %v6356
    %v8794 = vsel %vm8790, %v8761, %v6362
    %v8795 = vsel %vm8790, %v8762, %v6369
    %v8796 = vsel %vm8790, %v8763, %v6375
    %v8797 = vsel %vm8790, %v8764, %v6382
    %v8798 = vsel %vm8790, %v8765, %v6388
    %v8799 = vsel %vm8790, %v8766, %v6395
    %v8800 = vsel %vm8790, %v8767, %v6401
    %v8801 = vsel %vm8790, %v8768, %v6408
    %v8802 = vsel %vm8790, %v8769, %v6414
    %v8803 = vsel %vm8790, %v8770, %v6421
    %v8804 = vsel %vm8790, %v8771, %v6427
    %v8805 = vsel %vm8790, %v8772, %v6434
    %v8806 = vsel %vm8790, %v8773, %v6440
    %v8807 = vsel %vm8790, %v8774, %v6447
    %v8808 = vsel %vm8790, %v8775, %v6453
    %v8809 = vsel %vm8790, %v8776, %v6460
    %v8810 = vsel %vm8790, %v8777, %v6466
    %v8811 = vsel %vm8790, %v8778, %v6473
    %v8812 = vsel %vm8790, %v8779, %v6479
    %v8813 = vsel %vm8790, %v8780, %v6486
    %v8814 = vsel %vm8790, %v8781, %v6492
    %v8815 = vsel %vm8790, %v8782, %v6499
    %v8816 = vsel %vm8790, %v8783, %v6505
    %v8817 = vsel %vm8790, %v8784, %v6512
    %v8818 = vsel %vm8790, %v8785, %v6518
    %v8819 = vsel %vm8790, %v8786, %v6525
    %v8820 = vsel %vm8790, %v8787, %v6531
    %v8821 = vsel %vm8790, %v8788, %v6538
    %v8822 = vsel %vm8790, %v8789, %v6544
    %vm8823 = vcmask 56320
    %v8824 = vsel %vm8823, %v8791, %v6551
    %v8825 = vsel %vm8823, %v8792, %v6557
    %v8826 = vsel %vm8823, %v8793, %v6564
    %v8827 = vsel %vm8823, %v8794, %v6570
    %v8828 = vsel %vm8823, %v8795, %v6577
    %v8829 = vsel %vm8823, %v8796, %v6583
    %v8830 = vsel %vm8823, %v8797, %v6590
    %v8831 = vsel %vm8823, %v8798, %v6596
    %v8832 = vsel %vm8823, %v8799, %v6603
    %v8833 = vsel %vm8823, %v8800, %v6609
    %v8834 = vsel %vm8823, %v8801, %v6616
    %v8835 = vsel %vm8823, %v8802, %v6622
    %v8836 = vsel %vm8823, %v8803, %v6629
    %v8837 = vsel %vm8823, %v8804, %v6635
    %v8838 = vsel %vm8823, %v8805, %v6642
    %v8839 = vsel %vm8823, %v8806, %v6648
    %v8840 = vsel %vm8823, %v8807, %v6655
    %v8841 = vsel %vm8823, %v8808, %v6661
    %v8842 = vsel %vm8823, %v8809, %v6668
    %v8843 = vsel %vm8823, %v8810, %v6674
    %v8844 = vsel %vm8823, %v8811, %v6681
    %v8845 = vsel %vm8823, %v8812, %v6687
    %v8846 = vsel %vm8823, %v8813, %v6694
    %v8847 = vsel %vm8823, %v8814, %v6700
    %v8848 = vsel %vm8823, %v8815, %v6707
    %v8849 = vsel %vm8823, %v8816, %v6713
    %v8850 = vsel %vm8823, %v8817, %v6720
    %v8851 = vsel %vm8823, %v8818, %v6726
    %v8852 = vsel %vm8823, %v8819, %v6733
    %v8853 = vsel %vm8823, %v8820, %v6739
    %v8854 = vsel %vm8823, %v8821, %v6746
    %v8855 = vsel %vm8823, %v8822, %v6752
    %vm8856 = vcmask 64512
    %v8857 = vsel %vm8856, %v8824, %v6759
    %v8858 = vsel %vm8856, %v8825, %v6765
    %v8859 = vsel %vm8856, %v8826, %v6772
    %v8860 = vsel %vm8856, %v8827, %v6778
    %v8861 = vsel %vm8856, %v8828, %v6785
    %v8862 = vsel %vm8856, %v8829, %v6791
    %v8863 = vsel %vm8856, %v8830, %v6798
    %v8864 = vsel %vm8856, %v8831, %v6804
    %v8865 = vsel %vm8856, %v8832, %v6811
    %v8866 = vsel %vm8856, %v8833, %v6817
    %v8867 = vsel %vm8856, %v8834, %v6824
    %v8868 = vsel %vm8856, %v8835, %v6830
    %v8869 = vsel %vm8856, %v8836, %v6837
    %v8870 = vsel %vm8856, %v8837, %v6843
    %v8871 = vsel %vm8856, %v8838, %v6850
    %v8872 = vsel %vm8856, %v8839, %v6856
    %v8873 = vsel %vm8856, %v8840, %v6863
    %v8874 = vsel %vm8856, %v8841, %v6869
    %v8875 = vsel %vm8856, %v8842, %v6876
    %v8876 = vsel %vm8856, %v8843, %v6882
    %v8877 = vsel %vm8856, %v8844, %v6889
    %v8878 = vsel %vm8856, %v8845, %v6895
    %v8879 = vsel %vm8856, %v8846, %v6902
    %v8880 = vsel %vm8856, %v8847, %v6908
    %v8881 = vsel %vm8856, %v8848, %v6915
    %v8882 = vsel %vm8856, %v8849, %v6921
    %v8883 = vsel %vm8856, %v8850, %v6928
    %v8884 = vsel %vm8856, %v8851, %v6934
    %v8885 = vsel %vm8856, %v8852, %v6941
    %v8886 = vsel %vm8856, %v8853, %v6947
    %v8887 = vsel %vm8856, %v8854, %v6954
    %v8888 = vsel %vm8856, %v8855, %v6960
    %vm8889 = vcmask 72704
    %v8890 = vsel %vm8889, %v8857, %v6967
    %v8891 = vsel %vm8889, %v8858, %v6973
    %v8892 = vsel %vm8889, %v8859, %v6980
    %v8893 = vsel %vm8889, %v8860, %v6986
    %v8894 = vsel %vm8889, %v8861, %v6993
    %v8895 = vsel %vm8889, %v8862, %v6999
    %v8896 = vsel %vm8889, %v8863, %v7006
    %v8897 = vsel %vm8889, %v8864, %v7012
    %v8898 = vsel %vm8889, %v8865, %v7019
    %v8899 = vsel %vm8889, %v8866, %v7025
    %v8900 = vsel %vm8889, %v8867, %v7032
    %v8901 = vsel %vm8889, %v8868, %v7038
    %v8902 = vsel %vm8889, %v8869, %v7045
    %v8903 = vsel %vm8889, %v8870, %v7051
    %v8904 = vsel %vm8889, %v8871, %v7058
    %v8905 = vsel %vm8889, %v8872, %v7064
    %v8906 = vsel %vm8889, %v8873, %v7071
    %v8907 = vsel %vm8889, %v8874, %v7077
    %v8908 = vsel %vm8889, %v8875, %v7084
    %v8909 = vsel %vm8889, %v8876, %v7090
    %v8910 = vsel %vm8889, %v8877, %v7097
    %v8911 = vsel %vm8889, %v8878, %v7103
    %v8912 = vsel %vm8889, %v8879, %v7110
    %v8913 = vsel %vm8889, %v8880, %v7116
    %v8914 = vsel %vm8889, %v8881, %v7123
    %v8915 = vsel %vm8889, %v8882, %v7129
    %v8916 = vsel %vm8889, %v8883, %v7136
    %v8917 = vsel %vm8889, %v8884, %v7142
    %v8918 = vsel %vm8889, %v8885, %v7149
    %v8919 = vsel %vm8889, %v8886, %v7155
    %v8920 = vsel %vm8889, %v8887, %v7162
    %v8921 = vsel %vm8889, %v8888, %v7168
    %vm8922 = vcmask 80896
    %v8923 = vsel %vm8922, %v8890, %v7175
    %v8924 = vsel %vm8922, %v8891, %v7181
    %v8925 = vsel %vm8922, %v8892, %v7188
    %v8926 = vsel %vm8922, %v8893, %v7194
    %v8927 = vsel %vm8922, %v8894, %v7201
    %v8928 = vsel %vm8922, %v8895, %v7207
    %v8929 = vsel %vm8922, %v8896, %v7214
    %v8930 = vsel %vm8922, %v8897, %v7220
    %v8931 = vsel %vm8922, %v8898, %v7227
    %v8932 = vsel %vm8922, %v8899, %v7233
    %v8933 = vsel %vm8922, %v8900, %v7240
    %v8934 = vsel %vm8922, %v8901, %v7246
    %v8935 = vsel %vm8922, %v8902, %v7253
    %v8936 = vsel %vm8922, %v8903, %v7259
    %v8937 = vsel %vm8922, %v8904, %v7266
    %v8938 = vsel %vm8922, %v8905, %v7272
    %v8939 = vsel %vm8922, %v8906, %v7279
    %v8940 = vsel %vm8922, %v8907, %v7285
    %v8941 = vsel %vm8922, %v8908, %v7292
    %v8942 = vsel %vm8922, %v8909, %v7298
    %v8943 = vsel %vm8922, %v8910, %v7305
    %v8944 = vsel %vm8922, %v8911, %v7311
    %v8945 = vsel %vm8922, %v8912, %v7318
    %v8946 = vsel %vm8922, %v8913, %v7324
    %v8947 = vsel %vm8922, %v8914, %v7331
    %v8948 = vsel %vm8922, %v8915, %v7337
    %v8949 = vsel %vm8922, %v8916, %v7344
    %v8950 = vsel %vm8922, %v8917, %v7350
    %v8951 = vsel %vm8922, %v8918, %v7357
    %v8952 = vsel %vm8922, %v8919, %v7363
    %v8953 = vsel %vm8922, %v8920, %v7370
    %v8954 = vsel %vm8922, %v8921, %v7376
    %vm8955 = vcmask 89088
    %v8956 = vsel %vm8955, %v8923, %v7383
    %v8957 = vsel %vm8955, %v8924, %v7389
    %v8958 = vsel %vm8955, %v8925, %v7396
    %v8959 = vsel %vm8955, %v8926, %v7402
    %v8960 = vsel %vm8955, %v8927, %v7409
    %v8961 = vsel %vm8955, %v8928, %v7415
    %v8962 = vsel %vm8955, %v8929, %v7422
    %v8963 = vsel %vm8955, %v8930, %v7428
    %v8964 = vsel %vm8955, %v8931, %v7435
    %v8965 = vsel %vm8955, %v8932, %v7441
    %v8966 = vsel %vm8955, %v8933, %v7448
    %v8967 = vsel %vm8955, %v8934, %v7454
    %v8968 = vsel %vm8955, %v8935, %v7461
    %v8969 = vsel %vm8955, %v8936, %v7467
    %v8970 = vsel %vm8955, %v8937, %v7474
    %v8971 = vsel %vm8955, %v8938, %v7480
    %v8972 = vsel %vm8955, %v8939, %v7487
    %v8973 = vsel %vm8955, %v8940, %v7493
    %v8974 = vsel %vm8955, %v8941, %v7500
    %v8975 = vsel %vm8955, %v8942, %v7506
    %v8976 = vsel %vm8955, %v8943, %v7513
    %v8977 = vsel %vm8955, %v8944, %v7519
    %v8978 = vsel %vm8955, %v8945, %v7526
    %v8979 = vsel %vm8955, %v8946, %v7532
    %v8980 = vsel %vm8955, %v8947, %v7539
    %v8981 = vsel %vm8955, %v8948, %v7545
    %v8982 = vsel %vm8955, %v8949, %v7552
    %v8983 = vsel %vm8955, %v8950, %v7558
    %v8984 = vsel %vm8955, %v8951, %v7565
    %v8985 = vsel %vm8955, %v8952, %v7571
    %v8986 = vsel %vm8955, %v8953, %v7578
    %v8987 = vsel %vm8955, %v8954, %v7584
    %vm8988 = vcmask 97280
    %v8989 = vsel %vm8988, %v8956, %v7591
    %v8990 = vsel %vm8988, %v8957, %v7597
    %v8991 = vsel %vm8988, %v8958, %v7604
    %v8992 = vsel %vm8988, %v8959, %v7610
    %v8993 = vsel %vm8988, %v8960, %v7617
    %v8994 = vsel %vm8988, %v8961, %v7623
    %v8995 = vsel %vm8988, %v8962, %v7630
    %v8996 = vsel %vm8988, %v8963, %v7636
    %v8997 = vsel %vm8988, %v8964, %v7643
    %v8998 = vsel %vm8988, %v8965, %v7649
    %v8999 = vsel %vm8988, %v8966, %v7656
    %v9000 = vsel %vm8988, %v8967, %v7662
    %v9001 = vsel %vm8988, %v8968, %v7669
    %v9002 = vsel %vm8988, %v8969, %v7675
    %v9003 = vsel %vm8988, %v8970, %v7682
    %v9004 = vsel %vm8988, %v8971, %v7688
    %v9005 = vsel %vm8988, %v8972, %v7695
    %v9006 = vsel %vm8988, %v8973, %v7701
    %v9007 = vsel %vm8988, %v8974, %v7708
    %v9008 = vsel %vm8988, %v8975, %v7714
    %v9009 = vsel %vm8988, %v8976, %v7721
    %v9010 = vsel %vm8988, %v8977, %v7727
    %v9011 = vsel %vm8988, %v8978, %v7734
    %v9012 = vsel %vm8988, %v8979, %v7740
    %v9013 = vsel %vm8988, %v8980, %v7747
    %v9014 = vsel %vm8988, %v8981, %v7753
    %v9015 = vsel %vm8988, %v8982, %v7760
    %v9016 = vsel %vm8988, %v8983, %v7766
    %v9017 = vsel %vm8988, %v8984, %v7773
    %v9018 = vsel %vm8988, %v8985, %v7779
    %v9019 = vsel %vm8988, %v8986, %v7786
    %v9020 = vsel %vm8988, %v8987, %v7792
    %vm9021 = vcmask 105472
    %v9022 = vsel %vm9021, %v8989, %v7799
    %v9023 = vsel %vm9021, %v8990, %v7805
    %v9024 = vsel %vm9021, %v8991, %v7812
    %v9025 = vsel %vm9021, %v8992, %v7818
    %v9026 = vsel %vm9021, %v8993, %v7825
    %v9027 = vsel %vm9021, %v8994, %v7831
    %v9028 = vsel %vm9021, %v8995, %v7838
    %v9029 = vsel %vm9021, %v8996, %v7844
    %v9030 = vsel %vm9021, %v8997, %v7851
    %v9031 = vsel %vm9021, %v8998, %v7857
    %v9032 = vsel %vm9021, %v8999, %v7864
    %v9033 = vsel %vm9021, %v9000, %v7870
    %v9034 = vsel %vm9021, %v9001, %v7877
    %v9035 = vsel %vm9021, %v9002, %v7883
    %v9036 = vsel %vm9021, %v9003, %v7890
    %v9037 = vsel %vm9021, %v9004, %v7896
    %v9038 = vsel %vm9021, %v9005, %v7903
    %v9039 = vsel %vm9021, %v9006, %v7909
    %v9040 = vsel %vm9021, %v9007, %v7916
    %v9041 = vsel %vm9021, %v9008, %v7922
    %v9042 = vsel %vm9021, %v9009, %v7929
    %v9043 = vsel %vm9021, %v9010, %v7935
    %v9044 = vsel %vm9021, %v9011, %v7942
    %v9045 = vsel %vm9021, %v9012, %v7948
    %v9046 = vsel %vm9021, %v9013, %v7955
    %v9047 = vsel %vm9021, %v9014, %v7961
    %v9048 = vsel %vm9021, %v9015, %v7968
    %v9049 = vsel %vm9021, %v9016, %v7974
    %v9050 = vsel %vm9021, %v9017, %v7981
    %v9051 = vsel %vm9021, %v9018, %v7987
    %v9052 = vsel %vm9021, %v9019, %v7994
    %v9053 = vsel %vm9021, %v9020, %v8000
    %vm9054 = vcmask 113664
    %v9055 = vsel %vm9054, %v9022, %v8007
    %v9056 = vsel %vm9054, %v9023, %v8013
    %v9057 = vsel %vm9054, %v9024, %v8020
    %v9058 = vsel %vm9054, %v9025, %v8026
    %v9059 = vsel %vm9054, %v9026, %v8033
    %v9060 = vsel %vm9054, %v9027, %v8039
    %v9061 = vsel %vm9054, %v9028, %v8046
    %v9062 = vsel %vm9054, %v9029, %v8052
    %v9063 = vsel %vm9054, %v9030, %v8059
    %v9064 = vsel %vm9054, %v9031, %v8065
    %v9065 = vsel %vm9054, %v9032, %v8072
    %v9066 = vsel %vm9054, %v9033, %v8078
    %v9067 = vsel %vm9054, %v9034, %v8085
    %v9068 = vsel %vm9054, %v9035, %v8091
    %v9069 = vsel %vm9054, %v9036, %v8098
    %v9070 = vsel %vm9054, %v9037, %v8104
    %v9071 = vsel %vm9054, %v9038, %v8111
    %v9072 = vsel %vm9054, %v9039, %v8117
    %v9073 = vsel %vm9054, %v9040, %v8124
    %v9074 = vsel %vm9054, %v9041, %v8130
    %v9075 = vsel %vm9054, %v9042, %v8137
    %v9076 = vsel %vm9054, %v9043, %v8143
    %v9077 = vsel %vm9054, %v9044, %v8150
    %v9078 = vsel %vm9054, %v9045, %v8156
    %v9079 = vsel %vm9054, %v9046, %v8163
    %v9080 = vsel %vm9054, %v9047, %v8169
    %v9081 = vsel %vm9054, %v9048, %v8176
    %v9082 = vsel %vm9054, %v9049, %v8182
    %v9083 = vsel %vm9054, %v9050, %v8189
    %v9084 = vsel %vm9054, %v9051, %v8195
    %v9085 = vsel %vm9054, %v9052, %v8202
    %v9086 = vsel %vm9054, %v9053, %v8208
    %vm9087 = vcmask 121856
    %v9088 = vsel %vm9087, %v9055, %v8215
    %v9089 = vsel %vm9087, %v9056, %v8221
    %v9090 = vsel %vm9087, %v9057, %v8228
    %v9091 = vsel %vm9087, %v9058, %v8234
    %v9092 = vsel %vm9087, %v9059, %v8241
    %v9093 = vsel %vm9087, %v9060, %v8247
    %v9094 = vsel %vm9087, %v9061, %v8254
    %v9095 = vsel %vm9087, %v9062, %v8260
    %v9096 = vsel %vm9087, %v9063, %v8267
    %v9097 = vsel %vm9087, %v9064, %v8273
    %v9098 = vsel %vm9087, %v9065, %v8280
    %v9099 = vsel %vm9087, %v9066, %v8286
    %v9100 = vsel %vm9087, %v9067, %v8293
    %v9101 = vsel %vm9087, %v9068, %v8299
    %v9102 = vsel %vm9087, %v9069, %v8306
    %v9103 = vsel %vm9087, %v9070, %v8312
    %v9104 = vsel %vm9087, %v9071, %v8319
    %v9105 = vsel %vm9087, %v9072, %v8325
    %v9106 = vsel %vm9087, %v9073, %v8332
    %v9107 = vsel %vm9087, %v9074, %v8338
    %v9108 = vsel %vm9087, %v9075, %v8345
    %v9109 = vsel %vm9087, %v9076, %v8351
    %v9110 = vsel %vm9087, %v9077, %v8358
    %v9111 = vsel %vm9087, %v9078, %v8364
    %v9112 = vsel %vm9087, %v9079, %v8371
    %v9113 = vsel %vm9087, %v9080, %v8377
    %v9114 = vsel %vm9087, %v9081, %v8384
    %v9115 = vsel %vm9087, %v9082, %v8390
    %v9116 = vsel %vm9087, %v9083, %v8397
    %v9117 = vsel %vm9087, %v9084, %v8403
    %v9118 = vsel %vm9087, %v9085, %v8410
    %v9119 = vsel %vm9087, %v9086, %v8416
    %vm9120 = vcmask 130048
    %v9121 = vsel %vm9120, %v9088, %v8423
    %v9122 = vsel %vm9120, %v9089, %v8429
    %v9123 = vsel %vm9120, %v9090, %v8436
    %v9124 = vsel %vm9120, %v9091, %v8442
    %v9125 = vsel %vm9120, %v9092, %v8449
    %v9126 = vsel %vm9120, %v9093, %v8455
    %v9127 = vsel %vm9120, %v9094, %v8462
    %v9128 = vsel %vm9120, %v9095, %v8468
    %v9129 = vsel %vm9120, %v9096, %v8475
    %v9130 = vsel %vm9120, %v9097, %v8481
    %v9131 = vsel %vm9120, %v9098, %v8488
    %v9132 = vsel %vm9120, %v9099, %v8494
    %v9133 = vsel %vm9120, %v9100, %v8501
    %v9134 = vsel %vm9120, %v9101, %v8507
    %v9135 = vsel %vm9120, %v9102, %v8514
    %v9136 = vsel %vm9120, %v9103, %v8520
    %v9137 = vsel %vm9120, %v9104, %v8527
    %v9138 = vsel %vm9120, %v9105, %v8533
    %v9139 = vsel %vm9120, %v9106, %v8540
    %v9140 = vsel %vm9120, %v9107, %v8546
    %v9141 = vsel %vm9120, %v9108, %v8553
    %v9142 = vsel %vm9120, %v9109, %v8559
    %v9143 = vsel %vm9120, %v9110, %v8566
    %v9144 = vsel %vm9120, %v9111, %v8572
    %v9145 = vsel %vm9120, %v9112, %v8579
    %v9146 = vsel %vm9120, %v9113, %v8585
    %v9147 = vsel %vm9120, %v9114, %v8592
    %v9148 = vsel %vm9120, %v9115, %v8598
    %v9149 = vsel %vm9120, %v9116, %v8605
    %v9150 = vsel %vm9120, %v9117, %v8611
    %v9151 = vsel %vm9120, %v9118, %v8618
    %v9152 = vsel %vm9120, %v9119, %v8624
    %v9153 = vld [vmem:[#allocation2] sm:$0xff]
    %v9154 = vld [vmem:[#allocation2 + $0x8] sm:$0xff]
    %v9155 = vld [vmem:[#allocation2 + $0x10] sm:$0x1]
    %v9156 = vld [vmem:[%s3] sm:$0x1]
    %v9158 = vperm.slane %v9156, 0
    %vm9160 = vcmask 138240
    %v9162 = vsel %vm9160, %v9121, 0
    %v9165 = vsel %vm9160, %v9122, 0
    %v9168 = vsel %vm9160, %v9123, 0
    %v9171 = vsel %vm9160, %v9124, 0
    %v9174 = vsel %vm9160, %v9125, 0
    %v9177 = vsel %vm9160, %v9126, 0
    %v9180 = vsel %vm9160, %v9127, 0
    %v9183 = vsel %vm9160, %v9128, 0
    %v9186 = vsel %vm9160, %v9129, 0
    %v9189 = vsel %vm9160, %v9130, 0
    %v9192 = vsel %vm9160, %v9131, 0
    %v9195 = vsel %vm9160, %v9132, 0
    %v9198 = vsel %vm9160, %v9133, 0
    %v9201 = vsel %vm9160, %v9134, 0
    %v9204 = vsel %vm9160, %v9135, 0
    %v9207 = vsel %vm9160, %v9136, 0
    %v9210 = vsel %vm9160, %v9137, 0
    %v9213 = vsel %vm9160, %v9138, 0
    %v9216 = vsel %vm9160, %v9139, 0
    %v9219 = vsel %vm9160, %v9140, 0
    %v9222 = vsel %vm9160, %v9141, 0
    %v9225 = vsel %vm9160, %v9142, 0
    %v9228 = vsel %vm9160, %v9143, 0
    %v9231 = vsel %vm9160, %v9144, 0
    %v9234 = vsel %vm9160, %v9145, 0
    %v9237 = vsel %vm9160, %v9146, 0
    %v9240 = vsel %vm9160, %v9147, 0
    %v9243 = vsel %vm9160, %v9148, 0
    %v9246 = vsel %vm9160, %v9149, 0
    %v9249 = vsel %vm9160, %v9150, 0
    %v9252 = vsel %vm9160, %v9151, 0
    %v9255 = vsel %vm9160, %v9152, 0
    %vm9257 = vcmask 1040384
    %v9259 = vsel %vm9257, %v9155, 0
    %9261 = vmatpush.msra.mxu0 0.0
    %9262 = vmatpush.msra.mxu0 0.0
    %9263 = vmatpush.msra.mxu0 0.0
    %9264 = vmatpush.msra.mxu0 0.0
    %9265 = vmatpush.msra.mxu0 0.0
    %9266 = vmatpush.msra.mxu0 0.0
    %9267 = vmatpush.msra.mxu0 0.0
    %9268 = vmatpush.msra.mxu0 0.0
    %9269 = vmatpush.msra.mxu0 0.0
    %9270 = vmatpush.msra.mxu0 0.0
    %9271 = vmatpush.msra.mxu0 0.0
    %9272 = vmatpush.msra.mxu0 0.0
    %9273 = vmatpush.msra.mxu0 0.0
    %v9274 = vand.u32 %v9259, 4294901760
    %9275 = vmatpush.msra.mxu0 %v9274
    %v9276 = vand.u32 %v9154, 4294901760
    %9277 = vmatpush.msra.mxu0 %v9276
    %v9278 = vand.u32 %v9153, 4294901760
    %9279 = vmatpush.msra.mxu0 %v9278
    %v9280 = vand.u32 %v9162, 4294901760
    %v9281 = vsub.f32 %v9162, %v9280
    %v9282 = vand.u32 %v9281, 4294901760
    %v9283 = vsub.f32 %v9281, %v9282
    %v9284 = vand.u32 %v9283, 4294901760
    %9285 = vmatmul.f32.gmra.mxu0 %v9284
    %v9286 = vpop.f32.mrf.mxu0
    %v9287 = vadd.f32 %v9158, %v9286
    %v9288 = vand.u32 %v9165, 4294901760
    %v9289 = vsub.f32 %v9165, %v9288
    %v9290 = vand.u32 %v9289, 4294901760
    %v9291 = vsub.f32 %v9289, %v9290
    %v9292 = vand.u32 %v9291, 4294901760
    %9293 = vmatmul.f32.gmra.mxu0 %v9292
    %v9294 = vpop.f32.mrf.mxu0
    %v9295 = vadd.f32 %v9158, %v9294
    %v9296 = vand.u32 %v9168, 4294901760
    %v9297 = vsub.f32 %v9168, %v9296
    %v9298 = vand.u32 %v9297, 4294901760
    %v9299 = vsub.f32 %v9297, %v9298
    %v9300 = vand.u32 %v9299, 4294901760
    %9301 = vmatmul.f32.gmra.mxu0 %v9300
    %v9302 = vpop.f32.mrf.mxu0
    %v9303 = vadd.f32 %v9158, %v9302
    %v9304 = vand.u32 %v9171, 4294901760
    %v9305 = vsub.f32 %v9171, %v9304
    %v9306 = vand.u32 %v9305, 4294901760
    %v9307 = vsub.f32 %v9305, %v9306
    %v9308 = vand.u32 %v9307, 4294901760
    %9309 = vmatmul.f32.gmra.mxu0 %v9308
    %v9310 = vpop.f32.mrf.mxu0
    %v9311 = vadd.f32 %v9158, %v9310
    %v9312 = vand.u32 %v9174, 4294901760
    %v9313 = vsub.f32 %v9174, %v9312
    %v9314 = vand.u32 %v9313, 4294901760
    %v9315 = vsub.f32 %v9313, %v9314
    %v9316 = vand.u32 %v9315, 4294901760
    %9317 = vmatmul.f32.gmra.mxu0 %v9316
    %v9318 = vpop.f32.mrf.mxu0
    %v9319 = vadd.f32 %v9158, %v9318
    %v9320 = vand.u32 %v9177, 4294901760
    %v9321 = vsub.f32 %v9177, %v9320
    %v9322 = vand.u32 %v9321, 4294901760
    %v9323 = vsub.f32 %v9321, %v9322
    %v9324 = vand.u32 %v9323, 4294901760
    %9325 = vmatmul.f32.gmra.mxu0 %v9324
    %v9326 = vpop.f32.mrf.mxu0
    %v9327 = vadd.f32 %v9158, %v9326
    %v9328 = vand.u32 %v9180, 4294901760
    %v9329 = vsub.f32 %v9180, %v9328
    %v9330 = vand.u32 %v9329, 4294901760
    %v9331 = vsub.f32 %v9329, %v9330
    %v9332 = vand.u32 %v9331, 4294901760
    %9333 = vmatmul.f32.gmra.mxu0 %v9332
    %v9334 = vpop.f32.mrf.mxu0
    %v9335 = vadd.f32 %v9158, %v9334
    %v9336 = vand.u32 %v9183, 4294901760
    %v9337 = vsub.f32 %v9183, %v9336
    %v9338 = vand.u32 %v9337, 4294901760
    %v9339 = vsub.f32 %v9337, %v9338
    %v9340 = vand.u32 %v9339, 4294901760
    %9341 = vmatmul.f32.gmra.mxu0 %v9340
    %v9342 = vpop.f32.mrf.mxu0
    %v9343 = vadd.f32 %v9158, %v9342
    %v9344 = vand.u32 %v9186, 4294901760
    %v9345 = vsub.f32 %v9186, %v9344
    %v9346 = vand.u32 %v9345, 4294901760
    %v9347 = vsub.f32 %v9345, %v9346
    %v9348 = vand.u32 %v9347, 4294901760
    %9349 = vmatmul.f32.gmra.mxu0 %v9348
    %v9350 = vpop.f32.mrf.mxu0
    %v9351 = vadd.f32 %v9158, %v9350
    %v9352 = vand.u32 %v9189, 4294901760
    %v9353 = vsub.f32 %v9189, %v9352
    %v9354 = vand.u32 %v9353, 4294901760
    %v9355 = vsub.f32 %v9353, %v9354
    %v9356 = vand.u32 %v9355, 4294901760
    %9357 = vmatmul.f32.gmra.mxu0 %v9356
    %v9358 = vpop.f32.mrf.mxu0
    %v9359 = vadd.f32 %v9158, %v9358
    %v9360 = vand.u32 %v9192, 4294901760
    %v9361 = vsub.f32 %v9192, %v9360
    %v9362 = vand.u32 %v9361, 4294901760
    %v9363 = vsub.f32 %v9361, %v9362
    %v9364 = vand.u32 %v9363, 4294901760
    %9365 = vmatmul.f32.gmra.mxu0 %v9364
    %v9366 = vpop.f32.mrf.mxu0
    %v9367 = vadd.f32 %v9158, %v9366
    %v9368 = vand.u32 %v9195, 4294901760
    %v9369 = vsub.f32 %v9195, %v9368
    %v9370 = vand.u32 %v9369, 4294901760
    %v9371 = vsub.f32 %v9369, %v9370
    %v9372 = vand.u32 %v9371, 4294901760
    %9373 = vmatmul.f32.gmra.mxu0 %v9372
    %v9374 = vpop.f32.mrf.mxu0
    %v9375 = vadd.f32 %v9158, %v9374
    %v9376 = vand.u32 %v9198, 4294901760
    %v9377 = vsub.f32 %v9198, %v9376
    %v9378 = vand.u32 %v9377, 4294901760
    %v9379 = vsub.f32 %v9377, %v9378
    %v9380 = vand.u32 %v9379, 4294901760
    %9381 = vmatmul.f32.gmra.mxu0 %v9380
    %v9382 = vpop.f32.mrf.mxu0
    %v9383 = vadd.f32 %v9158, %v9382
    %v9384 = vand.u32 %v9201, 4294901760
    %v9385 = vsub.f32 %v9201, %v9384
    %v9386 = vand.u32 %v9385, 4294901760
    %v9387 = vsub.f32 %v9385, %v9386
    %v9388 = vand.u32 %v9387, 4294901760
    %9389 = vmatmul.f32.gmra.mxu0 %v9388
    %v9390 = vpop.f32.mrf.mxu0
    %v9391 = vadd.f32 %v9158, %v9390
    %v9392 = vand.u32 %v9204, 4294901760
    %v9393 = vsub.f32 %v9204, %v9392
    %v9394 = vand.u32 %v9393, 4294901760
    %v9395 = vsub.f32 %v9393, %v9394
    %v9396 = vand.u32 %v9395, 4294901760
    %9397 = vmatmul.f32.gmra.mxu0 %v9396
    %v9398 = vpop.f32.mrf.mxu0
    %v9399 = vadd.f32 %v9158, %v9398
    %v9400 = vand.u32 %v9207, 4294901760
    %v9401 = vsub.f32 %v9207, %v9400
    %v9402 = vand.u32 %v9401, 4294901760
    %v9403 = vsub.f32 %v9401, %v9402
    %v9404 = vand.u32 %v9403, 4294901760
    %9405 = vmatmul.f32.gmra.mxu0 %v9404
    %v9406 = vpop.f32.mrf.mxu0
    %v9407 = vadd.f32 %v9158, %v9406
    %v9408 = vand.u32 %v9210, 4294901760
    %v9409 = vsub.f32 %v9210, %v9408
    %v9410 = vand.u32 %v9409, 4294901760
    %v9411 = vsub.f32 %v9409, %v9410
    %v9412 = vand.u32 %v9411, 4294901760
    %9413 = vmatmul.f32.gmra.mxu0 %v9412
    %v9414 = vpop.f32.mrf.mxu0
    %v9415 = vadd.f32 %v9158, %v9414
    %v9416 = vand.u32 %v9213, 4294901760
    %v9417 = vsub.f32 %v9213, %v9416
    %v9418 = vand.u32 %v9417, 4294901760
    %v9419 = vsub.f32 %v9417, %v9418
    %v9420 = vand.u32 %v9419, 4294901760
    %9421 = vmatmul.f32.gmra.mxu0 %v9420
    %v9422 = vpop.f32.mrf.mxu0
    %v9423 = vadd.f32 %v9158, %v9422
    %v9424 = vand.u32 %v9216, 4294901760
    %v9425 = vsub.f32 %v9216, %v9424
    %v9426 = vand.u32 %v9425, 4294901760
    %v9427 = vsub.f32 %v9425, %v9426
    %v9428 = vand.u32 %v9427, 4294901760
    %9429 = vmatmul.f32.gmra.mxu0 %v9428
    %v9430 = vpop.f32.mrf.mxu0
    %v9431 = vadd.f32 %v9158, %v9430
    %v9432 = vand.u32 %v9219, 4294901760
    %v9433 = vsub.f32 %v9219, %v9432
    %v9434 = vand.u32 %v9433, 4294901760
    %v9435 = vsub.f32 %v9433, %v9434
    %v9436 = vand.u32 %v9435, 4294901760
    %9437 = vmatmul.f32.gmra.mxu0 %v9436
    %v9438 = vpop.f32.mrf.mxu0
    %v9439 = vadd.f32 %v9158, %v9438
    %v9440 = vand.u32 %v9222, 4294901760
    %v9441 = vsub.f32 %v9222, %v9440
    %v9442 = vand.u32 %v9441, 4294901760
    %v9443 = vsub.f32 %v9441, %v9442
    %v9444 = vand.u32 %v9443, 4294901760
    %9445 = vmatmul.f32.gmra.mxu0 %v9444
    %v9446 = vpop.f32.mrf.mxu0
    %v9447 = vadd.f32 %v9158, %v9446
    %v9448 = vand.u32 %v9225, 4294901760
    %v9449 = vsub.f32 %v9225, %v9448
    %v9450 = vand.u32 %v9449, 4294901760
    %v9451 = vsub.f32 %v9449, %v9450
    %v9452 = vand.u32 %v9451, 4294901760
    %9453 = vmatmul.f32.gmra.mxu0 %v9452
    %v9454 = vpop.f32.mrf.mxu0
    %v9455 = vadd.f32 %v9158, %v9454
    %v9456 = vand.u32 %v9228, 4294901760
    %v9457 = vsub.f32 %v9228, %v9456
    %v9458 = vand.u32 %v9457, 4294901760
    %v9459 = vsub.f32 %v9457, %v9458
    %v9460 = vand.u32 %v9459, 4294901760
    %9461 = vmatmul.f32.gmra.mxu0 %v9460
    %v9462 = vpop.f32.mrf.mxu0
    %v9463 = vadd.f32 %v9158, %v9462
    %v9464 = vand.u32 %v9231, 4294901760
    %v9465 = vsub.f32 %v9231, %v9464
    %v9466 = vand.u32 %v9465, 4294901760
    %v9467 = vsub.f32 %v9465, %v9466
    %v9468 = vand.u32 %v9467, 4294901760
    %9469 = vmatmul.f32.gmra.mxu0 %v9468
    %v9470 = vpop.f32.mrf.mxu0
    %v9471 = vadd.f32 %v9158, %v9470
    %v9472 = vand.u32 %v9234, 4294901760
    %v9473 = vsub.f32 %v9234, %v9472
    %v9474 = vand.u32 %v9473, 4294901760
    %v9475 = vsub.f32 %v9473, %v9474
    %v9476 = vand.u32 %v9475, 4294901760
    %9477 = vmatmul.f32.gmra.mxu0 %v9476
    %v9478 = vpop.f32.mrf.mxu0
    %v9479 = vadd.f32 %v9158, %v9478
    %v9480 = vand.u32 %v9237, 4294901760
    %v9481 = vsub.f32 %v9237, %v9480
    %v9482 = vand.u32 %v9481, 4294901760
    %v9483 = vsub.f32 %v9481, %v9482
    %v9484 = vand.u32 %v9483, 4294901760
    %9485 = vmatmul.f32.gmra.mxu0 %v9484
    %v9486 = vpop.f32.mrf.mxu0
    %v9487 = vadd.f32 %v9158, %v9486
    %v9488 = vand.u32 %v9240, 4294901760
    %v9489 = vsub.f32 %v9240, %v9488
    %v9490 = vand.u32 %v9489, 4294901760
    %v9491 = vsub.f32 %v9489, %v9490
    %v9492 = vand.u32 %v9491, 4294901760
    %9493 = vmatmul.f32.gmra.mxu0 %v9492
    %v9494 = vpop.f32.mrf.mxu0
    %v9495 = vadd.f32 %v9158, %v9494
    %v9496 = vand.u32 %v9243, 4294901760
    %v9497 = vsub.f32 %v9243, %v9496
    %v9498 = vand.u32 %v9497, 4294901760
    %v9499 = vsub.f32 %v9497, %v9498
    %v9500 = vand.u32 %v9499, 4294901760
    %9501 = vmatmul.f32.gmra.mxu0 %v9500
    %v9502 = vpop.f32.mrf.mxu0
    %v9503 = vadd.f32 %v9158, %v9502
    %v9504 = vand.u32 %v9246, 4294901760
    %v9505 = vsub.f32 %v9246, %v9504
    %v9506 = vand.u32 %v9505, 4294901760
    %v9507 = vsub.f32 %v9505, %v9506
    %v9508 = vand.u32 %v9507, 4294901760
    %9509 = vmatmul.f32.gmra.mxu0 %v9508
    %v9510 = vpop.f32.mrf.mxu0
    %v9511 = vadd.f32 %v9158, %v9510
    %v9512 = vand.u32 %v9249, 4294901760
    %v9513 = vsub.f32 %v9249, %v9512
    %v9514 = vand.u32 %v9513, 4294901760
    %v9515 = vsub.f32 %v9513, %v9514
    %v9516 = vand.u32 %v9515, 4294901760
    %9517 = vmatmul.f32.gmra.mxu0 %v9516
    %v9518 = vpop.f32.mrf.mxu0
    %v9519 = vadd.f32 %v9158, %v9518
    %v9520 = vand.u32 %v9252, 4294901760
    %v9521 = vsub.f32 %v9252, %v9520
    %v9522 = vand.u32 %v9521, 4294901760
    %v9523 = vsub.f32 %v9521, %v9522
    %v9524 = vand.u32 %v9523, 4294901760
    %9525 = vmatmul.f32.gmra.mxu0 %v9524
    %v9526 = vpop.f32.mrf.mxu0
    %v9527 = vadd.f32 %v9158, %v9526
    %v9528 = vand.u32 %v9255, 4294901760
    %v9529 = vsub.f32 %v9255, %v9528
    %v9530 = vand.u32 %v9529, 4294901760
    %v9531 = vsub.f32 %v9529, %v9530
    %v9532 = vand.u32 %v9531, 4294901760
    %9533 = vmatmul.f32.gmra.mxu0 %v9532
    %v9534 = vpop.f32.mrf.mxu0
    %v9535 = vadd.f32 %v9158, %v9534
    %9536 = vdwg.mxu0
    %9537 = vmatpush.msra.mxu0 0.0
    %9538 = vmatpush.msra.mxu0 0.0
    %9539 = vmatpush.msra.mxu0 0.0
    %9540 = vmatpush.msra.mxu0 0.0
    %9541 = vmatpush.msra.mxu0 0.0
    %9542 = vmatpush.msra.mxu0 0.0
    %9543 = vmatpush.msra.mxu0 0.0
    %9544 = vmatpush.msra.mxu0 0.0
    %9545 = vmatpush.msra.mxu0 0.0
    %9546 = vmatpush.msra.mxu0 0.0
    %9547 = vmatpush.msra.mxu0 0.0
    %9548 = vmatpush.msra.mxu0 0.0
    %9549 = vmatpush.msra.mxu0 0.0
    %v9550 = vand.u32 %v9259, 4294901760
    %v9551 = vsub.f32 %v9259, %v9550
    %v9552 = vand.u32 %v9551, 4294901760
    %v9553 = vsub.f32 %v9551, %v9552
    %v9554 = vand.u32 %v9553, 4294901760
    %9555 = vmatpush.msra.mxu0 %v9554
    %v9556 = vand.u32 %v9154, 4294901760
    %v9557 = vsub.f32 %v9154, %v9556
    %v9558 = vand.u32 %v9557, 4294901760
    %v9559 = vsub.f32 %v9557, %v9558
    %v9560 = vand.u32 %v9559, 4294901760
    %9561 = vmatpush.msra.mxu0 %v9560
    %v9562 = vand.u32 %v9153, 4294901760
    %v9563 = vsub.f32 %v9153, %v9562
    %v9564 = vand.u32 %v9563, 4294901760
    %v9565 = vsub.f32 %v9563, %v9564
    %v9566 = vand.u32 %v9565, 4294901760
    %9567 = vmatpush.msra.mxu0 %v9566
    %v9568 = vand.u32 %v9162, 4294901760
    %9569 = vmatmul.f32.gmra.mxu0 %v9568
    %v9570 = vpop.f32.mrf.mxu0
    %v9571 = vadd.f32 %v9287, %v9570
    %v9572 = vand.u32 %v9165, 4294901760
    %9573 = vmatmul.f32.gmra.mxu0 %v9572
    %v9574 = vpop.f32.mrf.mxu0
    %v9575 = vadd.f32 %v9295, %v9574
    %v9576 = vand.u32 %v9168, 4294901760
    %9577 = vmatmul.f32.gmra.mxu0 %v9576
    %v9578 = vpop.f32.mrf.mxu0
    %v9579 = vadd.f32 %v9303, %v9578
    %v9580 = vand.u32 %v9171, 4294901760
    %9581 = vmatmul.f32.gmra.mxu0 %v9580
    %v9582 = vpop.f32.mrf.mxu0
    %v9583 = vadd.f32 %v9311, %v9582
    %v9584 = vand.u32 %v9174, 4294901760
    %9585 = vmatmul.f32.gmra.mxu0 %v9584
    %v9586 = vpop.f32.mrf.mxu0
    %v9587 = vadd.f32 %v9319, %v9586
    %v9588 = vand.u32 %v9177, 4294901760
    %9589 = vmatmul.f32.gmra.mxu0 %v9588
    %v9590 = vpop.f32.mrf.mxu0
    %v9591 = vadd.f32 %v9327, %v9590
    %v9592 = vand.u32 %v9180, 4294901760
    %9593 = vmatmul.f32.gmra.mxu0 %v9592
    %v9594 = vpop.f32.mrf.mxu0
    %v9595 = vadd.f32 %v9335, %v9594
    %v9596 = vand.u32 %v9183, 4294901760
    %9597 = vmatmul.f32.gmra.mxu0 %v9596
    %v9598 = vpop.f32.mrf.mxu0
    %v9599 = vadd.f32 %v9343, %v9598
    %v9600 = vand.u32 %v9186, 4294901760
    %9601 = vmatmul.f32.gmra.mxu0 %v9600
    %v9602 = vpop.f32.mrf.mxu0
    %v9603 = vadd.f32 %v9351, %v9602
    %v9604 = vand.u32 %v9189, 4294901760
    %9605 = vmatmul.f32.gmra.mxu0 %v9604
    %v9606 = vpop.f32.mrf.mxu0
    %v9607 = vadd.f32 %v9359, %v9606
    %v9608 = vand.u32 %v9192, 4294901760
    %9609 = vmatmul.f32.gmra.mxu0 %v9608
    %v9610 = vpop.f32.mrf.mxu0
    %v9611 = vadd.f32 %v9367, %v9610
    %v9612 = vand.u32 %v9195, 4294901760
    %9613 = vmatmul.f32.gmra.mxu0 %v9612
    %v9614 = vpop.f32.mrf.mxu0
    %v9615 = vadd.f32 %v9375, %v9614
    %v9616 = vand.u32 %v9198, 4294901760
    %9617 = vmatmul.f32.gmra.mxu0 %v9616
    %v9618 = vpop.f32.mrf.mxu0
    %v9619 = vadd.f32 %v9383, %v9618
    %v9620 = vand.u32 %v9201, 4294901760
    %9621 = vmatmul.f32.gmra.mxu0 %v9620
    %v9622 = vpop.f32.mrf.mxu0
    %v9623 = vadd.f32 %v9391, %v9622
    %v9624 = vand.u32 %v9204, 4294901760
    %9625 = vmatmul.f32.gmra.mxu0 %v9624
    %v9626 = vpop.f32.mrf.mxu0
    %v9627 = vadd.f32 %v9399, %v9626
    %v9628 = vand.u32 %v9207, 4294901760
    %9629 = vmatmul.f32.gmra.mxu0 %v9628
    %v9630 = vpop.f32.mrf.mxu0
    %v9631 = vadd.f32 %v9407, %v9630
    %v9632 = vand.u32 %v9210, 4294901760
    %9633 = vmatmul.f32.gmra.mxu0 %v9632
    %v9634 = vpop.f32.mrf.mxu0
    %v9635 = vadd.f32 %v9415, %v9634
    %v9636 = vand.u32 %v9213, 4294901760
    %9637 = vmatmul.f32.gmra.mxu0 %v9636
    %v9638 = vpop.f32.mrf.mxu0
    %v9639 = vadd.f32 %v9423, %v9638
    %v9640 = vand.u32 %v9216, 4294901760
    %9641 = vmatmul.f32.gmra.mxu0 %v9640
    %v9642 = vpop.f32.mrf.mxu0
    %v9643 = vadd.f32 %v9431, %v9642
    %v9644 = vand.u32 %v9219, 4294901760
    %9645 = vmatmul.f32.gmra.mxu0 %v9644
    %v9646 = vpop.f32.mrf.mxu0
    %v9647 = vadd.f32 %v9439, %v9646
    %v9648 = vand.u32 %v9222, 4294901760
    %9649 = vmatmul.f32.gmra.mxu0 %v9648
    %v9650 = vpop.f32.mrf.mxu0
    %v9651 = vadd.f32 %v9447, %v9650
    %v9652 = vand.u32 %v9225, 4294901760
    %9653 = vmatmul.f32.gmra.mxu0 %v9652
    %v9654 = vpop.f32.mrf.mxu0
    %v9655 = vadd.f32 %v9455, %v9654
    %v9656 = vand.u32 %v9228, 4294901760
    %9657 = vmatmul.f32.gmra.mxu0 %v9656
    %v9658 = vpop.f32.mrf.mxu0
    %v9659 = vadd.f32 %v9463, %v9658
    %v9660 = vand.u32 %v9231, 4294901760
    %9661 = vmatmul.f32.gmra.mxu0 %v9660
    %v9662 = vpop.f32.mrf.mxu0
    %v9663 = vadd.f32 %v9471, %v9662
    %v9664 = vand.u32 %v9234, 4294901760
    %9665 = vmatmul.f32.gmra.mxu0 %v9664
    %v9666 = vpop.f32.mrf.mxu0
    %v9667 = vadd.f32 %v9479, %v9666
    %v9668 = vand.u32 %v9237, 4294901760
    %9669 = vmatmul.f32.gmra.mxu0 %v9668
    %v9670 = vpop.f32.mrf.mxu0
    %v9671 = vadd.f32 %v9487, %v9670
    %v9672 = vand.u32 %v9240, 4294901760
    %9673 = vmatmul.f32.gmra.mxu0 %v9672
    %v9674 = vpop.f32.mrf.mxu0
    %v9675 = vadd.f32 %v9495, %v9674
    %v9676 = vand.u32 %v9243, 4294901760
    %9677 = vmatmul.f32.gmra.mxu0 %v9676
    %v9678 = vpop.f32.mrf.mxu0
    %v9679 = vadd.f32 %v9503, %v9678
    %v9680 = vand.u32 %v9246, 4294901760
    %9681 = vmatmul.f32.gmra.mxu0 %v9680
    %v9682 = vpop.f32.mrf.mxu0
    %v9683 = vadd.f32 %v9511, %v9682
    %v9684 = vand.u32 %v9249, 4294901760
    %9685 = vmatmul.f32.gmra.mxu0 %v9684
    %v9686 = vpop.f32.mrf.mxu0
    %v9687 = vadd.f32 %v9519, %v9686
    %v9688 = vand.u32 %v9252, 4294901760
    %9689 = vmatmul.f32.gmra.mxu0 %v9688
    %v9690 = vpop.f32.mrf.mxu0
    %v9691 = vadd.f32 %v9527, %v9690
    %v9692 = vand.u32 %v9255, 4294901760
    %9693 = vmatmul.f32.gmra.mxu0 %v9692
    %v9694 = vpop.f32.mrf.mxu0
    %v9695 = vadd.f32 %v9535, %v9694
    %9696 = vdwg.mxu0
    %9697 = vmatpush.msra.mxu0 0.0
    %9698 = vmatpush.msra.mxu0 0.0
    %9699 = vmatpush.msra.mxu0 0.0
    %9700 = vmatpush.msra.mxu0 0.0
    %9701 = vmatpush.msra.mxu0 0.0
    %9702 = vmatpush.msra.mxu0 0.0
    %9703 = vmatpush.msra.mxu0 0.0
    %9704 = vmatpush.msra.mxu0 0.0
    %9705 = vmatpush.msra.mxu0 0.0
    %9706 = vmatpush.msra.mxu0 0.0
    %9707 = vmatpush.msra.mxu0 0.0
    %9708 = vmatpush.msra.mxu0 0.0
    %9709 = vmatpush.msra.mxu0 0.0
    %v9710 = vand.u32 %v9259, 4294901760
    %v9711 = vsub.f32 %v9259, %v9710
    %9712 = vmatpush.msra.mxu0 %v9711
    %v9713 = vand.u32 %v9154, 4294901760
    %v9714 = vsub.f32 %v9154, %v9713
    %9715 = vmatpush.msra.mxu0 %v9714
    %v9716 = vand.u32 %v9153, 4294901760
    %v9717 = vsub.f32 %v9153, %v9716
    %9718 = vmatpush.msra.mxu0 %v9717
    %v9719 = vand.u32 %v9162, 4294901760
    %v9720 = vsub.f32 %v9162, %v9719
    %9721 = vmatmul.f32.gmra.mxu0 %v9720
    %v9722 = vpop.f32.mrf.mxu0
    %v9723 = vadd.f32 %v9571, %v9722
    %v9724 = vand.u32 %v9165, 4294901760
    %v9725 = vsub.f32 %v9165, %v9724
    %9726 = vmatmul.f32.gmra.mxu0 %v9725
    %v9727 = vpop.f32.mrf.mxu0
    %v9728 = vadd.f32 %v9575, %v9727
    %v9729 = vand.u32 %v9168, 4294901760
    %v9730 = vsub.f32 %v9168, %v9729
    %9731 = vmatmul.f32.gmra.mxu0 %v9730
    %v9732 = vpop.f32.mrf.mxu0
    %v9733 = vadd.f32 %v9579, %v9732
    %v9734 = vand.u32 %v9171, 4294901760
    %v9735 = vsub.f32 %v9171, %v9734
    %9736 = vmatmul.f32.gmra.mxu0 %v9735
    %v9737 = vpop.f32.mrf.mxu0
    %v9738 = vadd.f32 %v9583, %v9737
    %v9739 = vand.u32 %v9174, 4294901760
    %v9740 = vsub.f32 %v9174, %v9739
    %9741 = vmatmul.f32.gmra.mxu0 %v9740
    %v9742 = vpop.f32.mrf.mxu0
    %v9743 = vadd.f32 %v9587, %v9742
    %v9744 = vand.u32 %v9177, 4294901760
    %v9745 = vsub.f32 %v9177, %v9744
    %9746 = vmatmul.f32.gmra.mxu0 %v9745
    %v9747 = vpop.f32.mrf.mxu0
    %v9748 = vadd.f32 %v9591, %v9747
    %v9749 = vand.u32 %v9180, 4294901760
    %v9750 = vsub.f32 %v9180, %v9749
    %9751 = vmatmul.f32.gmra.mxu0 %v9750
    %v9752 = vpop.f32.mrf.mxu0
    %v9753 = vadd.f32 %v9595, %v9752
    %v9754 = vand.u32 %v9183, 4294901760
    %v9755 = vsub.f32 %v9183, %v9754
    %9756 = vmatmul.f32.gmra.mxu0 %v9755
    %v9757 = vpop.f32.mrf.mxu0
    %v9758 = vadd.f32 %v9599, %v9757
    %v9759 = vand.u32 %v9186, 4294901760
    %v9760 = vsub.f32 %v9186, %v9759
    %9761 = vmatmul.f32.gmra.mxu0 %v9760
    %v9762 = vpop.f32.mrf.mxu0
    %v9763 = vadd.f32 %v9603, %v9762
    %v9764 = vand.u32 %v9189, 4294901760
    %v9765 = vsub.f32 %v9189, %v9764
    %9766 = vmatmul.f32.gmra.mxu0 %v9765
    %v9767 = vpop.f32.mrf.mxu0
    %v9768 = vadd.f32 %v9607, %v9767
    %v9769 = vand.u32 %v9192, 4294901760
    %v9770 = vsub.f32 %v9192, %v9769
    %9771 = vmatmul.f32.gmra.mxu0 %v9770
    %v9772 = vpop.f32.mrf.mxu0
    %v9773 = vadd.f32 %v9611, %v9772
    %v9774 = vand.u32 %v9195, 4294901760
    %v9775 = vsub.f32 %v9195, %v9774
    %9776 = vmatmul.f32.gmra.mxu0 %v9775
    %v9777 = vpop.f32.mrf.mxu0
    %v9778 = vadd.f32 %v9615, %v9777
    %v9779 = vand.u32 %v9198, 4294901760
    %v9780 = vsub.f32 %v9198, %v9779
    %9781 = vmatmul.f32.gmra.mxu0 %v9780
    %v9782 = vpop.f32.mrf.mxu0
    %v9783 = vadd.f32 %v9619, %v9782
    %v9784 = vand.u32 %v9201, 4294901760
    %v9785 = vsub.f32 %v9201, %v9784
    %9786 = vmatmul.f32.gmra.mxu0 %v9785
    %v9787 = vpop.f32.mrf.mxu0
    %v9788 = vadd.f32 %v9623, %v9787
    %v9789 = vand.u32 %v9204, 4294901760
    %v9790 = vsub.f32 %v9204, %v9789
    %9791 = vmatmul.f32.gmra.mxu0 %v9790
    %v9792 = vpop.f32.mrf.mxu0
    %v9793 = vadd.f32 %v9627, %v9792
    %v9794 = vand.u32 %v9207, 4294901760
    %v9795 = vsub.f32 %v9207, %v9794
    %9796 = vmatmul.f32.gmra.mxu0 %v9795
    %v9797 = vpop.f32.mrf.mxu0
    %v9798 = vadd.f32 %v9631, %v9797
    %v9799 = vand.u32 %v9210, 4294901760
    %v9800 = vsub.f32 %v9210, %v9799
    %9801 = vmatmul.f32.gmra.mxu0 %v9800
    %v9802 = vpop.f32.mrf.mxu0
    %v9803 = vadd.f32 %v9635, %v9802
    %v9804 = vand.u32 %v9213, 4294901760
    %v9805 = vsub.f32 %v9213, %v9804
    %9806 = vmatmul.f32.gmra.mxu0 %v9805
    %v9807 = vpop.f32.mrf.mxu0
    %v9808 = vadd.f32 %v9639, %v9807
    %v9809 = vand.u32 %v9216, 4294901760
    %v9810 = vsub.f32 %v9216, %v9809
    %9811 = vmatmul.f32.gmra.mxu0 %v9810
    %v9812 = vpop.f32.mrf.mxu0
    %v9813 = vadd.f32 %v9643, %v9812
    %v9814 = vand.u32 %v9219, 4294901760
    %v9815 = vsub.f32 %v9219, %v9814
    %9816 = vmatmul.f32.gmra.mxu0 %v9815
    %v9817 = vpop.f32.mrf.mxu0
    %v9818 = vadd.f32 %v9647, %v9817
    %v9819 = vand.u32 %v9222, 4294901760
    %v9820 = vsub.f32 %v9222, %v9819
    %9821 = vmatmul.f32.gmra.mxu0 %v9820
    %v9822 = vpop.f32.mrf.mxu0
    %v9823 = vadd.f32 %v9651, %v9822
    %v9824 = vand.u32 %v9225, 4294901760
    %v9825 = vsub.f32 %v9225, %v9824
    %9826 = vmatmul.f32.gmra.mxu0 %v9825
    %v9827 = vpop.f32.mrf.mxu0
    %v9828 = vadd.f32 %v9655, %v9827
    %v9829 = vand.u32 %v9228, 4294901760
    %v9830 = vsub.f32 %v9228, %v9829
    %9831 = vmatmul.f32.gmra.mxu0 %v9830
    %v9832 = vpop.f32.mrf.mxu0
    %v9833 = vadd.f32 %v9659, %v9832
    %v9834 = vand.u32 %v9231, 4294901760
    %v9835 = vsub.f32 %v9231, %v9834
    %9836 = vmatmul.f32.gmra.mxu0 %v9835
    %v9837 = vpop.f32.mrf.mxu0
    %v9838 = vadd.f32 %v9663, %v9837
    %v9839 = vand.u32 %v9234, 4294901760
    %v9840 = vsub.f32 %v9234, %v9839
    %9841 = vmatmul.f32.gmra.mxu0 %v9840
    %v9842 = vpop.f32.mrf.mxu0
    %v9843 = vadd.f32 %v9667, %v9842
    %v9844 = vand.u32 %v9237, 4294901760
    %v9845 = vsub.f32 %v9237, %v9844
    %9846 = vmatmul.f32.gmra.mxu0 %v9845
    %v9847 = vpop.f32.mrf.mxu0
    %v9848 = vadd.f32 %v9671, %v9847
    %v9849 = vand.u32 %v9240, 4294901760
    %v9850 = vsub.f32 %v9240, %v9849
    %9851 = vmatmul.f32.gmra.mxu0 %v9850
    %v9852 = vpop.f32.mrf.mxu0
    %v9853 = vadd.f32 %v9675, %v9852
    %v9854 = vand.u32 %v9243, 4294901760
    %v9855 = vsub.f32 %v9243, %v9854
    %9856 = vmatmul.f32.gmra.mxu0 %v9855
    %v9857 = vpop.f32.mrf.mxu0
    %v9858 = vadd.f32 %v9679, %v9857
    %v9859 = vand.u32 %v9246, 4294901760
    %v9860 = vsub.f32 %v9246, %v9859
    %9861 = vmatmul.f32.gmra.mxu0 %v9860
    %v9862 = vpop.f32.mrf.mxu0
    %v9863 = vadd.f32 %v9683, %v9862
    %v9864 = vand.u32 %v9249, 4294901760
    %v9865 = vsub.f32 %v9249, %v9864
    %9866 = vmatmul.f32.gmra.mxu0 %v9865
    %v9867 = vpop.f32.mrf.mxu0
    %v9868 = vadd.f32 %v9687, %v9867
    %v9869 = vand.u32 %v9252, 4294901760
    %v9870 = vsub.f32 %v9252, %v9869
    %9871 = vmatmul.f32.gmra.mxu0 %v9870
    %v9872 = vpop.f32.mrf.mxu0
    %v9873 = vadd.f32 %v9691, %v9872
    %v9874 = vand.u32 %v9255, 4294901760
    %v9875 = vsub.f32 %v9255, %v9874
    %9876 = vmatmul.f32.gmra.mxu0 %v9875
    %v9877 = vpop.f32.mrf.mxu0
    %v9878 = vadd.f32 %v9695, %v9877
    %9879 = vdwg.mxu0
    %9880 = vmatpush.msra.mxu0 0.0
    %9881 = vmatpush.msra.mxu0 0.0
    %9882 = vmatpush.msra.mxu0 0.0
    %9883 = vmatpush.msra.mxu0 0.0
    %9884 = vmatpush.msra.mxu0 0.0
    %9885 = vmatpush.msra.mxu0 0.0
    %9886 = vmatpush.msra.mxu0 0.0
    %9887 = vmatpush.msra.mxu0 0.0
    %9888 = vmatpush.msra.mxu0 0.0
    %9889 = vmatpush.msra.mxu0 0.0
    %9890 = vmatpush.msra.mxu0 0.0
    %9891 = vmatpush.msra.mxu0 0.0
    %9892 = vmatpush.msra.mxu0 0.0
    %v9893 = vand.u32 %v9259, 4294901760
    %9894 = vmatpush.msra.mxu0 %v9893
    %v9895 = vand.u32 %v9154, 4294901760
    %9896 = vmatpush.msra.mxu0 %v9895
    %v9897 = vand.u32 %v9153, 4294901760
    %9898 = vmatpush.msra.mxu0 %v9897
    %v9899 = vand.u32 %v9162, 4294901760
    %v9900 = vsub.f32 %v9162, %v9899
    %v9901 = vand.u32 %v9900, 4294901760
    %9902 = vmatmul.f32.gmra.mxu0 %v9901
    %v9903 = vpop.f32.mrf.mxu0
    %v9904 = vadd.f32 %v9723, %v9903
    %v9905 = vand.u32 %v9165, 4294901760
    %v9906 = vsub.f32 %v9165, %v9905
    %v9907 = vand.u32 %v9906, 4294901760
    %9908 = vmatmul.f32.gmra.mxu0 %v9907
    %v9909 = vpop.f32.mrf.mxu0
    %v9910 = vadd.f32 %v9728, %v9909
    %v9911 = vand.u32 %v9168, 4294901760
    %v9912 = vsub.f32 %v9168, %v9911
    %v9913 = vand.u32 %v9912, 4294901760
    %9914 = vmatmul.f32.gmra.mxu0 %v9913
    %v9915 = vpop.f32.mrf.mxu0
    %v9916 = vadd.f32 %v9733, %v9915
    %v9917 = vand.u32 %v9171, 4294901760
    %v9918 = vsub.f32 %v9171, %v9917
    %v9919 = vand.u32 %v9918, 4294901760
    %9920 = vmatmul.f32.gmra.mxu0 %v9919
    %v9921 = vpop.f32.mrf.mxu0
    %v9922 = vadd.f32 %v9738, %v9921
    %v9923 = vand.u32 %v9174, 4294901760
    %v9924 = vsub.f32 %v9174, %v9923
    %v9925 = vand.u32 %v9924, 4294901760
    %9926 = vmatmul.f32.gmra.mxu0 %v9925
    %v9927 = vpop.f32.mrf.mxu0
    %v9928 = vadd.f32 %v9743, %v9927
    %v9929 = vand.u32 %v9177, 4294901760
    %v9930 = vsub.f32 %v9177, %v9929
    %v9931 = vand.u32 %v9930, 4294901760
    %9932 = vmatmul.f32.gmra.mxu0 %v9931
    %v9933 = vpop.f32.mrf.mxu0
    %v9934 = vadd.f32 %v9748, %v9933
    %v9935 = vand.u32 %v9180, 4294901760
    %v9936 = vsub.f32 %v9180, %v9935
    %v9937 = vand.u32 %v9936, 4294901760
    %9938 = vmatmul.f32.gmra.mxu0 %v9937
    %v9939 = vpop.f32.mrf.mxu0
    %v9940 = vadd.f32 %v9753, %v9939
    %v9941 = vand.u32 %v9183, 4294901760
    %v9942 = vsub.f32 %v9183, %v9941
    %v9943 = vand.u32 %v9942, 4294901760
    %9944 = vmatmul.f32.gmra.mxu0 %v9943
    %v9945 = vpop.f32.mrf.mxu0
    %v9946 = vadd.f32 %v9758, %v9945
    %v9947 = vand.u32 %v9186, 4294901760
    %v9948 = vsub.f32 %v9186, %v9947
    %v9949 = vand.u32 %v9948, 4294901760
    %9950 = vmatmul.f32.gmra.mxu0 %v9949
    %v9951 = vpop.f32.mrf.mxu0
    %v9952 = vadd.f32 %v9763, %v9951
    %v9953 = vand.u32 %v9189, 4294901760
    %v9954 = vsub.f32 %v9189, %v9953
    %v9955 = vand.u32 %v9954, 4294901760
    %9956 = vmatmul.f32.gmra.mxu0 %v9955
    %v9957 = vpop.f32.mrf.mxu0
    %v9958 = vadd.f32 %v9768, %v9957
    %v9959 = vand.u32 %v9192, 4294901760
    %v9960 = vsub.f32 %v9192, %v9959
    %v9961 = vand.u32 %v9960, 4294901760
    %9962 = vmatmul.f32.gmra.mxu0 %v9961
    %v9963 = vpop.f32.mrf.mxu0
    %v9964 = vadd.f32 %v9773, %v9963
    %v9965 = vand.u32 %v9195, 4294901760
    %v9966 = vsub.f32 %v9195, %v9965
    %v9967 = vand.u32 %v9966, 4294901760
    %9968 = vmatmul.f32.gmra.mxu0 %v9967
    %v9969 = vpop.f32.mrf.mxu0
    %v9970 = vadd.f32 %v9778, %v9969
    %v9971 = vand.u32 %v9198, 4294901760
    %v9972 = vsub.f32 %v9198, %v9971
    %v9973 = vand.u32 %v9972, 4294901760
    %9974 = vmatmul.f32.gmra.mxu0 %v9973
    %v9975 = vpop.f32.mrf.mxu0
    %v9976 = vadd.f32 %v9783, %v9975
    %v9977 = vand.u32 %v9201, 4294901760
    %v9978 = vsub.f32 %v9201, %v9977
    %v9979 = vand.u32 %v9978, 4294901760
    %9980 = vmatmul.f32.gmra.mxu0 %v9979
    %v9981 = vpop.f32.mrf.mxu0
    %v9982 = vadd.f32 %v9788, %v9981
    %v9983 = vand.u32 %v9204, 4294901760
    %v9984 = vsub.f32 %v9204, %v9983
    %v9985 = vand.u32 %v9984, 4294901760
    %9986 = vmatmul.f32.gmra.mxu0 %v9985
    %v9987 = vpop.f32.mrf.mxu0
    %v9988 = vadd.f32 %v9793, %v9987
    %v9989 = vand.u32 %v9207, 4294901760
    %v9990 = vsub.f32 %v9207, %v9989
    %v9991 = vand.u32 %v9990, 4294901760
    %9992 = vmatmul.f32.gmra.mxu0 %v9991
    %v9993 = vpop.f32.mrf.mxu0
    %v9994 = vadd.f32 %v9798, %v9993
    %v9995 = vand.u32 %v9210, 4294901760
    %v9996 = vsub.f32 %v9210, %v9995
    %v9997 = vand.u32 %v9996, 4294901760
    %9998 = vmatmul.f32.gmra.mxu0 %v9997
    %v9999 = vpop.f32.mrf.mxu0
    %v10000 = vadd.f32 %v9803, %v9999
    %v10001 = vand.u32 %v9213, 4294901760
    %v10002 = vsub.f32 %v9213, %v10001
    %v10003 = vand.u32 %v10002, 4294901760
    %10004 = vmatmul.f32.gmra.mxu0 %v10003
    %v10005 = vpop.f32.mrf.mxu0
    %v10006 = vadd.f32 %v9808, %v10005
    %v10007 = vand.u32 %v9216, 4294901760
    %v10008 = vsub.f32 %v9216, %v10007
    %v10009 = vand.u32 %v10008, 4294901760
    %10010 = vmatmul.f32.gmra.mxu0 %v10009
    %v10011 = vpop.f32.mrf.mxu0
    %v10012 = vadd.f32 %v9813, %v10011
    %v10013 = vand.u32 %v9219, 4294901760
    %v10014 = vsub.f32 %v9219, %v10013
    %v10015 = vand.u32 %v10014, 4294901760
    %10016 = vmatmul.f32.gmra.mxu0 %v10015
    %v10017 = vpop.f32.mrf.mxu0
    %v10018 = vadd.f32 %v9818, %v10017
    %v10019 = vand.u32 %v9222, 4294901760
    %v10020 = vsub.f32 %v9222, %v10019
    %v10021 = vand.u32 %v10020, 4294901760
    %10022 = vmatmul.f32.gmra.mxu0 %v10021
    %v10023 = vpop.f32.mrf.mxu0
    %v10024 = vadd.f32 %v9823, %v10023
    %v10025 = vand.u32 %v9225, 4294901760
    %v10026 = vsub.f32 %v9225, %v10025
    %v10027 = vand.u32 %v10026, 4294901760
    %10028 = vmatmul.f32.gmra.mxu0 %v10027
    %v10029 = vpop.f32.mrf.mxu0
    %v10030 = vadd.f32 %v9828, %v10029
    %v10031 = vand.u32 %v9228, 4294901760
    %v10032 = vsub.f32 %v9228, %v10031
    %v10033 = vand.u32 %v10032, 4294901760
    %10034 = vmatmul.f32.gmra.mxu0 %v10033
    %v10035 = vpop.f32.mrf.mxu0
    %v10036 = vadd.f32 %v9833, %v10035
    %v10037 = vand.u32 %v9231, 4294901760
    %v10038 = vsub.f32 %v9231, %v10037
    %v10039 = vand.u32 %v10038, 4294901760
    %10040 = vmatmul.f32.gmra.mxu0 %v10039
    %v10041 = vpop.f32.mrf.mxu0
    %v10042 = vadd.f32 %v9838, %v10041
    %v10043 = vand.u32 %v9234, 4294901760
    %v10044 = vsub.f32 %v9234, %v10043
    %v10045 = vand.u32 %v10044, 4294901760
    %10046 = vmatmul.f32.gmra.mxu0 %v10045
    %v10047 = vpop.f32.mrf.mxu0
    %v10048 = vadd.f32 %v9843, %v10047
    %v10049 = vand.u32 %v9237, 4294901760
    %v10050 = vsub.f32 %v9237, %v10049
    %v10051 = vand.u32 %v10050, 4294901760
    %10052 = vmatmul.f32.gmra.mxu0 %v10051
    %v10053 = vpop.f32.mrf.mxu0
    %v10054 = vadd.f32 %v9848, %v10053
    %v10055 = vand.u32 %v9240, 4294901760
    %v10056 = vsub.f32 %v9240, %v10055
    %v10057 = vand.u32 %v10056, 4294901760
    %10058 = vmatmul.f32.gmra.mxu0 %v10057
    %v10059 = vpop.f32.mrf.mxu0
    %v10060 = vadd.f32 %v9853, %v10059
    %v10061 = vand.u32 %v9243, 4294901760
    %v10062 = vsub.f32 %v9243, %v10061
    %v10063 = vand.u32 %v10062, 4294901760
    %10064 = vmatmul.f32.gmra.mxu0 %v10063
    %v10065 = vpop.f32.mrf.mxu0
    %v10066 = vadd.f32 %v9858, %v10065
    %v10067 = vand.u32 %v9246, 4294901760
    %v10068 = vsub.f32 %v9246, %v10067
    %v10069 = vand.u32 %v10068, 4294901760
    %10070 = vmatmul.f32.gmra.mxu0 %v10069
    %v10071 = vpop.f32.mrf.mxu0
    %v10072 = vadd.f32 %v9863, %v10071
    %v10073 = vand.u32 %v9249, 4294901760
    %v10074 = vsub.f32 %v9249, %v10073
    %v10075 = vand.u32 %v10074, 4294901760
    %10076 = vmatmul.f32.gmra.mxu0 %v10075
    %v10077 = vpop.f32.mrf.mxu0
    %v10078 = vadd.f32 %v9868, %v10077
    %v10079 = vand.u32 %v9252, 4294901760
    %v10080 = vsub.f32 %v9252, %v10079
    %v10081 = vand.u32 %v10080, 4294901760
    %10082 = vmatmul.f32.gmra.mxu0 %v10081
    %v10083 = vpop.f32.mrf.mxu0
    %v10084 = vadd.f32 %v9873, %v10083
    %v10085 = vand.u32 %v9255, 4294901760
    %v10086 = vsub.f32 %v9255, %v10085
    %v10087 = vand.u32 %v10086, 4294901760
    %10088 = vmatmul.f32.gmra.mxu0 %v10087
    %v10089 = vpop.f32.mrf.mxu0
    %v10090 = vadd.f32 %v9878, %v10089
    %10091 = vdwg.mxu0
    %10092 = vmatpush.msra.mxu0 0.0
    %10093 = vmatpush.msra.mxu0 0.0
    %10094 = vmatpush.msra.mxu0 0.0
    %10095 = vmatpush.msra.mxu0 0.0
    %10096 = vmatpush.msra.mxu0 0.0
    %10097 = vmatpush.msra.mxu0 0.0
    %10098 = vmatpush.msra.mxu0 0.0
    %10099 = vmatpush.msra.mxu0 0.0
    %10100 = vmatpush.msra.mxu0 0.0
    %10101 = vmatpush.msra.mxu0 0.0
    %10102 = vmatpush.msra.mxu0 0.0
    %10103 = vmatpush.msra.mxu0 0.0
    %10104 = vmatpush.msra.mxu0 0.0
    %v10105 = vand.u32 %v9259, 4294901760
    %v10106 = vsub.f32 %v9259, %v10105
    %v10107 = vand.u32 %v10106, 4294901760
    %10108 = vmatpush.msra.mxu0 %v10107
    %v10109 = vand.u32 %v9154, 4294901760
    %v10110 = vsub.f32 %v9154, %v10109
    %v10111 = vand.u32 %v10110, 4294901760
    %10112 = vmatpush.msra.mxu0 %v10111
    %v10113 = vand.u32 %v9153, 4294901760
    %v10114 = vsub.f32 %v9153, %v10113
    %v10115 = vand.u32 %v10114, 4294901760
    %10116 = vmatpush.msra.mxu0 %v10115
    %v10117 = vand.u32 %v9162, 4294901760
    %10118 = vmatmul.f32.gmra.mxu0 %v10117
    %v10119 = vpop.f32.mrf.mxu0
    %v10120 = vadd.f32 %v9904, %v10119
    %v10121 = vand.u32 %v9165, 4294901760
    %10122 = vmatmul.f32.gmra.mxu0 %v10121
    %v10123 = vpop.f32.mrf.mxu0
    %v10124 = vadd.f32 %v9910, %v10123
    %v10125 = vand.u32 %v9168, 4294901760
    %10126 = vmatmul.f32.gmra.mxu0 %v10125
    %v10127 = vpop.f32.mrf.mxu0
    %v10128 = vadd.f32 %v9916, %v10127
    %v10129 = vand.u32 %v9171, 4294901760
    %10130 = vmatmul.f32.gmra.mxu0 %v10129
    %v10131 = vpop.f32.mrf.mxu0
    %v10132 = vadd.f32 %v9922, %v10131
    %v10133 = vand.u32 %v9174, 4294901760
    %10134 = vmatmul.f32.gmra.mxu0 %v10133
    %v10135 = vpop.f32.mrf.mxu0
    %v10136 = vadd.f32 %v9928, %v10135
    %v10137 = vand.u32 %v9177, 4294901760
    %10138 = vmatmul.f32.gmra.mxu0 %v10137
    %v10139 = vpop.f32.mrf.mxu0
    %v10140 = vadd.f32 %v9934, %v10139
    %v10141 = vand.u32 %v9180, 4294901760
    %10142 = vmatmul.f32.gmra.mxu0 %v10141
    %v10143 = vpop.f32.mrf.mxu0
    %v10144 = vadd.f32 %v9940, %v10143
    %v10145 = vand.u32 %v9183, 4294901760
    %10146 = vmatmul.f32.gmra.mxu0 %v10145
    %v10147 = vpop.f32.mrf.mxu0
    %v10148 = vadd.f32 %v9946, %v10147
    %v10149 = vand.u32 %v9186, 4294901760
    %10150 = vmatmul.f32.gmra.mxu0 %v10149
    %v10151 = vpop.f32.mrf.mxu0
    %v10152 = vadd.f32 %v9952, %v10151
    %v10153 = vand.u32 %v9189, 4294901760
    %10154 = vmatmul.f32.gmra.mxu0 %v10153
    %v10155 = vpop.f32.mrf.mxu0
    %v10156 = vadd.f32 %v9958, %v10155
    %v10157 = vand.u32 %v9192, 4294901760
    %10158 = vmatmul.f32.gmra.mxu0 %v10157
    %v10159 = vpop.f32.mrf.mxu0
    %v10160 = vadd.f32 %v9964, %v10159
    %v10161 = vand.u32 %v9195, 4294901760
    %10162 = vmatmul.f32.gmra.mxu0 %v10161
    %v10163 = vpop.f32.mrf.mxu0
    %v10164 = vadd.f32 %v9970, %v10163
    %v10165 = vand.u32 %v9198, 4294901760
    %10166 = vmatmul.f32.gmra.mxu0 %v10165
    %v10167 = vpop.f32.mrf.mxu0
    %v10168 = vadd.f32 %v9976, %v10167
    %v10169 = vand.u32 %v9201, 4294901760
    %10170 = vmatmul.f32.gmra.mxu0 %v10169
    %v10171 = vpop.f32.mrf.mxu0
    %v10172 = vadd.f32 %v9982, %v10171
    %v10173 = vand.u32 %v9204, 4294901760
    %10174 = vmatmul.f32.gmra.mxu0 %v10173
    %v10175 = vpop.f32.mrf.mxu0
    %v10176 = vadd.f32 %v9988, %v10175
    %v10177 = vand.u32 %v9207, 4294901760
    %10178 = vmatmul.f32.gmra.mxu0 %v10177
    %v10179 = vpop.f32.mrf.mxu0
    %v10180 = vadd.f32 %v9994, %v10179
    %v10181 = vand.u32 %v9210, 4294901760
    %10182 = vmatmul.f32.gmra.mxu0 %v10181
    %v10183 = vpop.f32.mrf.mxu0
    %v10184 = vadd.f32 %v10000, %v10183
    %v10185 = vand.u32 %v9213, 4294901760
    %10186 = vmatmul.f32.gmra.mxu0 %v10185
    %v10187 = vpop.f32.mrf.mxu0
    %v10188 = vadd.f32 %v10006, %v10187
    %v10189 = vand.u32 %v9216, 4294901760
    %10190 = vmatmul.f32.gmra.mxu0 %v10189
    %v10191 = vpop.f32.mrf.mxu0
    %v10192 = vadd.f32 %v10012, %v10191
    %v10193 = vand.u32 %v9219, 4294901760
    %10194 = vmatmul.f32.gmra.mxu0 %v10193
    %v10195 = vpop.f32.mrf.mxu0
    %v10196 = vadd.f32 %v10018, %v10195
    %v10197 = vand.u32 %v9222, 4294901760
    %10198 = vmatmul.f32.gmra.mxu0 %v10197
    %v10199 = vpop.f32.mrf.mxu0
    %v10200 = vadd.f32 %v10024, %v10199
    %v10201 = vand.u32 %v9225, 4294901760
    %10202 = vmatmul.f32.gmra.mxu0 %v10201
    %v10203 = vpop.f32.mrf.mxu0
    %v10204 = vadd.f32 %v10030, %v10203
    %v10205 = vand.u32 %v9228, 4294901760
    %10206 = vmatmul.f32.gmra.mxu0 %v10205
    %v10207 = vpop.f32.mrf.mxu0
    %v10208 = vadd.f32 %v10036, %v10207
    %v10209 = vand.u32 %v9231, 4294901760
    %10210 = vmatmul.f32.gmra.mxu0 %v10209
    %v10211 = vpop.f32.mrf.mxu0
    %v10212 = vadd.f32 %v10042, %v10211
    %v10213 = vand.u32 %v9234, 4294901760
    %10214 = vmatmul.f32.gmra.mxu0 %v10213
    %v10215 = vpop.f32.mrf.mxu0
    %v10216 = vadd.f32 %v10048, %v10215
    %v10217 = vand.u32 %v9237, 4294901760
    %10218 = vmatmul.f32.gmra.mxu0 %v10217
    %v10219 = vpop.f32.mrf.mxu0
    %v10220 = vadd.f32 %v10054, %v10219
    %v10221 = vand.u32 %v9240, 4294901760
    %10222 = vmatmul.f32.gmra.mxu0 %v10221
    %v10223 = vpop.f32.mrf.mxu0
    %v10224 = vadd.f32 %v10060, %v10223
    %v10225 = vand.u32 %v9243, 4294901760
    %10226 = vmatmul.f32.gmra.mxu0 %v10225
    %v10227 = vpop.f32.mrf.mxu0
    %v10228 = vadd.f32 %v10066, %v10227
    %v10229 = vand.u32 %v9246, 4294901760
    %10230 = vmatmul.f32.gmra.mxu0 %v10229
    %v10231 = vpop.f32.mrf.mxu0
    %v10232 = vadd.f32 %v10072, %v10231
    %v10233 = vand.u32 %v9249, 4294901760
    %10234 = vmatmul.f32.gmra.mxu0 %v10233
    %v10235 = vpop.f32.mrf.mxu0
    %v10236 = vadd.f32 %v10078, %v10235
    %v10237 = vand.u32 %v9252, 4294901760
    %10238 = vmatmul.f32.gmra.mxu0 %v10237
    %v10239 = vpop.f32.mrf.mxu0
    %v10240 = vadd.f32 %v10084, %v10239
    %v10241 = vand.u32 %v9255, 4294901760
    %10242 = vmatmul.f32.gmra.mxu0 %v10241
    %v10243 = vpop.f32.mrf.mxu0
    %v10244 = vadd.f32 %v10090, %v10243
    %10245 = vdwg.mxu0
    %10246 = vmatpush.msra.mxu0 0.0
    %10247 = vmatpush.msra.mxu0 0.0
    %10248 = vmatpush.msra.mxu0 0.0
    %10249 = vmatpush.msra.mxu0 0.0
    %10250 = vmatpush.msra.mxu0 0.0
    %10251 = vmatpush.msra.mxu0 0.0
    %10252 = vmatpush.msra.mxu0 0.0
    %10253 = vmatpush.msra.mxu0 0.0
    %10254 = vmatpush.msra.mxu0 0.0
    %10255 = vmatpush.msra.mxu0 0.0
    %10256 = vmatpush.msra.mxu0 0.0
    %10257 = vmatpush.msra.mxu0 0.0
    %10258 = vmatpush.msra.mxu0 0.0
    %v10259 = vand.u32 %v9259, 4294901760
    %10260 = vmatpush.msra.mxu0 %v10259
    %v10261 = vand.u32 %v9154, 4294901760
    %10262 = vmatpush.msra.mxu0 %v10261
    %v10263 = vand.u32 %v9153, 4294901760
    %10264 = vmatpush.msra.mxu0 %v10263
    %v10265 = vand.u32 %v9162, 4294901760
    %10266 = vmatmul.f32.gmra.mxu0 %v10265
    %v10267 = vpop.f32.mrf.mxu0
    %v10268 = vadd.f32 %v10120, %v10267
    %v10269 = vand.u32 %v9165, 4294901760
    %10270 = vmatmul.f32.gmra.mxu0 %v10269
    %v10271 = vpop.f32.mrf.mxu0
    %v10272 = vadd.f32 %v10124, %v10271
    %v10273 = vand.u32 %v9168, 4294901760
    %10274 = vmatmul.f32.gmra.mxu0 %v10273
    %v10275 = vpop.f32.mrf.mxu0
    %v10276 = vadd.f32 %v10128, %v10275
    %v10277 = vand.u32 %v9171, 4294901760
    %10278 = vmatmul.f32.gmra.mxu0 %v10277
    %v10279 = vpop.f32.mrf.mxu0
    %v10280 = vadd.f32 %v10132, %v10279
    %v10281 = vand.u32 %v9174, 4294901760
    %10282 = vmatmul.f32.gmra.mxu0 %v10281
    %v10283 = vpop.f32.mrf.mxu0
    %v10284 = vadd.f32 %v10136, %v10283
    %v10285 = vand.u32 %v9177, 4294901760
    %10286 = vmatmul.f32.gmra.mxu0 %v10285
    %v10287 = vpop.f32.mrf.mxu0
    %v10288 = vadd.f32 %v10140, %v10287
    %v10289 = vand.u32 %v9180, 4294901760
    %10290 = vmatmul.f32.gmra.mxu0 %v10289
    %v10291 = vpop.f32.mrf.mxu0
    %v10292 = vadd.f32 %v10144, %v10291
    %v10293 = vand.u32 %v9183, 4294901760
    %10294 = vmatmul.f32.gmra.mxu0 %v10293
    %v10295 = vpop.f32.mrf.mxu0
    %v10296 = vadd.f32 %v10148, %v10295
    %v10297 = vand.u32 %v9186, 4294901760
    %10298 = vmatmul.f32.gmra.mxu0 %v10297
    %v10299 = vpop.f32.mrf.mxu0
    %v10300 = vadd.f32 %v10152, %v10299
    %v10301 = vand.u32 %v9189, 4294901760
    %10302 = vmatmul.f32.gmra.mxu0 %v10301
    %v10303 = vpop.f32.mrf.mxu0
    %v10304 = vadd.f32 %v10156, %v10303
    %v10305 = vand.u32 %v9192, 4294901760
    %10306 = vmatmul.f32.gmra.mxu0 %v10305
    %v10307 = vpop.f32.mrf.mxu0
    %v10308 = vadd.f32 %v10160, %v10307
    %v10309 = vand.u32 %v9195, 4294901760
    %10310 = vmatmul.f32.gmra.mxu0 %v10309
    %v10311 = vpop.f32.mrf.mxu0
    %v10312 = vadd.f32 %v10164, %v10311
    %v10313 = vand.u32 %v9198, 4294901760
    %10314 = vmatmul.f32.gmra.mxu0 %v10313
    %v10315 = vpop.f32.mrf.mxu0
    %v10316 = vadd.f32 %v10168, %v10315
    %v10317 = vand.u32 %v9201, 4294901760
    %10318 = vmatmul.f32.gmra.mxu0 %v10317
    %v10319 = vpop.f32.mrf.mxu0
    %v10320 = vadd.f32 %v10172, %v10319
    %v10321 = vand.u32 %v9204, 4294901760
    %10322 = vmatmul.f32.gmra.mxu0 %v10321
    %v10323 = vpop.f32.mrf.mxu0
    %v10324 = vadd.f32 %v10176, %v10323
    %v10325 = vand.u32 %v9207, 4294901760
    %10326 = vmatmul.f32.gmra.mxu0 %v10325
    %v10327 = vpop.f32.mrf.mxu0
    %v10328 = vadd.f32 %v10180, %v10327
    %v10329 = vand.u32 %v9210, 4294901760
    %10330 = vmatmul.f32.gmra.mxu0 %v10329
    %v10331 = vpop.f32.mrf.mxu0
    %v10332 = vadd.f32 %v10184, %v10331
    %v10333 = vand.u32 %v9213, 4294901760
    %10334 = vmatmul.f32.gmra.mxu0 %v10333
    %v10335 = vpop.f32.mrf.mxu0
    %v10336 = vadd.f32 %v10188, %v10335
    %v10337 = vand.u32 %v9216, 4294901760
    %10338 = vmatmul.f32.gmra.mxu0 %v10337
    %v10339 = vpop.f32.mrf.mxu0
    %v10340 = vadd.f32 %v10192, %v10339
    %v10341 = vand.u32 %v9219, 4294901760
    %10342 = vmatmul.f32.gmra.mxu0 %v10341
    %v10343 = vpop.f32.mrf.mxu0
    %v10344 = vadd.f32 %v10196, %v10343
    %v10345 = vand.u32 %v9222, 4294901760
    %10346 = vmatmul.f32.gmra.mxu0 %v10345
    %v10347 = vpop.f32.mrf.mxu0
    %v10348 = vadd.f32 %v10200, %v10347
    %v10349 = vand.u32 %v9225, 4294901760
    %10350 = vmatmul.f32.gmra.mxu0 %v10349
    %v10351 = vpop.f32.mrf.mxu0
    %v10352 = vadd.f32 %v10204, %v10351
    %v10353 = vand.u32 %v9228, 4294901760
    %10354 = vmatmul.f32.gmra.mxu0 %v10353
    %v10355 = vpop.f32.mrf.mxu0
    %v10356 = vadd.f32 %v10208, %v10355
    %v10357 = vand.u32 %v9231, 4294901760
    %10358 = vmatmul.f32.gmra.mxu0 %v10357
    %v10359 = vpop.f32.mrf.mxu0
    %v10360 = vadd.f32 %v10212, %v10359
    %v10361 = vand.u32 %v9234, 4294901760
    %10362 = vmatmul.f32.gmra.mxu0 %v10361
    %v10363 = vpop.f32.mrf.mxu0
    %v10364 = vadd.f32 %v10216, %v10363
    %v10365 = vand.u32 %v9237, 4294901760
    %10366 = vmatmul.f32.gmra.mxu0 %v10365
    %v10367 = vpop.f32.mrf.mxu0
    %v10368 = vadd.f32 %v10220, %v10367
    %v10369 = vand.u32 %v9240, 4294901760
    %10370 = vmatmul.f32.gmra.mxu0 %v10369
    %v10371 = vpop.f32.mrf.mxu0
    %v10372 = vadd.f32 %v10224, %v10371
    %v10373 = vand.u32 %v9243, 4294901760
    %10374 = vmatmul.f32.gmra.mxu0 %v10373
    %v10375 = vpop.f32.mrf.mxu0
    %v10376 = vadd.f32 %v10228, %v10375
    %v10377 = vand.u32 %v9246, 4294901760
    %10378 = vmatmul.f32.gmra.mxu0 %v10377
    %v10379 = vpop.f32.mrf.mxu0
    %v10380 = vadd.f32 %v10232, %v10379
    %v10381 = vand.u32 %v9249, 4294901760
    %10382 = vmatmul.f32.gmra.mxu0 %v10381
    %v10383 = vpop.f32.mrf.mxu0
    %v10384 = vadd.f32 %v10236, %v10383
    %v10385 = vand.u32 %v9252, 4294901760
    %10386 = vmatmul.f32.gmra.mxu0 %v10385
    %v10387 = vpop.f32.mrf.mxu0
    %v10388 = vadd.f32 %v10240, %v10387
    %v10389 = vand.u32 %v9255, 4294901760
    %10390 = vmatmul.f32.gmra.mxu0 %v10389
    %v10391 = vpop.f32.mrf.mxu0
    %v10392 = vadd.f32 %v10244, %v10391
    %10393 = vdwg.mxu0
    %v10394 = vld [vmem:[#allocation5] sm:$0xff]
    %v10395 = vld [vmem:[#allocation5 + $0x8] sm:$0xff]
    %v10396 = vld [vmem:[#allocation5 + $0x10] sm:$0xff]
    %v10397 = vld [vmem:[#allocation5 + $0x18] sm:$0xff]
    %v10398 = vld [vmem:[#allocation5 + $0x20] sm:$0xff]
    %v10399 = vld [vmem:[#allocation5 + $0x28] sm:$0xff]
    %v10400 = vld [vmem:[#allocation5 + $0x30] sm:$0xff]
    %v10401 = vld [vmem:[#allocation5 + $0x38] sm:$0xff]
    %v10402 = vld [vmem:[#allocation5 + $0x40] sm:$0xff]
    %v10403 = vld [vmem:[#allocation5 + $0x48] sm:$0xff]
    %v10404 = vld [vmem:[#allocation5 + $0x50] sm:$0xff]
    %v10405 = vld [vmem:[#allocation5 + $0x58] sm:$0xff]
    %v10406 = vld [vmem:[#allocation5 + $0x60] sm:$0xff]
    %v10407 = vld [vmem:[#allocation5 + $0x68] sm:$0xff]
    %v10408 = vld [vmem:[#allocation5 + $0x70] sm:$0xff]
    %v10409 = vld [vmem:[#allocation5 + $0x78] sm:$0xff]
    %v10410 = vld [vmem:[#allocation5 + $0x80] sm:$0xff]
    %v10411 = vld [vmem:[#allocation5 + $0x88] sm:$0xff]
    %v10412 = vld [vmem:[#allocation5 + $0x90] sm:$0xff]
    %v10413 = vld [vmem:[#allocation5 + $0x98] sm:$0xff]
    %v10414 = vld [vmem:[#allocation5 + $0xa0] sm:$0xff]
    %v10415 = vld [vmem:[#allocation5 + $0xa8] sm:$0xff]
    %v10416 = vld [vmem:[#allocation5 + $0xb0] sm:$0xff]
    %v10417 = vld [vmem:[#allocation5 + $0xb8] sm:$0xff]
    %v10418 = vld [vmem:[#allocation5 + $0xc0] sm:$0xff]
    %v10419 = vld [vmem:[#allocation5 + $0xc8] sm:$0xff]
    %v10420 = vld [vmem:[#allocation5 + $0xd0] sm:$0xff]
    %v10421 = vld [vmem:[#allocation5 + $0xd8] sm:$0xff]
    %v10422 = vld [vmem:[#allocation5 + $0xe0] sm:$0xff]
    %v10423 = vld [vmem:[#allocation5 + $0xe8] sm:$0xff]
    %v10424 = vld [vmem:[#allocation5 + $0xf0] sm:$0xff]
    %v10425 = vld [vmem:[#allocation5 + $0xf8] sm:$0xff]
    %v10426 = vld [vmem:[%s5] sm:$0x1]
    %v10427 = vld [vmem:[%s6] sm:$0x1]
    %vm10428 = vcmask 261120
    %v10429 = vsel %vm10428, %v10394, 0.0
    %10430 = vadd.xlane.f32.xlu0 %v10429
    %v10431 = vpop.xlane.xlu0 %10430
    %v10432 = vsel %vm10428, %v10395, 0.0
    %10433 = vadd.xlane.f32.xlu0 %v10432
    %v10434 = vpop.xlane.xlu0 %10433
    %v10435 = vsel %vm10428, %v10396, 0.0
    %10436 = vadd.xlane.f32.xlu0 %v10435
    %v10437 = vpop.xlane.xlu0 %10436
    %v10438 = vsel %vm10428, %v10397, 0.0
    %10439 = vadd.xlane.f32.xlu0 %v10438
    %v10440 = vpop.xlane.xlu0 %10439
    %v10441 = vsel %vm10428, %v10398, 0.0
    %10442 = vadd.xlane.f32.xlu0 %v10441
    %v10443 = vpop.xlane.xlu0 %10442
    %v10444 = vsel %vm10428, %v10399, 0.0
    %10445 = vadd.xlane.f32.xlu0 %v10444
    %v10446 = vpop.xlane.xlu0 %10445
    %v10447 = vsel %vm10428, %v10400, 0.0
    %10448 = vadd.xlane.f32.xlu0 %v10447
    %v10449 = vpop.xlane.xlu0 %10448
    %v10450 = vsel %vm10428, %v10401, 0.0
    %10451 = vadd.xlane.f32.xlu0 %v10450
    %v10452 = vpop.xlane.xlu0 %10451
    %v10453 = vsel %vm10428, %v10402, 0.0
    %10454 = vadd.xlane.f32.xlu0 %v10453
    %v10455 = vpop.xlane.xlu0 %10454
    %v10456 = vsel %vm10428, %v10403, 0.0
    %10457 = vadd.xlane.f32.xlu0 %v10456
    %v10458 = vpop.xlane.xlu0 %10457
    %v10459 = vsel %vm10428, %v10404, 0.0
    %10460 = vadd.xlane.f32.xlu0 %v10459
    %v10461 = vpop.xlane.xlu0 %10460
    %v10462 = vsel %vm10428, %v10405, 0.0
    %10463 = vadd.xlane.f32.xlu0 %v10462
    %v10464 = vpop.xlane.xlu0 %10463
    %v10465 = vsel %vm10428, %v10406, 0.0
    %10466 = vadd.xlane.f32.xlu0 %v10465
    %v10467 = vpop.xlane.xlu0 %10466
    %v10468 = vsel %vm10428, %v10407, 0.0
    %10469 = vadd.xlane.f32.xlu0 %v10468
    %v10470 = vpop.xlane.xlu0 %10469
    %v10471 = vsel %vm10428, %v10408, 0.0
    %10472 = vadd.xlane.f32.xlu0 %v10471
    %v10473 = vpop.xlane.xlu0 %10472
    %v10474 = vsel %vm10428, %v10409, 0.0
    %10475 = vadd.xlane.f32.xlu0 %v10474
    %v10476 = vpop.xlane.xlu0 %10475
    %v10477 = vsel %vm10428, %v10410, 0.0
    %10478 = vadd.xlane.f32.xlu0 %v10477
    %v10479 = vpop.xlane.xlu0 %10478
    %v10480 = vsel %vm10428, %v10411, 0.0
    %10481 = vadd.xlane.f32.xlu0 %v10480
    %v10482 = vpop.xlane.xlu0 %10481
    %v10483 = vsel %vm10428, %v10412, 0.0
    %10484 = vadd.xlane.f32.xlu0 %v10483
    %v10485 = vpop.xlane.xlu0 %10484
    %v10486 = vsel %vm10428, %v10413, 0.0
    %10487 = vadd.xlane.f32.xlu0 %v10486
    %v10488 = vpop.xlane.xlu0 %10487
    %v10489 = vsel %vm10428, %v10414, 0.0
    %10490 = vadd.xlane.f32.xlu0 %v10489
    %v10491 = vpop.xlane.xlu0 %10490
    %v10492 = vsel %vm10428, %v10415, 0.0
    %10493 = vadd.xlane.f32.xlu0 %v10492
    %v10494 = vpop.xlane.xlu0 %10493
    %v10495 = vsel %vm10428, %v10416, 0.0
    %10496 = vadd.xlane.f32.xlu0 %v10495
    %v10497 = vpop.xlane.xlu0 %10496
    %v10498 = vsel %vm10428, %v10417, 0.0
    %10499 = vadd.xlane.f32.xlu0 %v10498
    %v10500 = vpop.xlane.xlu0 %10499
    %v10501 = vsel %vm10428, %v10418, 0.0
    %10502 = vadd.xlane.f32.xlu0 %v10501
    %v10503 = vpop.xlane.xlu0 %10502
    %v10504 = vsel %vm10428, %v10419, 0.0
    %10505 = vadd.xlane.f32.xlu0 %v10504
    %v10506 = vpop.xlane.xlu0 %10505
    %v10507 = vsel %vm10428, %v10420, 0.0
    %10508 = vadd.xlane.f32.xlu0 %v10507
    %v10509 = vpop.xlane.xlu0 %10508
    %v10510 = vsel %vm10428, %v10421, 0.0
    %10511 = vadd.xlane.f32.xlu0 %v10510
    %v10512 = vpop.xlane.xlu0 %10511
    %v10513 = vsel %vm10428, %v10422, 0.0
    %10514 = vadd.xlane.f32.xlu0 %v10513
    %v10515 = vpop.xlane.xlu0 %10514
    %v10516 = vsel %vm10428, %v10423, 0.0
    %10517 = vadd.xlane.f32.xlu0 %v10516
    %v10518 = vpop.xlane.xlu0 %10517
    %v10519 = vsel %vm10428, %v10424, 0.0
    %10520 = vadd.xlane.f32.xlu0 %v10519
    %v10521 = vpop.xlane.xlu0 %10520
    %v10522 = vsel %vm10428, %v10425, 0.0
    %10523 = vadd.xlane.f32.xlu0 %v10522
    %v10524 = vpop.xlane.xlu0 %10523
    %v10525 = vrcp.pop 32.0
    %v10526 = vmul.f32 32.0, %v10525
    %v10527 = vsub.f32 1.0, %v10526
    %v10528 = vmul.f32 %v10525, %v10527
    %v10529 = vadd.f32 %v10525, %v10528
    %vm10530 = vweird.f32 %v10525
    %v10531 = vsel %vm10530, %v10525, %v10529
    %v10532 = vmul.f32 %v10431, %v10531
    %v10533 = vmul.f32 %v10434, %v10531
    %v10534 = vmul.f32 %v10437, %v10531
    %v10535 = vmul.f32 %v10440, %v10531
    %v10536 = vmul.f32 %v10443, %v10531
    %v10537 = vmul.f32 %v10446, %v10531
    %v10538 = vmul.f32 %v10449, %v10531
    %v10539 = vmul.f32 %v10452, %v10531
    %v10540 = vmul.f32 %v10455, %v10531
    %v10541 = vmul.f32 %v10458, %v10531
    %v10542 = vmul.f32 %v10461, %v10531
    %v10543 = vmul.f32 %v10464, %v10531
    %v10544 = vmul.f32 %v10467, %v10531
    %v10545 = vmul.f32 %v10470, %v10531
    %v10546 = vmul.f32 %v10473, %v10531
    %v10547 = vmul.f32 %v10476, %v10531
    %v10548 = vmul.f32 %v10479, %v10531
    %v10549 = vmul.f32 %v10482, %v10531
    %v10550 = vmul.f32 %v10485, %v10531
    %v10551 = vmul.f32 %v10488, %v10531
    %v10552 = vmul.f32 %v10491, %v10531
    %v10553 = vmul.f32 %v10494, %v10531
    %v10554 = vmul.f32 %v10497, %v10531
    %v10555 = vmul.f32 %v10500, %v10531
    %v10556 = vmul.f32 %v10503, %v10531
    %v10557 = vmul.f32 %v10506, %v10531
    %v10558 = vmul.f32 %v10509, %v10531
    %v10559 = vmul.f32 %v10512, %v10531
    %v10560 = vmul.f32 %v10515, %v10531
    %v10561 = vmul.f32 %v10518, %v10531
    %v10562 = vmul.f32 %v10521, %v10531
    %v10563 = vmul.f32 %v10524, %v10531
    %v10564 = vsub.f32 %v10394, %v10532
    %v10565 = vsub.f32 %v10395, %v10533
    %v10566 = vsub.f32 %v10396, %v10534
    %v10567 = vsub.f32 %v10397, %v10535
    %v10568 = vsub.f32 %v10398, %v10536
    %v10569 = vsub.f32 %v10399, %v10537
    %v10570 = vsub.f32 %v10400, %v10538
    %v10571 = vsub.f32 %v10401, %v10539
    %v10572 = vsub.f32 %v10402, %v10540
    %v10573 = vsub.f32 %v10403, %v10541
    %v10574 = vsub.f32 %v10404, %v10542
    %v10575 = vsub.f32 %v10405, %v10543
    %v10576 = vsub.f32 %v10406, %v10544
    %v10577 = vsub.f32 %v10407, %v10545
    %v10578 = vsub.f32 %v10408, %v10546
    %v10579 = vsub.f32 %v10409, %v10547
    %v10580 = vsub.f32 %v10410, %v10548
    %v10581 = vsub.f32 %v10411, %v10549
    %v10582 = vsub.f32 %v10412, %v10550
    %v10583 = vsub.f32 %v10413, %v10551
    %v10584 = vsub.f32 %v10414, %v10552
    %v10585 = vsub.f32 %v10415, %v10553
    %v10586 = vsub.f32 %v10416, %v10554
    %v10587 = vsub.f32 %v10417, %v10555
    %v10588 = vsub.f32 %v10418, %v10556
    %v10589 = vsub.f32 %v10419, %v10557
    %v10590 = vsub.f32 %v10420, %v10558
    %v10591 = vsub.f32 %v10421, %v10559
    %v10592 = vsub.f32 %v10422, %v10560
    %v10593 = vsub.f32 %v10423, %v10561
    %v10594 = vsub.f32 %v10424, %v10562
    %v10595 = vsub.f32 %v10425, %v10563
    %v10596 = vmul.f32 %v10564, %v10564
    %v10597 = vmul.f32 %v10565, %v10565
    %v10598 = vmul.f32 %v10566, %v10566
    %v10599 = vmul.f32 %v10567, %v10567
    %v10600 = vmul.f32 %v10568, %v10568
    %v10601 = vmul.f32 %v10569, %v10569
    %v10602 = vmul.f32 %v10570, %v10570
    %v10603 = vmul.f32 %v10571, %v10571
    %v10604 = vmul.f32 %v10572, %v10572
    %v10605 = vmul.f32 %v10573, %v10573
    %v10606 = vmul.f32 %v10574, %v10574
    %v10607 = vmul.f32 %v10575, %v10575
    %v10608 = vmul.f32 %v10576, %v10576
    %v10609 = vmul.f32 %v10577, %v10577
    %v10610 = vmul.f32 %v10578, %v10578
    %v10611 = vmul.f32 %v10579, %v10579
    %v10612 = vmul.f32 %v10580, %v10580
    %v10613 = vmul.f32 %v10581, %v10581
    %v10614 = vmul.f32 %v10582, %v10582
    %v10615 = vmul.f32 %v10583, %v10583
    %v10616 = vmul.f32 %v10584, %v10584
    %v10617 = vmul.f32 %v10585, %v10585
    %v10618 = vmul.f32 %v10586, %v10586
    %v10619 = vmul.f32 %v10587, %v10587
    %v10620 = vmul.f32 %v10588, %v10588
    %v10621 = vmul.f32 %v10589, %v10589
    %v10622 = vmul.f32 %v10590, %v10590
    %v10623 = vmul.f32 %v10591, %v10591
    %v10624 = vmul.f32 %v10592, %v10592
    %v10625 = vmul.f32 %v10593, %v10593
    %v10626 = vmul.f32 %v10594, %v10594
    %v10627 = vmul.f32 %v10595, %v10595
    %v10628 = vsel %vm10428, %v10596, 0.0
    %10629 = vadd.xlane.f32.xlu0 %v10628
    %v10630 = vpop.xlane.xlu0 %10629
    %v10631 = vsel %vm10428, %v10597, 0.0
    %10632 = vadd.xlane.f32.xlu0 %v10631
    %v10633 = vpop.xlane.xlu0 %10632
    %v10634 = vsel %vm10428, %v10598, 0.0
    %10635 = vadd.xlane.f32.xlu0 %v10634
    %v10636 = vpop.xlane.xlu0 %10635
    %v10637 = vsel %vm10428, %v10599, 0.0
    %10638 = vadd.xlane.f32.xlu0 %v10637
    %v10639 = vpop.xlane.xlu0 %10638
    %v10640 = vsel %vm10428, %v10600, 0.0
    %10641 = vadd.xlane.f32.xlu0 %v10640
    %v10642 = vpop.xlane.xlu0 %10641
    %v10643 = vsel %vm10428, %v10601, 0.0
    %10644 = vadd.xlane.f32.xlu0 %v10643
    %v10645 = vpop.xlane.xlu0 %10644
    %v10646 = vsel %vm10428, %v10602, 0.0
    %10647 = vadd.xlane.f32.xlu0 %v10646
    %v10648 = vpop.xlane.xlu0 %10647
    %v10649 = vsel %vm10428, %v10603, 0.0
    %10650 = vadd.xlane.f32.xlu0 %v10649
    %v10651 = vpop.xlane.xlu0 %10650
    %v10652 = vsel %vm10428, %v10604, 0.0
    %10653 = vadd.xlane.f32.xlu0 %v10652
    %v10654 = vpop.xlane.xlu0 %10653
    %v10655 = vsel %vm10428, %v10605, 0.0
    %10656 = vadd.xlane.f32.xlu0 %v10655
    %v10657 = vpop.xlane.xlu0 %10656
    %v10658 = vsel %vm10428, %v10606, 0.0
    %10659 = vadd.xlane.f32.xlu0 %v10658
    %v10660 = vpop.xlane.xlu0 %10659
    %v10661 = vsel %vm10428, %v10607, 0.0
    %10662 = vadd.xlane.f32.xlu0 %v10661
    %v10663 = vpop.xlane.xlu0 %10662
    %v10664 = vsel %vm10428, %v10608, 0.0
    %10665 = vadd.xlane.f32.xlu0 %v10664
    %v10666 = vpop.xlane.xlu0 %10665
    %v10667 = vsel %vm10428, %v10609, 0.0
    %10668 = vadd.xlane.f32.xlu0 %v10667
    %v10669 = vpop.xlane.xlu0 %10668
    %v10670 = vsel %vm10428, %v10610, 0.0
    %10671 = vadd.xlane.f32.xlu0 %v10670
    %v10672 = vpop.xlane.xlu0 %10671
    %v10673 = vsel %vm10428, %v10611, 0.0
    %10674 = vadd.xlane.f32.xlu0 %v10673
    %v10675 = vpop.xlane.xlu0 %10674
    %v10676 = vsel %vm10428, %v10612, 0.0
    %10677 = vadd.xlane.f32.xlu0 %v10676
    %v10678 = vpop.xlane.xlu0 %10677
    %v10679 = vsel %vm10428, %v10613, 0.0
    %10680 = vadd.xlane.f32.xlu0 %v10679
    %v10681 = vpop.xlane.xlu0 %10680
    %v10682 = vsel %vm10428, %v10614, 0.0
    %10683 = vadd.xlane.f32.xlu0 %v10682
    %v10684 = vpop.xlane.xlu0 %10683
    %v10685 = vsel %vm10428, %v10615, 0.0
    %10686 = vadd.xlane.f32.xlu0 %v10685
    %v10687 = vpop.xlane.xlu0 %10686
    %v10688 = vsel %vm10428, %v10616, 0.0
    %10689 = vadd.xlane.f32.xlu0 %v10688
    %v10690 = vpop.xlane.xlu0 %10689
    %v10691 = vsel %vm10428, %v10617, 0.0
    %10692 = vadd.xlane.f32.xlu0 %v10691
    %v10693 = vpop.xlane.xlu0 %10692
    %v10694 = vsel %vm10428, %v10618, 0.0
    %10695 = vadd.xlane.f32.xlu0 %v10694
    %v10696 = vpop.xlane.xlu0 %10695
    %v10697 = vsel %vm10428, %v10619, 0.0
    %10698 = vadd.xlane.f32.xlu0 %v10697
    %v10699 = vpop.xlane.xlu0 %10698
    %v10700 = vsel %vm10428, %v10620, 0.0
    %10701 = vadd.xlane.f32.xlu0 %v10700
    %v10702 = vpop.xlane.xlu0 %10701
    %v10703 = vsel %vm10428, %v10621, 0.0
    %10704 = vadd.xlane.f32.xlu0 %v10703
    %v10705 = vpop.xlane.xlu0 %10704
    %v10706 = vsel %vm10428, %v10622, 0.0
    %10707 = vadd.xlane.f32.xlu0 %v10706
    %v10708 = vpop.xlane.xlu0 %10707
    %v10709 = vsel %vm10428, %v10623, 0.0
    %10710 = vadd.xlane.f32.xlu0 %v10709
    %v10711 = vpop.xlane.xlu0 %10710
    %v10712 = vsel %vm10428, %v10624, 0.0
    %10713 = vadd.xlane.f32.xlu0 %v10712
    %v10714 = vpop.xlane.xlu0 %10713
    %v10715 = vsel %vm10428, %v10625, 0.0
    %10716 = vadd.xlane.f32.xlu0 %v10715
    %v10717 = vpop.xlane.xlu0 %10716
    %v10718 = vsel %vm10428, %v10626, 0.0
    %10719 = vadd.xlane.f32.xlu0 %v10718
    %v10720 = vpop.xlane.xlu0 %10719
    %v10721 = vsel %vm10428, %v10627, 0.0
    %10722 = vadd.xlane.f32.xlu0 %v10721
    %v10723 = vpop.xlane.xlu0 %10722
    %v10724 = vmul.f32 %v10630, %v10531
    %v10725 = vmul.f32 %v10633, %v10531
    %v10726 = vmul.f32 %v10636, %v10531
    %v10727 = vmul.f32 %v10639, %v10531
    %v10728 = vmul.f32 %v10642, %v10531
    %v10729 = vmul.f32 %v10645, %v10531
    %v10730 = vmul.f32 %v10648, %v10531
    %v10731 = vmul.f32 %v10651, %v10531
    %v10732 = vmul.f32 %v10654, %v10531
    %v10733 = vmul.f32 %v10657, %v10531
    %v10734 = vmul.f32 %v10660, %v10531
    %v10735 = vmul.f32 %v10663, %v10531
    %v10736 = vmul.f32 %v10666, %v10531
    %v10737 = vmul.f32 %v10669, %v10531
    %v10738 = vmul.f32 %v10672, %v10531
    %v10739 = vmul.f32 %v10675, %v10531
    %v10740 = vmul.f32 %v10678, %v10531
    %v10741 = vmul.f32 %v10681, %v10531
    %v10742 = vmul.f32 %v10684, %v10531
    %v10743 = vmul.f32 %v10687, %v10531
    %v10744 = vmul.f32 %v10690, %v10531
    %v10745 = vmul.f32 %v10693, %v10531
    %v10746 = vmul.f32 %v10696, %v10531
    %v10747 = vmul.f32 %v10699, %v10531
    %v10748 = vmul.f32 %v10702, %v10531
    %v10749 = vmul.f32 %v10705, %v10531
    %v10750 = vmul.f32 %v10708, %v10531
    %v10751 = vmul.f32 %v10711, %v10531
    %v10752 = vmul.f32 %v10714, %v10531
    %v10753 = vmul.f32 %v10717, %v10531
    %v10754 = vmul.f32 %v10720, %v10531
    %v10755 = vmul.f32 %v10723, %v10531
    %v10756 = vadd.f32 %v10724, 1e-05
    %v10757 = vadd.f32 %v10725, 1e-05
    %v10758 = vadd.f32 %v10726, 1e-05
    %v10759 = vadd.f32 %v10727, 1e-05
    %v10760 = vadd.f32 %v10728, 1e-05
    %v10761 = vadd.f32 %v10729, 1e-05
    %v10762 = vadd.f32 %v10730, 1e-05
    %v10763 = vadd.f32 %v10731, 1e-05
    %v10764 = vadd.f32 %v10732, 1e-05
    %v10765 = vadd.f32 %v10733, 1e-05
    %v10766 = vadd.f32 %v10734, 1e-05
    %v10767 = vadd.f32 %v10735, 1e-05
    %v10768 = vadd.f32 %v10736, 1e-05
    %v10769 = vadd.f32 %v10737, 1e-05
    %v10770 = vadd.f32 %v10738, 1e-05
    %v10771 = vadd.f32 %v10739, 1e-05
    %v10772 = vadd.f32 %v10740, 1e-05
    %v10773 = vadd.f32 %v10741, 1e-05
    %v10774 = vadd.f32 %v10742, 1e-05
    %v10775 = vadd.f32 %v10743, 1e-05
    %v10776 = vadd.f32 %v10744, 1e-05
    %v10777 = vadd.f32 %v10745, 1e-05
    %v10778 = vadd.f32 %v10746, 1e-05
    %v10779 = vadd.f32 %v10747, 1e-05
    %v10780 = vadd.f32 %v10748, 1e-05
    %v10781 = vadd.f32 %v10749, 1e-05
    %v10782 = vadd.f32 %v10750, 1e-05
    %v10783 = vadd.f32 %v10751, 1e-05
    %v10784 = vadd.f32 %v10752, 1e-05
    %v10785 = vadd.f32 %v10753, 1e-05
    %v10786 = vadd.f32 %v10754, 1e-05
    %v10787 = vadd.f32 %v10755, 1e-05
    %v10788 = vrsqrt.pop %v10756
    %v10789 = vmul.f32 %v10788, %v10756
    %v10790 = vmul.f32 %v10789, %v10788
    %v10791 = vmul.f32 0.5, %v10790
    %v10792 = vsub.f32 1.5, %v10791
    %v10793 = vmul.f32 %v10788, %v10792
    %vm10794 = vweird.f32 %v10756
    %vm10795 = vweird.f32 %v10788
    %vm10796 = vmor %vm10794, %vm10795
    %v10797 = vsel %vm10796, %v10788, %v10793
    %v10798 = vrsqrt.pop %v10757
    %v10799 = vmul.f32 %v10798, %v10757
    %v10800 = vmul.f32 %v10799, %v10798
    %v10801 = vmul.f32 0.5, %v10800
    %v10802 = vsub.f32 1.5, %v10801
    %v10803 = vmul.f32 %v10798, %v10802
    %vm10804 = vweird.f32 %v10757
    %vm10805 = vweird.f32 %v10798
    %vm10806 = vmor %vm10804, %vm10805
    %v10807 = vsel %vm10806, %v10798, %v10803
    %v10808 = vrsqrt.pop %v10758
    %v10809 = vmul.f32 %v10808, %v10758
    %v10810 = vmul.f32 %v10809, %v10808
    %v10811 = vmul.f32 0.5, %v10810
    %v10812 = vsub.f32 1.5, %v10811
    %v10813 = vmul.f32 %v10808, %v10812
    %vm10814 = vweird.f32 %v10758
    %vm10815 = vweird.f32 %v10808
    %vm10816 = vmor %vm10814, %vm10815
    %v10817 = vsel %vm10816, %v10808, %v10813
    %v10818 = vrsqrt.pop %v10759
    %v10819 = vmul.f32 %v10818, %v10759
    %v10820 = vmul.f32 %v10819, %v10818
    %v10821 = vmul.f32 0.5, %v10820
    %v10822 = vsub.f32 1.5, %v10821
    %v10823 = vmul.f32 %v10818, %v10822
    %vm10824 = vweird.f32 %v10759
    %vm10825 = vweird.f32 %v10818
    %vm10826 = vmor %vm10824, %vm10825
    %v10827 = vsel %vm10826, %v10818, %v10823
    %v10828 = vrsqrt.pop %v10760
    %v10829 = vmul.f32 %v10828, %v10760
    %v10830 = vmul.f32 %v10829, %v10828
    %v10831 = vmul.f32 0.5, %v10830
    %v10832 = vsub.f32 1.5, %v10831
    %v10833 = vmul.f32 %v10828, %v10832
    %vm10834 = vweird.f32 %v10760
    %vm10835 = vweird.f32 %v10828
    %vm10836 = vmor %vm10834, %vm10835
    %v10837 = vsel %vm10836, %v10828, %v10833
    %v10838 = vrsqrt.pop %v10761
    %v10839 = vmul.f32 %v10838, %v10761
    %v10840 = vmul.f32 %v10839, %v10838
    %v10841 = vmul.f32 0.5, %v10840
    %v10842 = vsub.f32 1.5, %v10841
    %v10843 = vmul.f32 %v10838, %v10842
    %vm10844 = vweird.f32 %v10761
    %vm10845 = vweird.f32 %v10838
    %vm10846 = vmor %vm10844, %vm10845
    %v10847 = vsel %vm10846, %v10838, %v10843
    %v10848 = vrsqrt.pop %v10762
    %v10849 = vmul.f32 %v10848, %v10762
    %v10850 = vmul.f32 %v10849, %v10848
    %v10851 = vmul.f32 0.5, %v10850
    %v10852 = vsub.f32 1.5, %v10851
    %v10853 = vmul.f32 %v10848, %v10852
    %vm10854 = vweird.f32 %v10762
    %vm10855 = vweird.f32 %v10848
    %vm10856 = vmor %vm10854, %vm10855
    %v10857 = vsel %vm10856, %v10848, %v10853
    %v10858 = vrsqrt.pop %v10763
    %v10859 = vmul.f32 %v10858, %v10763
    %v10860 = vmul.f32 %v10859, %v10858
    %v10861 = vmul.f32 0.5, %v10860
    %v10862 = vsub.f32 1.5, %v10861
    %v10863 = vmul.f32 %v10858, %v10862
    %vm10864 = vweird.f32 %v10763
    %vm10865 = vweird.f32 %v10858
    %vm10866 = vmor %vm10864, %vm10865
    %v10867 = vsel %vm10866, %v10858, %v10863
    %v10868 = vrsqrt.pop %v10764
    %v10869 = vmul.f32 %v10868, %v10764
    %v10870 = vmul.f32 %v10869, %v10868
    %v10871 = vmul.f32 0.5, %v10870
    %v10872 = vsub.f32 1.5, %v10871
    %v10873 = vmul.f32 %v10868, %v10872
    %vm10874 = vweird.f32 %v10764
    %vm10875 = vweird.f32 %v10868
    %vm10876 = vmor %vm10874, %vm10875
    %v10877 = vsel %vm10876, %v10868, %v10873
    %v10878 = vrsqrt.pop %v10765
    %v10879 = vmul.f32 %v10878, %v10765
    %v10880 = vmul.f32 %v10879, %v10878
    %v10881 = vmul.f32 0.5, %v10880
    %v10882 = vsub.f32 1.5, %v10881
    %v10883 = vmul.f32 %v10878, %v10882
    %vm10884 = vweird.f32 %v10765
    %vm10885 = vweird.f32 %v10878
    %vm10886 = vmor %vm10884, %vm10885
    %v10887 = vsel %vm10886, %v10878, %v10883
    %v10888 = vrsqrt.pop %v10766
    %v10889 = vmul.f32 %v10888, %v10766
    %v10890 = vmul.f32 %v10889, %v10888
    %v10891 = vmul.f32 0.5, %v10890
    %v10892 = vsub.f32 1.5, %v10891
    %v10893 = vmul.f32 %v10888, %v10892
    %vm10894 = vweird.f32 %v10766
    %vm10895 = vweird.f32 %v10888
    %vm10896 = vmor %vm10894, %vm10895
    %v10897 = vsel %vm10896, %v10888, %v10893
    %v10898 = vrsqrt.pop %v10767
    %v10899 = vmul.f32 %v10898, %v10767
    %v10900 = vmul.f32 %v10899, %v10898
    %v10901 = vmul.f32 0.5, %v10900
    %v10902 = vsub.f32 1.5, %v10901
    %v10903 = vmul.f32 %v10898, %v10902
    %vm10904 = vweird.f32 %v10767
    %vm10905 = vweird.f32 %v10898
    %vm10906 = vmor %vm10904, %vm10905
    %v10907 = vsel %vm10906, %v10898, %v10903
    %v10908 = vrsqrt.pop %v10768
    %v10909 = vmul.f32 %v10908, %v10768
    %v10910 = vmul.f32 %v10909, %v10908
    %v10911 = vmul.f32 0.5, %v10910
    %v10912 = vsub.f32 1.5, %v10911
    %v10913 = vmul.f32 %v10908, %v10912
    %vm10914 = vweird.f32 %v10768
    %vm10915 = vweird.f32 %v10908
    %vm10916 = vmor %vm10914, %vm10915
    %v10917 = vsel %vm10916, %v10908, %v10913
    %v10918 = vrsqrt.pop %v10769
    %v10919 = vmul.f32 %v10918, %v10769
    %v10920 = vmul.f32 %v10919, %v10918
    %v10921 = vmul.f32 0.5, %v10920
    %v10922 = vsub.f32 1.5, %v10921
    %v10923 = vmul.f32 %v10918, %v10922
    %vm10924 = vweird.f32 %v10769
    %vm10925 = vweird.f32 %v10918
    %vm10926 = vmor %vm10924, %vm10925
    %v10927 = vsel %vm10926, %v10918, %v10923
    %v10928 = vrsqrt.pop %v10770
    %v10929 = vmul.f32 %v10928, %v10770
    %v10930 = vmul.f32 %v10929, %v10928
    %v10931 = vmul.f32 0.5, %v10930
    %v10932 = vsub.f32 1.5, %v10931
    %v10933 = vmul.f32 %v10928, %v10932
    %vm10934 = vweird.f32 %v10770
    %vm10935 = vweird.f32 %v10928
    %vm10936 = vmor %vm10934, %vm10935
    %v10937 = vsel %vm10936, %v10928, %v10933
    %v10938 = vrsqrt.pop %v10771
    %v10939 = vmul.f32 %v10938, %v10771
    %v10940 = vmul.f32 %v10939, %v10938
    %v10941 = vmul.f32 0.5, %v10940
    %v10942 = vsub.f32 1.5, %v10941
    %v10943 = vmul.f32 %v10938, %v10942
    %vm10944 = vweird.f32 %v10771
    %vm10945 = vweird.f32 %v10938
    %vm10946 = vmor %vm10944, %vm10945
    %v10947 = vsel %vm10946, %v10938, %v10943
    %v10948 = vrsqrt.pop %v10772
    %v10949 = vmul.f32 %v10948, %v10772
    %v10950 = vmul.f32 %v10949, %v10948
    %v10951 = vmul.f32 0.5, %v10950
    %v10952 = vsub.f32 1.5, %v10951
    %v10953 = vmul.f32 %v10948, %v10952
    %vm10954 = vweird.f32 %v10772
    %vm10955 = vweird.f32 %v10948
    %vm10956 = vmor %vm10954, %vm10955
    %v10957 = vsel %vm10956, %v10948, %v10953
    %v10958 = vrsqrt.pop %v10773
    %v10959 = vmul.f32 %v10958, %v10773
    %v10960 = vmul.f32 %v10959, %v10958
    %v10961 = vmul.f32 0.5, %v10960
    %v10962 = vsub.f32 1.5, %v10961
    %v10963 = vmul.f32 %v10958, %v10962
    %vm10964 = vweird.f32 %v10773
    %vm10965 = vweird.f32 %v10958
    %vm10966 = vmor %vm10964, %vm10965
    %v10967 = vsel %vm10966, %v10958, %v10963
    %v10968 = vrsqrt.pop %v10774
    %v10969 = vmul.f32 %v10968, %v10774
    %v10970 = vmul.f32 %v10969, %v10968
    %v10971 = vmul.f32 0.5, %v10970
    %v10972 = vsub.f32 1.5, %v10971
    %v10973 = vmul.f32 %v10968, %v10972
    %vm10974 = vweird.f32 %v10774
    %vm10975 = vweird.f32 %v10968
    %vm10976 = vmor %vm10974, %vm10975
    %v10977 = vsel %vm10976, %v10968, %v10973
    %v10978 = vrsqrt.pop %v10775
    %v10979 = vmul.f32 %v10978, %v10775
    %v10980 = vmul.f32 %v10979, %v10978
    %v10981 = vmul.f32 0.5, %v10980
    %v10982 = vsub.f32 1.5, %v10981
    %v10983 = vmul.f32 %v10978, %v10982
    %vm10984 = vweird.f32 %v10775
    %vm10985 = vweird.f32 %v10978
    %vm10986 = vmor %vm10984, %vm10985
    %v10987 = vsel %vm10986, %v10978, %v10983
    %v10988 = vrsqrt.pop %v10776
    %v10989 = vmul.f32 %v10988, %v10776
    %v10990 = vmul.f32 %v10989, %v10988
    %v10991 = vmul.f32 0.5, %v10990
    %v10992 = vsub.f32 1.5, %v10991
    %v10993 = vmul.f32 %v10988, %v10992
    %vm10994 = vweird.f32 %v10776
    %vm10995 = vweird.f32 %v10988
    %vm10996 = vmor %vm10994, %vm10995
    %v10997 = vsel %vm10996, %v10988, %v10993
    %v10998 = vrsqrt.pop %v10777
    %v10999 = vmul.f32 %v10998, %v10777
    %v11000 = vmul.f32 %v10999, %v10998
    %v11001 = vmul.f32 0.5, %v11000
    %v11002 = vsub.f32 1.5, %v11001
    %v11003 = vmul.f32 %v10998, %v11002
    %vm11004 = vweird.f32 %v10777
    %vm11005 = vweird.f32 %v10998
    %vm11006 = vmor %vm11004, %vm11005
    %v11007 = vsel %vm11006, %v10998, %v11003
    %v11008 = vrsqrt.pop %v10778
    %v11009 = vmul.f32 %v11008, %v10778
    %v11010 = vmul.f32 %v11009, %v11008
    %v11011 = vmul.f32 0.5, %v11010
    %v11012 = vsub.f32 1.5, %v11011
    %v11013 = vmul.f32 %v11008, %v11012
    %vm11014 = vweird.f32 %v10778
    %vm11015 = vweird.f32 %v11008
    %vm11016 = vmor %vm11014, %vm11015
    %v11017 = vsel %vm11016, %v11008, %v11013
    %v11018 = vrsqrt.pop %v10779
    %v11019 = vmul.f32 %v11018, %v10779
    %v11020 = vmul.f32 %v11019, %v11018
    %v11021 = vmul.f32 0.5, %v11020
    %v11022 = vsub.f32 1.5, %v11021
    %v11023 = vmul.f32 %v11018, %v11022
    %vm11024 = vweird.f32 %v10779
    %vm11025 = vweird.f32 %v11018
    %vm11026 = vmor %vm11024, %vm11025
    %v11027 = vsel %vm11026, %v11018, %v11023
    %v11028 = vrsqrt.pop %v10780
    %v11029 = vmul.f32 %v11028, %v10780
    %v11030 = vmul.f32 %v11029, %v11028
    %v11031 = vmul.f32 0.5, %v11030
    %v11032 = vsub.f32 1.5, %v11031
    %v11033 = vmul.f32 %v11028, %v11032
    %vm11034 = vweird.f32 %v10780
    %vm11035 = vweird.f32 %v11028
    %vm11036 = vmor %vm11034, %vm11035
    %v11037 = vsel %vm11036, %v11028, %v11033
    %v11038 = vrsqrt.pop %v10781
    %v11039 = vmul.f32 %v11038, %v10781
    %v11040 = vmul.f32 %v11039, %v11038
    %v11041 = vmul.f32 0.5, %v11040
    %v11042 = vsub.f32 1.5, %v11041
    %v11043 = vmul.f32 %v11038, %v11042
    %vm11044 = vweird.f32 %v10781
    %vm11045 = vweird.f32 %v11038
    %vm11046 = vmor %vm11044, %vm11045
    %v11047 = vsel %vm11046, %v11038, %v11043
    %v11048 = vrsqrt.pop %v10782
    %v11049 = vmul.f32 %v11048, %v10782
    %v11050 = vmul.f32 %v11049, %v11048
    %v11051 = vmul.f32 0.5, %v11050
    %v11052 = vsub.f32 1.5, %v11051
    %v11053 = vmul.f32 %v11048, %v11052
    %vm11054 = vweird.f32 %v10782
    %vm11055 = vweird.f32 %v11048
    %vm11056 = vmor %vm11054, %vm11055
    %v11057 = vsel %vm11056, %v11048, %v11053
    %v11058 = vrsqrt.pop %v10783
    %v11059 = vmul.f32 %v11058, %v10783
    %v11060 = vmul.f32 %v11059, %v11058
    %v11061 = vmul.f32 0.5, %v11060
    %v11062 = vsub.f32 1.5, %v11061
    %v11063 = vmul.f32 %v11058, %v11062
    %vm11064 = vweird.f32 %v10783
    %vm11065 = vweird.f32 %v11058
    %vm11066 = vmor %vm11064, %vm11065
    %v11067 = vsel %vm11066, %v11058, %v11063
    %v11068 = vrsqrt.pop %v10784
    %v11069 = vmul.f32 %v11068, %v10784
    %v11070 = vmul.f32 %v11069, %v11068
    %v11071 = vmul.f32 0.5, %v11070
    %v11072 = vsub.f32 1.5, %v11071
    %v11073 = vmul.f32 %v11068, %v11072
    %vm11074 = vweird.f32 %v10784
    %vm11075 = vweird.f32 %v11068
    %vm11076 = vmor %vm11074, %vm11075
    %v11077 = vsel %vm11076, %v11068, %v11073
    %v11078 = vrsqrt.pop %v10785
    %v11079 = vmul.f32 %v11078, %v10785
    %v11080 = vmul.f32 %v11079, %v11078
    %v11081 = vmul.f32 0.5, %v11080
    %v11082 = vsub.f32 1.5, %v11081
    %v11083 = vmul.f32 %v11078, %v11082
    %vm11084 = vweird.f32 %v10785
    %vm11085 = vweird.f32 %v11078
    %vm11086 = vmor %vm11084, %vm11085
    %v11087 = vsel %vm11086, %v11078, %v11083
    %v11088 = vrsqrt.pop %v10786
    %v11089 = vmul.f32 %v11088, %v10786
    %v11090 = vmul.f32 %v11089, %v11088
    %v11091 = vmul.f32 0.5, %v11090
    %v11092 = vsub.f32 1.5, %v11091
    %v11093 = vmul.f32 %v11088, %v11092
    %vm11094 = vweird.f32 %v10786
    %vm11095 = vweird.f32 %v11088
    %vm11096 = vmor %vm11094, %vm11095
    %v11097 = vsel %vm11096, %v11088, %v11093
    %v11098 = vrsqrt.pop %v10787
    %v11099 = vmul.f32 %v11098, %v10787
    %v11100 = vmul.f32 %v11099, %v11098
    %v11101 = vmul.f32 0.5, %v11100
    %v11102 = vsub.f32 1.5, %v11101
    %v11103 = vmul.f32 %v11098, %v11102
    %vm11104 = vweird.f32 %v10787
    %vm11105 = vweird.f32 %v11098
    %vm11106 = vmor %vm11104, %vm11105
    %v11107 = vsel %vm11106, %v11098, %v11103
    %v11108 = vmul.f32 %v10564, %v10797
    %v11109 = vmul.f32 %v10565, %v10807
    %v11110 = vmul.f32 %v10566, %v10817
    %v11111 = vmul.f32 %v10567, %v10827
    %v11112 = vmul.f32 %v10568, %v10837
    %v11113 = vmul.f32 %v10569, %v10847
    %v11114 = vmul.f32 %v10570, %v10857
    %v11115 = vmul.f32 %v10571, %v10867
    %v11116 = vmul.f32 %v10572, %v10877
    %v11117 = vmul.f32 %v10573, %v10887
    %v11118 = vmul.f32 %v10574, %v10897
    %v11119 = vmul.f32 %v10575, %v10907
    %v11120 = vmul.f32 %v10576, %v10917
    %v11121 = vmul.f32 %v10577, %v10927
    %v11122 = vmul.f32 %v10578, %v10937
    %v11123 = vmul.f32 %v10579, %v10947
    %v11124 = vmul.f32 %v10580, %v10957
    %v11125 = vmul.f32 %v10581, %v10967
    %v11126 = vmul.f32 %v10582, %v10977
    %v11127 = vmul.f32 %v10583, %v10987
    %v11128 = vmul.f32 %v10584, %v10997
    %v11129 = vmul.f32 %v10585, %v11007
    %v11130 = vmul.f32 %v10586, %v11017
    %v11131 = vmul.f32 %v10587, %v11027
    %v11132 = vmul.f32 %v10588, %v11037
    %v11133 = vmul.f32 %v10589, %v11047
    %v11134 = vmul.f32 %v10590, %v11057
    %v11135 = vmul.f32 %v10591, %v11067
    %v11136 = vmul.f32 %v10592, %v11077
    %v11137 = vmul.f32 %v10593, %v11087
    %v11138 = vmul.f32 %v10594, %v11097
    %v11139 = vmul.f32 %v10595, %v11107
    %v11141 = vperm.slane %v10426, 0
    %v11143 = vmul.f32 %v11108, %v11141
    %v11144 = vmul.f32 %v11109, %v11141
    %v11145 = vmul.f32 %v11110, %v11141
    %v11146 = vmul.f32 %v11111, %v11141
    %v11147 = vmul.f32 %v11112, %v11141
    %v11148 = vmul.f32 %v11113, %v11141
    %v11149 = vmul.f32 %v11114, %v11141
    %v11150 = vmul.f32 %v11115, %v11141
    %v11151 = vmul.f32 %v11116, %v11141
    %v11152 = vmul.f32 %v11117, %v11141
    %v11153 = vmul.f32 %v11118, %v11141
    %v11154 = vmul.f32 %v11119, %v11141
    %v11155 = vmul.f32 %v11120, %v11141
    %v11156 = vmul.f32 %v11121, %v11141
    %v11157 = vmul.f32 %v11122, %v11141
    %v11158 = vmul.f32 %v11123, %v11141
    %v11159 = vmul.f32 %v11124, %v11141
    %v11160 = vmul.f32 %v11125, %v11141
    %v11161 = vmul.f32 %v11126, %v11141
    %v11162 = vmul.f32 %v11127, %v11141
    %v11163 = vmul.f32 %v11128, %v11141
    %v11164 = vmul.f32 %v11129, %v11141
    %v11165 = vmul.f32 %v11130, %v11141
    %v11166 = vmul.f32 %v11131, %v11141
    %v11167 = vmul.f32 %v11132, %v11141
    %v11168 = vmul.f32 %v11133, %v11141
    %v11169 = vmul.f32 %v11134, %v11141
    %v11170 = vmul.f32 %v11135, %v11141
    %v11171 = vmul.f32 %v11136, %v11141
    %v11172 = vmul.f32 %v11137, %v11141
    %v11173 = vmul.f32 %v11138, %v11141
    %v11174 = vmul.f32 %v11139, %v11141
    %v11176 = vperm.slane %v10427, 0
    %v11178 = vadd.f32 %v11143, %v11176
    %v11179 = vadd.f32 %v11144, %v11176
    %v11180 = vadd.f32 %v11145, %v11176
    %v11181 = vadd.f32 %v11146, %v11176
    %v11182 = vadd.f32 %v11147, %v11176
    %v11183 = vadd.f32 %v11148, %v11176
    %v11184 = vadd.f32 %v11149, %v11176
    %v11185 = vadd.f32 %v11150, %v11176
    %v11186 = vadd.f32 %v11151, %v11176
    %v11187 = vadd.f32 %v11152, %v11176
    %v11188 = vadd.f32 %v11153, %v11176
    %v11189 = vadd.f32 %v11154, %v11176
    %v11190 = vadd.f32 %v11155, %v11176
    %v11191 = vadd.f32 %v11156, %v11176
    %v11192 = vadd.f32 %v11157, %v11176
    %v11193 = vadd.f32 %v11158, %v11176
    %v11194 = vadd.f32 %v11159, %v11176
    %v11195 = vadd.f32 %v11160, %v11176
    %v11196 = vadd.f32 %v11161, %v11176
    %v11197 = vadd.f32 %v11162, %v11176
    %v11198 = vadd.f32 %v11163, %v11176
    %v11199 = vadd.f32 %v11164, %v11176
    %v11200 = vadd.f32 %v11165, %v11176
    %v11201 = vadd.f32 %v11166, %v11176
    %v11202 = vadd.f32 %v11167, %v11176
    %v11203 = vadd.f32 %v11168, %v11176
    %v11204 = vadd.f32 %v11169, %v11176
    %v11205 = vadd.f32 %v11170, %v11176
    %v11206 = vadd.f32 %v11171, %v11176
    %v11207 = vadd.f32 %v11172, %v11176
    %v11208 = vadd.f32 %v11173, %v11176
    %v11209 = vadd.f32 %v11174, %v11176
    %v11210 = vadd.f32 %v11178, %v10268
    %v11211 = vadd.f32 %v11179, %v10272
    %v11212 = vadd.f32 %v11180, %v10276
    %v11213 = vadd.f32 %v11181, %v10280
    %v11214 = vadd.f32 %v11182, %v10284
    %v11215 = vadd.f32 %v11183, %v10288
    %v11216 = vadd.f32 %v11184, %v10292
    %v11217 = vadd.f32 %v11185, %v10296
    %v11218 = vadd.f32 %v11186, %v10300
    %v11219 = vadd.f32 %v11187, %v10304
    %v11220 = vadd.f32 %v11188, %v10308
    %v11221 = vadd.f32 %v11189, %v10312
    %v11222 = vadd.f32 %v11190, %v10316
    %v11223 = vadd.f32 %v11191, %v10320
    %v11224 = vadd.f32 %v11192, %v10324
    %v11225 = vadd.f32 %v11193, %v10328
    %v11226 = vadd.f32 %v11194, %v10332
    %v11227 = vadd.f32 %v11195, %v10336
    %v11228 = vadd.f32 %v11196, %v10340
    %v11229 = vadd.f32 %v11197, %v10344
    %v11230 = vadd.f32 %v11198, %v10348
    %v11231 = vadd.f32 %v11199, %v10352
    %v11232 = vadd.f32 %v11200, %v10356
    %v11233 = vadd.f32 %v11201, %v10360
    %v11234 = vadd.f32 %v11202, %v10364
    %v11235 = vadd.f32 %v11203, %v10368
    %v11236 = vadd.f32 %v11204, %v10372
    %v11237 = vadd.f32 %v11205, %v10376
    %v11238 = vadd.f32 %v11206, %v10380
    %v11239 = vadd.f32 %v11207, %v10384
    %v11240 = vadd.f32 %v11208, %v10388
    %v11241 = vadd.f32 %v11209, %v10392
    %11242 = vst.msk [vmem:[#allocation7] sm:$0xff] %vm10428, %v11210
    %11243 = vst.msk [vmem:[#allocation7 + $0x8] sm:$0xff] %vm10428, %v11211
    %11244 = vst.msk [vmem:[#allocation7 + $0x10] sm:$0xff] %vm10428, %v11212
    %11245 = vst.msk [vmem:[#allocation7 + $0x18] sm:$0xff] %vm10428, %v11213
    %11246 = vst.msk [vmem:[#allocation7 + $0x20] sm:$0xff] %vm10428, %v11214
    %11247 = vst.msk [vmem:[#allocation7 + $0x28] sm:$0xff] %vm10428, %v11215
    %11248 = vst.msk [vmem:[#allocation7 + $0x30] sm:$0xff] %vm10428, %v11216
    %11249 = vst.msk [vmem:[#allocation7 + $0x38] sm:$0xff] %vm10428, %v11217
    %11250 = vst.msk [vmem:[#allocation7 + $0x40] sm:$0xff] %vm10428, %v11218
    %11251 = vst.msk [vmem:[#allocation7 + $0x48] sm:$0xff] %vm10428, %v11219
    %11252 = vst.msk [vmem:[#allocation7 + $0x50] sm:$0xff] %vm10428, %v11220
    %11253 = vst.msk [vmem:[#allocation7 + $0x58] sm:$0xff] %vm10428, %v11221
    %11254 = vst.msk [vmem:[#allocation7 + $0x60] sm:$0xff] %vm10428, %v11222
    %11255 = vst.msk [vmem:[#allocation7 + $0x68] sm:$0xff] %vm10428, %v11223
    %11256 = vst.msk [vmem:[#allocation7 + $0x70] sm:$0xff] %vm10428, %v11224
    %11257 = vst.msk [vmem:[#allocation7 + $0x78] sm:$0xff] %vm10428, %v11225
    %11258 = vst.msk [vmem:[#allocation7 + $0x80] sm:$0xff] %vm10428, %v11226
    %11259 = vst.msk [vmem:[#allocation7 + $0x88] sm:$0xff] %vm10428, %v11227
    %11260 = vst.msk [vmem:[#allocation7 + $0x90] sm:$0xff] %vm10428, %v11228
    %11261 = vst.msk [vmem:[#allocation7 + $0x98] sm:$0xff] %vm10428, %v11229
    %11262 = vst.msk [vmem:[#allocation7 + $0xa0] sm:$0xff] %vm10428, %v11230
    %11263 = vst.msk [vmem:[#allocation7 + $0xa8] sm:$0xff] %vm10428, %v11231
    %11264 = vst.msk [vmem:[#allocation7 + $0xb0] sm:$0xff] %vm10428, %v11232
    %11265 = vst.msk [vmem:[#allocation7 + $0xb8] sm:$0xff] %vm10428, %v11233
    %11266 = vst.msk [vmem:[#allocation7 + $0xc0] sm:$0xff] %vm10428, %v11234
    %11267 = vst.msk [vmem:[#allocation7 + $0xc8] sm:$0xff] %vm10428, %v11235
    %11268 = vst.msk [vmem:[#allocation7 + $0xd0] sm:$0xff] %vm10428, %v11236
    %11269 = vst.msk [vmem:[#allocation7 + $0xd8] sm:$0xff] %vm10428, %v11237
    %11270 = vst.msk [vmem:[#allocation7 + $0xe0] sm:$0xff] %vm10428, %v11238
    %11271 = vst.msk [vmem:[#allocation7 + $0xe8] sm:$0xff] %vm10428, %v11239
    %11272 = vst.msk [vmem:[#allocation7 + $0xf0] sm:$0xff] %vm10428, %v11240
    %11273 = vst.msk [vmem:[#allocation7 + $0xf8] sm:$0xff] %vm10428, %v11241
    // Predicated region
    $region38: #{tpu_custom_call.1} parent=1 // pred_check
      _
    $region39: #{tpu_custom_call.1} parent=1 // pred_check_branch
      %11275 = sbr.rel (0) target = $region41
    $region40: #{tpu_custom_call.1} parent=1 // pred_region
      %11277 = vsyncadd [#allocation4], 0
      %s11278 = sshll.u32 [#allocation7], 4
      %s11279 = int_to_ptr.vmem [resolvable:$true] %s11278
      %s11280 = sshll.u32 %s7, 4
      %s11281 = int_to_ptr.hbm [resolvable:$true] %s11280
      %11286 = dma.vmem_to_hbm [thread:$0]  %s11279, 4096, %s11281, [#allocation4], 128, 128, 8
    $region41: #{tpu_custom_call.1} parent=1 // pred_fallthru
      _
    // Predicated region
    $region42: #{tpu_custom_call.1} parent=1 // pred_check
      _
    $region43: #{tpu_custom_call.1} parent=1 // pred_check_branch
      %11288 = sbr.rel (0) target = $region45
    $region44: #{tpu_custom_call.1} parent=1 // pred_region
      %11290 = dma.done [#allocation4], 4096
    $region45: #{tpu_custom_call.1} parent=1 // pred_fallthru
      _
    %11291 = vsyncpa [#allocation3], 1
    %11292 = vsyncpa [#allocation6], 1
    %11293 = vsyncpa [#allocation4], 1

</llo_original>
